<compile_context>
chip_gen: v7x
topology: tpu7x:2x2x1
jax: 0.10.0
libtpu: 0.0.40
codegen_flags: <defaults>
</compile_context>

<pallas_src>
import jax
import jax.numpy as jnp
from jax.experimental import pallas as pl
from jax.experimental.pallas import tpu as pltpu

EPS = 1e-5
LANES = 128


# --------------------------------------------------------------------------- #
# kernel helpers
# --------------------------------------------------------------------------- #
def _bn_two_pass(y, gamma, beta, rows):
    """Training-mode BatchNorm (biased variance), two-pass centered form, f32."""
    inv_n = 1.0 / rows
    mean = jnp.sum(y, axis=0, keepdims=True) * inv_n
    centered = y - mean
    var = jnp.sum(centered * centered, axis=0, keepdims=True) * inv_n
    scale = gamma * jax.lax.rsqrt(var + EPS)        # rsqrt -> EUP (free slot)
    return centered * scale + beta


def _im2col(xp_ref, col_ref, N, H, W, CP):
    """(N, H+2, W+2, CP) padded staging -> (N*H*W, 9*CP) im2col buffer.

    The 3 dw-shifted windows are materialized once each (only 2 sublane-shift
    relayouts per conv); the dh slice is tile-granular, and every col write is a
    lane-aligned full-128-lane store at offset t*CP.
    """
    rows = N * H * W
    for dw in range(3):
        shifted = xp_ref[:, :, dw:dw + W, :]             # (N, H+2, W, CP)
        for dh in range(3):
            t = dh * 3 + dw                              # matches weight packing
            col_ref[:, t * CP:(t + 1) * CP] = (
                shifted[:, dh:dh + H, :, :].reshape(rows, CP))


def basic_block_kernel(x_ref, w1_ref, g1_ref, b1_ref, w2_ref, g2_ref, b2_ref,
                       out_ref, xp_ref, col_ref, res_ref):
    N, H, W, C = x_ref.shape
    CP = g1_ref.shape[1]            # lane-padded channel count (multiple of 128)
    rows = N * H * W
    mm_dtype = xp_ref.dtype

    # ---- channel-padded residual (f32); also conv1's staging source ---------
    res_ref[...] = jnp.zeros_like(res_ref)
    res_ref[:, :C] = x_ref[...].reshape(rows, C)

    # ---- padded staging buffer: zero ONCE; halo stays zero for BOTH convs ---
    xp_ref[...] = jnp.zeros_like(xp_ref)
    xp_ref[:, 1:1 + H, 1:1 + W, :] = (
        res_ref[...].reshape(N, H, W, CP).astype(mm_dtype))

    # ---- conv1 (single K = 9*CP MXU contraction) + bn1 + relu ---------------
    _im2col(xp_ref, col_ref, N, H, W, CP)
    y1 = jnp.dot(col_ref[...], w1_ref[...], preferred_element_type=jnp.float32)
    y1 = jnp.maximum(_bn_two_pass(y1, g1_ref[...], b1_ref[...], rows), 0.0)

    # ---- conv2 input staging: rewrite only the interior (halo still zero) ---
    xp_ref[:, 1:1 + H, 1:1 + W, :] = y1.reshape(N, H, W, CP).astype(mm_dtype)

    # ---- conv2 + bn2 + residual add + relu, all in the padded lane domain ---
    _im2col(xp_ref, col_ref, N, H, W, CP)
    y2 = jnp.dot(col_ref[...], w2_ref[...], preferred_element_type=jnp.float32)
    y2 = _bn_two_pass(y2, g2_ref[...], b2_ref[...], rows)
    # Lane-dense, unmasked (rows, CP) store; the padded lanes are exactly zero
    # (zero weight columns, gamma=beta=0 in the padding -> bn -> 0, relu(0)=0).
    out_ref[...] = jnp.maximum(y2 + res_ref[...], 0.0)


# --------------------------------------------------------------------------- #
# wrappers
# --------------------------------------------------------------------------- #
def _full_spec(shape):
    return pl.BlockSpec(shape, lambda i: (0,) * len(shape))


def _pack_conv_weight(w_hwio, C, CP, mm_dtype):
    """(3,3,C,C) HWIO -> (9*CP, CP) im2col weight, zero-padded to CP lanes."""
    wp = jnp.zeros((3, 3, CP, CP), jnp.float32)
    wp = wp.at[:, :, :C, :C].set(w_hwio.astype(jnp.float32))
    return wp.reshape(9 * CP, CP).astype(mm_dtype)


def _pack_bn_vec(v, C, CP):
    # Zero padding keeps the padded output lanes exactly 0 through BN / ReLU.
    return jnp.zeros((1, CP), jnp.float32).at[0, :C].set(v.astype(jnp.float32))


def basic_block_nhwc(x_nhwc, w1_hwio, gamma1, beta1, w2_hwio, gamma2, beta2,
                     *, mm_dtype=jnp.bfloat16):
    """Fused BasicBlock forward, NHWC in / NHWC out (chain blocks in NHWC).

    mm_dtype is the MXU operand dtype (bf16 is native on v5e/v6e/v7x and is the
    default); BN statistics, the residual add and ReLU always stay f32.
    """
    N, H, W, C = x_nhwc.shape
    assert w1_hwio.shape == (3, 3, C, C) and w2_hwio.shape == (3, 3, C, C), \
        "stride=1 / downsample=None requires inplanes == planes"
    assert W % 8 == 0, "W must be a multiple of 8 (keeps in-kernel reshapes free)"
    CP = ((C + LANES - 1) // LANES) * LANES
    rows = N * H * W

    w1p = _pack_conv_weight(w1_hwio, C, CP, mm_dtype)
    w2p = _pack_conv_weight(w2_hwio, C, CP, mm_dtype)
    g1, b1 = _pack_bn_vec(gamma1, C, CP), _pack_bn_vec(beta1, C, CP)
    g2, b2 = _pack_bn_vec(gamma2, C, CP), _pack_bn_vec(beta2, C, CP)

    out_flat = pl.pallas_call(
        basic_block_kernel,
        out_shape=jax.ShapeDtypeStruct((rows, CP), jnp.float32),
        grid_spec=pltpu.PrefetchScalarGridSpec(
            num_scalar_prefetch=0,
            grid=(1,),
            in_specs=[
                _full_spec((N, H, W, C)),             # x (conv1 input + residual)
                _full_spec((9 * CP, CP)),             # w1, im2col layout
                _full_spec((1, CP)), _full_spec((1, CP)),   # gamma1, beta1
                _full_spec((9 * CP, CP)),             # w2, im2col layout
                _full_spec((1, CP)), _full_spec((1, CP)),   # gamma2, beta2
            ],
            out_specs=_full_spec((rows, CP)),         # lane-dense output slab
            scratch_shapes=[
                pltpu.VMEM((N, H + 2, W + 2, CP), mm_dtype),  # padded staging
                pltpu.VMEM((rows, 9 * CP), mm_dtype),         # im2col buffer
                pltpu.VMEM((rows, CP), jnp.float32),          # padded residual
            ],
        ),
        compiler_params=pltpu.CompilerParams(
            # TODO(synk): once row-tiled (real ResNet shapes), mark that axis
            # "parallel" so v7x's two TensorCores split the work, and give the
            # constant-index weight specs pipeline_mode=pl.Buffered(1).
            dimension_semantics=("arbitrary",),
            vmem_limit_bytes=32 * 1024 * 1024,
        ),
    )(x_nhwc.astype(jnp.float32), w1p, g1, b1, w2p, g2, b2)

    # Compact CP -> C and restore the spatial shape (cheap layout plumbing).
    return out_flat[:, :C].reshape(N, H, W, C)


def basic_block(x_nchw, w1_hwio, gamma1, beta1, w2_hwio, gamma2, beta2,
                *, mm_dtype=jnp.bfloat16):
    """PyTorch-layout (NCHW) convenience wrapper used for the parity test only.
    Chained blocks should call basic_block_nhwc directly and stay in NHWC."""
    x = jnp.transpose(x_nchw, (0, 2, 3, 1))
    out = basic_block_nhwc(x, w1_hwio, gamma1, beta1, w2_hwio, gamma2, beta2,
                           mm_dtype=mm_dtype)
    return jnp.transpose(out, (0, 3, 1, 2))


# --------------------------------------------------------------------------- #
# pure-JAX reference for verification
# --------------------------------------------------------------------------- #
def _ref_basic_block(x_nchw, w1, g1, b1, w2, g2, b2):
    x = jnp.transpose(x_nchw, (0, 2, 3, 1)).astype(jnp.float32)

    def conv(a, w):
        return jax.lax.conv_general_dilated(
            a, w, window_strides=(1, 1), padding=((1, 1), (1, 1)),
            dimension_numbers=("NHWC", "HWIO", "NHWC"))

    def bn(a, g, b):
        mean = a.mean((0, 1, 2))
        var = ((a - mean) ** 2).mean((0, 1, 2))
        return (a - mean) / jnp.sqrt(var + EPS) * g + b

    out = jax.nn.relu(bn(conv(x, w1), g1, b1))
    out = bn(conv(out, w2), g2, b2) + x
    out = jax.nn.relu(out)
    return jnp.transpose(out, (0, 3, 1, 2))


if __name__ == "__main__":
    key = jax.random.PRNGKey(0)
    k_x, k_w1, k_w2, k_g1, k_b1, k_g2, k_b2 = jax.random.split(key, 7)

    N, C, H, W = 2, 4, 16, 16          # inplanes == planes == 4, stride=1
    x = jax.random.normal(k_x, (N, C, H, W), dtype=jnp.float32)

    # conv weights built directly in HWIO (PyTorch stores OIHW; layout only).
    w1 = 0.1 * jax.random.normal(k_w1, (3, 3, C, C), dtype=jnp.float32)
    w2 = 0.1 * jax.random.normal(k_w2, (3, 3, C, C), dtype=jnp.float32)

    # non-trivial affine params to exercise the full BatchNorm semantics
    gamma1 = 1.0 + 0.1 * jax.random.normal(k_g1, (C,), jnp.float32)
    beta1 = 0.1 * jax.random.normal(k_b1, (C,), jnp.float32)
    gamma2 = 1.0 + 0.1 * jax.random.normal(k_g2, (C,), jnp.float32)
    beta2 = 0.1 * jax.random.normal(k_b2, (C,), jnp.float32)

    ref = _ref_basic_block(x, w1, gamma1, beta1, w2, gamma2, beta2)

    # Algorithm-correctness check: f32 MXU operands, tight tolerance.
    out_f32 = jax.block_until_ready(
        basic_block(x, w1, gamma1, beta1, w2, gamma2, beta2,
                    mm_dtype=jnp.float32))
    assert out_f32.shape == (N, C, H, W)
    assert jnp.allclose(out_f32, ref, atol=1e-4, rtol=1e-4), "f32 path mismatch"

    # Default path: bf16 MXU operands (native on v5e/v6e/v7x); BN stats,
    # residual add and ReLU stay f32, so only matmul-operand rounding differs.
    out_bf16 = jax.block_until_ready(
        basic_block(x, w1, gamma1, beta1, w2, gamma2, beta2))
    assert out_bf16.shape == (N, C, H, W)
    assert jnp.allclose(out_bf16, ref, atol=1e-1, rtol=1e-1), "bf16 path mismatch"

    print("KERNEL_OK")
</pallas_src>

<mosaic_0001>
module attributes {stable_mosaic.version = 11 : i64} {
  func.func @basic_block_kernel(%arg0: i32, %arg1: memref<2x16x16x4xf32, #tpu.memory_space<vmem>>, %arg2: memref<1152x128xf32, #tpu.memory_space<vmem>>, %arg3: memref<1x128xf32, #tpu.memory_space<vmem>>, %arg4: memref<1x128xf32, #tpu.memory_space<vmem>>, %arg5: memref<1152x128xf32, #tpu.memory_space<vmem>>, %arg6: memref<1x128xf32, #tpu.memory_space<vmem>>, %arg7: memref<1x128xf32, #tpu.memory_space<vmem>>, %arg8: memref<512x128xf32, #tpu.memory_space<vmem>>, %arg9: memref<2x18x18x128xf32, #tpu.memory_space<vmem>>, %arg10: memref<512x1152xf32, #tpu.memory_space<vmem>>, %arg11: memref<512x128xf32, #tpu.memory_space<vmem>>) attributes {dimension_semantics = [#tpu.dimension_semantics<arbitrary>], iteration_bounds = array<i64: 1>, scalar_prefetch = 0 : i64, scratch_operands = 3 : i64, tpu.core_type = #tpu.core_type<tc>, window_params = [{pipeline_mode = #tpu.pipeline_mode<synchronous>, transform_indices = @transform_0, window_bounds = array<i64: 2, 16, 16, 4>}, {pipeline_mode = #tpu.pipeline_mode<synchronous>, transform_indices = @transform_1, window_bounds = array<i64: 1152, 128>}, {pipeline_mode = #tpu.pipeline_mode<synchronous>, transform_indices = @transform_2, window_bounds = array<i64: 1, 128>}, {pipeline_mode = #tpu.pipeline_mode<synchronous>, transform_indices = @transform_3, window_bounds = array<i64: 1, 128>}, {pipeline_mode = #tpu.pipeline_mode<synchronous>, transform_indices = @transform_4, window_bounds = array<i64: 1152, 128>}, {pipeline_mode = #tpu.pipeline_mode<synchronous>, transform_indices = @transform_5, window_bounds = array<i64: 1, 128>}, {pipeline_mode = #tpu.pipeline_mode<synchronous>, transform_indices = @transform_6, window_bounds = array<i64: 1, 128>}, {pipeline_mode = #tpu.pipeline_mode<synchronous>, transform_indices = @transform_7, window_bounds = array<i64: 512, 128>}]} {
    %cst = arith.constant 0.000000e+00 : f32
    %0 = vector.broadcast %cst : f32 to vector<512x128xf32>
    %c0 = arith.constant 0 : index
    %c0_0 = arith.constant 0 : index
    %1 = vector.load %arg11[%c0, %c0_0] : memref<512x128xf32, #tpu.memory_space<vmem>>, vector<512x128xf32>
    tpu.vector_store %arg11[%c0, %c0_0], %0 {strides = array<i32>} : memref<512x128xf32, #tpu.memory_space<vmem>>, vector<512x128xf32>,
    %c0_1 = arith.constant 0 : index
    %c0_2 = arith.constant 0 : index
    %c0_3 = arith.constant 0 : index
    %c0_4 = arith.constant 0 : index
    %2 = vector.load %arg1[%c0_1, %c0_2, %c0_3, %c0_4] : memref<2x16x16x4xf32, #tpu.memory_space<vmem>>, vector<2x16x16x4xf32>
    %3 = vector.shape_cast %2 : vector<2x16x16x4xf32> to vector<512x4xf32>
    %c0_5 = arith.constant 0 : index
    %c0_6 = arith.constant 0 : index
    %4 = vector.load %arg11[%c0_5, %c0_6] : memref<512x128xf32, #tpu.memory_space<vmem>>, vector<512x4xf32>
    tpu.vector_store %arg11[%c0_5, %c0_6], %3 {strides = array<i32>} : memref<512x128xf32, #tpu.memory_space<vmem>>, vector<512x4xf32>,
    %cst_7 = arith.constant 0.000000e+00 : f32
    %5 = vector.broadcast %cst_7 : f32 to vector<2x18x18x128xf32>
    %c0_8 = arith.constant 0 : index
    %c0_9 = arith.constant 0 : index
    %c0_10 = arith.constant 0 : index
    %c0_11 = arith.constant 0 : index
    %6 = vector.load %arg9[%c0_8, %c0_9, %c0_10, %c0_11] : memref<2x18x18x128xf32, #tpu.memory_space<vmem>>, vector<2x18x18x128xf32>
    tpu.vector_store %arg9[%c0_8, %c0_9, %c0_10, %c0_11], %5 {strides = array<i32>} : memref<2x18x18x128xf32, #tpu.memory_space<vmem>>, vector<2x18x18x128xf32>,
    %c0_12 = arith.constant 0 : index
    %c0_13 = arith.constant 0 : index
    %7 = vector.load %arg11[%c0_12, %c0_13] : memref<512x128xf32, #tpu.memory_space<vmem>>, vector<512x128xf32>
    %8 = vector.shape_cast %7 : vector<512x128xf32> to vector<2x16x16x128xf32>
    %c0_14 = arith.constant 0 : index
    %c1 = arith.constant 1 : index
    %c1_15 = arith.constant 1 : index
    %c0_16 = arith.constant 0 : index
    %9 = vector.load %arg9[%c0_14, %c1, %c1_15, %c0_16] : memref<2x18x18x128xf32, #tpu.memory_space<vmem>>, vector<2x16x16x128xf32>
    tpu.vector_store %arg9[%c0_14, %c1, %c1_15, %c0_16], %8 {strides = array<i32>} : memref<2x18x18x128xf32, #tpu.memory_space<vmem>>, vector<2x16x16x128xf32>,
    %c0_17 = arith.constant 0 : index
    %c0_18 = arith.constant 0 : index
    %c0_19 = arith.constant 0 : index
    %c0_20 = arith.constant 0 : index
    %10 = vector.load %arg9[%c0_17, %c0_18, %c0_19, %c0_20] : memref<2x18x18x128xf32, #tpu.memory_space<vmem>>, vector<2x18x16x128xf32>
    %11 = vector.extract_strided_slice %10 {offsets = [0, 0, 0, 0], sizes = [2, 16, 16, 128], strides = [1, 1, 1, 1]} : vector<2x18x16x128xf32> to vector<2x16x16x128xf32>
    %12 = vector.shape_cast %11 : vector<2x16x16x128xf32> to vector<512x128xf32>
    %c0_21 = arith.constant 0 : index
    %c0_22 = arith.constant 0 : index
    %13 = vector.load %arg10[%c0_21, %c0_22] : memref<512x1152xf32, #tpu.memory_space<vmem>>, vector<512x128xf32>
    tpu.vector_store %arg10[%c0_21, %c0_22], %12 {strides = array<i32>} : memref<512x1152xf32, #tpu.memory_space<vmem>>, vector<512x128xf32>,
    %14 = vector.extract_strided_slice %10 {offsets = [0, 1, 0, 0], sizes = [2, 16, 16, 128], strides = [1, 1, 1, 1]} : vector<2x18x16x128xf32> to vector<2x16x16x128xf32>
    %15 = vector.shape_cast %14 : vector<2x16x16x128xf32> to vector<512x128xf32>
    %c0_23 = arith.constant 0 : index
    %c384 = arith.constant 384 : index
    %16 = vector.load %arg10[%c0_23, %c384] : memref<512x1152xf32, #tpu.memory_space<vmem>>, vector<512x128xf32>
    tpu.vector_store %arg10[%c0_23, %c384], %15 {strides = array<i32>} : memref<512x1152xf32, #tpu.memory_space<vmem>>, vector<512x128xf32>,
    %17 = vector.extract_strided_slice %10 {offsets = [0, 2, 0, 0], sizes = [2, 16, 16, 128], strides = [1, 1, 1, 1]} : vector<2x18x16x128xf32> to vector<2x16x16x128xf32>
    %18 = vector.shape_cast %17 : vector<2x16x16x128xf32> to vector<512x128xf32>
    %c0_24 = arith.constant 0 : index
    %c768 = arith.constant 768 : index
    %19 = vector.load %arg10[%c0_24, %c768] : memref<512x1152xf32, #tpu.memory_space<vmem>>, vector<512x128xf32>
    tpu.vector_store %arg10[%c0_24, %c768], %18 {strides = array<i32>} : memref<512x1152xf32, #tpu.memory_space<vmem>>, vector<512x128xf32>,
    %c0_25 = arith.constant 0 : index
    %c0_26 = arith.constant 0 : index
    %c1_27 = arith.constant 1 : index
    %c0_28 = arith.constant 0 : index
    %20 = vector.load %arg9[%c0_25, %c0_26, %c1_27, %c0_28] : memref<2x18x18x128xf32, #tpu.memory_space<vmem>>, vector<2x18x16x128xf32>
    %21 = vector.extract_strided_slice %20 {offsets = [0, 0, 0, 0], sizes = [2, 16, 16, 128], strides = [1, 1, 1, 1]} : vector<2x18x16x128xf32> to vector<2x16x16x128xf32>
    %22 = vector.shape_cast %21 : vector<2x16x16x128xf32> to vector<512x128xf32>
    %c0_29 = arith.constant 0 : index
    %c128 = arith.constant 128 : index
    %23 = vector.load %arg10[%c0_29, %c128] : memref<512x1152xf32, #tpu.memory_space<vmem>>, vector<512x128xf32>
    tpu.vector_store %arg10[%c0_29, %c128], %22 {strides = array<i32>} : memref<512x1152xf32, #tpu.memory_space<vmem>>, vector<512x128xf32>,
    %24 = vector.extract_strided_slice %20 {offsets = [0, 1, 0, 0], sizes = [2, 16, 16, 128], strides = [1, 1, 1, 1]} : vector<2x18x16x128xf32> to vector<2x16x16x128xf32>
    %25 = vector.shape_cast %24 : vector<2x16x16x128xf32> to vector<512x128xf32>
    %c0_30 = arith.constant 0 : index
    %c512 = arith.constant 512 : index
    %26 = vector.load %arg10[%c0_30, %c512] : memref<512x1152xf32, #tpu.memory_space<vmem>>, vector<512x128xf32>
    tpu.vector_store %arg10[%c0_30, %c512], %25 {strides = array<i32>} : memref<512x1152xf32, #tpu.memory_space<vmem>>, vector<512x128xf32>,
    %27 = vector.extract_strided_slice %20 {offsets = [0, 2, 0, 0], sizes = [2, 16, 16, 128], strides = [1, 1, 1, 1]} : vector<2x18x16x128xf32> to vector<2x16x16x128xf32>
    %28 = vector.shape_cast %27 : vector<2x16x16x128xf32> to vector<512x128xf32>
    %c0_31 = arith.constant 0 : index
    %c896 = arith.constant 896 : index
    %29 = vector.load %arg10[%c0_31, %c896] : memref<512x1152xf32, #tpu.memory_space<vmem>>, vector<512x128xf32>
    tpu.vector_store %arg10[%c0_31, %c896], %28 {strides = array<i32>} : memref<512x1152xf32, #tpu.memory_space<vmem>>, vector<512x128xf32>,
    %c0_32 = arith.constant 0 : index
    %c0_33 = arith.constant 0 : index
    %c2 = arith.constant 2 : index
    %c0_34 = arith.constant 0 : index
    %30 = vector.load %arg9[%c0_32, %c0_33, %c2, %c0_34] : memref<2x18x18x128xf32, #tpu.memory_space<vmem>>, vector<2x18x16x128xf32>
    %31 = vector.extract_strided_slice %30 {offsets = [0, 0, 0, 0], sizes = [2, 16, 16, 128], strides = [1, 1, 1, 1]} : vector<2x18x16x128xf32> to vector<2x16x16x128xf32>
    %32 = vector.shape_cast %31 : vector<2x16x16x128xf32> to vector<512x128xf32>
    %c0_35 = arith.constant 0 : index
    %c256 = arith.constant 256 : index
    %33 = vector.load %arg10[%c0_35, %c256] : memref<512x1152xf32, #tpu.memory_space<vmem>>, vector<512x128xf32>
    tpu.vector_store %arg10[%c0_35, %c256], %32 {strides = array<i32>} : memref<512x1152xf32, #tpu.memory_space<vmem>>, vector<512x128xf32>,
    %34 = vector.extract_strided_slice %30 {offsets = [0, 1, 0, 0], sizes = [2, 16, 16, 128], strides = [1, 1, 1, 1]} : vector<2x18x16x128xf32> to vector<2x16x16x128xf32>
    %35 = vector.shape_cast %34 : vector<2x16x16x128xf32> to vector<512x128xf32>
    %c0_36 = arith.constant 0 : index
    %c640 = arith.constant 640 : index
    %36 = vector.load %arg10[%c0_36, %c640] : memref<512x1152xf32, #tpu.memory_space<vmem>>, vector<512x128xf32>
    tpu.vector_store %arg10[%c0_36, %c640], %35 {strides = array<i32>} : memref<512x1152xf32, #tpu.memory_space<vmem>>, vector<512x128xf32>,
    %37 = vector.extract_strided_slice %30 {offsets = [0, 2, 0, 0], sizes = [2, 16, 16, 128], strides = [1, 1, 1, 1]} : vector<2x18x16x128xf32> to vector<2x16x16x128xf32>
    %38 = vector.shape_cast %37 : vector<2x16x16x128xf32> to vector<512x128xf32>
    %c0_37 = arith.constant 0 : index
    %c1024 = arith.constant 1024 : index
    %39 = vector.load %arg10[%c0_37, %c1024] : memref<512x1152xf32, #tpu.memory_space<vmem>>, vector<512x128xf32>
    tpu.vector_store %arg10[%c0_37, %c1024], %38 {strides = array<i32>} : memref<512x1152xf32, #tpu.memory_space<vmem>>, vector<512x128xf32>,
    %c0_38 = arith.constant 0 : index
    %c0_39 = arith.constant 0 : index
    %40 = vector.load %arg10[%c0_38, %c0_39] : memref<512x1152xf32, #tpu.memory_space<vmem>>, vector<512x1152xf32>
    %c0_40 = arith.constant 0 : index
    %c0_41 = arith.constant 0 : index
    %41 = vector.load %arg2[%c0_40, %c0_41] : memref<1152x128xf32, #tpu.memory_space<vmem>>, vector<1152x128xf32>
    %cst_42 = arith.constant dense<0.000000e+00> : vector<512x128xf32>
    %42 = tpu.matmul %40, %41, %cst_42 {dimension_numbers = #tpu.dot_dimension_numbers<[1], [0], [0], [1], [0, 0, 1, 1], [], []>} : vector<512x1152xf32>, vector<1152x128xf32>, vector<512x128xf32> -> vector<512x128xf32>
    %c0_43 = arith.constant 0 : index
    %c0_44 = arith.constant 0 : index
    %43 = vector.load %arg3[%c0_43, %c0_44] : memref<1x128xf32, #tpu.memory_space<vmem>>, vector<1x128xf32>
    %c0_45 = arith.constant 0 : index
    %c0_46 = arith.constant 0 : index
    %44 = vector.load %arg4[%c0_45, %c0_46] : memref<1x128xf32, #tpu.memory_space<vmem>>, vector<1x128xf32>
    %cst_47 = arith.constant dense<0.000000e+00> : vector<128xf32>
    %45 = vector.multi_reduction <add>, %42, %cst_47 [0] : vector<512x128xf32> to vector<128xf32>
    %46 = vector.shape_cast %45 : vector<128xf32> to vector<1x128xf32>
    %cst_48 = arith.constant 0.001953125 : f32
    %47 = vector.broadcast %cst_48 : f32 to vector<1x128xf32>
    %48 = arith.mulf %46, %47 : vector<1x128xf32>
    %49 = vector.broadcast %48 : vector<1x128xf32> to vector<512x128xf32>
    %50 = arith.subf %42, %49 : vector<512x128xf32>
    %51 = arith.mulf %50, %50 : vector<512x128xf32>
    %cst_49 = arith.constant dense<0.000000e+00> : vector<128xf32>
    %52 = vector.multi_reduction <add>, %51, %cst_49 [0] : vector<512x128xf32> to vector<128xf32>
    %53 = vector.shape_cast %52 : vector<128xf32> to vector<1x128xf32>
    %cst_50 = arith.constant 0.001953125 : f32
    %54 = vector.broadcast %cst_50 : f32 to vector<1x128xf32>
    %55 = arith.mulf %53, %54 : vector<1x128xf32>
    %cst_51 = arith.constant 9.99999974E-6 : f32
    %56 = vector.broadcast %cst_51 : f32 to vector<1x128xf32>
    %57 = arith.addf %55, %56 : vector<1x128xf32>
    %58 = math.rsqrt %57 : vector<1x128xf32>
    %59 = arith.mulf %43, %58 : vector<1x128xf32>
    %60 = vector.broadcast %59 : vector<1x128xf32> to vector<512x128xf32>
    %61 = arith.mulf %50, %60 : vector<512x128xf32>
    %62 = vector.broadcast %44 : vector<1x128xf32> to vector<512x128xf32>
    %63 = arith.addf %61, %62 : vector<512x128xf32>
    %cst_52 = arith.constant 0.000000e+00 : f32
    %64 = vector.broadcast %cst_52 : f32 to vector<512x128xf32>
    %65 = arith.maximumf %63, %64 : vector<512x128xf32>
    %66 = vector.shape_cast %65 : vector<512x128xf32> to vector<2x16x16x128xf32>
    %c0_53 = arith.constant 0 : index
    %c1_54 = arith.constant 1 : index
    %c1_55 = arith.constant 1 : index
    %c0_56 = arith.constant 0 : index
    %67 = vector.load %arg9[%c0_53, %c1_54, %c1_55, %c0_56] : memref<2x18x18x128xf32, #tpu.memory_space<vmem>>, vector<2x16x16x128xf32>
    tpu.vector_store %arg9[%c0_53, %c1_54, %c1_55, %c0_56], %66 {strides = array<i32>} : memref<2x18x18x128xf32, #tpu.memory_space<vmem>>, vector<2x16x16x128xf32>,
    %c0_57 = arith.constant 0 : index
    %c0_58 = arith.constant 0 : index
    %c0_59 = arith.constant 0 : index
    %c0_60 = arith.constant 0 : index
    %68 = vector.load %arg9[%c0_57, %c0_58, %c0_59, %c0_60] : memref<2x18x18x128xf32, #tpu.memory_space<vmem>>, vector<2x18x16x128xf32>
    %69 = vector.extract_strided_slice %68 {offsets = [0, 0, 0, 0], sizes = [2, 16, 16, 128], strides = [1, 1, 1, 1]} : vector<2x18x16x128xf32> to vector<2x16x16x128xf32>
    %70 = vector.shape_cast %69 : vector<2x16x16x128xf32> to vector<512x128xf32>
    %c0_61 = arith.constant 0 : index
    %c0_62 = arith.constant 0 : index
    %71 = vector.load %arg10[%c0_61, %c0_62] : memref<512x1152xf32, #tpu.memory_space<vmem>>, vector<512x128xf32>
    tpu.vector_store %arg10[%c0_61, %c0_62], %70 {strides = array<i32>} : memref<512x1152xf32, #tpu.memory_space<vmem>>, vector<512x128xf32>,
    %72 = vector.extract_strided_slice %68 {offsets = [0, 1, 0, 0], sizes = [2, 16, 16, 128], strides = [1, 1, 1, 1]} : vector<2x18x16x128xf32> to vector<2x16x16x128xf32>
    %73 = vector.shape_cast %72 : vector<2x16x16x128xf32> to vector<512x128xf32>
    %c0_63 = arith.constant 0 : index
    %c384_64 = arith.constant 384 : index
    %74 = vector.load %arg10[%c0_63, %c384_64] : memref<512x1152xf32, #tpu.memory_space<vmem>>, vector<512x128xf32>
    tpu.vector_store %arg10[%c0_63, %c384_64], %73 {strides = array<i32>} : memref<512x1152xf32, #tpu.memory_space<vmem>>, vector<512x128xf32>,
    %75 = vector.extract_strided_slice %68 {offsets = [0, 2, 0, 0], sizes = [2, 16, 16, 128], strides = [1, 1, 1, 1]} : vector<2x18x16x128xf32> to vector<2x16x16x128xf32>
    %76 = vector.shape_cast %75 : vector<2x16x16x128xf32> to vector<512x128xf32>
    %c0_65 = arith.constant 0 : index
    %c768_66 = arith.constant 768 : index
    %77 = vector.load %arg10[%c0_65, %c768_66] : memref<512x1152xf32, #tpu.memory_space<vmem>>, vector<512x128xf32>
    tpu.vector_store %arg10[%c0_65, %c768_66], %76 {strides = array<i32>} : memref<512x1152xf32, #tpu.memory_space<vmem>>, vector<512x128xf32>,
    %c0_67 = arith.constant 0 : index
    %c0_68 = arith.constant 0 : index
    %c1_69 = arith.constant 1 : index
    %c0_70 = arith.constant 0 : index
    %78 = vector.load %arg9[%c0_67, %c0_68, %c1_69, %c0_70] : memref<2x18x18x128xf32, #tpu.memory_space<vmem>>, vector<2x18x16x128xf32>
    %79 = vector.extract_strided_slice %78 {offsets = [0, 0, 0, 0], sizes = [2, 16, 16, 128], strides = [1, 1, 1, 1]} : vector<2x18x16x128xf32> to vector<2x16x16x128xf32>
    %80 = vector.shape_cast %79 : vector<2x16x16x128xf32> to vector<512x128xf32>
    %c0_71 = arith.constant 0 : index
    %c128_72 = arith.constant 128 : index
    %81 = vector.load %arg10[%c0_71, %c128_72] : memref<512x1152xf32, #tpu.memory_space<vmem>>, vector<512x128xf32>
    tpu.vector_store %arg10[%c0_71, %c128_72], %80 {strides = array<i32>} : memref<512x1152xf32, #tpu.memory_space<vmem>>, vector<512x128xf32>,
    %82 = vector.extract_strided_slice %78 {offsets = [0, 1, 0, 0], sizes = [2, 16, 16, 128], strides = [1, 1, 1, 1]} : vector<2x18x16x128xf32> to vector<2x16x16x128xf32>
    %83 = vector.shape_cast %82 : vector<2x16x16x128xf32> to vector<512x128xf32>
    %c0_73 = arith.constant 0 : index
    %c512_74 = arith.constant 512 : index
    %84 = vector.load %arg10[%c0_73, %c512_74] : memref<512x1152xf32, #tpu.memory_space<vmem>>, vector<512x128xf32>
    tpu.vector_store %arg10[%c0_73, %c512_74], %83 {strides = array<i32>} : memref<512x1152xf32, #tpu.memory_space<vmem>>, vector<512x128xf32>,
    %85 = vector.extract_strided_slice %78 {offsets = [0, 2, 0, 0], sizes = [2, 16, 16, 128], strides = [1, 1, 1, 1]} : vector<2x18x16x128xf32> to vector<2x16x16x128xf32>
    %86 = vector.shape_cast %85 : vector<2x16x16x128xf32> to vector<512x128xf32>
    %c0_75 = arith.constant 0 : index
    %c896_76 = arith.constant 896 : index
    %87 = vector.load %arg10[%c0_75, %c896_76] : memref<512x1152xf32, #tpu.memory_space<vmem>>, vector<512x128xf32>
    tpu.vector_store %arg10[%c0_75, %c896_76], %86 {strides = array<i32>} : memref<512x1152xf32, #tpu.memory_space<vmem>>, vector<512x128xf32>,
    %c0_77 = arith.constant 0 : index
    %c0_78 = arith.constant 0 : index
    %c2_79 = arith.constant 2 : index
    %c0_80 = arith.constant 0 : index
    %88 = vector.load %arg9[%c0_77, %c0_78, %c2_79, %c0_80] : memref<2x18x18x128xf32, #tpu.memory_space<vmem>>, vector<2x18x16x128xf32>
    %89 = vector.extract_strided_slice %88 {offsets = [0, 0, 0, 0], sizes = [2, 16, 16, 128], strides = [1, 1, 1, 1]} : vector<2x18x16x128xf32> to vector<2x16x16x128xf32>
    %90 = vector.shape_cast %89 : vector<2x16x16x128xf32> to vector<512x128xf32>
    %c0_81 = arith.constant 0 : index
    %c256_82 = arith.constant 256 : index
    %91 = vector.load %arg10[%c0_81, %c256_82] : memref<512x1152xf32, #tpu.memory_space<vmem>>, vector<512x128xf32>
    tpu.vector_store %arg10[%c0_81, %c256_82], %90 {strides = array<i32>} : memref<512x1152xf32, #tpu.memory_space<vmem>>, vector<512x128xf32>,
    %92 = vector.extract_strided_slice %88 {offsets = [0, 1, 0, 0], sizes = [2, 16, 16, 128], strides = [1, 1, 1, 1]} : vector<2x18x16x128xf32> to vector<2x16x16x128xf32>
    %93 = vector.shape_cast %92 : vector<2x16x16x128xf32> to vector<512x128xf32>
    %c0_83 = arith.constant 0 : index
    %c640_84 = arith.constant 640 : index
    %94 = vector.load %arg10[%c0_83, %c640_84] : memref<512x1152xf32, #tpu.memory_space<vmem>>, vector<512x128xf32>
    tpu.vector_store %arg10[%c0_83, %c640_84], %93 {strides = array<i32>} : memref<512x1152xf32, #tpu.memory_space<vmem>>, vector<512x128xf32>,
    %95 = vector.extract_strided_slice %88 {offsets = [0, 2, 0, 0], sizes = [2, 16, 16, 128], strides = [1, 1, 1, 1]} : vector<2x18x16x128xf32> to vector<2x16x16x128xf32>
    %96 = vector.shape_cast %95 : vector<2x16x16x128xf32> to vector<512x128xf32>
    %c0_85 = arith.constant 0 : index
    %c1024_86 = arith.constant 1024 : index
    %97 = vector.load %arg10[%c0_85, %c1024_86] : memref<512x1152xf32, #tpu.memory_space<vmem>>, vector<512x128xf32>
    tpu.vector_store %arg10[%c0_85, %c1024_86], %96 {strides = array<i32>} : memref<512x1152xf32, #tpu.memory_space<vmem>>, vector<512x128xf32>,
    %c0_87 = arith.constant 0 : index
    %c0_88 = arith.constant 0 : index
    %98 = vector.load %arg10[%c0_87, %c0_88] : memref<512x1152xf32, #tpu.memory_space<vmem>>, vector<512x1152xf32>
    %c0_89 = arith.constant 0 : index
    %c0_90 = arith.constant 0 : index
    %99 = vector.load %arg5[%c0_89, %c0_90] : memref<1152x128xf32, #tpu.memory_space<vmem>>, vector<1152x128xf32>
    %cst_91 = arith.constant dense<0.000000e+00> : vector<512x128xf32>
    %100 = tpu.matmul %98, %99, %cst_91 {dimension_numbers = #tpu.dot_dimension_numbers<[1], [0], [0], [1], [0, 0, 1, 1], [], []>} : vector<512x1152xf32>, vector<1152x128xf32>, vector<512x128xf32> -> vector<512x128xf32>
    %c0_92 = arith.constant 0 : index
    %c0_93 = arith.constant 0 : index
    %101 = vector.load %arg6[%c0_92, %c0_93] : memref<1x128xf32, #tpu.memory_space<vmem>>, vector<1x128xf32>
    %c0_94 = arith.constant 0 : index
    %c0_95 = arith.constant 0 : index
    %102 = vector.load %arg7[%c0_94, %c0_95] : memref<1x128xf32, #tpu.memory_space<vmem>>, vector<1x128xf32>
    %cst_96 = arith.constant dense<0.000000e+00> : vector<128xf32>
    %103 = vector.multi_reduction <add>, %100, %cst_96 [0] : vector<512x128xf32> to vector<128xf32>
    %104 = vector.shape_cast %103 : vector<128xf32> to vector<1x128xf32>
    %cst_97 = arith.constant 0.001953125 : f32
    %105 = vector.broadcast %cst_97 : f32 to vector<1x128xf32>
    %106 = arith.mulf %104, %105 : vector<1x128xf32>
    %107 = vector.broadcast %106 : vector<1x128xf32> to vector<512x128xf32>
    %108 = arith.subf %100, %107 : vector<512x128xf32>
    %109 = arith.mulf %108, %108 : vector<512x128xf32>
    %cst_98 = arith.constant dense<0.000000e+00> : vector<128xf32>
    %110 = vector.multi_reduction <add>, %109, %cst_98 [0] : vector<512x128xf32> to vector<128xf32>
    %111 = vector.shape_cast %110 : vector<128xf32> to vector<1x128xf32>
    %cst_99 = arith.constant 0.001953125 : f32
    %112 = vector.broadcast %cst_99 : f32 to vector<1x128xf32>
    %113 = arith.mulf %111, %112 : vector<1x128xf32>
    %cst_100 = arith.constant 9.99999974E-6 : f32
    %114 = vector.broadcast %cst_100 : f32 to vector<1x128xf32>
    %115 = arith.addf %113, %114 : vector<1x128xf32>
    %116 = math.rsqrt %115 : vector<1x128xf32>
    %117 = arith.mulf %101, %116 : vector<1x128xf32>
    %118 = vector.broadcast %117 : vector<1x128xf32> to vector<512x128xf32>
    %119 = arith.mulf %108, %118 : vector<512x128xf32>
    %120 = vector.broadcast %102 : vector<1x128xf32> to vector<512x128xf32>
    %121 = arith.addf %119, %120 : vector<512x128xf32>
    %c0_101 = arith.constant 0 : index
    %c0_102 = arith.constant 0 : index
    %122 = vector.load %arg11[%c0_101, %c0_102] : memref<512x128xf32, #tpu.memory_space<vmem>>, vector<512x128xf32>
    %123 = arith.addf %121, %122 : vector<512x128xf32>
    %cst_103 = arith.constant 0.000000e+00 : f32
    %124 = vector.broadcast %cst_103 : f32 to vector<512x128xf32>
    %125 = arith.maximumf %123, %124 : vector<512x128xf32>
    %c0_104 = arith.constant 0 : index
    %c0_105 = arith.constant 0 : index
    %126 = vector.load %arg8[%c0_104, %c0_105] : memref<512x128xf32, #tpu.memory_space<vmem>>, vector<512x128xf32>
    tpu.vector_store %arg8[%c0_104, %c0_105], %125 {strides = array<i32>} : memref<512x128xf32, #tpu.memory_space<vmem>>, vector<512x128xf32>,
    return
  }
  func.func @transform_0(%arg0: i32) -> (i32, i32, i32, i32) {
    %c0_i32 = arith.constant 0 : i32
    %c0_i32_0 = arith.constant 0 : i32
    %c0_i32_1 = arith.constant 0 : i32
    %c0_i32_2 = arith.constant 0 : i32
    %c0_i32_3 = arith.constant 0 : i32
    return %c0_i32, %c0_i32_0, %c0_i32_1, %c0_i32_2 : i32, i32, i32, i32
  }
  func.func @transform_1(%arg0: i32) -> (i32, i32) {
    %c0_i32 = arith.constant 0 : i32
    %c0_i32_0 = arith.constant 0 : i32
    %c0_i32_1 = arith.constant 0 : i32
    return %c0_i32, %c0_i32_0 : i32, i32
  }
  func.func @transform_2(%arg0: i32) -> (i32, i32) {
    %c0_i32 = arith.constant 0 : i32
    %c0_i32_0 = arith.constant 0 : i32
    %c0_i32_1 = arith.constant 0 : i32
    return %c0_i32, %c0_i32_0 : i32, i32
  }
  func.func @transform_3(%arg0: i32) -> (i32, i32) {
    %c0_i32 = arith.constant 0 : i32
    %c0_i32_0 = arith.constant 0 : i32
    %c0_i32_1 = arith.constant 0 : i32
    return %c0_i32, %c0_i32_0 : i32, i32
  }
  func.func @transform_4(%arg0: i32) -> (i32, i32) {
    %c0_i32 = arith.constant 0 : i32
    %c0_i32_0 = arith.constant 0 : i32
    %c0_i32_1 = arith.constant 0 : i32
    return %c0_i32, %c0_i32_0 : i32, i32
  }
  func.func @transform_5(%arg0: i32) -> (i32, i32) {
    %c0_i32 = arith.constant 0 : i32
    %c0_i32_0 = arith.constant 0 : i32
    %c0_i32_1 = arith.constant 0 : i32
    return %c0_i32, %c0_i32_0 : i32, i32
  }
  func.func @transform_6(%arg0: i32) -> (i32, i32) {
    %c0_i32 = arith.constant 0 : i32
    %c0_i32_0 = arith.constant 0 : i32
    %c0_i32_1 = arith.constant 0 : i32
    return %c0_i32, %c0_i32_0 : i32, i32
  }
  func.func @transform_7(%arg0: i32) -> (i32, i32) {
    %c0_i32 = arith.constant 0 : i32
    %c0_i32_0 = arith.constant 0 : i32
    %c0_i32_1 = arith.constant 0 : i32
    return %c0_i32, %c0_i32_0 : i32, i32
  }
}

</mosaic_0001>

<llo_original>
// kernel: tpu_custom_call.1
$region0: #{tpu_custom_call.1}
  #allocation0 [shape = 'u32[]', space=smem, size = 0x4, offset = 0x4, fixed_abs, tag = 'smem constant byte address 0x4 - core index']
  #allocation1 [shape = 'u32[144,128]{1,0:T(1,128)}', space=vmem, size = 0x12000, scoped, tag = 'internal scratch']
  #allocation2 [shape = 'f32[2,18,18,128]{3,2,1,0:T(8,128)}', space=vmem, size = 0x6c000, scoped, tag = 'scratch operand']
  #allocation3 [shape = 'f32[512,1152]{1,0:T(8,128)}', space=vmem, size = 0x240000, scoped, tag = 'scratch operand']
  #allocation4 [shape = 'f32[512,128]{1,0:T(8,128)}', space=vmem, size = 0x40000, scoped, tag = 'scratch operand']
  %s0 = inlined_call_operand.vmem [shape: f32[2,16,16,4], index: 0, kind: input, shape index: {}]
  %s1 = inlined_call_operand.hbm [shape: f32[1152,128], index: 1, kind: input, shape index: {}]
  %s2 = inlined_call_operand.vmem [shape: f32[1,128], index: 2, kind: input, shape index: {}]
  %s3 = inlined_call_operand.vmem [shape: f32[1,128], index: 3, kind: input, shape index: {}]
  %s4 = inlined_call_operand.hbm [shape: f32[1152,128], index: 4, kind: input, shape index: {}]
  %s5 = inlined_call_operand.vmem [shape: f32[1,128], index: 5, kind: input, shape index: {}]
  %s6 = inlined_call_operand.vmem [shape: f32[1,128], index: 6, kind: input, shape index: {}]
  %s7 = inlined_call_operand.hbm [shape: f32[512,128], index: 7, kind: output, shape index: {}]
  %s8 = sld [smem:[#allocation0]]
  $region46: #{tpu_custom_call.1} parent=0
    _
  %s10 = ssub.s32 1, %s8
  %s11 = scalar_select 0, %s10, %s8
  $region1: #{tpu_custom_call.1} parent=0
    #allocation5 [shape = 'u8[589824]{0}', space=vmem, size = 0x90000, scoped, tag = 'input window, operand 1, single buffered']
    #allocation6 [shape = 's32[1]{0}', space=sflag, size = 0x4, scoped, tag = 'scoped memory for tpu_custom_call.1']
    #allocation7 [shape = 's32[1]{0}', space=sflag, size = 0x4, scoped, tag = 'scoped memory for tpu_custom_call.1']
    #allocation8 [shape = 'u8[589824]{0}', space=vmem, size = 0x90000, scoped, tag = 'input window, operand 4, single buffered']
    #allocation9 [shape = 's32[1]{0}', space=sflag, size = 0x4, scoped, tag = 'scoped memory for tpu_custom_call.1']
    #allocation10 [shape = 'u8[262144]{0}', space=vmem, size = 0x40000, scoped, tag = 'output window, operand 0, single buffered']
    %12 = vsyncpa [#allocation6], 0
    %13 = vsyncpa [#allocation9], 0
    %14 = vsyncpa [#allocation7], 0
    // Predicated region
    $region2: #{tpu_custom_call.1} parent=1 // pred_check
      _
    $region3: #{tpu_custom_call.1} parent=1 // pred_check_branch
      %16 = sbr.rel (0) target = $region5
    $region4: #{tpu_custom_call.1} parent=1 // pred_region
      _
    $region5: #{tpu_custom_call.1} parent=1 // pred_fallthru
      _
    // Predicated region
    $region6: #{tpu_custom_call.1} parent=1 // pred_check
      _
    $region7: #{tpu_custom_call.1} parent=1 // pred_check_branch
      %18 = sbr.rel (0) target = $region9
    $region8: #{tpu_custom_call.1} parent=1 // pred_region
      %s20 = ssub.s32 18432, 18432
      %21 = vsyncadd [#allocation6], %s20
      %s22 = sshll.u32 [#allocation5], 4
      %s23 = int_to_ptr.vmem [resolvable:$true] %s22
      %28 = dma.hbm_to_vmem [thread:$0]  %s1, 18432, %s23, [#allocation6], 128, 128, 8
    $region9: #{tpu_custom_call.1} parent=1 // pred_fallthru
      _
    // Predicated region
    $region10: #{tpu_custom_call.1} parent=1 // pred_check
      _
    $region11: #{tpu_custom_call.1} parent=1 // pred_check_branch
      %30 = sbr.rel (0) target = $region13
    $region12: #{tpu_custom_call.1} parent=1 // pred_region
      _
    $region13: #{tpu_custom_call.1} parent=1 // pred_fallthru
      _
    // Predicated region
    $region14: #{tpu_custom_call.1} parent=1 // pred_check
      _
    $region15: #{tpu_custom_call.1} parent=1 // pred_check_branch
      %32 = sbr.rel (0) target = $region17
    $region16: #{tpu_custom_call.1} parent=1 // pred_region
      _
    $region17: #{tpu_custom_call.1} parent=1 // pred_fallthru
      _
    // Predicated region
    $region18: #{tpu_custom_call.1} parent=1 // pred_check
      _
    $region19: #{tpu_custom_call.1} parent=1 // pred_check_branch
      %34 = sbr.rel (0) target = $region21
    $region20: #{tpu_custom_call.1} parent=1 // pred_region
      %s36 = ssub.s32 18432, 18432
      %37 = vsyncadd [#allocation9], %s36
      %s38 = sshll.u32 [#allocation8], 4
      %s39 = int_to_ptr.vmem [resolvable:$true] %s38
      %44 = dma.hbm_to_vmem [thread:$0]  %s4, 18432, %s39, [#allocation9], 128, 128, 8
    $region21: #{tpu_custom_call.1} parent=1 // pred_fallthru
      _
    // Predicated region
    $region22: #{tpu_custom_call.1} parent=1 // pred_check
      _
    $region23: #{tpu_custom_call.1} parent=1 // pred_check_branch
      %46 = sbr.rel (0) target = $region25
    $region24: #{tpu_custom_call.1} parent=1 // pred_region
      _
    $region25: #{tpu_custom_call.1} parent=1 // pred_fallthru
      _
    // Predicated region
    $region26: #{tpu_custom_call.1} parent=1 // pred_check
      _
    $region27: #{tpu_custom_call.1} parent=1 // pred_check_branch
      %48 = sbr.rel (0) target = $region29
    $region28: #{tpu_custom_call.1} parent=1 // pred_region
      _
    $region29: #{tpu_custom_call.1} parent=1 // pred_fallthru
      _
    // Predicated region
    $region30: #{tpu_custom_call.1} parent=1 // pred_check
      _
    $region31: #{tpu_custom_call.1} parent=1 // pred_check_branch
      %50 = sbr.rel (0) target = $region33
    $region32: #{tpu_custom_call.1} parent=1 // pred_region
      %51 = dma.done [#allocation6], 18432
    $region33: #{tpu_custom_call.1} parent=1 // pred_fallthru
      _
    // Predicated region
    $region34: #{tpu_custom_call.1} parent=1 // pred_check
      _
    $region35: #{tpu_custom_call.1} parent=1 // pred_check_branch
      %53 = sbr.rel (0) target = $region37
    $region36: #{tpu_custom_call.1} parent=1 // pred_region
      %54 = dma.done [#allocation9], 18432
    $region37: #{tpu_custom_call.1} parent=1 // pred_fallthru
      _
    %55 = vst [vmem:[#allocation4] sm:$0xff] 0.0
    %56 = vst [vmem:[#allocation4 + $0x8] sm:$0xff] 0.0
    %57 = vst [vmem:[#allocation4 + $0x10] sm:$0xff] 0.0
    %58 = vst [vmem:[#allocation4 + $0x18] sm:$0xff] 0.0
    %59 = vst [vmem:[#allocation4 + $0x20] sm:$0xff] 0.0
    %60 = vst [vmem:[#allocation4 + $0x28] sm:$0xff] 0.0
    %61 = vst [vmem:[#allocation4 + $0x30] sm:$0xff] 0.0
    %62 = vst [vmem:[#allocation4 + $0x38] sm:$0xff] 0.0
    %63 = vst [vmem:[#allocation4 + $0x40] sm:$0xff] 0.0
    %64 = vst [vmem:[#allocation4 + $0x48] sm:$0xff] 0.0
    %65 = vst [vmem:[#allocation4 + $0x50] sm:$0xff] 0.0
    %66 = vst [vmem:[#allocation4 + $0x58] sm:$0xff] 0.0
    %67 = vst [vmem:[#allocation4 + $0x60] sm:$0xff] 0.0
    %68 = vst [vmem:[#allocation4 + $0x68] sm:$0xff] 0.0
    %69 = vst [vmem:[#allocation4 + $0x70] sm:$0xff] 0.0
    %70 = vst [vmem:[#allocation4 + $0x78] sm:$0xff] 0.0
    %71 = vst [vmem:[#allocation4 + $0x80] sm:$0xff] 0.0
    %72 = vst [vmem:[#allocation4 + $0x88] sm:$0xff] 0.0
    %73 = vst [vmem:[#allocation4 + $0x90] sm:$0xff] 0.0
    %74 = vst [vmem:[#allocation4 + $0x98] sm:$0xff] 0.0
    %75 = vst [vmem:[#allocation4 + $0xa0] sm:$0xff] 0.0
    %76 = vst [vmem:[#allocation4 + $0xa8] sm:$0xff] 0.0
    %77 = vst [vmem:[#allocation4 + $0xb0] sm:$0xff] 0.0
    %78 = vst [vmem:[#allocation4 + $0xb8] sm:$0xff] 0.0
    %79 = vst [vmem:[#allocation4 + $0xc0] sm:$0xff] 0.0
    %80 = vst [vmem:[#allocation4 + $0xc8] sm:$0xff] 0.0
    %81 = vst [vmem:[#allocation4 + $0xd0] sm:$0xff] 0.0
    %82 = vst [vmem:[#allocation4 + $0xd8] sm:$0xff] 0.0
    %83 = vst [vmem:[#allocation4 + $0xe0] sm:$0xff] 0.0
    %84 = vst [vmem:[#allocation4 + $0xe8] sm:$0xff] 0.0
    %85 = vst [vmem:[#allocation4 + $0xf0] sm:$0xff] 0.0
    %86 = vst [vmem:[#allocation4 + $0xf8] sm:$0xff] 0.0
    %87 = vst [vmem:[#allocation4 + $0x100] sm:$0xff] 0.0
    %88 = vst [vmem:[#allocation4 + $0x108] sm:$0xff] 0.0
    %89 = vst [vmem:[#allocation4 + $0x110] sm:$0xff] 0.0
    %90 = vst [vmem:[#allocation4 + $0x118] sm:$0xff] 0.0
    %91 = vst [vmem:[#allocation4 + $0x120] sm:$0xff] 0.0
    %92 = vst [vmem:[#allocation4 + $0x128] sm:$0xff] 0.0
    %93 = vst [vmem:[#allocation4 + $0x130] sm:$0xff] 0.0
    %94 = vst [vmem:[#allocation4 + $0x138] sm:$0xff] 0.0
    %95 = vst [vmem:[#allocation4 + $0x140] sm:$0xff] 0.0
    %96 = vst [vmem:[#allocation4 + $0x148] sm:$0xff] 0.0
    %97 = vst [vmem:[#allocation4 + $0x150] sm:$0xff] 0.0
    %98 = vst [vmem:[#allocation4 + $0x158] sm:$0xff] 0.0
    %99 = vst [vmem:[#allocation4 + $0x160] sm:$0xff] 0.0
    %100 = vst [vmem:[#allocation4 + $0x168] sm:$0xff] 0.0
    %101 = vst [vmem:[#allocation4 + $0x170] sm:$0xff] 0.0
    %102 = vst [vmem:[#allocation4 + $0x178] sm:$0xff] 0.0
    %103 = vst [vmem:[#allocation4 + $0x180] sm:$0xff] 0.0
    %104 = vst [vmem:[#allocation4 + $0x188] sm:$0xff] 0.0
    %105 = vst [vmem:[#allocation4 + $0x190] sm:$0xff] 0.0
    %106 = vst [vmem:[#allocation4 + $0x198] sm:$0xff] 0.0
    %107 = vst [vmem:[#allocation4 + $0x1a0] sm:$0xff] 0.0
    %108 = vst [vmem:[#allocation4 + $0x1a8] sm:$0xff] 0.0
    %109 = vst [vmem:[#allocation4 + $0x1b0] sm:$0xff] 0.0
    %110 = vst [vmem:[#allocation4 + $0x1b8] sm:$0xff] 0.0
    %111 = vst [vmem:[#allocation4 + $0x1c0] sm:$0xff] 0.0
    %112 = vst [vmem:[#allocation4 + $0x1c8] sm:$0xff] 0.0
    %113 = vst [vmem:[#allocation4 + $0x1d0] sm:$0xff] 0.0
    %114 = vst [vmem:[#allocation4 + $0x1d8] sm:$0xff] 0.0
    %115 = vst [vmem:[#allocation4 + $0x1e0] sm:$0xff] 0.0
    %116 = vst [vmem:[#allocation4 + $0x1e8] sm:$0xff] 0.0
    %117 = vst [vmem:[#allocation4 + $0x1f0] sm:$0xff] 0.0
    %118 = vst [vmem:[#allocation4 + $0x1f8] sm:$0xff] 0.0
    %v119 = vld [vmem:[%s0] sm:$0xff]
    %v120 = vld [vmem:[%s0 + $0x8] sm:$0xff]
    %v121 = vld [vmem:[%s0 + $0x10] sm:$0xff]
    %v122 = vld [vmem:[%s0 + $0x18] sm:$0xff]
    %v123 = vld [vmem:[%s0 + $0x20] sm:$0xff]
    %v124 = vld [vmem:[%s0 + $0x28] sm:$0xff]
    %v125 = vld [vmem:[%s0 + $0x30] sm:$0xff]
    %v126 = vld [vmem:[%s0 + $0x38] sm:$0xff]
    %v127 = vld [vmem:[%s0 + $0x40] sm:$0xff]
    %v128 = vld [vmem:[%s0 + $0x48] sm:$0xff]
    %v129 = vld [vmem:[%s0 + $0x50] sm:$0xff]
    %v130 = vld [vmem:[%s0 + $0x58] sm:$0xff]
    %v131 = vld [vmem:[%s0 + $0x60] sm:$0xff]
    %v132 = vld [vmem:[%s0 + $0x68] sm:$0xff]
    %v133 = vld [vmem:[%s0 + $0x70] sm:$0xff]
    %v134 = vld [vmem:[%s0 + $0x78] sm:$0xff]
    %v135 = vld [vmem:[%s0 + $0x80] sm:$0xff]
    %v136 = vld [vmem:[%s0 + $0x88] sm:$0xff]
    %v137 = vld [vmem:[%s0 + $0x90] sm:$0xff]
    %v138 = vld [vmem:[%s0 + $0x98] sm:$0xff]
    %v139 = vld [vmem:[%s0 + $0xa0] sm:$0xff]
    %v140 = vld [vmem:[%s0 + $0xa8] sm:$0xff]
    %v141 = vld [vmem:[%s0 + $0xb0] sm:$0xff]
    %v142 = vld [vmem:[%s0 + $0xb8] sm:$0xff]
    %v143 = vld [vmem:[%s0 + $0xc0] sm:$0xff]
    %v144 = vld [vmem:[%s0 + $0xc8] sm:$0xff]
    %v145 = vld [vmem:[%s0 + $0xd0] sm:$0xff]
    %v146 = vld [vmem:[%s0 + $0xd8] sm:$0xff]
    %v147 = vld [vmem:[%s0 + $0xe0] sm:$0xff]
    %v148 = vld [vmem:[%s0 + $0xe8] sm:$0xff]
    %v149 = vld [vmem:[%s0 + $0xf0] sm:$0xff]
    %v150 = vld [vmem:[%s0 + $0xf8] sm:$0xff]
    %v151 = vld [vmem:[%s0 + $0x100] sm:$0xff]
    %v152 = vld [vmem:[%s0 + $0x108] sm:$0xff]
    %v153 = vld [vmem:[%s0 + $0x110] sm:$0xff]
    %v154 = vld [vmem:[%s0 + $0x118] sm:$0xff]
    %v155 = vld [vmem:[%s0 + $0x120] sm:$0xff]
    %v156 = vld [vmem:[%s0 + $0x128] sm:$0xff]
    %v157 = vld [vmem:[%s0 + $0x130] sm:$0xff]
    %v158 = vld [vmem:[%s0 + $0x138] sm:$0xff]
    %v159 = vld [vmem:[%s0 + $0x140] sm:$0xff]
    %v160 = vld [vmem:[%s0 + $0x148] sm:$0xff]
    %v161 = vld [vmem:[%s0 + $0x150] sm:$0xff]
    %v162 = vld [vmem:[%s0 + $0x158] sm:$0xff]
    %v163 = vld [vmem:[%s0 + $0x160] sm:$0xff]
    %v164 = vld [vmem:[%s0 + $0x168] sm:$0xff]
    %v165 = vld [vmem:[%s0 + $0x170] sm:$0xff]
    %v166 = vld [vmem:[%s0 + $0x178] sm:$0xff]
    %v167 = vld [vmem:[%s0 + $0x180] sm:$0xff]
    %v168 = vld [vmem:[%s0 + $0x188] sm:$0xff]
    %v169 = vld [vmem:[%s0 + $0x190] sm:$0xff]
    %v170 = vld [vmem:[%s0 + $0x198] sm:$0xff]
    %v171 = vld [vmem:[%s0 + $0x1a0] sm:$0xff]
    %v172 = vld [vmem:[%s0 + $0x1a8] sm:$0xff]
    %v173 = vld [vmem:[%s0 + $0x1b0] sm:$0xff]
    %v174 = vld [vmem:[%s0 + $0x1b8] sm:$0xff]
    %v175 = vld [vmem:[%s0 + $0x1c0] sm:$0xff]
    %v176 = vld [vmem:[%s0 + $0x1c8] sm:$0xff]
    %v177 = vld [vmem:[%s0 + $0x1d0] sm:$0xff]
    %v178 = vld [vmem:[%s0 + $0x1d8] sm:$0xff]
    %v179 = vld [vmem:[%s0 + $0x1e0] sm:$0xff]
    %v180 = vld [vmem:[%s0 + $0x1e8] sm:$0xff]
    %v181 = vld [vmem:[%s0 + $0x1f0] sm:$0xff]
    %v182 = vld [vmem:[%s0 + $0x1f8] sm:$0xff]
    %vm183 = vcmask 31744
    %184 = vst.msk [vmem:[#allocation4] sm:$0xff] %vm183, %v119
    %185 = vst.msk [vmem:[#allocation4 + $0x8] sm:$0xff] %vm183, %v120
    %186 = vst.msk [vmem:[#allocation4 + $0x10] sm:$0xff] %vm183, %v121
    %187 = vst.msk [vmem:[#allocation4 + $0x18] sm:$0xff] %vm183, %v122
    %188 = vst.msk [vmem:[#allocation4 + $0x20] sm:$0xff] %vm183, %v123
    %189 = vst.msk [vmem:[#allocation4 + $0x28] sm:$0xff] %vm183, %v124
    %190 = vst.msk [vmem:[#allocation4 + $0x30] sm:$0xff] %vm183, %v125
    %191 = vst.msk [vmem:[#allocation4 + $0x38] sm:$0xff] %vm183, %v126
    %192 = vst.msk [vmem:[#allocation4 + $0x40] sm:$0xff] %vm183, %v127
    %193 = vst.msk [vmem:[#allocation4 + $0x48] sm:$0xff] %vm183, %v128
    %194 = vst.msk [vmem:[#allocation4 + $0x50] sm:$0xff] %vm183, %v129
    %195 = vst.msk [vmem:[#allocation4 + $0x58] sm:$0xff] %vm183, %v130
    %196 = vst.msk [vmem:[#allocation4 + $0x60] sm:$0xff] %vm183, %v131
    %197 = vst.msk [vmem:[#allocation4 + $0x68] sm:$0xff] %vm183, %v132
    %198 = vst.msk [vmem:[#allocation4 + $0x70] sm:$0xff] %vm183, %v133
    %199 = vst.msk [vmem:[#allocation4 + $0x78] sm:$0xff] %vm183, %v134
    %200 = vst.msk [vmem:[#allocation4 + $0x80] sm:$0xff] %vm183, %v135
    %201 = vst.msk [vmem:[#allocation4 + $0x88] sm:$0xff] %vm183, %v136
    %202 = vst.msk [vmem:[#allocation4 + $0x90] sm:$0xff] %vm183, %v137
    %203 = vst.msk [vmem:[#allocation4 + $0x98] sm:$0xff] %vm183, %v138
    %204 = vst.msk [vmem:[#allocation4 + $0xa0] sm:$0xff] %vm183, %v139
    %205 = vst.msk [vmem:[#allocation4 + $0xa8] sm:$0xff] %vm183, %v140
    %206 = vst.msk [vmem:[#allocation4 + $0xb0] sm:$0xff] %vm183, %v141
    %207 = vst.msk [vmem:[#allocation4 + $0xb8] sm:$0xff] %vm183, %v142
    %208 = vst.msk [vmem:[#allocation4 + $0xc0] sm:$0xff] %vm183, %v143
    %209 = vst.msk [vmem:[#allocation4 + $0xc8] sm:$0xff] %vm183, %v144
    %210 = vst.msk [vmem:[#allocation4 + $0xd0] sm:$0xff] %vm183, %v145
    %211 = vst.msk [vmem:[#allocation4 + $0xd8] sm:$0xff] %vm183, %v146
    %212 = vst.msk [vmem:[#allocation4 + $0xe0] sm:$0xff] %vm183, %v147
    %213 = vst.msk [vmem:[#allocation4 + $0xe8] sm:$0xff] %vm183, %v148
    %214 = vst.msk [vmem:[#allocation4 + $0xf0] sm:$0xff] %vm183, %v149
    %215 = vst.msk [vmem:[#allocation4 + $0xf8] sm:$0xff] %vm183, %v150
    %216 = vst.msk [vmem:[#allocation4 + $0x100] sm:$0xff] %vm183, %v151
    %217 = vst.msk [vmem:[#allocation4 + $0x108] sm:$0xff] %vm183, %v152
    %218 = vst.msk [vmem:[#allocation4 + $0x110] sm:$0xff] %vm183, %v153
    %219 = vst.msk [vmem:[#allocation4 + $0x118] sm:$0xff] %vm183, %v154
    %220 = vst.msk [vmem:[#allocation4 + $0x120] sm:$0xff] %vm183, %v155
    %221 = vst.msk [vmem:[#allocation4 + $0x128] sm:$0xff] %vm183, %v156
    %222 = vst.msk [vmem:[#allocation4 + $0x130] sm:$0xff] %vm183, %v157
    %223 = vst.msk [vmem:[#allocation4 + $0x138] sm:$0xff] %vm183, %v158
    %224 = vst.msk [vmem:[#allocation4 + $0x140] sm:$0xff] %vm183, %v159
    %225 = vst.msk [vmem:[#allocation4 + $0x148] sm:$0xff] %vm183, %v160
    %226 = vst.msk [vmem:[#allocation4 + $0x150] sm:$0xff] %vm183, %v161
    %227 = vst.msk [vmem:[#allocation4 + $0x158] sm:$0xff] %vm183, %v162
    %228 = vst.msk [vmem:[#allocation4 + $0x160] sm:$0xff] %vm183, %v163
    %229 = vst.msk [vmem:[#allocation4 + $0x168] sm:$0xff] %vm183, %v164
    %230 = vst.msk [vmem:[#allocation4 + $0x170] sm:$0xff] %vm183, %v165
    %231 = vst.msk [vmem:[#allocation4 + $0x178] sm:$0xff] %vm183, %v166
    %232 = vst.msk [vmem:[#allocation4 + $0x180] sm:$0xff] %vm183, %v167
    %233 = vst.msk [vmem:[#allocation4 + $0x188] sm:$0xff] %vm183, %v168
    %234 = vst.msk [vmem:[#allocation4 + $0x190] sm:$0xff] %vm183, %v169
    %235 = vst.msk [vmem:[#allocation4 + $0x198] sm:$0xff] %vm183, %v170
    %236 = vst.msk [vmem:[#allocation4 + $0x1a0] sm:$0xff] %vm183, %v171
    %237 = vst.msk [vmem:[#allocation4 + $0x1a8] sm:$0xff] %vm183, %v172
    %238 = vst.msk [vmem:[#allocation4 + $0x1b0] sm:$0xff] %vm183, %v173
    %239 = vst.msk [vmem:[#allocation4 + $0x1b8] sm:$0xff] %vm183, %v174
    %240 = vst.msk [vmem:[#allocation4 + $0x1c0] sm:$0xff] %vm183, %v175
    %241 = vst.msk [vmem:[#allocation4 + $0x1c8] sm:$0xff] %vm183, %v176
    %242 = vst.msk [vmem:[#allocation4 + $0x1d0] sm:$0xff] %vm183, %v177
    %243 = vst.msk [vmem:[#allocation4 + $0x1d8] sm:$0xff] %vm183, %v178
    %244 = vst.msk [vmem:[#allocation4 + $0x1e0] sm:$0xff] %vm183, %v179
    %245 = vst.msk [vmem:[#allocation4 + $0x1e8] sm:$0xff] %vm183, %v180
    %246 = vst.msk [vmem:[#allocation4 + $0x1f0] sm:$0xff] %vm183, %v181
    %247 = vst.msk [vmem:[#allocation4 + $0x1f8] sm:$0xff] %vm183, %v182
    %248 = vst [vmem:[#allocation2] sm:$0xff] 0.0
    %249 = vst [vmem:[#allocation2 + $0x8] sm:$0xff] 0.0
    %250 = vst [vmem:[#allocation2 + $0x10] sm:$0x3] 0.0
    %251 = vst [vmem:[#allocation2 + $0x18] sm:$0xff] 0.0
    %252 = vst [vmem:[#allocation2 + $0x20] sm:$0xff] 0.0
    %253 = vst [vmem:[#allocation2 + $0x28] sm:$0x3] 0.0
    %254 = vst [vmem:[#allocation2 + $0x30] sm:$0xff] 0.0
    %255 = vst [vmem:[#allocation2 + $0x38] sm:$0xff] 0.0
    %256 = vst [vmem:[#allocation2 + $0x40] sm:$0x3] 0.0
    %257 = vst [vmem:[#allocation2 + $0x48] sm:$0xff] 0.0
    %258 = vst [vmem:[#allocation2 + $0x50] sm:$0xff] 0.0
    %259 = vst [vmem:[#allocation2 + $0x58] sm:$0x3] 0.0
    %260 = vst [vmem:[#allocation2 + $0x60] sm:$0xff] 0.0
    %261 = vst [vmem:[#allocation2 + $0x68] sm:$0xff] 0.0
    %262 = vst [vmem:[#allocation2 + $0x70] sm:$0x3] 0.0
    %263 = vst [vmem:[#allocation2 + $0x78] sm:$0xff] 0.0
    %264 = vst [vmem:[#allocation2 + $0x80] sm:$0xff] 0.0
    %265 = vst [vmem:[#allocation2 + $0x88] sm:$0x3] 0.0
    %266 = vst [vmem:[#allocation2 + $0x90] sm:$0xff] 0.0
    %267 = vst [vmem:[#allocation2 + $0x98] sm:$0xff] 0.0
    %268 = vst [vmem:[#allocation2 + $0xa0] sm:$0x3] 0.0
    %269 = vst [vmem:[#allocation2 + $0xa8] sm:$0xff] 0.0
    %270 = vst [vmem:[#allocation2 + $0xb0] sm:$0xff] 0.0
    %271 = vst [vmem:[#allocation2 + $0xb8] sm:$0x3] 0.0
    %272 = vst [vmem:[#allocation2 + $0xc0] sm:$0xff] 0.0
    %273 = vst [vmem:[#allocation2 + $0xc8] sm:$0xff] 0.0
    %274 = vst [vmem:[#allocation2 + $0xd0] sm:$0x3] 0.0
    %275 = vst [vmem:[#allocation2 + $0xd8] sm:$0xff] 0.0
    %276 = vst [vmem:[#allocation2 + $0xe0] sm:$0xff] 0.0
    %277 = vst [vmem:[#allocation2 + $0xe8] sm:$0x3] 0.0
    %278 = vst [vmem:[#allocation2 + $0xf0] sm:$0xff] 0.0
    %279 = vst [vmem:[#allocation2 + $0xf8] sm:$0xff] 0.0
    %280 = vst [vmem:[#allocation2 + $0x100] sm:$0x3] 0.0
    %281 = vst [vmem:[#allocation2 + $0x108] sm:$0xff] 0.0
    %282 = vst [vmem:[#allocation2 + $0x110] sm:$0xff] 0.0
    %283 = vst [vmem:[#allocation2 + $0x118] sm:$0x3] 0.0
    %284 = vst [vmem:[#allocation2 + $0x120] sm:$0xff] 0.0
    %285 = vst [vmem:[#allocation2 + $0x128] sm:$0xff] 0.0
    %286 = vst [vmem:[#allocation2 + $0x130] sm:$0x3] 0.0
    %287 = vst [vmem:[#allocation2 + $0x138] sm:$0xff] 0.0
    %288 = vst [vmem:[#allocation2 + $0x140] sm:$0xff] 0.0
    %289 = vst [vmem:[#allocation2 + $0x148] sm:$0x3] 0.0
    %290 = vst [vmem:[#allocation2 + $0x150] sm:$0xff] 0.0
    %291 = vst [vmem:[#allocation2 + $0x158] sm:$0xff] 0.0
    %292 = vst [vmem:[#allocation2 + $0x160] sm:$0x3] 0.0
    %293 = vst [vmem:[#allocation2 + $0x168] sm:$0xff] 0.0
    %294 = vst [vmem:[#allocation2 + $0x170] sm:$0xff] 0.0
    %295 = vst [vmem:[#allocation2 + $0x178] sm:$0x3] 0.0
    %296 = vst [vmem:[#allocation2 + $0x180] sm:$0xff] 0.0
    %297 = vst [vmem:[#allocation2 + $0x188] sm:$0xff] 0.0
    %298 = vst [vmem:[#allocation2 + $0x190] sm:$0x3] 0.0
    %299 = vst [vmem:[#allocation2 + $0x198] sm:$0xff] 0.0
    %300 = vst [vmem:[#allocation2 + $0x1a0] sm:$0xff] 0.0
    %301 = vst [vmem:[#allocation2 + $0x1a8] sm:$0x3] 0.0
    %302 = vst [vmem:[#allocation2 + $0x1b0] sm:$0xff] 0.0
    %303 = vst [vmem:[#allocation2 + $0x1b8] sm:$0xff] 0.0
    %304 = vst [vmem:[#allocation2 + $0x1c0] sm:$0x3] 0.0
    %305 = vst [vmem:[#allocation2 + $0x1c8] sm:$0xff] 0.0
    %306 = vst [vmem:[#allocation2 + $0x1d0] sm:$0xff] 0.0
    %307 = vst [vmem:[#allocation2 + $0x1d8] sm:$0x3] 0.0
    %308 = vst [vmem:[#allocation2 + $0x1e0] sm:$0xff] 0.0
    %309 = vst [vmem:[#allocation2 + $0x1e8] sm:$0xff] 0.0
    %310 = vst [vmem:[#allocation2 + $0x1f0] sm:$0x3] 0.0
    %311 = vst [vmem:[#allocation2 + $0x1f8] sm:$0xff] 0.0
    %312 = vst [vmem:[#allocation2 + $0x200] sm:$0xff] 0.0
    %313 = vst [vmem:[#allocation2 + $0x208] sm:$0x3] 0.0
    %314 = vst [vmem:[#allocation2 + $0x210] sm:$0xff] 0.0
    %315 = vst [vmem:[#allocation2 + $0x218] sm:$0xff] 0.0
    %316 = vst [vmem:[#allocation2 + $0x220] sm:$0x3] 0.0
    %317 = vst [vmem:[#allocation2 + $0x228] sm:$0xff] 0.0
    %318 = vst [vmem:[#allocation2 + $0x230] sm:$0xff] 0.0
    %319 = vst [vmem:[#allocation2 + $0x238] sm:$0x3] 0.0
    %320 = vst [vmem:[#allocation2 + $0x240] sm:$0xff] 0.0
    %321 = vst [vmem:[#allocation2 + $0x248] sm:$0xff] 0.0
    %322 = vst [vmem:[#allocation2 + $0x250] sm:$0x3] 0.0
    %323 = vst [vmem:[#allocation2 + $0x258] sm:$0xff] 0.0
    %324 = vst [vmem:[#allocation2 + $0x260] sm:$0xff] 0.0
    %325 = vst [vmem:[#allocation2 + $0x268] sm:$0x3] 0.0
    %326 = vst [vmem:[#allocation2 + $0x270] sm:$0xff] 0.0
    %327 = vst [vmem:[#allocation2 + $0x278] sm:$0xff] 0.0
    %328 = vst [vmem:[#allocation2 + $0x280] sm:$0x3] 0.0
    %329 = vst [vmem:[#allocation2 + $0x288] sm:$0xff] 0.0
    %330 = vst [vmem:[#allocation2 + $0x290] sm:$0xff] 0.0
    %331 = vst [vmem:[#allocation2 + $0x298] sm:$0x3] 0.0
    %332 = vst [vmem:[#allocation2 + $0x2a0] sm:$0xff] 0.0
    %333 = vst [vmem:[#allocation2 + $0x2a8] sm:$0xff] 0.0
    %334 = vst [vmem:[#allocation2 + $0x2b0] sm:$0x3] 0.0
    %335 = vst [vmem:[#allocation2 + $0x2b8] sm:$0xff] 0.0
    %336 = vst [vmem:[#allocation2 + $0x2c0] sm:$0xff] 0.0
    %337 = vst [vmem:[#allocation2 + $0x2c8] sm:$0x3] 0.0
    %338 = vst [vmem:[#allocation2 + $0x2d0] sm:$0xff] 0.0
    %339 = vst [vmem:[#allocation2 + $0x2d8] sm:$0xff] 0.0
    %340 = vst [vmem:[#allocation2 + $0x2e0] sm:$0x3] 0.0
    %341 = vst [vmem:[#allocation2 + $0x2e8] sm:$0xff] 0.0
    %342 = vst [vmem:[#allocation2 + $0x2f0] sm:$0xff] 0.0
    %343 = vst [vmem:[#allocation2 + $0x2f8] sm:$0x3] 0.0
    %344 = vst [vmem:[#allocation2 + $0x300] sm:$0xff] 0.0
    %345 = vst [vmem:[#allocation2 + $0x308] sm:$0xff] 0.0
    %346 = vst [vmem:[#allocation2 + $0x310] sm:$0x3] 0.0
    %347 = vst [vmem:[#allocation2 + $0x318] sm:$0xff] 0.0
    %348 = vst [vmem:[#allocation2 + $0x320] sm:$0xff] 0.0
    %349 = vst [vmem:[#allocation2 + $0x328] sm:$0x3] 0.0
    %350 = vst [vmem:[#allocation2 + $0x330] sm:$0xff] 0.0
    %351 = vst [vmem:[#allocation2 + $0x338] sm:$0xff] 0.0
    %352 = vst [vmem:[#allocation2 + $0x340] sm:$0x3] 0.0
    %353 = vst [vmem:[#allocation2 + $0x348] sm:$0xff] 0.0
    %354 = vst [vmem:[#allocation2 + $0x350] sm:$0xff] 0.0
    %355 = vst [vmem:[#allocation2 + $0x358] sm:$0x3] 0.0
    %v356 = vld [vmem:[#allocation4] sm:$0xff]
    %v357 = vld [vmem:[#allocation4 + $0x8] sm:$0xff]
    %v358 = vld [vmem:[#allocation4 + $0x10] sm:$0xff]
    %v359 = vld [vmem:[#allocation4 + $0x18] sm:$0xff]
    %v360 = vld [vmem:[#allocation4 + $0x20] sm:$0xff]
    %v361 = vld [vmem:[#allocation4 + $0x28] sm:$0xff]
    %v362 = vld [vmem:[#allocation4 + $0x30] sm:$0xff]
    %v363 = vld [vmem:[#allocation4 + $0x38] sm:$0xff]
    %v364 = vld [vmem:[#allocation4 + $0x40] sm:$0xff]
    %v365 = vld [vmem:[#allocation4 + $0x48] sm:$0xff]
    %v366 = vld [vmem:[#allocation4 + $0x50] sm:$0xff]
    %v367 = vld [vmem:[#allocation4 + $0x58] sm:$0xff]
    %v368 = vld [vmem:[#allocation4 + $0x60] sm:$0xff]
    %v369 = vld [vmem:[#allocation4 + $0x68] sm:$0xff]
    %v370 = vld [vmem:[#allocation4 + $0x70] sm:$0xff]
    %v371 = vld [vmem:[#allocation4 + $0x78] sm:$0xff]
    %v372 = vld [vmem:[#allocation4 + $0x80] sm:$0xff]
    %v373 = vld [vmem:[#allocation4 + $0x88] sm:$0xff]
    %v374 = vld [vmem:[#allocation4 + $0x90] sm:$0xff]
    %v375 = vld [vmem:[#allocation4 + $0x98] sm:$0xff]
    %v376 = vld [vmem:[#allocation4 + $0xa0] sm:$0xff]
    %v377 = vld [vmem:[#allocation4 + $0xa8] sm:$0xff]
    %v378 = vld [vmem:[#allocation4 + $0xb0] sm:$0xff]
    %v379 = vld [vmem:[#allocation4 + $0xb8] sm:$0xff]
    %v380 = vld [vmem:[#allocation4 + $0xc0] sm:$0xff]
    %v381 = vld [vmem:[#allocation4 + $0xc8] sm:$0xff]
    %v382 = vld [vmem:[#allocation4 + $0xd0] sm:$0xff]
    %v383 = vld [vmem:[#allocation4 + $0xd8] sm:$0xff]
    %v384 = vld [vmem:[#allocation4 + $0xe0] sm:$0xff]
    %v385 = vld [vmem:[#allocation4 + $0xe8] sm:$0xff]
    %v386 = vld [vmem:[#allocation4 + $0xf0] sm:$0xff]
    %v387 = vld [vmem:[#allocation4 + $0xf8] sm:$0xff]
    %v388 = vld [vmem:[#allocation4 + $0x100] sm:$0xff]
    %v389 = vld [vmem:[#allocation4 + $0x108] sm:$0xff]
    %v390 = vld [vmem:[#allocation4 + $0x110] sm:$0xff]
    %v391 = vld [vmem:[#allocation4 + $0x118] sm:$0xff]
    %v392 = vld [vmem:[#allocation4 + $0x120] sm:$0xff]
    %v393 = vld [vmem:[#allocation4 + $0x128] sm:$0xff]
    %v394 = vld [vmem:[#allocation4 + $0x130] sm:$0xff]
    %v395 = vld [vmem:[#allocation4 + $0x138] sm:$0xff]
    %v396 = vld [vmem:[#allocation4 + $0x140] sm:$0xff]
    %v397 = vld [vmem:[#allocation4 + $0x148] sm:$0xff]
    %v398 = vld [vmem:[#allocation4 + $0x150] sm:$0xff]
    %v399 = vld [vmem:[#allocation4 + $0x158] sm:$0xff]
    %v400 = vld [vmem:[#allocation4 + $0x160] sm:$0xff]
    %v401 = vld [vmem:[#allocation4 + $0x168] sm:$0xff]
    %v402 = vld [vmem:[#allocation4 + $0x170] sm:$0xff]
    %v403 = vld [vmem:[#allocation4 + $0x178] sm:$0xff]
    %v404 = vld [vmem:[#allocation4 + $0x180] sm:$0xff]
    %v405 = vld [vmem:[#allocation4 + $0x188] sm:$0xff]
    %v406 = vld [vmem:[#allocation4 + $0x190] sm:$0xff]
    %v407 = vld [vmem:[#allocation4 + $0x198] sm:$0xff]
    %v408 = vld [vmem:[#allocation4 + $0x1a0] sm:$0xff]
    %v409 = vld [vmem:[#allocation4 + $0x1a8] sm:$0xff]
    %v410 = vld [vmem:[#allocation4 + $0x1b0] sm:$0xff]
    %v411 = vld [vmem:[#allocation4 + $0x1b8] sm:$0xff]
    %v412 = vld [vmem:[#allocation4 + $0x1c0] sm:$0xff]
    %v413 = vld [vmem:[#allocation4 + $0x1c8] sm:$0xff]
    %v414 = vld [vmem:[#allocation4 + $0x1d0] sm:$0xff]
    %v415 = vld [vmem:[#allocation4 + $0x1d8] sm:$0xff]
    %v416 = vld [vmem:[#allocation4 + $0x1e0] sm:$0xff]
    %v417 = vld [vmem:[#allocation4 + $0x1e8] sm:$0xff]
    %v418 = vld [vmem:[#allocation4 + $0x1f0] sm:$0xff]
    %v419 = vld [vmem:[#allocation4 + $0x1f8] sm:$0xff]
    %s420 = scalar_lea.vmem [#allocation2], 24
    %421 = vst [vmem:[%s420 + $0x1] sm:$0xff] %v356
    %422 = vst [vmem:[%s420 + $0x9] sm:$0xff] %v357
    %423 = vst [vmem:[%s420 + $0x19] sm:$0xff] %v358
    %424 = vst [vmem:[%s420 + $0x21] sm:$0xff] %v359
    %425 = vst [vmem:[%s420 + $0x31] sm:$0xff] %v360
    %426 = vst [vmem:[%s420 + $0x39] sm:$0xff] %v361
    %427 = vst [vmem:[%s420 + $0x49] sm:$0xff] %v362
    %428 = vst [vmem:[%s420 + $0x51] sm:$0xff] %v363
    %429 = vst [vmem:[%s420 + $0x61] sm:$0xff] %v364
    %430 = vst [vmem:[%s420 + $0x69] sm:$0xff] %v365
    %431 = vst [vmem:[%s420 + $0x79] sm:$0xff] %v366
    %432 = vst [vmem:[%s420 + $0x81] sm:$0xff] %v367
    %433 = vst [vmem:[%s420 + $0x91] sm:$0xff] %v368
    %434 = vst [vmem:[%s420 + $0x99] sm:$0xff] %v369
    %435 = vst [vmem:[%s420 + $0xa9] sm:$0xff] %v370
    %436 = vst [vmem:[%s420 + $0xb1] sm:$0xff] %v371
    %437 = vst [vmem:[%s420 + $0xc1] sm:$0xff] %v372
    %438 = vst [vmem:[%s420 + $0xc9] sm:$0xff] %v373
    %439 = vst [vmem:[%s420 + $0xd9] sm:$0xff] %v374
    %440 = vst [vmem:[%s420 + $0xe1] sm:$0xff] %v375
    %441 = vst [vmem:[%s420 + $0xf1] sm:$0xff] %v376
    %442 = vst [vmem:[%s420 + $0xf9] sm:$0xff] %v377
    %443 = vst [vmem:[%s420 + $0x109] sm:$0xff] %v378
    %444 = vst [vmem:[%s420 + $0x111] sm:$0xff] %v379
    %445 = vst [vmem:[%s420 + $0x121] sm:$0xff] %v380
    %446 = vst [vmem:[%s420 + $0x129] sm:$0xff] %v381
    %447 = vst [vmem:[%s420 + $0x139] sm:$0xff] %v382
    %448 = vst [vmem:[%s420 + $0x141] sm:$0xff] %v383
    %449 = vst [vmem:[%s420 + $0x151] sm:$0xff] %v384
    %450 = vst [vmem:[%s420 + $0x159] sm:$0xff] %v385
    %451 = vst [vmem:[%s420 + $0x169] sm:$0xff] %v386
    %452 = vst [vmem:[%s420 + $0x171] sm:$0xff] %v387
    %453 = vst [vmem:[%s420 + $0x1b1] sm:$0xff] %v388
    %454 = vst [vmem:[%s420 + $0x1b9] sm:$0xff] %v389
    %455 = vst [vmem:[%s420 + $0x1c9] sm:$0xff] %v390
    %456 = vst [vmem:[%s420 + $0x1d1] sm:$0xff] %v391
    %457 = vst [vmem:[%s420 + $0x1e1] sm:$0xff] %v392
    %458 = vst [vmem:[%s420 + $0x1e9] sm:$0xff] %v393
    %459 = vst [vmem:[%s420 + $0x1f9] sm:$0xff] %v394
    %460 = vst [vmem:[%s420 + $0x201] sm:$0xff] %v395
    %461 = vst [vmem:[%s420 + $0x211] sm:$0xff] %v396
    %462 = vst [vmem:[%s420 + $0x219] sm:$0xff] %v397
    %463 = vst [vmem:[%s420 + $0x229] sm:$0xff] %v398
    %464 = vst [vmem:[%s420 + $0x231] sm:$0xff] %v399
    %465 = vst [vmem:[%s420 + $0x241] sm:$0xff] %v400
    %466 = vst [vmem:[%s420 + $0x249] sm:$0xff] %v401
    %467 = vst [vmem:[%s420 + $0x259] sm:$0xff] %v402
    %468 = vst [vmem:[%s420 + $0x261] sm:$0xff] %v403
    %469 = vst [vmem:[%s420 + $0x271] sm:$0xff] %v404
    %470 = vst [vmem:[%s420 + $0x279] sm:$0xff] %v405
    %471 = vst [vmem:[%s420 + $0x289] sm:$0xff] %v406
    %472 = vst [vmem:[%s420 + $0x291] sm:$0xff] %v407
    %473 = vst [vmem:[%s420 + $0x2a1] sm:$0xff] %v408
    %474 = vst [vmem:[%s420 + $0x2a9] sm:$0xff] %v409
    %475 = vst [vmem:[%s420 + $0x2b9] sm:$0xff] %v410
    %476 = vst [vmem:[%s420 + $0x2c1] sm:$0xff] %v411
    %477 = vst [vmem:[%s420 + $0x2d1] sm:$0xff] %v412
    %478 = vst [vmem:[%s420 + $0x2d9] sm:$0xff] %v413
    %479 = vst [vmem:[%s420 + $0x2e9] sm:$0xff] %v414
    %480 = vst [vmem:[%s420 + $0x2f1] sm:$0xff] %v415
    %481 = vst [vmem:[%s420 + $0x301] sm:$0xff] %v416
    %482 = vst [vmem:[%s420 + $0x309] sm:$0xff] %v417
    %483 = vst [vmem:[%s420 + $0x319] sm:$0xff] %v418
    %484 = vst [vmem:[%s420 + $0x321] sm:$0xff] %v419
    %v485 = vld [vmem:[#allocation2] sm:$0xff]
    %v486 = vld [vmem:[#allocation2 + $0x8] sm:$0xff]
    %v487 = vld [vmem:[#allocation2 + $0x18] sm:$0xff]
    %v488 = vld [vmem:[#allocation2 + $0x20] sm:$0xff]
    %v489 = vld [vmem:[#allocation2 + $0x30] sm:$0xff]
    %v490 = vld [vmem:[#allocation2 + $0x38] sm:$0xff]
    %v491 = vld [vmem:[#allocation2 + $0x48] sm:$0xff]
    %v492 = vld [vmem:[#allocation2 + $0x50] sm:$0xff]
    %v493 = vld [vmem:[#allocation2 + $0x60] sm:$0xff]
    %v494 = vld [vmem:[#allocation2 + $0x68] sm:$0xff]
    %v495 = vld [vmem:[#allocation2 + $0x78] sm:$0xff]
    %v496 = vld [vmem:[#allocation2 + $0x80] sm:$0xff]
    %v497 = vld [vmem:[#allocation2 + $0x90] sm:$0xff]
    %v498 = vld [vmem:[#allocation2 + $0x98] sm:$0xff]
    %v499 = vld [vmem:[#allocation2 + $0xa8] sm:$0xff]
    %v500 = vld [vmem:[#allocation2 + $0xb0] sm:$0xff]
    %v501 = vld [vmem:[#allocation2 + $0xc0] sm:$0xff]
    %v502 = vld [vmem:[#allocation2 + $0xc8] sm:$0xff]
    %v503 = vld [vmem:[#allocation2 + $0xd8] sm:$0xff]
    %v504 = vld [vmem:[#allocation2 + $0xe0] sm:$0xff]
    %v505 = vld [vmem:[#allocation2 + $0xf0] sm:$0xff]
    %v506 = vld [vmem:[#allocation2 + $0xf8] sm:$0xff]
    %v507 = vld [vmem:[#allocation2 + $0x108] sm:$0xff]
    %v508 = vld [vmem:[#allocation2 + $0x110] sm:$0xff]
    %v509 = vld [vmem:[#allocation2 + $0x120] sm:$0xff]
    %v510 = vld [vmem:[#allocation2 + $0x128] sm:$0xff]
    %v511 = vld [vmem:[#allocation2 + $0x138] sm:$0xff]
    %v512 = vld [vmem:[#allocation2 + $0x140] sm:$0xff]
    %v513 = vld [vmem:[#allocation2 + $0x150] sm:$0xff]
    %v514 = vld [vmem:[#allocation2 + $0x158] sm:$0xff]
    %v515 = vld [vmem:[#allocation2 + $0x168] sm:$0xff]
    %v516 = vld [vmem:[#allocation2 + $0x170] sm:$0xff]
    %v517 = vld [vmem:[#allocation2 + $0x180] sm:$0xff]
    %v518 = vld [vmem:[#allocation2 + $0x188] sm:$0xff]
    %v519 = vld [vmem:[#allocation2 + $0x198] sm:$0xff]
    %v520 = vld [vmem:[#allocation2 + $0x1a0] sm:$0xff]
    %v521 = vld [vmem:[#allocation2 + $0x1b0] sm:$0xff]
    %v522 = vld [vmem:[#allocation2 + $0x1b8] sm:$0xff]
    %v523 = vld [vmem:[#allocation2 + $0x1c8] sm:$0xff]
    %v524 = vld [vmem:[#allocation2 + $0x1d0] sm:$0xff]
    %v525 = vld [vmem:[#allocation2 + $0x1e0] sm:$0xff]
    %v526 = vld [vmem:[#allocation2 + $0x1e8] sm:$0xff]
    %v527 = vld [vmem:[#allocation2 + $0x1f8] sm:$0xff]
    %v528 = vld [vmem:[#allocation2 + $0x200] sm:$0xff]
    %v529 = vld [vmem:[#allocation2 + $0x210] sm:$0xff]
    %v530 = vld [vmem:[#allocation2 + $0x218] sm:$0xff]
    %v531 = vld [vmem:[#allocation2 + $0x228] sm:$0xff]
    %v532 = vld [vmem:[#allocation2 + $0x230] sm:$0xff]
    %v533 = vld [vmem:[#allocation2 + $0x240] sm:$0xff]
    %v534 = vld [vmem:[#allocation2 + $0x248] sm:$0xff]
    %v535 = vld [vmem:[#allocation2 + $0x258] sm:$0xff]
    %v536 = vld [vmem:[#allocation2 + $0x260] sm:$0xff]
    %v537 = vld [vmem:[#allocation2 + $0x270] sm:$0xff]
    %v538 = vld [vmem:[#allocation2 + $0x278] sm:$0xff]
    %v539 = vld [vmem:[#allocation2 + $0x288] sm:$0xff]
    %v540 = vld [vmem:[#allocation2 + $0x290] sm:$0xff]
    %v541 = vld [vmem:[#allocation2 + $0x2a0] sm:$0xff]
    %v542 = vld [vmem:[#allocation2 + $0x2a8] sm:$0xff]
    %v543 = vld [vmem:[#allocation2 + $0x2b8] sm:$0xff]
    %v544 = vld [vmem:[#allocation2 + $0x2c0] sm:$0xff]
    %v545 = vld [vmem:[#allocation2 + $0x2d0] sm:$0xff]
    %v546 = vld [vmem:[#allocation2 + $0x2d8] sm:$0xff]
    %v547 = vld [vmem:[#allocation2 + $0x2e8] sm:$0xff]
    %v548 = vld [vmem:[#allocation2 + $0x2f0] sm:$0xff]
    %v549 = vld [vmem:[#allocation2 + $0x300] sm:$0xff]
    %v550 = vld [vmem:[#allocation2 + $0x308] sm:$0xff]
    %v551 = vld [vmem:[#allocation2 + $0x318] sm:$0xff]
    %v552 = vld [vmem:[#allocation2 + $0x320] sm:$0xff]
    %v553 = vld [vmem:[#allocation2 + $0x330] sm:$0xff]
    %v554 = vld [vmem:[#allocation2 + $0x338] sm:$0xff]
    %v555 = vld [vmem:[#allocation2 + $0x348] sm:$0xff]
    %v556 = vld [vmem:[#allocation2 + $0x350] sm:$0xff]
    %557 = vst [vmem:[#allocation3] sm:$0xff] %v485
    %558 = vst [vmem:[#allocation3 + $0x48] sm:$0xff] %v486
    %559 = vst [vmem:[#allocation3 + $0x90] sm:$0xff] %v487
    %560 = vst [vmem:[#allocation3 + $0xd8] sm:$0xff] %v488
    %561 = vst [vmem:[#allocation3 + $0x120] sm:$0xff] %v489
    %562 = vst [vmem:[#allocation3 + $0x168] sm:$0xff] %v490
    %563 = vst [vmem:[#allocation3 + $0x1b0] sm:$0xff] %v491
    %564 = vst [vmem:[#allocation3 + $0x1f8] sm:$0xff] %v492
    %565 = vst [vmem:[#allocation3 + $0x240] sm:$0xff] %v493
    %566 = vst [vmem:[#allocation3 + $0x288] sm:$0xff] %v494
    %567 = vst [vmem:[#allocation3 + $0x2d0] sm:$0xff] %v495
    %568 = vst [vmem:[#allocation3 + $0x318] sm:$0xff] %v496
    %569 = vst [vmem:[#allocation3 + $0x360] sm:$0xff] %v497
    %570 = vst [vmem:[#allocation3 + $0x3a8] sm:$0xff] %v498
    %571 = vst [vmem:[#allocation3 + $0x3f0] sm:$0xff] %v499
    %572 = vst [vmem:[#allocation3 + $0x438] sm:$0xff] %v500
    %573 = vst [vmem:[#allocation3 + $0x480] sm:$0xff] %v501
    %574 = vst [vmem:[#allocation3 + $0x4c8] sm:$0xff] %v502
    %575 = vst [vmem:[#allocation3 + $0x510] sm:$0xff] %v503
    %576 = vst [vmem:[#allocation3 + $0x558] sm:$0xff] %v504
    %577 = vst [vmem:[#allocation3 + $0x5a0] sm:$0xff] %v505
    %578 = vst [vmem:[#allocation3 + $0x5e8] sm:$0xff] %v506
    %579 = vst [vmem:[#allocation3 + $0x630] sm:$0xff] %v507
    %580 = vst [vmem:[#allocation3 + $0x678] sm:$0xff] %v508
    %581 = vst [vmem:[#allocation3 + $0x6c0] sm:$0xff] %v509
    %582 = vst [vmem:[#allocation3 + $0x708] sm:$0xff] %v510
    %583 = vst [vmem:[#allocation3 + $0x750] sm:$0xff] %v511
    %584 = vst [vmem:[#allocation3 + $0x798] sm:$0xff] %v512
    %585 = vst [vmem:[#allocation3 + $0x7e0] sm:$0xff] %v513
    %586 = vst [vmem:[#allocation3 + $0x828] sm:$0xff] %v514
    %587 = vst [vmem:[#allocation3 + $0x870] sm:$0xff] %v515
    %588 = vst [vmem:[#allocation3 + $0x8b8] sm:$0xff] %v516
    %589 = vst [vmem:[#allocation3 + $0x900] sm:$0xff] %v521
    %590 = vst [vmem:[#allocation3 + $0x948] sm:$0xff] %v522
    %591 = vst [vmem:[#allocation3 + $0x990] sm:$0xff] %v523
    %592 = vst [vmem:[#allocation3 + $0x9d8] sm:$0xff] %v524
    %593 = vst [vmem:[#allocation3 + $0xa20] sm:$0xff] %v525
    %594 = vst [vmem:[#allocation3 + $0xa68] sm:$0xff] %v526
    %595 = vst [vmem:[#allocation3 + $0xab0] sm:$0xff] %v527
    %596 = vst [vmem:[#allocation3 + $0xaf8] sm:$0xff] %v528
    %597 = vst [vmem:[#allocation3 + $0xb40] sm:$0xff] %v529
    %598 = vst [vmem:[#allocation3 + $0xb88] sm:$0xff] %v530
    %599 = vst [vmem:[#allocation3 + $0xbd0] sm:$0xff] %v531
    %600 = vst [vmem:[#allocation3 + $0xc18] sm:$0xff] %v532
    %601 = vst [vmem:[#allocation3 + $0xc60] sm:$0xff] %v533
    %602 = vst [vmem:[#allocation3 + $0xca8] sm:$0xff] %v534
    %603 = vst [vmem:[#allocation3 + $0xcf0] sm:$0xff] %v535
    %604 = vst [vmem:[#allocation3 + $0xd38] sm:$0xff] %v536
    %605 = vst [vmem:[#allocation3 + $0xd80] sm:$0xff] %v537
    %606 = vst [vmem:[#allocation3 + $0xdc8] sm:$0xff] %v538
    %607 = vst [vmem:[#allocation3 + $0xe10] sm:$0xff] %v539
    %608 = vst [vmem:[#allocation3 + $0xe58] sm:$0xff] %v540
    %609 = vst [vmem:[#allocation3 + $0xea0] sm:$0xff] %v541
    %610 = vst [vmem:[#allocation3 + $0xee8] sm:$0xff] %v542
    %611 = vst [vmem:[#allocation3 + $0xf30] sm:$0xff] %v543
    %612 = vst [vmem:[#allocation3 + $0xf78] sm:$0xff] %v544
    %613 = vst [vmem:[#allocation3 + $0xfc0] sm:$0xff] %v545
    %614 = vst [vmem:[#allocation3 + $0x1008] sm:$0xff] %v546
    %615 = vst [vmem:[#allocation3 + $0x1050] sm:$0xff] %v547
    %616 = vst [vmem:[#allocation3 + $0x1098] sm:$0xff] %v548
    %617 = vst [vmem:[#allocation3 + $0x10e0] sm:$0xff] %v549
    %618 = vst [vmem:[#allocation3 + $0x1128] sm:$0xff] %v550
    %619 = vst [vmem:[#allocation3 + $0x1170] sm:$0xff] %v551
    %620 = vst [vmem:[#allocation3 + $0x11b8] sm:$0xff] %v552
    %621 = vst [vmem:[#allocation3 + $0x18] sm:$0xff] %v487
    %622 = vst [vmem:[#allocation3 + $0x60] sm:$0xff] %v488
    %623 = vst [vmem:[#allocation3 + $0xa8] sm:$0xff] %v489
    %624 = vst [vmem:[#allocation3 + $0xf0] sm:$0xff] %v490
    %625 = vst [vmem:[#allocation3 + $0x138] sm:$0xff] %v491
    %626 = vst [vmem:[#allocation3 + $0x180] sm:$0xff] %v492
    %627 = vst [vmem:[#allocation3 + $0x1c8] sm:$0xff] %v493
    %628 = vst [vmem:[#allocation3 + $0x210] sm:$0xff] %v494
    %629 = vst [vmem:[#allocation3 + $0x258] sm:$0xff] %v495
    %630 = vst [vmem:[#allocation3 + $0x2a0] sm:$0xff] %v496
    %631 = vst [vmem:[#allocation3 + $0x2e8] sm:$0xff] %v497
    %632 = vst [vmem:[#allocation3 + $0x330] sm:$0xff] %v498
    %633 = vst [vmem:[#allocation3 + $0x378] sm:$0xff] %v499
    %634 = vst [vmem:[#allocation3 + $0x3c0] sm:$0xff] %v500
    %635 = vst [vmem:[#allocation3 + $0x408] sm:$0xff] %v501
    %636 = vst [vmem:[#allocation3 + $0x450] sm:$0xff] %v502
    %637 = vst [vmem:[#allocation3 + $0x498] sm:$0xff] %v503
    %638 = vst [vmem:[#allocation3 + $0x4e0] sm:$0xff] %v504
    %639 = vst [vmem:[#allocation3 + $0x528] sm:$0xff] %v505
    %640 = vst [vmem:[#allocation3 + $0x570] sm:$0xff] %v506
    %641 = vst [vmem:[#allocation3 + $0x5b8] sm:$0xff] %v507
    %642 = vst [vmem:[#allocation3 + $0x600] sm:$0xff] %v508
    %643 = vst [vmem:[#allocation3 + $0x648] sm:$0xff] %v509
    %644 = vst [vmem:[#allocation3 + $0x690] sm:$0xff] %v510
    %645 = vst [vmem:[#allocation3 + $0x6d8] sm:$0xff] %v511
    %646 = vst [vmem:[#allocation3 + $0x720] sm:$0xff] %v512
    %647 = vst [vmem:[#allocation3 + $0x768] sm:$0xff] %v513
    %648 = vst [vmem:[#allocation3 + $0x7b0] sm:$0xff] %v514
    %649 = vst [vmem:[#allocation3 + $0x7f8] sm:$0xff] %v515
    %650 = vst [vmem:[#allocation3 + $0x840] sm:$0xff] %v516
    %651 = vst [vmem:[#allocation3 + $0x888] sm:$0xff] %v517
    %652 = vst [vmem:[#allocation3 + $0x8d0] sm:$0xff] %v518
    %653 = vst [vmem:[#allocation3 + $0x918] sm:$0xff] %v523
    %654 = vst [vmem:[#allocation3 + $0x960] sm:$0xff] %v524
    %655 = vst [vmem:[#allocation3 + $0x9a8] sm:$0xff] %v525
    %656 = vst [vmem:[#allocation3 + $0x9f0] sm:$0xff] %v526
    %657 = vst [vmem:[#allocation3 + $0xa38] sm:$0xff] %v527
    %658 = vst [vmem:[#allocation3 + $0xa80] sm:$0xff] %v528
    %659 = vst [vmem:[#allocation3 + $0xac8] sm:$0xff] %v529
    %660 = vst [vmem:[#allocation3 + $0xb10] sm:$0xff] %v530
    %661 = vst [vmem:[#allocation3 + $0xb58] sm:$0xff] %v531
    %662 = vst [vmem:[#allocation3 + $0xba0] sm:$0xff] %v532
    %663 = vst [vmem:[#allocation3 + $0xbe8] sm:$0xff] %v533
    %664 = vst [vmem:[#allocation3 + $0xc30] sm:$0xff] %v534
    %665 = vst [vmem:[#allocation3 + $0xc78] sm:$0xff] %v535
    %666 = vst [vmem:[#allocation3 + $0xcc0] sm:$0xff] %v536
    %667 = vst [vmem:[#allocation3 + $0xd08] sm:$0xff] %v537
    %668 = vst [vmem:[#allocation3 + $0xd50] sm:$0xff] %v538
    %669 = vst [vmem:[#allocation3 + $0xd98] sm:$0xff] %v539
    %670 = vst [vmem:[#allocation3 + $0xde0] sm:$0xff] %v540
    %671 = vst [vmem:[#allocation3 + $0xe28] sm:$0xff] %v541
    %672 = vst [vmem:[#allocation3 + $0xe70] sm:$0xff] %v542
    %673 = vst [vmem:[#allocation3 + $0xeb8] sm:$0xff] %v543
    %674 = vst [vmem:[#allocation3 + $0xf00] sm:$0xff] %v544
    %675 = vst [vmem:[#allocation3 + $0xf48] sm:$0xff] %v545
    %676 = vst [vmem:[#allocation3 + $0xf90] sm:$0xff] %v546
    %677 = vst [vmem:[#allocation3 + $0xfd8] sm:$0xff] %v547
    %678 = vst [vmem:[#allocation3 + $0x1020] sm:$0xff] %v548
    %679 = vst [vmem:[#allocation3 + $0x1068] sm:$0xff] %v549
    %680 = vst [vmem:[#allocation3 + $0x10b0] sm:$0xff] %v550
    %681 = vst [vmem:[#allocation3 + $0x10f8] sm:$0xff] %v551
    %682 = vst [vmem:[#allocation3 + $0x1140] sm:$0xff] %v552
    %683 = vst [vmem:[#allocation3 + $0x1188] sm:$0xff] %v553
    %684 = vst [vmem:[#allocation3 + $0x11d0] sm:$0xff] %v554
    %685 = vst [vmem:[#allocation3 + $0x30] sm:$0xff] %v489
    %686 = vst [vmem:[#allocation3 + $0x78] sm:$0xff] %v490
    %687 = vst [vmem:[#allocation3 + $0xc0] sm:$0xff] %v491
    %688 = vst [vmem:[#allocation3 + $0x108] sm:$0xff] %v492
    %689 = vst [vmem:[#allocation3 + $0x150] sm:$0xff] %v493
    %690 = vst [vmem:[#allocation3 + $0x198] sm:$0xff] %v494
    %691 = vst [vmem:[#allocation3 + $0x1e0] sm:$0xff] %v495
    %692 = vst [vmem:[#allocation3 + $0x228] sm:$0xff] %v496
    %693 = vst [vmem:[#allocation3 + $0x270] sm:$0xff] %v497
    %694 = vst [vmem:[#allocation3 + $0x2b8] sm:$0xff] %v498
    %695 = vst [vmem:[#allocation3 + $0x300] sm:$0xff] %v499
    %696 = vst [vmem:[#allocation3 + $0x348] sm:$0xff] %v500
    %697 = vst [vmem:[#allocation3 + $0x390] sm:$0xff] %v501
    %698 = vst [vmem:[#allocation3 + $0x3d8] sm:$0xff] %v502
    %699 = vst [vmem:[#allocation3 + $0x420] sm:$0xff] %v503
    %700 = vst [vmem:[#allocation3 + $0x468] sm:$0xff] %v504
    %701 = vst [vmem:[#allocation3 + $0x4b0] sm:$0xff] %v505
    %702 = vst [vmem:[#allocation3 + $0x4f8] sm:$0xff] %v506
    %703 = vst [vmem:[#allocation3 + $0x540] sm:$0xff] %v507
    %704 = vst [vmem:[#allocation3 + $0x588] sm:$0xff] %v508
    %705 = vst [vmem:[#allocation3 + $0x5d0] sm:$0xff] %v509
    %706 = vst [vmem:[#allocation3 + $0x618] sm:$0xff] %v510
    %707 = vst [vmem:[#allocation3 + $0x660] sm:$0xff] %v511
    %708 = vst [vmem:[#allocation3 + $0x6a8] sm:$0xff] %v512
    %709 = vst [vmem:[#allocation3 + $0x6f0] sm:$0xff] %v513
    %710 = vst [vmem:[#allocation3 + $0x738] sm:$0xff] %v514
    %711 = vst [vmem:[#allocation3 + $0x780] sm:$0xff] %v515
    %712 = vst [vmem:[#allocation3 + $0x7c8] sm:$0xff] %v516
    %713 = vst [vmem:[#allocation3 + $0x810] sm:$0xff] %v517
    %714 = vst [vmem:[#allocation3 + $0x858] sm:$0xff] %v518
    %715 = vst [vmem:[#allocation3 + $0x8a0] sm:$0xff] %v519
    %716 = vst [vmem:[#allocation3 + $0x8e8] sm:$0xff] %v520
    %717 = vst [vmem:[#allocation3 + $0x930] sm:$0xff] %v525
    %718 = vst [vmem:[#allocation3 + $0x978] sm:$0xff] %v526
    %719 = vst [vmem:[#allocation3 + $0x9c0] sm:$0xff] %v527
    %720 = vst [vmem:[#allocation3 + $0xa08] sm:$0xff] %v528
    %721 = vst [vmem:[#allocation3 + $0xa50] sm:$0xff] %v529
    %722 = vst [vmem:[#allocation3 + $0xa98] sm:$0xff] %v530
    %723 = vst [vmem:[#allocation3 + $0xae0] sm:$0xff] %v531
    %724 = vst [vmem:[#allocation3 + $0xb28] sm:$0xff] %v532
    %725 = vst [vmem:[#allocation3 + $0xb70] sm:$0xff] %v533
    %726 = vst [vmem:[#allocation3 + $0xbb8] sm:$0xff] %v534
    %727 = vst [vmem:[#allocation3 + $0xc00] sm:$0xff] %v535
    %728 = vst [vmem:[#allocation3 + $0xc48] sm:$0xff] %v536
    %729 = vst [vmem:[#allocation3 + $0xc90] sm:$0xff] %v537
    %730 = vst [vmem:[#allocation3 + $0xcd8] sm:$0xff] %v538
    %731 = vst [vmem:[#allocation3 + $0xd20] sm:$0xff] %v539
    %732 = vst [vmem:[#allocation3 + $0xd68] sm:$0xff] %v540
    %733 = vst [vmem:[#allocation3 + $0xdb0] sm:$0xff] %v541
    %734 = vst [vmem:[#allocation3 + $0xdf8] sm:$0xff] %v542
    %735 = vst [vmem:[#allocation3 + $0xe40] sm:$0xff] %v543
    %736 = vst [vmem:[#allocation3 + $0xe88] sm:$0xff] %v544
    %737 = vst [vmem:[#allocation3 + $0xed0] sm:$0xff] %v545
    %738 = vst [vmem:[#allocation3 + $0xf18] sm:$0xff] %v546
    %739 = vst [vmem:[#allocation3 + $0xf60] sm:$0xff] %v547
    %740 = vst [vmem:[#allocation3 + $0xfa8] sm:$0xff] %v548
    %741 = vst [vmem:[#allocation3 + $0xff0] sm:$0xff] %v549
    %742 = vst [vmem:[#allocation3 + $0x1038] sm:$0xff] %v550
    %743 = vst [vmem:[#allocation3 + $0x1080] sm:$0xff] %v551
    %744 = vst [vmem:[#allocation3 + $0x10c8] sm:$0xff] %v552
    %745 = vst [vmem:[#allocation3 + $0x1110] sm:$0xff] %v553
    %746 = vst [vmem:[#allocation3 + $0x1158] sm:$0xff] %v554
    %747 = vst [vmem:[#allocation3 + $0x11a0] sm:$0xff] %v555
    %748 = vst [vmem:[#allocation3 + $0x11e8] sm:$0xff] %v556
    %v749 = vld [vmem:[#allocation2 + $0x1] sm:$0xff]
    %v750 = vld [vmem:[#allocation2 + $0x9] sm:$0xff]
    %v751 = vld [vmem:[#allocation2 + $0x19] sm:$0xff]
    %v752 = vld [vmem:[#allocation2 + $0x21] sm:$0xff]
    %v753 = vld [vmem:[#allocation2 + $0x31] sm:$0xff]
    %v754 = vld [vmem:[#allocation2 + $0x39] sm:$0xff]
    %v755 = vld [vmem:[#allocation2 + $0x49] sm:$0xff]
    %v756 = vld [vmem:[#allocation2 + $0x51] sm:$0xff]
    %v757 = vld [vmem:[#allocation2 + $0x61] sm:$0xff]
    %v758 = vld [vmem:[#allocation2 + $0x69] sm:$0xff]
    %v759 = vld [vmem:[#allocation2 + $0x79] sm:$0xff]
    %v760 = vld [vmem:[#allocation2 + $0x81] sm:$0xff]
    %v761 = vld [vmem:[#allocation2 + $0x91] sm:$0xff]
    %v762 = vld [vmem:[#allocation2 + $0x99] sm:$0xff]
    %v763 = vld [vmem:[#allocation2 + $0xa9] sm:$0xff]
    %v764 = vld [vmem:[#allocation2 + $0xb1] sm:$0xff]
    %v765 = vld [vmem:[#allocation2 + $0xc1] sm:$0xff]
    %v766 = vld [vmem:[#allocation2 + $0xc9] sm:$0xff]
    %v767 = vld [vmem:[#allocation2 + $0xd9] sm:$0xff]
    %v768 = vld [vmem:[#allocation2 + $0xe1] sm:$0xff]
    %v769 = vld [vmem:[#allocation2 + $0xf1] sm:$0xff]
    %v770 = vld [vmem:[#allocation2 + $0xf9] sm:$0xff]
    %v771 = vld [vmem:[#allocation2 + $0x109] sm:$0xff]
    %v772 = vld [vmem:[#allocation2 + $0x111] sm:$0xff]
    %v773 = vld [vmem:[#allocation2 + $0x121] sm:$0xff]
    %v774 = vld [vmem:[#allocation2 + $0x129] sm:$0xff]
    %v775 = vld [vmem:[#allocation2 + $0x139] sm:$0xff]
    %v776 = vld [vmem:[#allocation2 + $0x141] sm:$0xff]
    %v777 = vld [vmem:[#allocation2 + $0x151] sm:$0xff]
    %v778 = vld [vmem:[#allocation2 + $0x159] sm:$0xff]
    %v779 = vld [vmem:[#allocation2 + $0x169] sm:$0xff]
    %v780 = vld [vmem:[#allocation2 + $0x171] sm:$0xff]
    %v781 = vld [vmem:[#allocation2 + $0x181] sm:$0xff]
    %v782 = vld [vmem:[#allocation2 + $0x189] sm:$0xff]
    %v783 = vld [vmem:[#allocation2 + $0x199] sm:$0xff]
    %v784 = vld [vmem:[#allocation2 + $0x1a1] sm:$0xff]
    %v785 = vld [vmem:[#allocation2 + $0x1b1] sm:$0xff]
    %v786 = vld [vmem:[#allocation2 + $0x1b9] sm:$0xff]
    %v787 = vld [vmem:[#allocation2 + $0x1c9] sm:$0xff]
    %v788 = vld [vmem:[#allocation2 + $0x1d1] sm:$0xff]
    %v789 = vld [vmem:[#allocation2 + $0x1e1] sm:$0xff]
    %v790 = vld [vmem:[#allocation2 + $0x1e9] sm:$0xff]
    %v791 = vld [vmem:[#allocation2 + $0x1f9] sm:$0xff]
    %v792 = vld [vmem:[#allocation2 + $0x201] sm:$0xff]
    %v793 = vld [vmem:[#allocation2 + $0x211] sm:$0xff]
    %v794 = vld [vmem:[#allocation2 + $0x219] sm:$0xff]
    %v795 = vld [vmem:[#allocation2 + $0x229] sm:$0xff]
    %v796 = vld [vmem:[#allocation2 + $0x231] sm:$0xff]
    %v797 = vld [vmem:[#allocation2 + $0x241] sm:$0xff]
    %v798 = vld [vmem:[#allocation2 + $0x249] sm:$0xff]
    %v799 = vld [vmem:[#allocation2 + $0x259] sm:$0xff]
    %v800 = vld [vmem:[#allocation2 + $0x261] sm:$0xff]
    %v801 = vld [vmem:[#allocation2 + $0x271] sm:$0xff]
    %v802 = vld [vmem:[#allocation2 + $0x279] sm:$0xff]
    %v803 = vld [vmem:[#allocation2 + $0x289] sm:$0xff]
    %v804 = vld [vmem:[#allocation2 + $0x291] sm:$0xff]
    %v805 = vld [vmem:[#allocation2 + $0x2a1] sm:$0xff]
    %v806 = vld [vmem:[#allocation2 + $0x2a9] sm:$0xff]
    %v807 = vld [vmem:[#allocation2 + $0x2b9] sm:$0xff]
    %v808 = vld [vmem:[#allocation2 + $0x2c1] sm:$0xff]
    %v809 = vld [vmem:[#allocation2 + $0x2d1] sm:$0xff]
    %v810 = vld [vmem:[#allocation2 + $0x2d9] sm:$0xff]
    %v811 = vld [vmem:[#allocation2 + $0x2e9] sm:$0xff]
    %v812 = vld [vmem:[#allocation2 + $0x2f1] sm:$0xff]
    %v813 = vld [vmem:[#allocation2 + $0x301] sm:$0xff]
    %v814 = vld [vmem:[#allocation2 + $0x309] sm:$0xff]
    %v815 = vld [vmem:[#allocation2 + $0x319] sm:$0xff]
    %v816 = vld [vmem:[#allocation2 + $0x321] sm:$0xff]
    %v817 = vld [vmem:[#allocation2 + $0x331] sm:$0xff]
    %v818 = vld [vmem:[#allocation2 + $0x339] sm:$0xff]
    %v819 = vld [vmem:[#allocation2 + $0x349] sm:$0xff]
    %v820 = vld [vmem:[#allocation2 + $0x351] sm:$0xff]
    %821 = vst [vmem:[#allocation3 + $0x8] sm:$0xff] %v749
    %822 = vst [vmem:[#allocation3 + $0x50] sm:$0xff] %v750
    %823 = vst [vmem:[#allocation3 + $0x98] sm:$0xff] %v751
    %824 = vst [vmem:[#allocation3 + $0xe0] sm:$0xff] %v752
    %825 = vst [vmem:[#allocation3 + $0x128] sm:$0xff] %v753
    %826 = vst [vmem:[#allocation3 + $0x170] sm:$0xff] %v754
    %827 = vst [vmem:[#allocation3 + $0x1b8] sm:$0xff] %v755
    %828 = vst [vmem:[#allocation3 + $0x200] sm:$0xff] %v756
    %829 = vst [vmem:[#allocation3 + $0x248] sm:$0xff] %v757
    %830 = vst [vmem:[#allocation3 + $0x290] sm:$0xff] %v758
    %831 = vst [vmem:[#allocation3 + $0x2d8] sm:$0xff] %v759
    %832 = vst [vmem:[#allocation3 + $0x320] sm:$0xff] %v760
    %833 = vst [vmem:[#allocation3 + $0x368] sm:$0xff] %v761
    %834 = vst [vmem:[#allocation3 + $0x3b0] sm:$0xff] %v762
    %835 = vst [vmem:[#allocation3 + $0x3f8] sm:$0xff] %v763
    %836 = vst [vmem:[#allocation3 + $0x440] sm:$0xff] %v764
    %837 = vst [vmem:[#allocation3 + $0x488] sm:$0xff] %v765
    %838 = vst [vmem:[#allocation3 + $0x4d0] sm:$0xff] %v766
    %839 = vst [vmem:[#allocation3 + $0x518] sm:$0xff] %v767
    %840 = vst [vmem:[#allocation3 + $0x560] sm:$0xff] %v768
    %841 = vst [vmem:[#allocation3 + $0x5a8] sm:$0xff] %v769
    %842 = vst [vmem:[#allocation3 + $0x5f0] sm:$0xff] %v770
    %843 = vst [vmem:[#allocation3 + $0x638] sm:$0xff] %v771
    %844 = vst [vmem:[#allocation3 + $0x680] sm:$0xff] %v772
    %845 = vst [vmem:[#allocation3 + $0x6c8] sm:$0xff] %v773
    %846 = vst [vmem:[#allocation3 + $0x710] sm:$0xff] %v774
    %847 = vst [vmem:[#allocation3 + $0x758] sm:$0xff] %v775
    %848 = vst [vmem:[#allocation3 + $0x7a0] sm:$0xff] %v776
    %849 = vst [vmem:[#allocation3 + $0x7e8] sm:$0xff] %v777
    %850 = vst [vmem:[#allocation3 + $0x830] sm:$0xff] %v778
    %851 = vst [vmem:[#allocation3 + $0x878] sm:$0xff] %v779
    %852 = vst [vmem:[#allocation3 + $0x8c0] sm:$0xff] %v780
    %853 = vst [vmem:[#allocation3 + $0x908] sm:$0xff] %v785
    %854 = vst [vmem:[#allocation3 + $0x950] sm:$0xff] %v786
    %855 = vst [vmem:[#allocation3 + $0x998] sm:$0xff] %v787
    %856 = vst [vmem:[#allocation3 + $0x9e0] sm:$0xff] %v788
    %857 = vst [vmem:[#allocation3 + $0xa28] sm:$0xff] %v789
    %858 = vst [vmem:[#allocation3 + $0xa70] sm:$0xff] %v790
    %859 = vst [vmem:[#allocation3 + $0xab8] sm:$0xff] %v791
    %860 = vst [vmem:[#allocation3 + $0xb00] sm:$0xff] %v792
    %861 = vst [vmem:[#allocation3 + $0xb48] sm:$0xff] %v793
    %862 = vst [vmem:[#allocation3 + $0xb90] sm:$0xff] %v794
    %863 = vst [vmem:[#allocation3 + $0xbd8] sm:$0xff] %v795
    %864 = vst [vmem:[#allocation3 + $0xc20] sm:$0xff] %v796
    %865 = vst [vmem:[#allocation3 + $0xc68] sm:$0xff] %v797
    %866 = vst [vmem:[#allocation3 + $0xcb0] sm:$0xff] %v798
    %867 = vst [vmem:[#allocation3 + $0xcf8] sm:$0xff] %v799
    %868 = vst [vmem:[#allocation3 + $0xd40] sm:$0xff] %v800
    %869 = vst [vmem:[#allocation3 + $0xd88] sm:$0xff] %v801
    %870 = vst [vmem:[#allocation3 + $0xdd0] sm:$0xff] %v802
    %871 = vst [vmem:[#allocation3 + $0xe18] sm:$0xff] %v803
    %872 = vst [vmem:[#allocation3 + $0xe60] sm:$0xff] %v804
    %873 = vst [vmem:[#allocation3 + $0xea8] sm:$0xff] %v805
    %874 = vst [vmem:[#allocation3 + $0xef0] sm:$0xff] %v806
    %875 = vst [vmem:[#allocation3 + $0xf38] sm:$0xff] %v807
    %876 = vst [vmem:[#allocation3 + $0xf80] sm:$0xff] %v808
    %877 = vst [vmem:[#allocation3 + $0xfc8] sm:$0xff] %v809
    %878 = vst [vmem:[#allocation3 + $0x1010] sm:$0xff] %v810
    %879 = vst [vmem:[#allocation3 + $0x1058] sm:$0xff] %v811
    %880 = vst [vmem:[#allocation3 + $0x10a0] sm:$0xff] %v812
    %881 = vst [vmem:[#allocation3 + $0x10e8] sm:$0xff] %v813
    %882 = vst [vmem:[#allocation3 + $0x1130] sm:$0xff] %v814
    %883 = vst [vmem:[#allocation3 + $0x1178] sm:$0xff] %v815
    %884 = vst [vmem:[#allocation3 + $0x11c0] sm:$0xff] %v816
    %885 = vst [vmem:[#allocation3 + $0x20] sm:$0xff] %v751
    %886 = vst [vmem:[#allocation3 + $0x68] sm:$0xff] %v752
    %887 = vst [vmem:[#allocation3 + $0xb0] sm:$0xff] %v753
    %888 = vst [vmem:[#allocation3 + $0xf8] sm:$0xff] %v754
    %889 = vst [vmem:[#allocation3 + $0x140] sm:$0xff] %v755
    %890 = vst [vmem:[#allocation3 + $0x188] sm:$0xff] %v756
    %891 = vst [vmem:[#allocation3 + $0x1d0] sm:$0xff] %v757
    %892 = vst [vmem:[#allocation3 + $0x218] sm:$0xff] %v758
    %893 = vst [vmem:[#allocation3 + $0x260] sm:$0xff] %v759
    %894 = vst [vmem:[#allocation3 + $0x2a8] sm:$0xff] %v760
    %895 = vst [vmem:[#allocation3 + $0x2f0] sm:$0xff] %v761
    %896 = vst [vmem:[#allocation3 + $0x338] sm:$0xff] %v762
    %897 = vst [vmem:[#allocation3 + $0x380] sm:$0xff] %v763
    %898 = vst [vmem:[#allocation3 + $0x3c8] sm:$0xff] %v764
    %899 = vst [vmem:[#allocation3 + $0x410] sm:$0xff] %v765
    %900 = vst [vmem:[#allocation3 + $0x458] sm:$0xff] %v766
    %901 = vst [vmem:[#allocation3 + $0x4a0] sm:$0xff] %v767
    %902 = vst [vmem:[#allocation3 + $0x4e8] sm:$0xff] %v768
    %903 = vst [vmem:[#allocation3 + $0x530] sm:$0xff] %v769
    %904 = vst [vmem:[#allocation3 + $0x578] sm:$0xff] %v770
    %905 = vst [vmem:[#allocation3 + $0x5c0] sm:$0xff] %v771
    %906 = vst [vmem:[#allocation3 + $0x608] sm:$0xff] %v772
    %907 = vst [vmem:[#allocation3 + $0x650] sm:$0xff] %v773
    %908 = vst [vmem:[#allocation3 + $0x698] sm:$0xff] %v774
    %909 = vst [vmem:[#allocation3 + $0x6e0] sm:$0xff] %v775
    %910 = vst [vmem:[#allocation3 + $0x728] sm:$0xff] %v776
    %911 = vst [vmem:[#allocation3 + $0x770] sm:$0xff] %v777
    %912 = vst [vmem:[#allocation3 + $0x7b8] sm:$0xff] %v778
    %913 = vst [vmem:[#allocation3 + $0x800] sm:$0xff] %v779
    %914 = vst [vmem:[#allocation3 + $0x848] sm:$0xff] %v780
    %915 = vst [vmem:[#allocation3 + $0x890] sm:$0xff] %v781
    %916 = vst [vmem:[#allocation3 + $0x8d8] sm:$0xff] %v782
    %917 = vst [vmem:[#allocation3 + $0x920] sm:$0xff] %v787
    %918 = vst [vmem:[#allocation3 + $0x968] sm:$0xff] %v788
    %919 = vst [vmem:[#allocation3 + $0x9b0] sm:$0xff] %v789
    %920 = vst [vmem:[#allocation3 + $0x9f8] sm:$0xff] %v790
    %921 = vst [vmem:[#allocation3 + $0xa40] sm:$0xff] %v791
    %922 = vst [vmem:[#allocation3 + $0xa88] sm:$0xff] %v792
    %923 = vst [vmem:[#allocation3 + $0xad0] sm:$0xff] %v793
    %924 = vst [vmem:[#allocation3 + $0xb18] sm:$0xff] %v794
    %925 = vst [vmem:[#allocation3 + $0xb60] sm:$0xff] %v795
    %926 = vst [vmem:[#allocation3 + $0xba8] sm:$0xff] %v796
    %927 = vst [vmem:[#allocation3 + $0xbf0] sm:$0xff] %v797
    %928 = vst [vmem:[#allocation3 + $0xc38] sm:$0xff] %v798
    %929 = vst [vmem:[#allocation3 + $0xc80] sm:$0xff] %v799
    %930 = vst [vmem:[#allocation3 + $0xcc8] sm:$0xff] %v800
    %931 = vst [vmem:[#allocation3 + $0xd10] sm:$0xff] %v801
    %932 = vst [vmem:[#allocation3 + $0xd58] sm:$0xff] %v802
    %933 = vst [vmem:[#allocation3 + $0xda0] sm:$0xff] %v803
    %934 = vst [vmem:[#allocation3 + $0xde8] sm:$0xff] %v804
    %935 = vst [vmem:[#allocation3 + $0xe30] sm:$0xff] %v805
    %936 = vst [vmem:[#allocation3 + $0xe78] sm:$0xff] %v806
    %937 = vst [vmem:[#allocation3 + $0xec0] sm:$0xff] %v807
    %938 = vst [vmem:[#allocation3 + $0xf08] sm:$0xff] %v808
    %939 = vst [vmem:[#allocation3 + $0xf50] sm:$0xff] %v809
    %940 = vst [vmem:[#allocation3 + $0xf98] sm:$0xff] %v810
    %941 = vst [vmem:[#allocation3 + $0xfe0] sm:$0xff] %v811
    %942 = vst [vmem:[#allocation3 + $0x1028] sm:$0xff] %v812
    %943 = vst [vmem:[#allocation3 + $0x1070] sm:$0xff] %v813
    %944 = vst [vmem:[#allocation3 + $0x10b8] sm:$0xff] %v814
    %945 = vst [vmem:[#allocation3 + $0x1100] sm:$0xff] %v815
    %946 = vst [vmem:[#allocation3 + $0x1148] sm:$0xff] %v816
    %947 = vst [vmem:[#allocation3 + $0x1190] sm:$0xff] %v817
    %948 = vst [vmem:[#allocation3 + $0x11d8] sm:$0xff] %v818
    %949 = vst [vmem:[#allocation3 + $0x38] sm:$0xff] %v753
    %950 = vst [vmem:[#allocation3 + $0x80] sm:$0xff] %v754
    %951 = vst [vmem:[#allocation3 + $0xc8] sm:$0xff] %v755
    %952 = vst [vmem:[#allocation3 + $0x110] sm:$0xff] %v756
    %953 = vst [vmem:[#allocation3 + $0x158] sm:$0xff] %v757
    %954 = vst [vmem:[#allocation3 + $0x1a0] sm:$0xff] %v758
    %955 = vst [vmem:[#allocation3 + $0x1e8] sm:$0xff] %v759
    %956 = vst [vmem:[#allocation3 + $0x230] sm:$0xff] %v760
    %957 = vst [vmem:[#allocation3 + $0x278] sm:$0xff] %v761
    %958 = vst [vmem:[#allocation3 + $0x2c0] sm:$0xff] %v762
    %959 = vst [vmem:[#allocation3 + $0x308] sm:$0xff] %v763
    %960 = vst [vmem:[#allocation3 + $0x350] sm:$0xff] %v764
    %961 = vst [vmem:[#allocation3 + $0x398] sm:$0xff] %v765
    %962 = vst [vmem:[#allocation3 + $0x3e0] sm:$0xff] %v766
    %963 = vst [vmem:[#allocation3 + $0x428] sm:$0xff] %v767
    %964 = vst [vmem:[#allocation3 + $0x470] sm:$0xff] %v768
    %965 = vst [vmem:[#allocation3 + $0x4b8] sm:$0xff] %v769
    %966 = vst [vmem:[#allocation3 + $0x500] sm:$0xff] %v770
    %967 = vst [vmem:[#allocation3 + $0x548] sm:$0xff] %v771
    %968 = vst [vmem:[#allocation3 + $0x590] sm:$0xff] %v772
    %969 = vst [vmem:[#allocation3 + $0x5d8] sm:$0xff] %v773
    %970 = vst [vmem:[#allocation3 + $0x620] sm:$0xff] %v774
    %971 = vst [vmem:[#allocation3 + $0x668] sm:$0xff] %v775
    %972 = vst [vmem:[#allocation3 + $0x6b0] sm:$0xff] %v776
    %973 = vst [vmem:[#allocation3 + $0x6f8] sm:$0xff] %v777
    %974 = vst [vmem:[#allocation3 + $0x740] sm:$0xff] %v778
    %975 = vst [vmem:[#allocation3 + $0x788] sm:$0xff] %v779
    %976 = vst [vmem:[#allocation3 + $0x7d0] sm:$0xff] %v780
    %977 = vst [vmem:[#allocation3 + $0x818] sm:$0xff] %v781
    %978 = vst [vmem:[#allocation3 + $0x860] sm:$0xff] %v782
    %979 = vst [vmem:[#allocation3 + $0x8a8] sm:$0xff] %v783
    %980 = vst [vmem:[#allocation3 + $0x8f0] sm:$0xff] %v784
    %981 = vst [vmem:[#allocation3 + $0x938] sm:$0xff] %v789
    %982 = vst [vmem:[#allocation3 + $0x980] sm:$0xff] %v790
    %983 = vst [vmem:[#allocation3 + $0x9c8] sm:$0xff] %v791
    %984 = vst [vmem:[#allocation3 + $0xa10] sm:$0xff] %v792
    %985 = vst [vmem:[#allocation3 + $0xa58] sm:$0xff] %v793
    %986 = vst [vmem:[#allocation3 + $0xaa0] sm:$0xff] %v794
    %987 = vst [vmem:[#allocation3 + $0xae8] sm:$0xff] %v795
    %988 = vst [vmem:[#allocation3 + $0xb30] sm:$0xff] %v796
    %989 = vst [vmem:[#allocation3 + $0xb78] sm:$0xff] %v797
    %990 = vst [vmem:[#allocation3 + $0xbc0] sm:$0xff] %v798
    %991 = vst [vmem:[#allocation3 + $0xc08] sm:$0xff] %v799
    %992 = vst [vmem:[#allocation3 + $0xc50] sm:$0xff] %v800
    %993 = vst [vmem:[#allocation3 + $0xc98] sm:$0xff] %v801
    %994 = vst [vmem:[#allocation3 + $0xce0] sm:$0xff] %v802
    %995 = vst [vmem:[#allocation3 + $0xd28] sm:$0xff] %v803
    %996 = vst [vmem:[#allocation3 + $0xd70] sm:$0xff] %v804
    %997 = vst [vmem:[#allocation3 + $0xdb8] sm:$0xff] %v805
    %998 = vst [vmem:[#allocation3 + $0xe00] sm:$0xff] %v806
    %999 = vst [vmem:[#allocation3 + $0xe48] sm:$0xff] %v807
    %1000 = vst [vmem:[#allocation3 + $0xe90] sm:$0xff] %v808
    %1001 = vst [vmem:[#allocation3 + $0xed8] sm:$0xff] %v809
    %1002 = vst [vmem:[#allocation3 + $0xf20] sm:$0xff] %v810
    %1003 = vst [vmem:[#allocation3 + $0xf68] sm:$0xff] %v811
    %1004 = vst [vmem:[#allocation3 + $0xfb0] sm:$0xff] %v812
    %1005 = vst [vmem:[#allocation3 + $0xff8] sm:$0xff] %v813
    %1006 = vst [vmem:[#allocation3 + $0x1040] sm:$0xff] %v814
    %1007 = vst [vmem:[#allocation3 + $0x1088] sm:$0xff] %v815
    %1008 = vst [vmem:[#allocation3 + $0x10d0] sm:$0xff] %v816
    %1009 = vst [vmem:[#allocation3 + $0x1118] sm:$0xff] %v817
    %1010 = vst [vmem:[#allocation3 + $0x1160] sm:$0xff] %v818
    %1011 = vst [vmem:[#allocation3 + $0x11a8] sm:$0xff] %v819
    %1012 = vst [vmem:[#allocation3 + $0x11f0] sm:$0xff] %v820
    %v1013 = vld [vmem:[#allocation2 + $0x2] sm:$0xff]
    %v1014 = vld [vmem:[#allocation2 + $0xa] sm:$0xff]
    %v1015 = vld [vmem:[#allocation2 + $0x1a] sm:$0xff]
    %v1016 = vld [vmem:[#allocation2 + $0x22] sm:$0xff]
    %v1017 = vld [vmem:[#allocation2 + $0x32] sm:$0xff]
    %v1018 = vld [vmem:[#allocation2 + $0x3a] sm:$0xff]
    %v1019 = vld [vmem:[#allocation2 + $0x4a] sm:$0xff]
    %v1020 = vld [vmem:[#allocation2 + $0x52] sm:$0xff]
    %v1021 = vld [vmem:[#allocation2 + $0x62] sm:$0xff]
    %v1022 = vld [vmem:[#allocation2 + $0x6a] sm:$0xff]
    %v1023 = vld [vmem:[#allocation2 + $0x7a] sm:$0xff]
    %v1024 = vld [vmem:[#allocation2 + $0x82] sm:$0xff]
    %v1025 = vld [vmem:[#allocation2 + $0x92] sm:$0xff]
    %v1026 = vld [vmem:[#allocation2 + $0x9a] sm:$0xff]
    %v1027 = vld [vmem:[#allocation2 + $0xaa] sm:$0xff]
    %v1028 = vld [vmem:[#allocation2 + $0xb2] sm:$0xff]
    %v1029 = vld [vmem:[#allocation2 + $0xc2] sm:$0xff]
    %v1030 = vld [vmem:[#allocation2 + $0xca] sm:$0xff]
    %v1031 = vld [vmem:[#allocation2 + $0xda] sm:$0xff]
    %v1032 = vld [vmem:[#allocation2 + $0xe2] sm:$0xff]
    %v1033 = vld [vmem:[#allocation2 + $0xf2] sm:$0xff]
    %v1034 = vld [vmem:[#allocation2 + $0xfa] sm:$0xff]
    %v1035 = vld [vmem:[#allocation2 + $0x10a] sm:$0xff]
    %v1036 = vld [vmem:[#allocation2 + $0x112] sm:$0xff]
    %v1037 = vld [vmem:[#allocation2 + $0x122] sm:$0xff]
    %v1038 = vld [vmem:[#allocation2 + $0x12a] sm:$0xff]
    %v1039 = vld [vmem:[#allocation2 + $0x13a] sm:$0xff]
    %v1040 = vld [vmem:[#allocation2 + $0x142] sm:$0xff]
    %v1041 = vld [vmem:[#allocation2 + $0x152] sm:$0xff]
    %v1042 = vld [vmem:[#allocation2 + $0x15a] sm:$0xff]
    %v1043 = vld [vmem:[#allocation2 + $0x16a] sm:$0xff]
    %v1044 = vld [vmem:[#allocation2 + $0x172] sm:$0xff]
    %v1045 = vld [vmem:[#allocation2 + $0x182] sm:$0xff]
    %v1046 = vld [vmem:[#allocation2 + $0x18a] sm:$0xff]
    %v1047 = vld [vmem:[#allocation2 + $0x19a] sm:$0xff]
    %v1048 = vld [vmem:[#allocation2 + $0x1a2] sm:$0xff]
    %v1049 = vld [vmem:[#allocation2 + $0x1b2] sm:$0xff]
    %v1050 = vld [vmem:[#allocation2 + $0x1ba] sm:$0xff]
    %v1051 = vld [vmem:[#allocation2 + $0x1ca] sm:$0xff]
    %v1052 = vld [vmem:[#allocation2 + $0x1d2] sm:$0xff]
    %v1053 = vld [vmem:[#allocation2 + $0x1e2] sm:$0xff]
    %v1054 = vld [vmem:[#allocation2 + $0x1ea] sm:$0xff]
    %v1055 = vld [vmem:[#allocation2 + $0x1fa] sm:$0xff]
    %v1056 = vld [vmem:[#allocation2 + $0x202] sm:$0xff]
    %v1057 = vld [vmem:[#allocation2 + $0x212] sm:$0xff]
    %v1058 = vld [vmem:[#allocation2 + $0x21a] sm:$0xff]
    %v1059 = vld [vmem:[#allocation2 + $0x22a] sm:$0xff]
    %v1060 = vld [vmem:[#allocation2 + $0x232] sm:$0xff]
    %v1061 = vld [vmem:[#allocation2 + $0x242] sm:$0xff]
    %v1062 = vld [vmem:[#allocation2 + $0x24a] sm:$0xff]
    %v1063 = vld [vmem:[#allocation2 + $0x25a] sm:$0xff]
    %v1064 = vld [vmem:[#allocation2 + $0x262] sm:$0xff]
    %v1065 = vld [vmem:[#allocation2 + $0x272] sm:$0xff]
    %v1066 = vld [vmem:[#allocation2 + $0x27a] sm:$0xff]
    %v1067 = vld [vmem:[#allocation2 + $0x28a] sm:$0xff]
    %v1068 = vld [vmem:[#allocation2 + $0x292] sm:$0xff]
    %v1069 = vld [vmem:[#allocation2 + $0x2a2] sm:$0xff]
    %v1070 = vld [vmem:[#allocation2 + $0x2aa] sm:$0xff]
    %v1071 = vld [vmem:[#allocation2 + $0x2ba] sm:$0xff]
    %v1072 = vld [vmem:[#allocation2 + $0x2c2] sm:$0xff]
    %v1073 = vld [vmem:[#allocation2 + $0x2d2] sm:$0xff]
    %v1074 = vld [vmem:[#allocation2 + $0x2da] sm:$0xff]
    %v1075 = vld [vmem:[#allocation2 + $0x2ea] sm:$0xff]
    %v1076 = vld [vmem:[#allocation2 + $0x2f2] sm:$0xff]
    %v1077 = vld [vmem:[#allocation2 + $0x302] sm:$0xff]
    %v1078 = vld [vmem:[#allocation2 + $0x30a] sm:$0xff]
    %v1079 = vld [vmem:[#allocation2 + $0x31a] sm:$0xff]
    %v1080 = vld [vmem:[#allocation2 + $0x322] sm:$0xff]
    %v1081 = vld [vmem:[#allocation2 + $0x332] sm:$0xff]
    %v1082 = vld [vmem:[#allocation2 + $0x33a] sm:$0xff]
    %v1083 = vld [vmem:[#allocation2 + $0x34a] sm:$0xff]
    %v1084 = vld [vmem:[#allocation2 + $0x352] sm:$0xff]
    %1085 = vst [vmem:[#allocation3 + $0x10] sm:$0xff] %v1013
    %1086 = vst [vmem:[#allocation3 + $0x58] sm:$0xff] %v1014
    %1087 = vst [vmem:[#allocation3 + $0xa0] sm:$0xff] %v1015
    %1088 = vst [vmem:[#allocation3 + $0xe8] sm:$0xff] %v1016
    %1089 = vst [vmem:[#allocation3 + $0x130] sm:$0xff] %v1017
    %1090 = vst [vmem:[#allocation3 + $0x178] sm:$0xff] %v1018
    %1091 = vst [vmem:[#allocation3 + $0x1c0] sm:$0xff] %v1019
    %1092 = vst [vmem:[#allocation3 + $0x208] sm:$0xff] %v1020
    %1093 = vst [vmem:[#allocation3 + $0x250] sm:$0xff] %v1021
    %1094 = vst [vmem:[#allocation3 + $0x298] sm:$0xff] %v1022
    %1095 = vst [vmem:[#allocation3 + $0x2e0] sm:$0xff] %v1023
    %1096 = vst [vmem:[#allocation3 + $0x328] sm:$0xff] %v1024
    %1097 = vst [vmem:[#allocation3 + $0x370] sm:$0xff] %v1025
    %1098 = vst [vmem:[#allocation3 + $0x3b8] sm:$0xff] %v1026
    %1099 = vst [vmem:[#allocation3 + $0x400] sm:$0xff] %v1027
    %1100 = vst [vmem:[#allocation3 + $0x448] sm:$0xff] %v1028
    %1101 = vst [vmem:[#allocation3 + $0x490] sm:$0xff] %v1029
    %1102 = vst [vmem:[#allocation3 + $0x4d8] sm:$0xff] %v1030
    %1103 = vst [vmem:[#allocation3 + $0x520] sm:$0xff] %v1031
    %1104 = vst [vmem:[#allocation3 + $0x568] sm:$0xff] %v1032
    %1105 = vst [vmem:[#allocation3 + $0x5b0] sm:$0xff] %v1033
    %1106 = vst [vmem:[#allocation3 + $0x5f8] sm:$0xff] %v1034
    %1107 = vst [vmem:[#allocation3 + $0x640] sm:$0xff] %v1035
    %1108 = vst [vmem:[#allocation3 + $0x688] sm:$0xff] %v1036
    %1109 = vst [vmem:[#allocation3 + $0x6d0] sm:$0xff] %v1037
    %1110 = vst [vmem:[#allocation3 + $0x718] sm:$0xff] %v1038
    %1111 = vst [vmem:[#allocation3 + $0x760] sm:$0xff] %v1039
    %1112 = vst [vmem:[#allocation3 + $0x7a8] sm:$0xff] %v1040
    %1113 = vst [vmem:[#allocation3 + $0x7f0] sm:$0xff] %v1041
    %1114 = vst [vmem:[#allocation3 + $0x838] sm:$0xff] %v1042
    %1115 = vst [vmem:[#allocation3 + $0x880] sm:$0xff] %v1043
    %1116 = vst [vmem:[#allocation3 + $0x8c8] sm:$0xff] %v1044
    %1117 = vst [vmem:[#allocation3 + $0x910] sm:$0xff] %v1049
    %1118 = vst [vmem:[#allocation3 + $0x958] sm:$0xff] %v1050
    %1119 = vst [vmem:[#allocation3 + $0x9a0] sm:$0xff] %v1051
    %1120 = vst [vmem:[#allocation3 + $0x9e8] sm:$0xff] %v1052
    %1121 = vst [vmem:[#allocation3 + $0xa30] sm:$0xff] %v1053
    %1122 = vst [vmem:[#allocation3 + $0xa78] sm:$0xff] %v1054
    %1123 = vst [vmem:[#allocation3 + $0xac0] sm:$0xff] %v1055
    %1124 = vst [vmem:[#allocation3 + $0xb08] sm:$0xff] %v1056
    %1125 = vst [vmem:[#allocation3 + $0xb50] sm:$0xff] %v1057
    %1126 = vst [vmem:[#allocation3 + $0xb98] sm:$0xff] %v1058
    %1127 = vst [vmem:[#allocation3 + $0xbe0] sm:$0xff] %v1059
    %1128 = vst [vmem:[#allocation3 + $0xc28] sm:$0xff] %v1060
    %1129 = vst [vmem:[#allocation3 + $0xc70] sm:$0xff] %v1061
    %1130 = vst [vmem:[#allocation3 + $0xcb8] sm:$0xff] %v1062
    %1131 = vst [vmem:[#allocation3 + $0xd00] sm:$0xff] %v1063
    %1132 = vst [vmem:[#allocation3 + $0xd48] sm:$0xff] %v1064
    %1133 = vst [vmem:[#allocation3 + $0xd90] sm:$0xff] %v1065
    %1134 = vst [vmem:[#allocation3 + $0xdd8] sm:$0xff] %v1066
    %1135 = vst [vmem:[#allocation3 + $0xe20] sm:$0xff] %v1067
    %1136 = vst [vmem:[#allocation3 + $0xe68] sm:$0xff] %v1068
    %1137 = vst [vmem:[#allocation3 + $0xeb0] sm:$0xff] %v1069
    %1138 = vst [vmem:[#allocation3 + $0xef8] sm:$0xff] %v1070
    %1139 = vst [vmem:[#allocation3 + $0xf40] sm:$0xff] %v1071
    %1140 = vst [vmem:[#allocation3 + $0xf88] sm:$0xff] %v1072
    %1141 = vst [vmem:[#allocation3 + $0xfd0] sm:$0xff] %v1073
    %1142 = vst [vmem:[#allocation3 + $0x1018] sm:$0xff] %v1074
    %1143 = vst [vmem:[#allocation3 + $0x1060] sm:$0xff] %v1075
    %1144 = vst [vmem:[#allocation3 + $0x10a8] sm:$0xff] %v1076
    %1145 = vst [vmem:[#allocation3 + $0x10f0] sm:$0xff] %v1077
    %1146 = vst [vmem:[#allocation3 + $0x1138] sm:$0xff] %v1078
    %1147 = vst [vmem:[#allocation3 + $0x1180] sm:$0xff] %v1079
    %1148 = vst [vmem:[#allocation3 + $0x11c8] sm:$0xff] %v1080
    %1149 = vst [vmem:[#allocation3 + $0x28] sm:$0xff] %v1015
    %1150 = vst [vmem:[#allocation3 + $0x70] sm:$0xff] %v1016
    %1151 = vst [vmem:[#allocation3 + $0xb8] sm:$0xff] %v1017
    %1152 = vst [vmem:[#allocation3 + $0x100] sm:$0xff] %v1018
    %1153 = vst [vmem:[#allocation3 + $0x148] sm:$0xff] %v1019
    %1154 = vst [vmem:[#allocation3 + $0x190] sm:$0xff] %v1020
    %1155 = vst [vmem:[#allocation3 + $0x1d8] sm:$0xff] %v1021
    %1156 = vst [vmem:[#allocation3 + $0x220] sm:$0xff] %v1022
    %1157 = vst [vmem:[#allocation3 + $0x268] sm:$0xff] %v1023
    %1158 = vst [vmem:[#allocation3 + $0x2b0] sm:$0xff] %v1024
    %1159 = vst [vmem:[#allocation3 + $0x2f8] sm:$0xff] %v1025
    %1160 = vst [vmem:[#allocation3 + $0x340] sm:$0xff] %v1026
    %1161 = vst [vmem:[#allocation3 + $0x388] sm:$0xff] %v1027
    %1162 = vst [vmem:[#allocation3 + $0x3d0] sm:$0xff] %v1028
    %1163 = vst [vmem:[#allocation3 + $0x418] sm:$0xff] %v1029
    %1164 = vst [vmem:[#allocation3 + $0x460] sm:$0xff] %v1030
    %1165 = vst [vmem:[#allocation3 + $0x4a8] sm:$0xff] %v1031
    %1166 = vst [vmem:[#allocation3 + $0x4f0] sm:$0xff] %v1032
    %1167 = vst [vmem:[#allocation3 + $0x538] sm:$0xff] %v1033
    %1168 = vst [vmem:[#allocation3 + $0x580] sm:$0xff] %v1034
    %1169 = vst [vmem:[#allocation3 + $0x5c8] sm:$0xff] %v1035
    %1170 = vst [vmem:[#allocation3 + $0x610] sm:$0xff] %v1036
    %1171 = vst [vmem:[#allocation3 + $0x658] sm:$0xff] %v1037
    %1172 = vst [vmem:[#allocation3 + $0x6a0] sm:$0xff] %v1038
    %1173 = vst [vmem:[#allocation3 + $0x6e8] sm:$0xff] %v1039
    %1174 = vst [vmem:[#allocation3 + $0x730] sm:$0xff] %v1040
    %1175 = vst [vmem:[#allocation3 + $0x778] sm:$0xff] %v1041
    %1176 = vst [vmem:[#allocation3 + $0x7c0] sm:$0xff] %v1042
    %1177 = vst [vmem:[#allocation3 + $0x808] sm:$0xff] %v1043
    %1178 = vst [vmem:[#allocation3 + $0x850] sm:$0xff] %v1044
    %1179 = vst [vmem:[#allocation3 + $0x898] sm:$0xff] %v1045
    %1180 = vst [vmem:[#allocation3 + $0x8e0] sm:$0xff] %v1046
    %1181 = vst [vmem:[#allocation3 + $0x928] sm:$0xff] %v1051
    %1182 = vst [vmem:[#allocation3 + $0x970] sm:$0xff] %v1052
    %1183 = vst [vmem:[#allocation3 + $0x9b8] sm:$0xff] %v1053
    %1184 = vst [vmem:[#allocation3 + $0xa00] sm:$0xff] %v1054
    %1185 = vst [vmem:[#allocation3 + $0xa48] sm:$0xff] %v1055
    %1186 = vst [vmem:[#allocation3 + $0xa90] sm:$0xff] %v1056
    %1187 = vst [vmem:[#allocation3 + $0xad8] sm:$0xff] %v1057
    %1188 = vst [vmem:[#allocation3 + $0xb20] sm:$0xff] %v1058
    %1189 = vst [vmem:[#allocation3 + $0xb68] sm:$0xff] %v1059
    %1190 = vst [vmem:[#allocation3 + $0xbb0] sm:$0xff] %v1060
    %1191 = vst [vmem:[#allocation3 + $0xbf8] sm:$0xff] %v1061
    %1192 = vst [vmem:[#allocation3 + $0xc40] sm:$0xff] %v1062
    %1193 = vst [vmem:[#allocation3 + $0xc88] sm:$0xff] %v1063
    %1194 = vst [vmem:[#allocation3 + $0xcd0] sm:$0xff] %v1064
    %1195 = vst [vmem:[#allocation3 + $0xd18] sm:$0xff] %v1065
    %1196 = vst [vmem:[#allocation3 + $0xd60] sm:$0xff] %v1066
    %1197 = vst [vmem:[#allocation3 + $0xda8] sm:$0xff] %v1067
    %1198 = vst [vmem:[#allocation3 + $0xdf0] sm:$0xff] %v1068
    %1199 = vst [vmem:[#allocation3 + $0xe38] sm:$0xff] %v1069
    %1200 = vst [vmem:[#allocation3 + $0xe80] sm:$0xff] %v1070
    %1201 = vst [vmem:[#allocation3 + $0xec8] sm:$0xff] %v1071
    %1202 = vst [vmem:[#allocation3 + $0xf10] sm:$0xff] %v1072
    %1203 = vst [vmem:[#allocation3 + $0xf58] sm:$0xff] %v1073
    %1204 = vst [vmem:[#allocation3 + $0xfa0] sm:$0xff] %v1074
    %1205 = vst [vmem:[#allocation3 + $0xfe8] sm:$0xff] %v1075
    %1206 = vst [vmem:[#allocation3 + $0x1030] sm:$0xff] %v1076
    %1207 = vst [vmem:[#allocation3 + $0x1078] sm:$0xff] %v1077
    %1208 = vst [vmem:[#allocation3 + $0x10c0] sm:$0xff] %v1078
    %1209 = vst [vmem:[#allocation3 + $0x1108] sm:$0xff] %v1079
    %1210 = vst [vmem:[#allocation3 + $0x1150] sm:$0xff] %v1080
    %1211 = vst [vmem:[#allocation3 + $0x1198] sm:$0xff] %v1081
    %1212 = vst [vmem:[#allocation3 + $0x11e0] sm:$0xff] %v1082
    %1213 = vst [vmem:[#allocation3 + $0x40] sm:$0xff] %v1017
    %1214 = vst [vmem:[#allocation3 + $0x88] sm:$0xff] %v1018
    %1215 = vst [vmem:[#allocation3 + $0xd0] sm:$0xff] %v1019
    %1216 = vst [vmem:[#allocation3 + $0x118] sm:$0xff] %v1020
    %1217 = vst [vmem:[#allocation3 + $0x160] sm:$0xff] %v1021
    %1218 = vst [vmem:[#allocation3 + $0x1a8] sm:$0xff] %v1022
    %1219 = vst [vmem:[#allocation3 + $0x1f0] sm:$0xff] %v1023
    %1220 = vst [vmem:[#allocation3 + $0x238] sm:$0xff] %v1024
    %1221 = vst [vmem:[#allocation3 + $0x280] sm:$0xff] %v1025
    %1222 = vst [vmem:[#allocation3 + $0x2c8] sm:$0xff] %v1026
    %1223 = vst [vmem:[#allocation3 + $0x310] sm:$0xff] %v1027
    %1224 = vst [vmem:[#allocation3 + $0x358] sm:$0xff] %v1028
    %1225 = vst [vmem:[#allocation3 + $0x3a0] sm:$0xff] %v1029
    %1226 = vst [vmem:[#allocation3 + $0x3e8] sm:$0xff] %v1030
    %1227 = vst [vmem:[#allocation3 + $0x430] sm:$0xff] %v1031
    %1228 = vst [vmem:[#allocation3 + $0x478] sm:$0xff] %v1032
    %1229 = vst [vmem:[#allocation3 + $0x4c0] sm:$0xff] %v1033
    %1230 = vst [vmem:[#allocation3 + $0x508] sm:$0xff] %v1034
    %1231 = vst [vmem:[#allocation3 + $0x550] sm:$0xff] %v1035
    %1232 = vst [vmem:[#allocation3 + $0x598] sm:$0xff] %v1036
    %1233 = vst [vmem:[#allocation3 + $0x5e0] sm:$0xff] %v1037
    %1234 = vst [vmem:[#allocation3 + $0x628] sm:$0xff] %v1038
    %1235 = vst [vmem:[#allocation3 + $0x670] sm:$0xff] %v1039
    %1236 = vst [vmem:[#allocation3 + $0x6b8] sm:$0xff] %v1040
    %1237 = vst [vmem:[#allocation3 + $0x700] sm:$0xff] %v1041
    %1238 = vst [vmem:[#allocation3 + $0x748] sm:$0xff] %v1042
    %1239 = vst [vmem:[#allocation3 + $0x790] sm:$0xff] %v1043
    %1240 = vst [vmem:[#allocation3 + $0x7d8] sm:$0xff] %v1044
    %1241 = vst [vmem:[#allocation3 + $0x820] sm:$0xff] %v1045
    %1242 = vst [vmem:[#allocation3 + $0x868] sm:$0xff] %v1046
    %1243 = vst [vmem:[#allocation3 + $0x8b0] sm:$0xff] %v1047
    %1244 = vst [vmem:[#allocation3 + $0x8f8] sm:$0xff] %v1048
    %1245 = vst [vmem:[#allocation3 + $0x940] sm:$0xff] %v1053
    %1246 = vst [vmem:[#allocation3 + $0x988] sm:$0xff] %v1054
    %1247 = vst [vmem:[#allocation3 + $0x9d0] sm:$0xff] %v1055
    %1248 = vst [vmem:[#allocation3 + $0xa18] sm:$0xff] %v1056
    %1249 = vst [vmem:[#allocation3 + $0xa60] sm:$0xff] %v1057
    %1250 = vst [vmem:[#allocation3 + $0xaa8] sm:$0xff] %v1058
    %1251 = vst [vmem:[#allocation3 + $0xaf0] sm:$0xff] %v1059
    %1252 = vst [vmem:[#allocation3 + $0xb38] sm:$0xff] %v1060
    %1253 = vst [vmem:[#allocation3 + $0xb80] sm:$0xff] %v1061
    %1254 = vst [vmem:[#allocation3 + $0xbc8] sm:$0xff] %v1062
    %1255 = vst [vmem:[#allocation3 + $0xc10] sm:$0xff] %v1063
    %1256 = vst [vmem:[#allocation3 + $0xc58] sm:$0xff] %v1064
    %1257 = vst [vmem:[#allocation3 + $0xca0] sm:$0xff] %v1065
    %1258 = vst [vmem:[#allocation3 + $0xce8] sm:$0xff] %v1066
    %1259 = vst [vmem:[#allocation3 + $0xd30] sm:$0xff] %v1067
    %1260 = vst [vmem:[#allocation3 + $0xd78] sm:$0xff] %v1068
    %1261 = vst [vmem:[#allocation3 + $0xdc0] sm:$0xff] %v1069
    %1262 = vst [vmem:[#allocation3 + $0xe08] sm:$0xff] %v1070
    %1263 = vst [vmem:[#allocation3 + $0xe50] sm:$0xff] %v1071
    %1264 = vst [vmem:[#allocation3 + $0xe98] sm:$0xff] %v1072
    %1265 = vst [vmem:[#allocation3 + $0xee0] sm:$0xff] %v1073
    %1266 = vst [vmem:[#allocation3 + $0xf28] sm:$0xff] %v1074
    %1267 = vst [vmem:[#allocation3 + $0xf70] sm:$0xff] %v1075
    %1268 = vst [vmem:[#allocation3 + $0xfb8] sm:$0xff] %v1076
    %1269 = vst [vmem:[#allocation3 + $0x1000] sm:$0xff] %v1077
    %1270 = vst [vmem:[#allocation3 + $0x1048] sm:$0xff] %v1078
    %1271 = vst [vmem:[#allocation3 + $0x1090] sm:$0xff] %v1079
    %1272 = vst [vmem:[#allocation3 + $0x10d8] sm:$0xff] %v1080
    %1273 = vst [vmem:[#allocation3 + $0x1120] sm:$0xff] %v1081
    %1274 = vst [vmem:[#allocation3 + $0x1168] sm:$0xff] %v1082
    %1275 = vst [vmem:[#allocation3 + $0x11b0] sm:$0xff] %v1083
    %1276 = vst [vmem:[#allocation3 + $0x11f8] sm:$0xff] %v1084
    %v1277 = vld [vmem:[#allocation3] sm:$0xff]
    %v1278 = vld [vmem:[#allocation3 + $0x8] sm:$0xff]
    %v1279 = vld [vmem:[#allocation3 + $0x10] sm:$0xff]
    %v1280 = vld [vmem:[#allocation3 + $0x18] sm:$0xff]
    %v1281 = vld [vmem:[#allocation3 + $0x20] sm:$0xff]
    %v1282 = vld [vmem:[#allocation3 + $0x28] sm:$0xff]
    %v1283 = vld [vmem:[#allocation3 + $0x30] sm:$0xff]
    %v1284 = vld [vmem:[#allocation3 + $0x38] sm:$0xff]
    %v1285 = vld [vmem:[#allocation3 + $0x40] sm:$0xff]
    %v1286 = vld [vmem:[#allocation3 + $0x48] sm:$0xff]
    %v1287 = vld [vmem:[#allocation3 + $0x50] sm:$0xff]
    %v1288 = vld [vmem:[#allocation3 + $0x58] sm:$0xff]
    %v1289 = vld [vmem:[#allocation3 + $0x60] sm:$0xff]
    %v1290 = vld [vmem:[#allocation3 + $0x68] sm:$0xff]
    %v1291 = vld [vmem:[#allocation3 + $0x70] sm:$0xff]
    %v1292 = vld [vmem:[#allocation3 + $0x78] sm:$0xff]
    %v1293 = vld [vmem:[#allocation3 + $0x80] sm:$0xff]
    %v1294 = vld [vmem:[#allocation3 + $0x88] sm:$0xff]
    %v1295 = vld [vmem:[#allocation3 + $0x90] sm:$0xff]
    %v1296 = vld [vmem:[#allocation3 + $0x98] sm:$0xff]
    %v1297 = vld [vmem:[#allocation3 + $0xa0] sm:$0xff]
    %v1298 = vld [vmem:[#allocation3 + $0xa8] sm:$0xff]
    %v1299 = vld [vmem:[#allocation3 + $0xb0] sm:$0xff]
    %v1300 = vld [vmem:[#allocation3 + $0xb8] sm:$0xff]
    %v1301 = vld [vmem:[#allocation3 + $0xc0] sm:$0xff]
    %v1302 = vld [vmem:[#allocation3 + $0xc8] sm:$0xff]
    %v1303 = vld [vmem:[#allocation3 + $0xd0] sm:$0xff]
    %v1304 = vld [vmem:[#allocation3 + $0xd8] sm:$0xff]
    %v1305 = vld [vmem:[#allocation3 + $0xe0] sm:$0xff]
    %v1306 = vld [vmem:[#allocation3 + $0xe8] sm:$0xff]
    %v1307 = vld [vmem:[#allocation3 + $0xf0] sm:$0xff]
    %v1308 = vld [vmem:[#allocation3 + $0xf8] sm:$0xff]
    %v1309 = vld [vmem:[#allocation3 + $0x100] sm:$0xff]
    %v1310 = vld [vmem:[#allocation3 + $0x108] sm:$0xff]
    %v1311 = vld [vmem:[#allocation3 + $0x110] sm:$0xff]
    %v1312 = vld [vmem:[#allocation3 + $0x118] sm:$0xff]
    %v1313 = vld [vmem:[#allocation3 + $0x120] sm:$0xff]
    %v1314 = vld [vmem:[#allocation3 + $0x128] sm:$0xff]
    %v1315 = vld [vmem:[#allocation3 + $0x130] sm:$0xff]
    %v1316 = vld [vmem:[#allocation3 + $0x138] sm:$0xff]
    %v1317 = vld [vmem:[#allocation3 + $0x140] sm:$0xff]
    %v1318 = vld [vmem:[#allocation3 + $0x148] sm:$0xff]
    %v1319 = vld [vmem:[#allocation3 + $0x150] sm:$0xff]
    %v1320 = vld [vmem:[#allocation3 + $0x158] sm:$0xff]
    %v1321 = vld [vmem:[#allocation3 + $0x160] sm:$0xff]
    %v1322 = vld [vmem:[#allocation3 + $0x168] sm:$0xff]
    %v1323 = vld [vmem:[#allocation3 + $0x170] sm:$0xff]
    %v1324 = vld [vmem:[#allocation3 + $0x178] sm:$0xff]
    %v1325 = vld [vmem:[#allocation3 + $0x180] sm:$0xff]
    %v1326 = vld [vmem:[#allocation3 + $0x188] sm:$0xff]
    %v1327 = vld [vmem:[#allocation3 + $0x190] sm:$0xff]
    %v1328 = vld [vmem:[#allocation3 + $0x198] sm:$0xff]
    %v1329 = vld [vmem:[#allocation3 + $0x1a0] sm:$0xff]
    %v1330 = vld [vmem:[#allocation3 + $0x1a8] sm:$0xff]
    %v1331 = vld [vmem:[#allocation3 + $0x1b0] sm:$0xff]
    %v1332 = vld [vmem:[#allocation3 + $0x1b8] sm:$0xff]
    %v1333 = vld [vmem:[#allocation3 + $0x1c0] sm:$0xff]
    %v1334 = vld [vmem:[#allocation3 + $0x1c8] sm:$0xff]
    %v1335 = vld [vmem:[#allocation3 + $0x1d0] sm:$0xff]
    %v1336 = vld [vmem:[#allocation3 + $0x1d8] sm:$0xff]
    %v1337 = vld [vmem:[#allocation3 + $0x1e0] sm:$0xff]
    %v1338 = vld [vmem:[#allocation3 + $0x1e8] sm:$0xff]
    %v1339 = vld [vmem:[#allocation3 + $0x1f0] sm:$0xff]
    %v1340 = vld [vmem:[#allocation3 + $0x1f8] sm:$0xff]
    %v1341 = vld [vmem:[#allocation3 + $0x200] sm:$0xff]
    %v1342 = vld [vmem:[#allocation3 + $0x208] sm:$0xff]
    %v1343 = vld [vmem:[#allocation3 + $0x210] sm:$0xff]
    %v1344 = vld [vmem:[#allocation3 + $0x218] sm:$0xff]
    %v1345 = vld [vmem:[#allocation3 + $0x220] sm:$0xff]
    %v1346 = vld [vmem:[#allocation3 + $0x228] sm:$0xff]
    %v1347 = vld [vmem:[#allocation3 + $0x230] sm:$0xff]
    %v1348 = vld [vmem:[#allocation3 + $0x238] sm:$0xff]
    %v1349 = vld [vmem:[#allocation3 + $0x240] sm:$0xff]
    %v1350 = vld [vmem:[#allocation3 + $0x248] sm:$0xff]
    %v1351 = vld [vmem:[#allocation3 + $0x250] sm:$0xff]
    %v1352 = vld [vmem:[#allocation3 + $0x258] sm:$0xff]
    %v1353 = vld [vmem:[#allocation3 + $0x260] sm:$0xff]
    %v1354 = vld [vmem:[#allocation3 + $0x268] sm:$0xff]
    %v1355 = vld [vmem:[#allocation3 + $0x270] sm:$0xff]
    %v1356 = vld [vmem:[#allocation3 + $0x278] sm:$0xff]
    %v1357 = vld [vmem:[#allocation3 + $0x280] sm:$0xff]
    %v1358 = vld [vmem:[#allocation3 + $0x288] sm:$0xff]
    %v1359 = vld [vmem:[#allocation3 + $0x290] sm:$0xff]
    %v1360 = vld [vmem:[#allocation3 + $0x298] sm:$0xff]
    %v1361 = vld [vmem:[#allocation3 + $0x2a0] sm:$0xff]
    %v1362 = vld [vmem:[#allocation3 + $0x2a8] sm:$0xff]
    %v1363 = vld [vmem:[#allocation3 + $0x2b0] sm:$0xff]
    %v1364 = vld [vmem:[#allocation3 + $0x2b8] sm:$0xff]
    %v1365 = vld [vmem:[#allocation3 + $0x2c0] sm:$0xff]
    %v1366 = vld [vmem:[#allocation3 + $0x2c8] sm:$0xff]
    %v1367 = vld [vmem:[#allocation3 + $0x2d0] sm:$0xff]
    %v1368 = vld [vmem:[#allocation3 + $0x2d8] sm:$0xff]
    %v1369 = vld [vmem:[#allocation3 + $0x2e0] sm:$0xff]
    %v1370 = vld [vmem:[#allocation3 + $0x2e8] sm:$0xff]
    %v1371 = vld [vmem:[#allocation3 + $0x2f0] sm:$0xff]
    %v1372 = vld [vmem:[#allocation3 + $0x2f8] sm:$0xff]
    %v1373 = vld [vmem:[#allocation3 + $0x300] sm:$0xff]
    %v1374 = vld [vmem:[#allocation3 + $0x308] sm:$0xff]
    %v1375 = vld [vmem:[#allocation3 + $0x310] sm:$0xff]
    %v1376 = vld [vmem:[#allocation3 + $0x318] sm:$0xff]
    %v1377 = vld [vmem:[#allocation3 + $0x320] sm:$0xff]
    %v1378 = vld [vmem:[#allocation3 + $0x328] sm:$0xff]
    %v1379 = vld [vmem:[#allocation3 + $0x330] sm:$0xff]
    %v1380 = vld [vmem:[#allocation3 + $0x338] sm:$0xff]
    %v1381 = vld [vmem:[#allocation3 + $0x340] sm:$0xff]
    %v1382 = vld [vmem:[#allocation3 + $0x348] sm:$0xff]
    %v1383 = vld [vmem:[#allocation3 + $0x350] sm:$0xff]
    %v1384 = vld [vmem:[#allocation3 + $0x358] sm:$0xff]
    %v1385 = vld [vmem:[#allocation3 + $0x360] sm:$0xff]
    %v1386 = vld [vmem:[#allocation3 + $0x368] sm:$0xff]
    %v1387 = vld [vmem:[#allocation3 + $0x370] sm:$0xff]
    %v1388 = vld [vmem:[#allocation3 + $0x378] sm:$0xff]
    %v1389 = vld [vmem:[#allocation3 + $0x380] sm:$0xff]
    %v1390 = vld [vmem:[#allocation3 + $0x388] sm:$0xff]
    %v1391 = vld [vmem:[#allocation3 + $0x390] sm:$0xff]
    %v1392 = vld [vmem:[#allocation3 + $0x398] sm:$0xff]
    %v1393 = vld [vmem:[#allocation3 + $0x3a0] sm:$0xff]
    %v1394 = vld [vmem:[#allocation3 + $0x3a8] sm:$0xff]
    %v1395 = vld [vmem:[#allocation3 + $0x3b0] sm:$0xff]
    %v1396 = vld [vmem:[#allocation3 + $0x3b8] sm:$0xff]
    %v1397 = vld [vmem:[#allocation3 + $0x3c0] sm:$0xff]
    %v1398 = vld [vmem:[#allocation3 + $0x3c8] sm:$0xff]
    %v1399 = vld [vmem:[#allocation3 + $0x3d0] sm:$0xff]
    %v1400 = vld [vmem:[#allocation3 + $0x3d8] sm:$0xff]
    %v1401 = vld [vmem:[#allocation3 + $0x3e0] sm:$0xff]
    %v1402 = vld [vmem:[#allocation3 + $0x3e8] sm:$0xff]
    %v1403 = vld [vmem:[#allocation3 + $0x3f0] sm:$0xff]
    %v1404 = vld [vmem:[#allocation3 + $0x3f8] sm:$0xff]
    %v1405 = vld [vmem:[#allocation3 + $0x400] sm:$0xff]
    %v1406 = vld [vmem:[#allocation3 + $0x408] sm:$0xff]
    %v1407 = vld [vmem:[#allocation3 + $0x410] sm:$0xff]
    %v1408 = vld [vmem:[#allocation3 + $0x418] sm:$0xff]
    %v1409 = vld [vmem:[#allocation3 + $0x420] sm:$0xff]
    %v1410 = vld [vmem:[#allocation3 + $0x428] sm:$0xff]
    %v1411 = vld [vmem:[#allocation3 + $0x430] sm:$0xff]
    %v1412 = vld [vmem:[#allocation3 + $0x438] sm:$0xff]
    %v1413 = vld [vmem:[#allocation3 + $0x440] sm:$0xff]
    %v1414 = vld [vmem:[#allocation3 + $0x448] sm:$0xff]
    %v1415 = vld [vmem:[#allocation3 + $0x450] sm:$0xff]
    %v1416 = vld [vmem:[#allocation3 + $0x458] sm:$0xff]
    %v1417 = vld [vmem:[#allocation3 + $0x460] sm:$0xff]
    %v1418 = vld [vmem:[#allocation3 + $0x468] sm:$0xff]
    %v1419 = vld [vmem:[#allocation3 + $0x470] sm:$0xff]
    %v1420 = vld [vmem:[#allocation3 + $0x478] sm:$0xff]
    %v1421 = vld [vmem:[#allocation3 + $0x480] sm:$0xff]
    %v1422 = vld [vmem:[#allocation3 + $0x488] sm:$0xff]
    %v1423 = vld [vmem:[#allocation3 + $0x490] sm:$0xff]
    %v1424 = vld [vmem:[#allocation3 + $0x498] sm:$0xff]
    %v1425 = vld [vmem:[#allocation3 + $0x4a0] sm:$0xff]
    %v1426 = vld [vmem:[#allocation3 + $0x4a8] sm:$0xff]
    %v1427 = vld [vmem:[#allocation3 + $0x4b0] sm:$0xff]
    %v1428 = vld [vmem:[#allocation3 + $0x4b8] sm:$0xff]
    %v1429 = vld [vmem:[#allocation3 + $0x4c0] sm:$0xff]
    %v1430 = vld [vmem:[#allocation3 + $0x4c8] sm:$0xff]
    %v1431 = vld [vmem:[#allocation3 + $0x4d0] sm:$0xff]
    %v1432 = vld [vmem:[#allocation3 + $0x4d8] sm:$0xff]
    %v1433 = vld [vmem:[#allocation3 + $0x4e0] sm:$0xff]
    %v1434 = vld [vmem:[#allocation3 + $0x4e8] sm:$0xff]
    %v1435 = vld [vmem:[#allocation3 + $0x4f0] sm:$0xff]
    %v1436 = vld [vmem:[#allocation3 + $0x4f8] sm:$0xff]
    %v1437 = vld [vmem:[#allocation3 + $0x500] sm:$0xff]
    %v1438 = vld [vmem:[#allocation3 + $0x508] sm:$0xff]
    %v1439 = vld [vmem:[#allocation3 + $0x510] sm:$0xff]
    %v1440 = vld [vmem:[#allocation3 + $0x518] sm:$0xff]
    %v1441 = vld [vmem:[#allocation3 + $0x520] sm:$0xff]
    %v1442 = vld [vmem:[#allocation3 + $0x528] sm:$0xff]
    %v1443 = vld [vmem:[#allocation3 + $0x530] sm:$0xff]
    %v1444 = vld [vmem:[#allocation3 + $0x538] sm:$0xff]
    %v1445 = vld [vmem:[#allocation3 + $0x540] sm:$0xff]
    %v1446 = vld [vmem:[#allocation3 + $0x548] sm:$0xff]
    %v1447 = vld [vmem:[#allocation3 + $0x550] sm:$0xff]
    %v1448 = vld [vmem:[#allocation3 + $0x558] sm:$0xff]
    %v1449 = vld [vmem:[#allocation3 + $0x560] sm:$0xff]
    %v1450 = vld [vmem:[#allocation3 + $0x568] sm:$0xff]
    %v1451 = vld [vmem:[#allocation3 + $0x570] sm:$0xff]
    %v1452 = vld [vmem:[#allocation3 + $0x578] sm:$0xff]
    %v1453 = vld [vmem:[#allocation3 + $0x580] sm:$0xff]
    %v1454 = vld [vmem:[#allocation3 + $0x588] sm:$0xff]
    %v1455 = vld [vmem:[#allocation3 + $0x590] sm:$0xff]
    %v1456 = vld [vmem:[#allocation3 + $0x598] sm:$0xff]
    %v1457 = vld [vmem:[#allocation3 + $0x5a0] sm:$0xff]
    %v1458 = vld [vmem:[#allocation3 + $0x5a8] sm:$0xff]
    %v1459 = vld [vmem:[#allocation3 + $0x5b0] sm:$0xff]
    %v1460 = vld [vmem:[#allocation3 + $0x5b8] sm:$0xff]
    %v1461 = vld [vmem:[#allocation3 + $0x5c0] sm:$0xff]
    %v1462 = vld [vmem:[#allocation3 + $0x5c8] sm:$0xff]
    %v1463 = vld [vmem:[#allocation3 + $0x5d0] sm:$0xff]
    %v1464 = vld [vmem:[#allocation3 + $0x5d8] sm:$0xff]
    %v1465 = vld [vmem:[#allocation3 + $0x5e0] sm:$0xff]
    %v1466 = vld [vmem:[#allocation3 + $0x5e8] sm:$0xff]
    %v1467 = vld [vmem:[#allocation3 + $0x5f0] sm:$0xff]
    %v1468 = vld [vmem:[#allocation3 + $0x5f8] sm:$0xff]
    %v1469 = vld [vmem:[#allocation3 + $0x600] sm:$0xff]
    %v1470 = vld [vmem:[#allocation3 + $0x608] sm:$0xff]
    %v1471 = vld [vmem:[#allocation3 + $0x610] sm:$0xff]
    %v1472 = vld [vmem:[#allocation3 + $0x618] sm:$0xff]
    %v1473 = vld [vmem:[#allocation3 + $0x620] sm:$0xff]
    %v1474 = vld [vmem:[#allocation3 + $0x628] sm:$0xff]
    %v1475 = vld [vmem:[#allocation3 + $0x630] sm:$0xff]
    %v1476 = vld [vmem:[#allocation3 + $0x638] sm:$0xff]
    %v1477 = vld [vmem:[#allocation3 + $0x640] sm:$0xff]
    %v1478 = vld [vmem:[#allocation3 + $0x648] sm:$0xff]
    %v1479 = vld [vmem:[#allocation3 + $0x650] sm:$0xff]
    %v1480 = vld [vmem:[#allocation3 + $0x658] sm:$0xff]
    %v1481 = vld [vmem:[#allocation3 + $0x660] sm:$0xff]
    %v1482 = vld [vmem:[#allocation3 + $0x668] sm:$0xff]
    %v1483 = vld [vmem:[#allocation3 + $0x670] sm:$0xff]
    %v1484 = vld [vmem:[#allocation3 + $0x678] sm:$0xff]
    %v1485 = vld [vmem:[#allocation3 + $0x680] sm:$0xff]
    %v1486 = vld [vmem:[#allocation3 + $0x688] sm:$0xff]
    %v1487 = vld [vmem:[#allocation3 + $0x690] sm:$0xff]
    %v1488 = vld [vmem:[#allocation3 + $0x698] sm:$0xff]
    %v1489 = vld [vmem:[#allocation3 + $0x6a0] sm:$0xff]
    %v1490 = vld [vmem:[#allocation3 + $0x6a8] sm:$0xff]
    %v1491 = vld [vmem:[#allocation3 + $0x6b0] sm:$0xff]
    %v1492 = vld [vmem:[#allocation3 + $0x6b8] sm:$0xff]
    %v1493 = vld [vmem:[#allocation3 + $0x6c0] sm:$0xff]
    %v1494 = vld [vmem:[#allocation3 + $0x6c8] sm:$0xff]
    %v1495 = vld [vmem:[#allocation3 + $0x6d0] sm:$0xff]
    %v1496 = vld [vmem:[#allocation3 + $0x6d8] sm:$0xff]
    %v1497 = vld [vmem:[#allocation3 + $0x6e0] sm:$0xff]
    %v1498 = vld [vmem:[#allocation3 + $0x6e8] sm:$0xff]
    %v1499 = vld [vmem:[#allocation3 + $0x6f0] sm:$0xff]
    %v1500 = vld [vmem:[#allocation3 + $0x6f8] sm:$0xff]
    %v1501 = vld [vmem:[#allocation3 + $0x700] sm:$0xff]
    %v1502 = vld [vmem:[#allocation3 + $0x708] sm:$0xff]
    %v1503 = vld [vmem:[#allocation3 + $0x710] sm:$0xff]
    %v1504 = vld [vmem:[#allocation3 + $0x718] sm:$0xff]
    %v1505 = vld [vmem:[#allocation3 + $0x720] sm:$0xff]
    %v1506 = vld [vmem:[#allocation3 + $0x728] sm:$0xff]
    %v1507 = vld [vmem:[#allocation3 + $0x730] sm:$0xff]
    %v1508 = vld [vmem:[#allocation3 + $0x738] sm:$0xff]
    %v1509 = vld [vmem:[#allocation3 + $0x740] sm:$0xff]
    %v1510 = vld [vmem:[#allocation3 + $0x748] sm:$0xff]
    %v1511 = vld [vmem:[#allocation3 + $0x750] sm:$0xff]
    %v1512 = vld [vmem:[#allocation3 + $0x758] sm:$0xff]
    %v1513 = vld [vmem:[#allocation3 + $0x760] sm:$0xff]
    %v1514 = vld [vmem:[#allocation3 + $0x768] sm:$0xff]
    %v1515 = vld [vmem:[#allocation3 + $0x770] sm:$0xff]
    %v1516 = vld [vmem:[#allocation3 + $0x778] sm:$0xff]
    %v1517 = vld [vmem:[#allocation3 + $0x780] sm:$0xff]
    %v1518 = vld [vmem:[#allocation3 + $0x788] sm:$0xff]
    %v1519 = vld [vmem:[#allocation3 + $0x790] sm:$0xff]
    %v1520 = vld [vmem:[#allocation3 + $0x798] sm:$0xff]
    %v1521 = vld [vmem:[#allocation3 + $0x7a0] sm:$0xff]
    %v1522 = vld [vmem:[#allocation3 + $0x7a8] sm:$0xff]
    %v1523 = vld [vmem:[#allocation3 + $0x7b0] sm:$0xff]
    %v1524 = vld [vmem:[#allocation3 + $0x7b8] sm:$0xff]
    %v1525 = vld [vmem:[#allocation3 + $0x7c0] sm:$0xff]
    %v1526 = vld [vmem:[#allocation3 + $0x7c8] sm:$0xff]
    %v1527 = vld [vmem:[#allocation3 + $0x7d0] sm:$0xff]
    %v1528 = vld [vmem:[#allocation3 + $0x7d8] sm:$0xff]
    %v1529 = vld [vmem:[#allocation3 + $0x7e0] sm:$0xff]
    %v1530 = vld [vmem:[#allocation3 + $0x7e8] sm:$0xff]
    %v1531 = vld [vmem:[#allocation3 + $0x7f0] sm:$0xff]
    %v1532 = vld [vmem:[#allocation3 + $0x7f8] sm:$0xff]
    %v1533 = vld [vmem:[#allocation3 + $0x800] sm:$0xff]
    %v1534 = vld [vmem:[#allocation3 + $0x808] sm:$0xff]
    %v1535 = vld [vmem:[#allocation3 + $0x810] sm:$0xff]
    %v1536 = vld [vmem:[#allocation3 + $0x818] sm:$0xff]
    %v1537 = vld [vmem:[#allocation3 + $0x820] sm:$0xff]
    %v1538 = vld [vmem:[#allocation3 + $0x828] sm:$0xff]
    %v1539 = vld [vmem:[#allocation3 + $0x830] sm:$0xff]
    %v1540 = vld [vmem:[#allocation3 + $0x838] sm:$0xff]
    %v1541 = vld [vmem:[#allocation3 + $0x840] sm:$0xff]
    %v1542 = vld [vmem:[#allocation3 + $0x848] sm:$0xff]
    %v1543 = vld [vmem:[#allocation3 + $0x850] sm:$0xff]
    %v1544 = vld [vmem:[#allocation3 + $0x858] sm:$0xff]
    %v1545 = vld [vmem:[#allocation3 + $0x860] sm:$0xff]
    %v1546 = vld [vmem:[#allocation3 + $0x868] sm:$0xff]
    %v1547 = vld [vmem:[#allocation3 + $0x870] sm:$0xff]
    %v1548 = vld [vmem:[#allocation3 + $0x878] sm:$0xff]
    %v1549 = vld [vmem:[#allocation3 + $0x880] sm:$0xff]
    %v1550 = vld [vmem:[#allocation3 + $0x888] sm:$0xff]
    %v1551 = vld [vmem:[#allocation3 + $0x890] sm:$0xff]
    %v1552 = vld [vmem:[#allocation3 + $0x898] sm:$0xff]
    %v1553 = vld [vmem:[#allocation3 + $0x8a0] sm:$0xff]
    %v1554 = vld [vmem:[#allocation3 + $0x8a8] sm:$0xff]
    %v1555 = vld [vmem:[#allocation3 + $0x8b0] sm:$0xff]
    %v1556 = vld [vmem:[#allocation3 + $0x8b8] sm:$0xff]
    %v1557 = vld [vmem:[#allocation3 + $0x8c0] sm:$0xff]
    %v1558 = vld [vmem:[#allocation3 + $0x8c8] sm:$0xff]
    %v1559 = vld [vmem:[#allocation3 + $0x8d0] sm:$0xff]
    %v1560 = vld [vmem:[#allocation3 + $0x8d8] sm:$0xff]
    %v1561 = vld [vmem:[#allocation3 + $0x8e0] sm:$0xff]
    %v1562 = vld [vmem:[#allocation3 + $0x8e8] sm:$0xff]
    %v1563 = vld [vmem:[#allocation3 + $0x8f0] sm:$0xff]
    %v1564 = vld [vmem:[#allocation3 + $0x8f8] sm:$0xff]
    %v1565 = vld [vmem:[#allocation3 + $0x900] sm:$0xff]
    %v1566 = vld [vmem:[#allocation3 + $0x908] sm:$0xff]
    %v1567 = vld [vmem:[#allocation3 + $0x910] sm:$0xff]
    %v1568 = vld [vmem:[#allocation3 + $0x918] sm:$0xff]
    %v1569 = vld [vmem:[#allocation3 + $0x920] sm:$0xff]
    %v1570 = vld [vmem:[#allocation3 + $0x928] sm:$0xff]
    %v1571 = vld [vmem:[#allocation3 + $0x930] sm:$0xff]
    %v1572 = vld [vmem:[#allocation3 + $0x938] sm:$0xff]
    %v1573 = vld [vmem:[#allocation3 + $0x940] sm:$0xff]
    %v1574 = vld [vmem:[#allocation3 + $0x948] sm:$0xff]
    %v1575 = vld [vmem:[#allocation3 + $0x950] sm:$0xff]
    %v1576 = vld [vmem:[#allocation3 + $0x958] sm:$0xff]
    %v1577 = vld [vmem:[#allocation3 + $0x960] sm:$0xff]
    %v1578 = vld [vmem:[#allocation3 + $0x968] sm:$0xff]
    %v1579 = vld [vmem:[#allocation3 + $0x970] sm:$0xff]
    %v1580 = vld [vmem:[#allocation3 + $0x978] sm:$0xff]
    %v1581 = vld [vmem:[#allocation3 + $0x980] sm:$0xff]
    %v1582 = vld [vmem:[#allocation3 + $0x988] sm:$0xff]
    %v1583 = vld [vmem:[#allocation3 + $0x990] sm:$0xff]
    %v1584 = vld [vmem:[#allocation3 + $0x998] sm:$0xff]
    %v1585 = vld [vmem:[#allocation3 + $0x9a0] sm:$0xff]
    %v1586 = vld [vmem:[#allocation3 + $0x9a8] sm:$0xff]
    %v1587 = vld [vmem:[#allocation3 + $0x9b0] sm:$0xff]
    %v1588 = vld [vmem:[#allocation3 + $0x9b8] sm:$0xff]
    %v1589 = vld [vmem:[#allocation3 + $0x9c0] sm:$0xff]
    %v1590 = vld [vmem:[#allocation3 + $0x9c8] sm:$0xff]
    %v1591 = vld [vmem:[#allocation3 + $0x9d0] sm:$0xff]
    %v1592 = vld [vmem:[#allocation3 + $0x9d8] sm:$0xff]
    %v1593 = vld [vmem:[#allocation3 + $0x9e0] sm:$0xff]
    %v1594 = vld [vmem:[#allocation3 + $0x9e8] sm:$0xff]
    %v1595 = vld [vmem:[#allocation3 + $0x9f0] sm:$0xff]
    %v1596 = vld [vmem:[#allocation3 + $0x9f8] sm:$0xff]
    %v1597 = vld [vmem:[#allocation3 + $0xa00] sm:$0xff]
    %v1598 = vld [vmem:[#allocation3 + $0xa08] sm:$0xff]
    %v1599 = vld [vmem:[#allocation3 + $0xa10] sm:$0xff]
    %v1600 = vld [vmem:[#allocation3 + $0xa18] sm:$0xff]
    %v1601 = vld [vmem:[#allocation3 + $0xa20] sm:$0xff]
    %v1602 = vld [vmem:[#allocation3 + $0xa28] sm:$0xff]
    %v1603 = vld [vmem:[#allocation3 + $0xa30] sm:$0xff]
    %v1604 = vld [vmem:[#allocation3 + $0xa38] sm:$0xff]
    %v1605 = vld [vmem:[#allocation3 + $0xa40] sm:$0xff]
    %v1606 = vld [vmem:[#allocation3 + $0xa48] sm:$0xff]
    %v1607 = vld [vmem:[#allocation3 + $0xa50] sm:$0xff]
    %v1608 = vld [vmem:[#allocation3 + $0xa58] sm:$0xff]
    %v1609 = vld [vmem:[#allocation3 + $0xa60] sm:$0xff]
    %v1610 = vld [vmem:[#allocation3 + $0xa68] sm:$0xff]
    %v1611 = vld [vmem:[#allocation3 + $0xa70] sm:$0xff]
    %v1612 = vld [vmem:[#allocation3 + $0xa78] sm:$0xff]
    %v1613 = vld [vmem:[#allocation3 + $0xa80] sm:$0xff]
    %v1614 = vld [vmem:[#allocation3 + $0xa88] sm:$0xff]
    %v1615 = vld [vmem:[#allocation3 + $0xa90] sm:$0xff]
    %v1616 = vld [vmem:[#allocation3 + $0xa98] sm:$0xff]
    %v1617 = vld [vmem:[#allocation3 + $0xaa0] sm:$0xff]
    %v1618 = vld [vmem:[#allocation3 + $0xaa8] sm:$0xff]
    %v1619 = vld [vmem:[#allocation3 + $0xab0] sm:$0xff]
    %v1620 = vld [vmem:[#allocation3 + $0xab8] sm:$0xff]
    %v1621 = vld [vmem:[#allocation3 + $0xac0] sm:$0xff]
    %v1622 = vld [vmem:[#allocation3 + $0xac8] sm:$0xff]
    %v1623 = vld [vmem:[#allocation3 + $0xad0] sm:$0xff]
    %v1624 = vld [vmem:[#allocation3 + $0xad8] sm:$0xff]
    %v1625 = vld [vmem:[#allocation3 + $0xae0] sm:$0xff]
    %v1626 = vld [vmem:[#allocation3 + $0xae8] sm:$0xff]
    %v1627 = vld [vmem:[#allocation3 + $0xaf0] sm:$0xff]
    %v1628 = vld [vmem:[#allocation3 + $0xaf8] sm:$0xff]
    %v1629 = vld [vmem:[#allocation3 + $0xb00] sm:$0xff]
    %v1630 = vld [vmem:[#allocation3 + $0xb08] sm:$0xff]
    %v1631 = vld [vmem:[#allocation3 + $0xb10] sm:$0xff]
    %v1632 = vld [vmem:[#allocation3 + $0xb18] sm:$0xff]
    %v1633 = vld [vmem:[#allocation3 + $0xb20] sm:$0xff]
    %v1634 = vld [vmem:[#allocation3 + $0xb28] sm:$0xff]
    %v1635 = vld [vmem:[#allocation3 + $0xb30] sm:$0xff]
    %v1636 = vld [vmem:[#allocation3 + $0xb38] sm:$0xff]
    %v1637 = vld [vmem:[#allocation3 + $0xb40] sm:$0xff]
    %v1638 = vld [vmem:[#allocation3 + $0xb48] sm:$0xff]
    %v1639 = vld [vmem:[#allocation3 + $0xb50] sm:$0xff]
    %v1640 = vld [vmem:[#allocation3 + $0xb58] sm:$0xff]
    %v1641 = vld [vmem:[#allocation3 + $0xb60] sm:$0xff]
    %v1642 = vld [vmem:[#allocation3 + $0xb68] sm:$0xff]
    %v1643 = vld [vmem:[#allocation3 + $0xb70] sm:$0xff]
    %v1644 = vld [vmem:[#allocation3 + $0xb78] sm:$0xff]
    %v1645 = vld [vmem:[#allocation3 + $0xb80] sm:$0xff]
    %v1646 = vld [vmem:[#allocation3 + $0xb88] sm:$0xff]
    %v1647 = vld [vmem:[#allocation3 + $0xb90] sm:$0xff]
    %v1648 = vld [vmem:[#allocation3 + $0xb98] sm:$0xff]
    %v1649 = vld [vmem:[#allocation3 + $0xba0] sm:$0xff]
    %v1650 = vld [vmem:[#allocation3 + $0xba8] sm:$0xff]
    %v1651 = vld [vmem:[#allocation3 + $0xbb0] sm:$0xff]
    %v1652 = vld [vmem:[#allocation3 + $0xbb8] sm:$0xff]
    %v1653 = vld [vmem:[#allocation3 + $0xbc0] sm:$0xff]
    %v1654 = vld [vmem:[#allocation3 + $0xbc8] sm:$0xff]
    %v1655 = vld [vmem:[#allocation3 + $0xbd0] sm:$0xff]
    %v1656 = vld [vmem:[#allocation3 + $0xbd8] sm:$0xff]
    %v1657 = vld [vmem:[#allocation3 + $0xbe0] sm:$0xff]
    %v1658 = vld [vmem:[#allocation3 + $0xbe8] sm:$0xff]
    %v1659 = vld [vmem:[#allocation3 + $0xbf0] sm:$0xff]
    %v1660 = vld [vmem:[#allocation3 + $0xbf8] sm:$0xff]
    %v1661 = vld [vmem:[#allocation3 + $0xc00] sm:$0xff]
    %v1662 = vld [vmem:[#allocation3 + $0xc08] sm:$0xff]
    %v1663 = vld [vmem:[#allocation3 + $0xc10] sm:$0xff]
    %v1664 = vld [vmem:[#allocation3 + $0xc18] sm:$0xff]
    %v1665 = vld [vmem:[#allocation3 + $0xc20] sm:$0xff]
    %v1666 = vld [vmem:[#allocation3 + $0xc28] sm:$0xff]
    %v1667 = vld [vmem:[#allocation3 + $0xc30] sm:$0xff]
    %v1668 = vld [vmem:[#allocation3 + $0xc38] sm:$0xff]
    %v1669 = vld [vmem:[#allocation3 + $0xc40] sm:$0xff]
    %v1670 = vld [vmem:[#allocation3 + $0xc48] sm:$0xff]
    %v1671 = vld [vmem:[#allocation3 + $0xc50] sm:$0xff]
    %v1672 = vld [vmem:[#allocation3 + $0xc58] sm:$0xff]
    %v1673 = vld [vmem:[#allocation3 + $0xc60] sm:$0xff]
    %v1674 = vld [vmem:[#allocation3 + $0xc68] sm:$0xff]
    %v1675 = vld [vmem:[#allocation3 + $0xc70] sm:$0xff]
    %v1676 = vld [vmem:[#allocation3 + $0xc78] sm:$0xff]
    %v1677 = vld [vmem:[#allocation3 + $0xc80] sm:$0xff]
    %v1678 = vld [vmem:[#allocation3 + $0xc88] sm:$0xff]
    %v1679 = vld [vmem:[#allocation3 + $0xc90] sm:$0xff]
    %v1680 = vld [vmem:[#allocation3 + $0xc98] sm:$0xff]
    %v1681 = vld [vmem:[#allocation3 + $0xca0] sm:$0xff]
    %v1682 = vld [vmem:[#allocation3 + $0xca8] sm:$0xff]
    %v1683 = vld [vmem:[#allocation3 + $0xcb0] sm:$0xff]
    %v1684 = vld [vmem:[#allocation3 + $0xcb8] sm:$0xff]
    %v1685 = vld [vmem:[#allocation3 + $0xcc0] sm:$0xff]
    %v1686 = vld [vmem:[#allocation3 + $0xcc8] sm:$0xff]
    %v1687 = vld [vmem:[#allocation3 + $0xcd0] sm:$0xff]
    %v1688 = vld [vmem:[#allocation3 + $0xcd8] sm:$0xff]
    %v1689 = vld [vmem:[#allocation3 + $0xce0] sm:$0xff]
    %v1690 = vld [vmem:[#allocation3 + $0xce8] sm:$0xff]
    %v1691 = vld [vmem:[#allocation3 + $0xcf0] sm:$0xff]
    %v1692 = vld [vmem:[#allocation3 + $0xcf8] sm:$0xff]
    %v1693 = vld [vmem:[#allocation3 + $0xd00] sm:$0xff]
    %v1694 = vld [vmem:[#allocation3 + $0xd08] sm:$0xff]
    %v1695 = vld [vmem:[#allocation3 + $0xd10] sm:$0xff]
    %v1696 = vld [vmem:[#allocation3 + $0xd18] sm:$0xff]
    %v1697 = vld [vmem:[#allocation3 + $0xd20] sm:$0xff]
    %v1698 = vld [vmem:[#allocation3 + $0xd28] sm:$0xff]
    %v1699 = vld [vmem:[#allocation3 + $0xd30] sm:$0xff]
    %v1700 = vld [vmem:[#allocation3 + $0xd38] sm:$0xff]
    %v1701 = vld [vmem:[#allocation3 + $0xd40] sm:$0xff]
    %v1702 = vld [vmem:[#allocation3 + $0xd48] sm:$0xff]
    %v1703 = vld [vmem:[#allocation3 + $0xd50] sm:$0xff]
    %v1704 = vld [vmem:[#allocation3 + $0xd58] sm:$0xff]
    %v1705 = vld [vmem:[#allocation3 + $0xd60] sm:$0xff]
    %v1706 = vld [vmem:[#allocation3 + $0xd68] sm:$0xff]
    %v1707 = vld [vmem:[#allocation3 + $0xd70] sm:$0xff]
    %v1708 = vld [vmem:[#allocation3 + $0xd78] sm:$0xff]
    %v1709 = vld [vmem:[#allocation3 + $0xd80] sm:$0xff]
    %v1710 = vld [vmem:[#allocation3 + $0xd88] sm:$0xff]
    %v1711 = vld [vmem:[#allocation3 + $0xd90] sm:$0xff]
    %v1712 = vld [vmem:[#allocation3 + $0xd98] sm:$0xff]
    %v1713 = vld [vmem:[#allocation3 + $0xda0] sm:$0xff]
    %v1714 = vld [vmem:[#allocation3 + $0xda8] sm:$0xff]
    %v1715 = vld [vmem:[#allocation3 + $0xdb0] sm:$0xff]
    %v1716 = vld [vmem:[#allocation3 + $0xdb8] sm:$0xff]
    %v1717 = vld [vmem:[#allocation3 + $0xdc0] sm:$0xff]
    %v1718 = vld [vmem:[#allocation3 + $0xdc8] sm:$0xff]
    %v1719 = vld [vmem:[#allocation3 + $0xdd0] sm:$0xff]
    %v1720 = vld [vmem:[#allocation3 + $0xdd8] sm:$0xff]
    %v1721 = vld [vmem:[#allocation3 + $0xde0] sm:$0xff]
    %v1722 = vld [vmem:[#allocation3 + $0xde8] sm:$0xff]
    %v1723 = vld [vmem:[#allocation3 + $0xdf0] sm:$0xff]
    %v1724 = vld [vmem:[#allocation3 + $0xdf8] sm:$0xff]
    %v1725 = vld [vmem:[#allocation3 + $0xe00] sm:$0xff]
    %v1726 = vld [vmem:[#allocation3 + $0xe08] sm:$0xff]
    %v1727 = vld [vmem:[#allocation3 + $0xe10] sm:$0xff]
    %v1728 = vld [vmem:[#allocation3 + $0xe18] sm:$0xff]
    %v1729 = vld [vmem:[#allocation3 + $0xe20] sm:$0xff]
    %v1730 = vld [vmem:[#allocation3 + $0xe28] sm:$0xff]
    %v1731 = vld [vmem:[#allocation3 + $0xe30] sm:$0xff]
    %v1732 = vld [vmem:[#allocation3 + $0xe38] sm:$0xff]
    %v1733 = vld [vmem:[#allocation3 + $0xe40] sm:$0xff]
    %v1734 = vld [vmem:[#allocation3 + $0xe48] sm:$0xff]
    %v1735 = vld [vmem:[#allocation3 + $0xe50] sm:$0xff]
    %v1736 = vld [vmem:[#allocation3 + $0xe58] sm:$0xff]
    %v1737 = vld [vmem:[#allocation3 + $0xe60] sm:$0xff]
    %v1738 = vld [vmem:[#allocation3 + $0xe68] sm:$0xff]
    %v1739 = vld [vmem:[#allocation3 + $0xe70] sm:$0xff]
    %v1740 = vld [vmem:[#allocation3 + $0xe78] sm:$0xff]
    %v1741 = vld [vmem:[#allocation3 + $0xe80] sm:$0xff]
    %v1742 = vld [vmem:[#allocation3 + $0xe88] sm:$0xff]
    %v1743 = vld [vmem:[#allocation3 + $0xe90] sm:$0xff]
    %v1744 = vld [vmem:[#allocation3 + $0xe98] sm:$0xff]
    %v1745 = vld [vmem:[#allocation3 + $0xea0] sm:$0xff]
    %v1746 = vld [vmem:[#allocation3 + $0xea8] sm:$0xff]
    %v1747 = vld [vmem:[#allocation3 + $0xeb0] sm:$0xff]
    %v1748 = vld [vmem:[#allocation3 + $0xeb8] sm:$0xff]
    %v1749 = vld [vmem:[#allocation3 + $0xec0] sm:$0xff]
    %v1750 = vld [vmem:[#allocation3 + $0xec8] sm:$0xff]
    %v1751 = vld [vmem:[#allocation3 + $0xed0] sm:$0xff]
    %v1752 = vld [vmem:[#allocation3 + $0xed8] sm:$0xff]
    %v1753 = vld [vmem:[#allocation3 + $0xee0] sm:$0xff]
    %v1754 = vld [vmem:[#allocation3 + $0xee8] sm:$0xff]
    %v1755 = vld [vmem:[#allocation3 + $0xef0] sm:$0xff]
    %v1756 = vld [vmem:[#allocation3 + $0xef8] sm:$0xff]
    %v1757 = vld [vmem:[#allocation3 + $0xf00] sm:$0xff]
    %v1758 = vld [vmem:[#allocation3 + $0xf08] sm:$0xff]
    %v1759 = vld [vmem:[#allocation3 + $0xf10] sm:$0xff]
    %v1760 = vld [vmem:[#allocation3 + $0xf18] sm:$0xff]
    %v1761 = vld [vmem:[#allocation3 + $0xf20] sm:$0xff]
    %v1762 = vld [vmem:[#allocation3 + $0xf28] sm:$0xff]
    %v1763 = vld [vmem:[#allocation3 + $0xf30] sm:$0xff]
    %v1764 = vld [vmem:[#allocation3 + $0xf38] sm:$0xff]
    %v1765 = vld [vmem:[#allocation3 + $0xf40] sm:$0xff]
    %v1766 = vld [vmem:[#allocation3 + $0xf48] sm:$0xff]
    %v1767 = vld [vmem:[#allocation3 + $0xf50] sm:$0xff]
    %v1768 = vld [vmem:[#allocation3 + $0xf58] sm:$0xff]
    %v1769 = vld [vmem:[#allocation3 + $0xf60] sm:$0xff]
    %v1770 = vld [vmem:[#allocation3 + $0xf68] sm:$0xff]
    %v1771 = vld [vmem:[#allocation3 + $0xf70] sm:$0xff]
    %v1772 = vld [vmem:[#allocation3 + $0xf78] sm:$0xff]
    %v1773 = vld [vmem:[#allocation3 + $0xf80] sm:$0xff]
    %v1774 = vld [vmem:[#allocation3 + $0xf88] sm:$0xff]
    %v1775 = vld [vmem:[#allocation3 + $0xf90] sm:$0xff]
    %v1776 = vld [vmem:[#allocation3 + $0xf98] sm:$0xff]
    %v1777 = vld [vmem:[#allocation3 + $0xfa0] sm:$0xff]
    %v1778 = vld [vmem:[#allocation3 + $0xfa8] sm:$0xff]
    %v1779 = vld [vmem:[#allocation3 + $0xfb0] sm:$0xff]
    %v1780 = vld [vmem:[#allocation3 + $0xfb8] sm:$0xff]
    %v1781 = vld [vmem:[#allocation3 + $0xfc0] sm:$0xff]
    %v1782 = vld [vmem:[#allocation3 + $0xfc8] sm:$0xff]
    %v1783 = vld [vmem:[#allocation3 + $0xfd0] sm:$0xff]
    %v1784 = vld [vmem:[#allocation3 + $0xfd8] sm:$0xff]
    %v1785 = vld [vmem:[#allocation3 + $0xfe0] sm:$0xff]
    %v1786 = vld [vmem:[#allocation3 + $0xfe8] sm:$0xff]
    %v1787 = vld [vmem:[#allocation3 + $0xff0] sm:$0xff]
    %v1788 = vld [vmem:[#allocation3 + $0xff8] sm:$0xff]
    %v1789 = vld [vmem:[#allocation3 + $0x1000] sm:$0xff]
    %v1790 = vld [vmem:[#allocation3 + $0x1008] sm:$0xff]
    %v1791 = vld [vmem:[#allocation3 + $0x1010] sm:$0xff]
    %v1792 = vld [vmem:[#allocation3 + $0x1018] sm:$0xff]
    %v1793 = vld [vmem:[#allocation3 + $0x1020] sm:$0xff]
    %v1794 = vld [vmem:[#allocation3 + $0x1028] sm:$0xff]
    %v1795 = vld [vmem:[#allocation3 + $0x1030] sm:$0xff]
    %v1796 = vld [vmem:[#allocation3 + $0x1038] sm:$0xff]
    %v1797 = vld [vmem:[#allocation3 + $0x1040] sm:$0xff]
    %v1798 = vld [vmem:[#allocation3 + $0x1048] sm:$0xff]
    %v1799 = vld [vmem:[#allocation3 + $0x1050] sm:$0xff]
    %v1800 = vld [vmem:[#allocation3 + $0x1058] sm:$0xff]
    %v1801 = vld [vmem:[#allocation3 + $0x1060] sm:$0xff]
    %v1802 = vld [vmem:[#allocation3 + $0x1068] sm:$0xff]
    %v1803 = vld [vmem:[#allocation3 + $0x1070] sm:$0xff]
    %v1804 = vld [vmem:[#allocation3 + $0x1078] sm:$0xff]
    %v1805 = vld [vmem:[#allocation3 + $0x1080] sm:$0xff]
    %v1806 = vld [vmem:[#allocation3 + $0x1088] sm:$0xff]
    %v1807 = vld [vmem:[#allocation3 + $0x1090] sm:$0xff]
    %v1808 = vld [vmem:[#allocation3 + $0x1098] sm:$0xff]
    %v1809 = vld [vmem:[#allocation3 + $0x10a0] sm:$0xff]
    %v1810 = vld [vmem:[#allocation3 + $0x10a8] sm:$0xff]
    %v1811 = vld [vmem:[#allocation3 + $0x10b0] sm:$0xff]
    %v1812 = vld [vmem:[#allocation3 + $0x10b8] sm:$0xff]
    %v1813 = vld [vmem:[#allocation3 + $0x10c0] sm:$0xff]
    %v1814 = vld [vmem:[#allocation3 + $0x10c8] sm:$0xff]
    %v1815 = vld [vmem:[#allocation3 + $0x10d0] sm:$0xff]
    %v1816 = vld [vmem:[#allocation3 + $0x10d8] sm:$0xff]
    %v1817 = vld [vmem:[#allocation3 + $0x10e0] sm:$0xff]
    %v1818 = vld [vmem:[#allocation3 + $0x10e8] sm:$0xff]
    %v1819 = vld [vmem:[#allocation3 + $0x10f0] sm:$0xff]
    %v1820 = vld [vmem:[#allocation3 + $0x10f8] sm:$0xff]
    %v1821 = vld [vmem:[#allocation3 + $0x1100] sm:$0xff]
    %v1822 = vld [vmem:[#allocation3 + $0x1108] sm:$0xff]
    %v1823 = vld [vmem:[#allocation3 + $0x1110] sm:$0xff]
    %v1824 = vld [vmem:[#allocation3 + $0x1118] sm:$0xff]
    %v1825 = vld [vmem:[#allocation3 + $0x1120] sm:$0xff]
    %v1826 = vld [vmem:[#allocation3 + $0x1128] sm:$0xff]
    %v1827 = vld [vmem:[#allocation3 + $0x1130] sm:$0xff]
    %v1828 = vld [vmem:[#allocation3 + $0x1138] sm:$0xff]
    %v1829 = vld [vmem:[#allocation3 + $0x1140] sm:$0xff]
    %v1830 = vld [vmem:[#allocation3 + $0x1148] sm:$0xff]
    %v1831 = vld [vmem:[#allocation3 + $0x1150] sm:$0xff]
    %v1832 = vld [vmem:[#allocation3 + $0x1158] sm:$0xff]
    %v1833 = vld [vmem:[#allocation3 + $0x1160] sm:$0xff]
    %v1834 = vld [vmem:[#allocation3 + $0x1168] sm:$0xff]
    %v1835 = vld [vmem:[#allocation3 + $0x1170] sm:$0xff]
    %v1836 = vld [vmem:[#allocation3 + $0x1178] sm:$0xff]
    %v1837 = vld [vmem:[#allocation3 + $0x1180] sm:$0xff]
    %v1838 = vld [vmem:[#allocation3 + $0x1188] sm:$0xff]
    %v1839 = vld [vmem:[#allocation3 + $0x1190] sm:$0xff]
    %v1840 = vld [vmem:[#allocation3 + $0x1198] sm:$0xff]
    %v1841 = vld [vmem:[#allocation3 + $0x11a0] sm:$0xff]
    %v1842 = vld [vmem:[#allocation3 + $0x11a8] sm:$0xff]
    %v1843 = vld [vmem:[#allocation3 + $0x11b0] sm:$0xff]
    %v1844 = vld [vmem:[#allocation3 + $0x11b8] sm:$0xff]
    %v1845 = vld [vmem:[#allocation3 + $0x11c0] sm:$0xff]
    %v1846 = vld [vmem:[#allocation3 + $0x11c8] sm:$0xff]
    %v1847 = vld [vmem:[#allocation3 + $0x11d0] sm:$0xff]
    %v1848 = vld [vmem:[#allocation3 + $0x11d8] sm:$0xff]
    %v1849 = vld [vmem:[#allocation3 + $0x11e0] sm:$0xff]
    %v1850 = vld [vmem:[#allocation3 + $0x11e8] sm:$0xff]
    %v1851 = vld [vmem:[#allocation3 + $0x11f0] sm:$0xff]
    %v1852 = vld [vmem:[#allocation3 + $0x11f8] sm:$0xff]
    %v1853 = vld [vmem:[#allocation5] sm:$0xff]
    %v1854 = vld [vmem:[#allocation5 + $0x8] sm:$0xff]
    %v1855 = vld [vmem:[#allocation5 + $0x10] sm:$0xff]
    %v1856 = vld [vmem:[#allocation5 + $0x18] sm:$0xff]
    %v1857 = vld [vmem:[#allocation5 + $0x20] sm:$0xff]
    %v1858 = vld [vmem:[#allocation5 + $0x28] sm:$0xff]
    %v1859 = vld [vmem:[#allocation5 + $0x30] sm:$0xff]
    %v1860 = vld [vmem:[#allocation5 + $0x38] sm:$0xff]
    %v1861 = vld [vmem:[#allocation5 + $0x40] sm:$0xff]
    %v1862 = vld [vmem:[#allocation5 + $0x48] sm:$0xff]
    %v1863 = vld [vmem:[#allocation5 + $0x50] sm:$0xff]
    %v1864 = vld [vmem:[#allocation5 + $0x58] sm:$0xff]
    %v1865 = vld [vmem:[#allocation5 + $0x60] sm:$0xff]
    %v1866 = vld [vmem:[#allocation5 + $0x68] sm:$0xff]
    %v1867 = vld [vmem:[#allocation5 + $0x70] sm:$0xff]
    %v1868 = vld [vmem:[#allocation5 + $0x78] sm:$0xff]
    %v1869 = vld [vmem:[#allocation5 + $0x80] sm:$0xff]
    %v1870 = vld [vmem:[#allocation5 + $0x88] sm:$0xff]
    %v1871 = vld [vmem:[#allocation5 + $0x90] sm:$0xff]
    %v1872 = vld [vmem:[#allocation5 + $0x98] sm:$0xff]
    %v1873 = vld [vmem:[#allocation5 + $0xa0] sm:$0xff]
    %v1874 = vld [vmem:[#allocation5 + $0xa8] sm:$0xff]
    %v1875 = vld [vmem:[#allocation5 + $0xb0] sm:$0xff]
    %v1876 = vld [vmem:[#allocation5 + $0xb8] sm:$0xff]
    %v1877 = vld [vmem:[#allocation5 + $0xc0] sm:$0xff]
    %v1878 = vld [vmem:[#allocation5 + $0xc8] sm:$0xff]
    %v1879 = vld [vmem:[#allocation5 + $0xd0] sm:$0xff]
    %v1880 = vld [vmem:[#allocation5 + $0xd8] sm:$0xff]
    %v1881 = vld [vmem:[#allocation5 + $0xe0] sm:$0xff]
    %v1882 = vld [vmem:[#allocation5 + $0xe8] sm:$0xff]
    %v1883 = vld [vmem:[#allocation5 + $0xf0] sm:$0xff]
    %v1884 = vld [vmem:[#allocation5 + $0xf8] sm:$0xff]
    %v1885 = vld [vmem:[#allocation5 + $0x100] sm:$0xff]
    %v1886 = vld [vmem:[#allocation5 + $0x108] sm:$0xff]
    %v1887 = vld [vmem:[#allocation5 + $0x110] sm:$0xff]
    %v1888 = vld [vmem:[#allocation5 + $0x118] sm:$0xff]
    %v1889 = vld [vmem:[#allocation5 + $0x120] sm:$0xff]
    %v1890 = vld [vmem:[#allocation5 + $0x128] sm:$0xff]
    %v1891 = vld [vmem:[#allocation5 + $0x130] sm:$0xff]
    %v1892 = vld [vmem:[#allocation5 + $0x138] sm:$0xff]
    %v1893 = vld [vmem:[#allocation5 + $0x140] sm:$0xff]
    %v1894 = vld [vmem:[#allocation5 + $0x148] sm:$0xff]
    %v1895 = vld [vmem:[#allocation5 + $0x150] sm:$0xff]
    %v1896 = vld [vmem:[#allocation5 + $0x158] sm:$0xff]
    %v1897 = vld [vmem:[#allocation5 + $0x160] sm:$0xff]
    %v1898 = vld [vmem:[#allocation5 + $0x168] sm:$0xff]
    %v1899 = vld [vmem:[#allocation5 + $0x170] sm:$0xff]
    %v1900 = vld [vmem:[#allocation5 + $0x178] sm:$0xff]
    %v1901 = vld [vmem:[#allocation5 + $0x180] sm:$0xff]
    %v1902 = vld [vmem:[#allocation5 + $0x188] sm:$0xff]
    %v1903 = vld [vmem:[#allocation5 + $0x190] sm:$0xff]
    %v1904 = vld [vmem:[#allocation5 + $0x198] sm:$0xff]
    %v1905 = vld [vmem:[#allocation5 + $0x1a0] sm:$0xff]
    %v1906 = vld [vmem:[#allocation5 + $0x1a8] sm:$0xff]
    %v1907 = vld [vmem:[#allocation5 + $0x1b0] sm:$0xff]
    %v1908 = vld [vmem:[#allocation5 + $0x1b8] sm:$0xff]
    %v1909 = vld [vmem:[#allocation5 + $0x1c0] sm:$0xff]
    %v1910 = vld [vmem:[#allocation5 + $0x1c8] sm:$0xff]
    %v1911 = vld [vmem:[#allocation5 + $0x1d0] sm:$0xff]
    %v1912 = vld [vmem:[#allocation5 + $0x1d8] sm:$0xff]
    %v1913 = vld [vmem:[#allocation5 + $0x1e0] sm:$0xff]
    %v1914 = vld [vmem:[#allocation5 + $0x1e8] sm:$0xff]
    %v1915 = vld [vmem:[#allocation5 + $0x1f0] sm:$0xff]
    %v1916 = vld [vmem:[#allocation5 + $0x1f8] sm:$0xff]
    %v1917 = vld [vmem:[#allocation5 + $0x200] sm:$0xff]
    %v1918 = vld [vmem:[#allocation5 + $0x208] sm:$0xff]
    %v1919 = vld [vmem:[#allocation5 + $0x210] sm:$0xff]
    %v1920 = vld [vmem:[#allocation5 + $0x218] sm:$0xff]
    %v1921 = vld [vmem:[#allocation5 + $0x220] sm:$0xff]
    %v1922 = vld [vmem:[#allocation5 + $0x228] sm:$0xff]
    %v1923 = vld [vmem:[#allocation5 + $0x230] sm:$0xff]
    %v1924 = vld [vmem:[#allocation5 + $0x238] sm:$0xff]
    %v1925 = vld [vmem:[#allocation5 + $0x240] sm:$0xff]
    %v1926 = vld [vmem:[#allocation5 + $0x248] sm:$0xff]
    %v1927 = vld [vmem:[#allocation5 + $0x250] sm:$0xff]
    %v1928 = vld [vmem:[#allocation5 + $0x258] sm:$0xff]
    %v1929 = vld [vmem:[#allocation5 + $0x260] sm:$0xff]
    %v1930 = vld [vmem:[#allocation5 + $0x268] sm:$0xff]
    %v1931 = vld [vmem:[#allocation5 + $0x270] sm:$0xff]
    %v1932 = vld [vmem:[#allocation5 + $0x278] sm:$0xff]
    %v1933 = vld [vmem:[#allocation5 + $0x280] sm:$0xff]
    %v1934 = vld [vmem:[#allocation5 + $0x288] sm:$0xff]
    %v1935 = vld [vmem:[#allocation5 + $0x290] sm:$0xff]
    %v1936 = vld [vmem:[#allocation5 + $0x298] sm:$0xff]
    %v1937 = vld [vmem:[#allocation5 + $0x2a0] sm:$0xff]
    %v1938 = vld [vmem:[#allocation5 + $0x2a8] sm:$0xff]
    %v1939 = vld [vmem:[#allocation5 + $0x2b0] sm:$0xff]
    %v1940 = vld [vmem:[#allocation5 + $0x2b8] sm:$0xff]
    %v1941 = vld [vmem:[#allocation5 + $0x2c0] sm:$0xff]
    %v1942 = vld [vmem:[#allocation5 + $0x2c8] sm:$0xff]
    %v1943 = vld [vmem:[#allocation5 + $0x2d0] sm:$0xff]
    %v1944 = vld [vmem:[#allocation5 + $0x2d8] sm:$0xff]
    %v1945 = vld [vmem:[#allocation5 + $0x2e0] sm:$0xff]
    %v1946 = vld [vmem:[#allocation5 + $0x2e8] sm:$0xff]
    %v1947 = vld [vmem:[#allocation5 + $0x2f0] sm:$0xff]
    %v1948 = vld [vmem:[#allocation5 + $0x2f8] sm:$0xff]
    %v1949 = vld [vmem:[#allocation5 + $0x300] sm:$0xff]
    %v1950 = vld [vmem:[#allocation5 + $0x308] sm:$0xff]
    %v1951 = vld [vmem:[#allocation5 + $0x310] sm:$0xff]
    %v1952 = vld [vmem:[#allocation5 + $0x318] sm:$0xff]
    %v1953 = vld [vmem:[#allocation5 + $0x320] sm:$0xff]
    %v1954 = vld [vmem:[#allocation5 + $0x328] sm:$0xff]
    %v1955 = vld [vmem:[#allocation5 + $0x330] sm:$0xff]
    %v1956 = vld [vmem:[#allocation5 + $0x338] sm:$0xff]
    %v1957 = vld [vmem:[#allocation5 + $0x340] sm:$0xff]
    %v1958 = vld [vmem:[#allocation5 + $0x348] sm:$0xff]
    %v1959 = vld [vmem:[#allocation5 + $0x350] sm:$0xff]
    %v1960 = vld [vmem:[#allocation5 + $0x358] sm:$0xff]
    %v1961 = vld [vmem:[#allocation5 + $0x360] sm:$0xff]
    %v1962 = vld [vmem:[#allocation5 + $0x368] sm:$0xff]
    %v1963 = vld [vmem:[#allocation5 + $0x370] sm:$0xff]
    %v1964 = vld [vmem:[#allocation5 + $0x378] sm:$0xff]
    %v1965 = vld [vmem:[#allocation5 + $0x380] sm:$0xff]
    %v1966 = vld [vmem:[#allocation5 + $0x388] sm:$0xff]
    %v1967 = vld [vmem:[#allocation5 + $0x390] sm:$0xff]
    %v1968 = vld [vmem:[#allocation5 + $0x398] sm:$0xff]
    %v1969 = vld [vmem:[#allocation5 + $0x3a0] sm:$0xff]
    %v1970 = vld [vmem:[#allocation5 + $0x3a8] sm:$0xff]
    %v1971 = vld [vmem:[#allocation5 + $0x3b0] sm:$0xff]
    %v1972 = vld [vmem:[#allocation5 + $0x3b8] sm:$0xff]
    %v1973 = vld [vmem:[#allocation5 + $0x3c0] sm:$0xff]
    %v1974 = vld [vmem:[#allocation5 + $0x3c8] sm:$0xff]
    %v1975 = vld [vmem:[#allocation5 + $0x3d0] sm:$0xff]
    %v1976 = vld [vmem:[#allocation5 + $0x3d8] sm:$0xff]
    %v1977 = vld [vmem:[#allocation5 + $0x3e0] sm:$0xff]
    %v1978 = vld [vmem:[#allocation5 + $0x3e8] sm:$0xff]
    %v1979 = vld [vmem:[#allocation5 + $0x3f0] sm:$0xff]
    %v1980 = vld [vmem:[#allocation5 + $0x3f8] sm:$0xff]
    %v1981 = vld [vmem:[#allocation5 + $0x400] sm:$0xff]
    %v1982 = vld [vmem:[#allocation5 + $0x408] sm:$0xff]
    %v1983 = vld [vmem:[#allocation5 + $0x410] sm:$0xff]
    %v1984 = vld [vmem:[#allocation5 + $0x418] sm:$0xff]
    %v1985 = vld [vmem:[#allocation5 + $0x420] sm:$0xff]
    %v1986 = vld [vmem:[#allocation5 + $0x428] sm:$0xff]
    %v1987 = vld [vmem:[#allocation5 + $0x430] sm:$0xff]
    %v1988 = vld [vmem:[#allocation5 + $0x438] sm:$0xff]
    %v1989 = vld [vmem:[#allocation5 + $0x440] sm:$0xff]
    %v1990 = vld [vmem:[#allocation5 + $0x448] sm:$0xff]
    %v1991 = vld [vmem:[#allocation5 + $0x450] sm:$0xff]
    %v1992 = vld [vmem:[#allocation5 + $0x458] sm:$0xff]
    %v1993 = vld [vmem:[#allocation5 + $0x460] sm:$0xff]
    %v1994 = vld [vmem:[#allocation5 + $0x468] sm:$0xff]
    %v1995 = vld [vmem:[#allocation5 + $0x470] sm:$0xff]
    %v1996 = vld [vmem:[#allocation5 + $0x478] sm:$0xff]
    %1997 = vmatprep.subr.mxu0 0.0
    %1998 = vmatpush1.msra.mxu0 %v1853
    %1999 = vmatprep.subr.mxu0 0.0
    %2000 = vmatpush1.msra.mxu0 %v1854
    %2001 = vmatprep.subr.mxu0 0.0
    %2002 = vmatpush1.msra.mxu0 %v1855
    %2003 = vmatprep.subr.mxu0 0.0
    %2004 = vmatpush1.msra.mxu0 %v1856
    %2005 = vmatprep.subr.mxu0 0.0
    %2006 = vmatpush1.msra.mxu0 %v1857
    %2007 = vmatprep.subr.mxu0 0.0
    %2008 = vmatpush1.msra.mxu0 %v1858
    %2009 = vmatprep.subr.mxu0 0.0
    %2010 = vmatpush1.msra.mxu0 %v1859
    %2011 = vmatprep.subr.mxu0 0.0
    %2012 = vmatpush1.msra.mxu0 %v1860
    %2013 = vmatprep.subr.mxu0 0.0
    %2014 = vmatpush1.msra.mxu0 %v1861
    %2015 = vmatprep.subr.mxu0 0.0
    %2016 = vmatpush1.msra.mxu0 %v1862
    %2017 = vmatprep.subr.mxu0 0.0
    %2018 = vmatpush1.msra.mxu0 %v1863
    %2019 = vmatprep.subr.mxu0 0.0
    %2020 = vmatpush1.msra.mxu0 %v1864
    %2021 = vmatprep.subr.mxu0 0.0
    %2022 = vmatpush1.msra.mxu0 %v1865
    %2023 = vmatprep.subr.mxu0 0.0
    %2024 = vmatpush1.msra.mxu0 %v1866
    %2025 = vmatprep.subr.mxu0 0.0
    %2026 = vmatpush1.msra.mxu0 %v1867
    %2027 = vmatprep.subr.mxu0 0.0
    %2028 = vmatpush1.msra.mxu0 %v1868
    %2029 = vmatprep.subr.mxu0 0.0
    %2030 = vmatpush1.msra.mxu0 %v1869
    %2031 = vmatprep.subr.mxu0 0.0
    %2032 = vmatpush1.msra.mxu0 %v1870
    %2033 = vmatprep.subr.mxu0 0.0
    %2034 = vmatpush1.msra.mxu0 %v1871
    %2035 = vmatprep.subr.mxu0 0.0
    %2036 = vmatpush1.msra.mxu0 %v1872
    %2037 = vmatprep.subr.mxu0 0.0
    %2038 = vmatpush1.msra.mxu0 %v1873
    %2039 = vmatprep.subr.mxu0 0.0
    %2040 = vmatpush1.msra.mxu0 %v1874
    %2041 = vmatprep.subr.mxu0 0.0
    %2042 = vmatpush1.msra.mxu0 %v1875
    %2043 = vmatprep.subr.mxu0 0.0
    %2044 = vmatpush1.msra.mxu0 %v1876
    %2045 = vmatprep.subr.mxu0 0.0
    %2046 = vmatpush1.msra.mxu0 %v1877
    %2047 = vmatprep.subr.mxu0 0.0
    %2048 = vmatpush1.msra.mxu0 %v1878
    %2049 = vmatprep.subr.mxu0 0.0
    %2050 = vmatpush1.msra.mxu0 %v1879
    %2051 = vmatprep.subr.mxu0 0.0
    %2052 = vmatpush1.msra.mxu0 %v1880
    %2053 = vmatprep.subr.mxu0 0.0
    %2054 = vmatpush1.msra.mxu0 %v1881
    %2055 = vmatprep.subr.mxu0 0.0
    %2056 = vmatpush1.msra.mxu0 %v1882
    %2057 = vmatprep.subr.mxu0 0.0
    %2058 = vmatpush1.msra.mxu0 %v1883
    %2059 = vmatprep.subr.mxu0 0.0
    %2060 = vmatpush1.msra.mxu0 %v1884
    %2061 = vmatprep.mubr.f32.mxu0 %v1278
    %2062 = vmatmul.mubr.f32.gmra.mrb[0].mxu0 %v1277
    %v2063 = vpop.f32.mrb[0].mxu0
    %v2064 = vadd.f32 0.0, %v2063
    %v2065 = vpop.f32.mrb[0].mxu0
    %2066 = vmatprep.mubr.f32.mxu0 %v1287
    %2067 = vmatmul.mubr.f32.gmra.mrb[0].mxu0 %v1286
    %v2068 = vpop.f32.mrb[0].mxu0
    %v2069 = vadd.f32 0.0, %v2068
    %v2070 = vpop.f32.mrb[0].mxu0
    %2071 = vmatprep.mubr.f32.mxu0 %v1296
    %2072 = vmatmul.mubr.f32.gmra.mrb[0].mxu0 %v1295
    %v2073 = vpop.f32.mrb[0].mxu0
    %v2074 = vadd.f32 0.0, %v2073
    %v2075 = vpop.f32.mrb[0].mxu0
    %2076 = vmatprep.mubr.f32.mxu0 %v1305
    %2077 = vmatmul.mubr.f32.gmra.mrb[0].mxu0 %v1304
    %v2078 = vpop.f32.mrb[0].mxu0
    %v2079 = vadd.f32 0.0, %v2078
    %v2080 = vpop.f32.mrb[0].mxu0
    %2081 = vmatprep.mubr.f32.mxu0 %v1314
    %2082 = vmatmul.mubr.f32.gmra.mrb[0].mxu0 %v1313
    %v2083 = vpop.f32.mrb[0].mxu0
    %v2084 = vadd.f32 0.0, %v2083
    %v2085 = vpop.f32.mrb[0].mxu0
    %2086 = vmatprep.mubr.f32.mxu0 %v1323
    %2087 = vmatmul.mubr.f32.gmra.mrb[0].mxu0 %v1322
    %v2088 = vpop.f32.mrb[0].mxu0
    %v2089 = vadd.f32 0.0, %v2088
    %v2090 = vpop.f32.mrb[0].mxu0
    %2091 = vmatprep.mubr.f32.mxu0 %v1332
    %2092 = vmatmul.mubr.f32.gmra.mrb[0].mxu0 %v1331
    %v2093 = vpop.f32.mrb[0].mxu0
    %v2094 = vadd.f32 0.0, %v2093
    %v2095 = vpop.f32.mrb[0].mxu0
    %2096 = vmatprep.mubr.f32.mxu0 %v1341
    %2097 = vmatmul.mubr.f32.gmra.mrb[0].mxu0 %v1340
    %v2098 = vpop.f32.mrb[0].mxu0
    %v2099 = vadd.f32 0.0, %v2098
    %v2100 = vpop.f32.mrb[0].mxu0
    %2101 = vmatprep.mubr.f32.mxu0 %v1350
    %2102 = vmatmul.mubr.f32.gmra.mrb[0].mxu0 %v1349
    %v2103 = vpop.f32.mrb[0].mxu0
    %v2104 = vadd.f32 0.0, %v2103
    %v2105 = vpop.f32.mrb[0].mxu0
    %2106 = vmatprep.mubr.f32.mxu0 %v1359
    %2107 = vmatmul.mubr.f32.gmra.mrb[0].mxu0 %v1358
    %v2108 = vpop.f32.mrb[0].mxu0
    %v2109 = vadd.f32 0.0, %v2108
    %v2110 = vpop.f32.mrb[0].mxu0
    %2111 = vmatprep.mubr.f32.mxu0 %v1368
    %2112 = vmatmul.mubr.f32.gmra.mrb[0].mxu0 %v1367
    %v2113 = vpop.f32.mrb[0].mxu0
    %v2114 = vadd.f32 0.0, %v2113
    %v2115 = vpop.f32.mrb[0].mxu0
    %2116 = vmatprep.mubr.f32.mxu0 %v1377
    %2117 = vmatmul.mubr.f32.gmra.mrb[0].mxu0 %v1376
    %v2118 = vpop.f32.mrb[0].mxu0
    %v2119 = vadd.f32 0.0, %v2118
    %v2120 = vpop.f32.mrb[0].mxu0
    %2121 = vmatprep.mubr.f32.mxu0 %v1386
    %2122 = vmatmul.mubr.f32.gmra.mrb[0].mxu0 %v1385
    %v2123 = vpop.f32.mrb[0].mxu0
    %v2124 = vadd.f32 0.0, %v2123
    %v2125 = vpop.f32.mrb[0].mxu0
    %2126 = vmatprep.mubr.f32.mxu0 %v1395
    %2127 = vmatmul.mubr.f32.gmra.mrb[0].mxu0 %v1394
    %v2128 = vpop.f32.mrb[0].mxu0
    %v2129 = vadd.f32 0.0, %v2128
    %v2130 = vpop.f32.mrb[0].mxu0
    %2131 = vmatprep.mubr.f32.mxu0 %v1404
    %2132 = vmatmul.mubr.f32.gmra.mrb[0].mxu0 %v1403
    %v2133 = vpop.f32.mrb[0].mxu0
    %v2134 = vadd.f32 0.0, %v2133
    %v2135 = vpop.f32.mrb[0].mxu0
    %2136 = vmatprep.mubr.f32.mxu0 %v1413
    %2137 = vmatmul.mubr.f32.gmra.mrb[0].mxu0 %v1412
    %v2138 = vpop.f32.mrb[0].mxu0
    %v2139 = vadd.f32 0.0, %v2138
    %v2140 = vpop.f32.mrb[0].mxu0
    %2141 = vmatprep.mubr.f32.mxu0 %v1422
    %2142 = vmatmul.mubr.f32.gmra.mrb[0].mxu0 %v1421
    %v2143 = vpop.f32.mrb[0].mxu0
    %v2144 = vadd.f32 0.0, %v2143
    %v2145 = vpop.f32.mrb[0].mxu0
    %2146 = vmatprep.mubr.f32.mxu0 %v1431
    %2147 = vmatmul.mubr.f32.gmra.mrb[0].mxu0 %v1430
    %v2148 = vpop.f32.mrb[0].mxu0
    %v2149 = vadd.f32 0.0, %v2148
    %v2150 = vpop.f32.mrb[0].mxu0
    %2151 = vmatprep.mubr.f32.mxu0 %v1440
    %2152 = vmatmul.mubr.f32.gmra.mrb[0].mxu0 %v1439
    %v2153 = vpop.f32.mrb[0].mxu0
    %v2154 = vadd.f32 0.0, %v2153
    %v2155 = vpop.f32.mrb[0].mxu0
    %2156 = vmatprep.mubr.f32.mxu0 %v1449
    %2157 = vmatmul.mubr.f32.gmra.mrb[0].mxu0 %v1448
    %v2158 = vpop.f32.mrb[0].mxu0
    %v2159 = vadd.f32 0.0, %v2158
    %v2160 = vpop.f32.mrb[0].mxu0
    %2161 = vmatprep.mubr.f32.mxu0 %v1458
    %2162 = vmatmul.mubr.f32.gmra.mrb[0].mxu0 %v1457
    %v2163 = vpop.f32.mrb[0].mxu0
    %v2164 = vadd.f32 0.0, %v2163
    %v2165 = vpop.f32.mrb[0].mxu0
    %2166 = vmatprep.mubr.f32.mxu0 %v1467
    %2167 = vmatmul.mubr.f32.gmra.mrb[0].mxu0 %v1466
    %v2168 = vpop.f32.mrb[0].mxu0
    %v2169 = vadd.f32 0.0, %v2168
    %v2170 = vpop.f32.mrb[0].mxu0
    %2171 = vmatprep.mubr.f32.mxu0 %v1476
    %2172 = vmatmul.mubr.f32.gmra.mrb[0].mxu0 %v1475
    %v2173 = vpop.f32.mrb[0].mxu0
    %v2174 = vadd.f32 0.0, %v2173
    %v2175 = vpop.f32.mrb[0].mxu0
    %2176 = vmatprep.mubr.f32.mxu0 %v1485
    %2177 = vmatmul.mubr.f32.gmra.mrb[0].mxu0 %v1484
    %v2178 = vpop.f32.mrb[0].mxu0
    %v2179 = vadd.f32 0.0, %v2178
    %v2180 = vpop.f32.mrb[0].mxu0
    %2181 = vmatprep.mubr.f32.mxu0 %v1494
    %2182 = vmatmul.mubr.f32.gmra.mrb[0].mxu0 %v1493
    %v2183 = vpop.f32.mrb[0].mxu0
    %v2184 = vadd.f32 0.0, %v2183
    %v2185 = vpop.f32.mrb[0].mxu0
    %2186 = vmatprep.mubr.f32.mxu0 %v1503
    %2187 = vmatmul.mubr.f32.gmra.mrb[0].mxu0 %v1502
    %v2188 = vpop.f32.mrb[0].mxu0
    %v2189 = vadd.f32 0.0, %v2188
    %v2190 = vpop.f32.mrb[0].mxu0
    %2191 = vmatprep.mubr.f32.mxu0 %v1512
    %2192 = vmatmul.mubr.f32.gmra.mrb[0].mxu0 %v1511
    %v2193 = vpop.f32.mrb[0].mxu0
    %v2194 = vadd.f32 0.0, %v2193
    %v2195 = vpop.f32.mrb[0].mxu0
    %2196 = vmatprep.mubr.f32.mxu0 %v1521
    %2197 = vmatmul.mubr.f32.gmra.mrb[0].mxu0 %v1520
    %v2198 = vpop.f32.mrb[0].mxu0
    %v2199 = vadd.f32 0.0, %v2198
    %v2200 = vpop.f32.mrb[0].mxu0
    %2201 = vmatprep.mubr.f32.mxu0 %v1530
    %2202 = vmatmul.mubr.f32.gmra.mrb[0].mxu0 %v1529
    %v2203 = vpop.f32.mrb[0].mxu0
    %v2204 = vadd.f32 0.0, %v2203
    %v2205 = vpop.f32.mrb[0].mxu0
    %2206 = vmatprep.mubr.f32.mxu0 %v1539
    %2207 = vmatmul.mubr.f32.gmra.mrb[0].mxu0 %v1538
    %v2208 = vpop.f32.mrb[0].mxu0
    %v2209 = vadd.f32 0.0, %v2208
    %v2210 = vpop.f32.mrb[0].mxu0
    %2211 = vmatprep.mubr.f32.mxu0 %v1548
    %2212 = vmatmul.mubr.f32.gmra.mrb[0].mxu0 %v1547
    %v2213 = vpop.f32.mrb[0].mxu0
    %v2214 = vadd.f32 0.0, %v2213
    %v2215 = vpop.f32.mrb[0].mxu0
    %2216 = vmatprep.mubr.f32.mxu0 %v1557
    %2217 = vmatmul.mubr.f32.gmra.mrb[0].mxu0 %v1556
    %v2218 = vpop.f32.mrb[0].mxu0
    %v2219 = vadd.f32 0.0, %v2218
    %v2220 = vpop.f32.mrb[0].mxu0
    %2221 = vmatprep.mubr.f32.mxu0 %v1566
    %2222 = vmatmul.mubr.f32.gmra.mrb[0].mxu0 %v1565
    %v2223 = vpop.f32.mrb[0].mxu0
    %v2224 = vadd.f32 0.0, %v2223
    %v2225 = vpop.f32.mrb[0].mxu0
    %2226 = vmatprep.mubr.f32.mxu0 %v1575
    %2227 = vmatmul.mubr.f32.gmra.mrb[0].mxu0 %v1574
    %v2228 = vpop.f32.mrb[0].mxu0
    %v2229 = vadd.f32 0.0, %v2228
    %v2230 = vpop.f32.mrb[0].mxu0
    %2231 = vmatprep.mubr.f32.mxu0 %v1584
    %2232 = vmatmul.mubr.f32.gmra.mrb[0].mxu0 %v1583
    %v2233 = vpop.f32.mrb[0].mxu0
    %v2234 = vadd.f32 0.0, %v2233
    %v2235 = vpop.f32.mrb[0].mxu0
    %2236 = vmatprep.mubr.f32.mxu0 %v1593
    %2237 = vmatmul.mubr.f32.gmra.mrb[0].mxu0 %v1592
    %v2238 = vpop.f32.mrb[0].mxu0
    %v2239 = vadd.f32 0.0, %v2238
    %v2240 = vpop.f32.mrb[0].mxu0
    %2241 = vmatprep.mubr.f32.mxu0 %v1602
    %2242 = vmatmul.mubr.f32.gmra.mrb[0].mxu0 %v1601
    %v2243 = vpop.f32.mrb[0].mxu0
    %v2244 = vadd.f32 0.0, %v2243
    %v2245 = vpop.f32.mrb[0].mxu0
    %2246 = vmatprep.mubr.f32.mxu0 %v1611
    %2247 = vmatmul.mubr.f32.gmra.mrb[0].mxu0 %v1610
    %v2248 = vpop.f32.mrb[0].mxu0
    %v2249 = vadd.f32 0.0, %v2248
    %v2250 = vpop.f32.mrb[0].mxu0
    %2251 = vmatprep.mubr.f32.mxu0 %v1620
    %2252 = vmatmul.mubr.f32.gmra.mrb[0].mxu0 %v1619
    %v2253 = vpop.f32.mrb[0].mxu0
    %v2254 = vadd.f32 0.0, %v2253
    %v2255 = vpop.f32.mrb[0].mxu0
    %2256 = vmatprep.mubr.f32.mxu0 %v1629
    %2257 = vmatmul.mubr.f32.gmra.mrb[0].mxu0 %v1628
    %v2258 = vpop.f32.mrb[0].mxu0
    %v2259 = vadd.f32 0.0, %v2258
    %v2260 = vpop.f32.mrb[0].mxu0
    %2261 = vmatprep.mubr.f32.mxu0 %v1638
    %2262 = vmatmul.mubr.f32.gmra.mrb[0].mxu0 %v1637
    %v2263 = vpop.f32.mrb[0].mxu0
    %v2264 = vadd.f32 0.0, %v2263
    %v2265 = vpop.f32.mrb[0].mxu0
    %2266 = vmatprep.mubr.f32.mxu0 %v1647
    %2267 = vmatmul.mubr.f32.gmra.mrb[0].mxu0 %v1646
    %v2268 = vpop.f32.mrb[0].mxu0
    %v2269 = vadd.f32 0.0, %v2268
    %v2270 = vpop.f32.mrb[0].mxu0
    %2271 = vmatprep.mubr.f32.mxu0 %v1656
    %2272 = vmatmul.mubr.f32.gmra.mrb[0].mxu0 %v1655
    %v2273 = vpop.f32.mrb[0].mxu0
    %v2274 = vadd.f32 0.0, %v2273
    %v2275 = vpop.f32.mrb[0].mxu0
    %2276 = vmatprep.mubr.f32.mxu0 %v1665
    %2277 = vmatmul.mubr.f32.gmra.mrb[0].mxu0 %v1664
    %v2278 = vpop.f32.mrb[0].mxu0
    %v2279 = vadd.f32 0.0, %v2278
    %v2280 = vpop.f32.mrb[0].mxu0
    %2281 = vmatprep.mubr.f32.mxu0 %v1674
    %2282 = vmatmul.mubr.f32.gmra.mrb[0].mxu0 %v1673
    %v2283 = vpop.f32.mrb[0].mxu0
    %v2284 = vadd.f32 0.0, %v2283
    %v2285 = vpop.f32.mrb[0].mxu0
    %2286 = vmatprep.mubr.f32.mxu0 %v1683
    %2287 = vmatmul.mubr.f32.gmra.mrb[0].mxu0 %v1682
    %v2288 = vpop.f32.mrb[0].mxu0
    %v2289 = vadd.f32 0.0, %v2288
    %v2290 = vpop.f32.mrb[0].mxu0
    %2291 = vmatprep.mubr.f32.mxu0 %v1692
    %2292 = vmatmul.mubr.f32.gmra.mrb[0].mxu0 %v1691
    %v2293 = vpop.f32.mrb[0].mxu0
    %v2294 = vadd.f32 0.0, %v2293
    %v2295 = vpop.f32.mrb[0].mxu0
    %2296 = vmatprep.mubr.f32.mxu0 %v1701
    %2297 = vmatmul.mubr.f32.gmra.mrb[0].mxu0 %v1700
    %v2298 = vpop.f32.mrb[0].mxu0
    %v2299 = vadd.f32 0.0, %v2298
    %v2300 = vpop.f32.mrb[0].mxu0
    %2301 = vmatprep.mubr.f32.mxu0 %v1710
    %2302 = vmatmul.mubr.f32.gmra.mrb[0].mxu0 %v1709
    %v2303 = vpop.f32.mrb[0].mxu0
    %v2304 = vadd.f32 0.0, %v2303
    %v2305 = vpop.f32.mrb[0].mxu0
    %2306 = vmatprep.mubr.f32.mxu0 %v1719
    %2307 = vmatmul.mubr.f32.gmra.mrb[0].mxu0 %v1718
    %v2308 = vpop.f32.mrb[0].mxu0
    %v2309 = vadd.f32 0.0, %v2308
    %v2310 = vpop.f32.mrb[0].mxu0
    %2311 = vmatprep.mubr.f32.mxu0 %v1728
    %2312 = vmatmul.mubr.f32.gmra.mrb[0].mxu0 %v1727
    %v2313 = vpop.f32.mrb[0].mxu0
    %v2314 = vadd.f32 0.0, %v2313
    %v2315 = vpop.f32.mrb[0].mxu0
    %2316 = vmatprep.mubr.f32.mxu0 %v1737
    %2317 = vmatmul.mubr.f32.gmra.mrb[0].mxu0 %v1736
    %v2318 = vpop.f32.mrb[0].mxu0
    %v2319 = vadd.f32 0.0, %v2318
    %v2320 = vpop.f32.mrb[0].mxu0
    %2321 = vmatprep.mubr.f32.mxu0 %v1746
    %2322 = vmatmul.mubr.f32.gmra.mrb[0].mxu0 %v1745
    %v2323 = vpop.f32.mrb[0].mxu0
    %v2324 = vadd.f32 0.0, %v2323
    %v2325 = vpop.f32.mrb[0].mxu0
    %2326 = vmatprep.mubr.f32.mxu0 %v1755
    %2327 = vmatmul.mubr.f32.gmra.mrb[0].mxu0 %v1754
    %v2328 = vpop.f32.mrb[0].mxu0
    %v2329 = vadd.f32 0.0, %v2328
    %v2330 = vpop.f32.mrb[0].mxu0
    %2331 = vmatprep.mubr.f32.mxu0 %v1764
    %2332 = vmatmul.mubr.f32.gmra.mrb[0].mxu0 %v1763
    %v2333 = vpop.f32.mrb[0].mxu0
    %v2334 = vadd.f32 0.0, %v2333
    %v2335 = vpop.f32.mrb[0].mxu0
    %2336 = vmatprep.mubr.f32.mxu0 %v1773
    %2337 = vmatmul.mubr.f32.gmra.mrb[0].mxu0 %v1772
    %v2338 = vpop.f32.mrb[0].mxu0
    %v2339 = vadd.f32 0.0, %v2338
    %v2340 = vpop.f32.mrb[0].mxu0
    %2341 = vmatprep.mubr.f32.mxu0 %v1782
    %2342 = vmatmul.mubr.f32.gmra.mrb[0].mxu0 %v1781
    %v2343 = vpop.f32.mrb[0].mxu0
    %v2344 = vadd.f32 0.0, %v2343
    %v2345 = vpop.f32.mrb[0].mxu0
    %2346 = vmatprep.mubr.f32.mxu0 %v1791
    %2347 = vmatmul.mubr.f32.gmra.mrb[0].mxu0 %v1790
    %v2348 = vpop.f32.mrb[0].mxu0
    %v2349 = vadd.f32 0.0, %v2348
    %v2350 = vpop.f32.mrb[0].mxu0
    %2351 = vmatprep.mubr.f32.mxu0 %v1800
    %2352 = vmatmul.mubr.f32.gmra.mrb[0].mxu0 %v1799
    %v2353 = vpop.f32.mrb[0].mxu0
    %v2354 = vadd.f32 0.0, %v2353
    %v2355 = vpop.f32.mrb[0].mxu0
    %2356 = vmatprep.mubr.f32.mxu0 %v1809
    %2357 = vmatmul.mubr.f32.gmra.mrb[0].mxu0 %v1808
    %v2358 = vpop.f32.mrb[0].mxu0
    %v2359 = vadd.f32 0.0, %v2358
    %v2360 = vpop.f32.mrb[0].mxu0
    %2361 = vmatprep.mubr.f32.mxu0 %v1818
    %2362 = vmatmul.mubr.f32.gmra.mrb[0].mxu0 %v1817
    %v2363 = vpop.f32.mrb[0].mxu0
    %v2364 = vadd.f32 0.0, %v2363
    %v2365 = vpop.f32.mrb[0].mxu0
    %2366 = vmatprep.mubr.f32.mxu0 %v1827
    %2367 = vmatmul.mubr.f32.gmra.mrb[0].mxu0 %v1826
    %v2368 = vpop.f32.mrb[0].mxu0
    %v2369 = vadd.f32 0.0, %v2368
    %v2370 = vpop.f32.mrb[0].mxu0
    %2371 = vmatprep.mubr.f32.mxu0 %v1836
    %2372 = vmatmul.mubr.f32.gmra.mrb[0].mxu0 %v1835
    %v2373 = vpop.f32.mrb[0].mxu0
    %v2374 = vadd.f32 0.0, %v2373
    %v2375 = vpop.f32.mrb[0].mxu0
    %2376 = vmatprep.mubr.f32.mxu0 %v1845
    %2377 = vmatmul.mubr.f32.gmra.mrb[0].mxu0 %v1844
    %v2378 = vpop.f32.mrb[0].mxu0
    %v2379 = vadd.f32 0.0, %v2378
    %v2380 = vpop.f32.mrb[0].mxu0
    %2381 = vdwg.mxu0
    %2382 = vmatprep.subr.mxu0 0.0
    %2383 = vmatpush1.msra.mxu0 %v1885
    %2384 = vmatprep.subr.mxu0 0.0
    %2385 = vmatpush1.msra.mxu0 %v1886
    %2386 = vmatprep.subr.mxu0 0.0
    %2387 = vmatpush1.msra.mxu0 %v1887
    %2388 = vmatprep.subr.mxu0 0.0
    %2389 = vmatpush1.msra.mxu0 %v1888
    %2390 = vmatprep.subr.mxu0 0.0
    %2391 = vmatpush1.msra.mxu0 %v1889
    %2392 = vmatprep.subr.mxu0 0.0
    %2393 = vmatpush1.msra.mxu0 %v1890
    %2394 = vmatprep.subr.mxu0 0.0
    %2395 = vmatpush1.msra.mxu0 %v1891
    %2396 = vmatprep.subr.mxu0 0.0
    %2397 = vmatpush1.msra.mxu0 %v1892
    %2398 = vmatprep.subr.mxu0 0.0
    %2399 = vmatpush1.msra.mxu0 %v1893
    %2400 = vmatprep.subr.mxu0 0.0
    %2401 = vmatpush1.msra.mxu0 %v1894
    %2402 = vmatprep.subr.mxu0 0.0
    %2403 = vmatpush1.msra.mxu0 %v1895
    %2404 = vmatprep.subr.mxu0 0.0
    %2405 = vmatpush1.msra.mxu0 %v1896
    %2406 = vmatprep.subr.mxu0 0.0
    %2407 = vmatpush1.msra.mxu0 %v1897
    %2408 = vmatprep.subr.mxu0 0.0
    %2409 = vmatpush1.msra.mxu0 %v1898
    %2410 = vmatprep.subr.mxu0 0.0
    %2411 = vmatpush1.msra.mxu0 %v1899
    %2412 = vmatprep.subr.mxu0 0.0
    %2413 = vmatpush1.msra.mxu0 %v1900
    %2414 = vmatprep.subr.mxu0 0.0
    %2415 = vmatpush1.msra.mxu0 %v1901
    %2416 = vmatprep.subr.mxu0 0.0
    %2417 = vmatpush1.msra.mxu0 %v1902
    %2418 = vmatprep.subr.mxu0 0.0
    %2419 = vmatpush1.msra.mxu0 %v1903
    %2420 = vmatprep.subr.mxu0 0.0
    %2421 = vmatpush1.msra.mxu0 %v1904
    %2422 = vmatprep.subr.mxu0 0.0
    %2423 = vmatpush1.msra.mxu0 %v1905
    %2424 = vmatprep.subr.mxu0 0.0
    %2425 = vmatpush1.msra.mxu0 %v1906
    %2426 = vmatprep.subr.mxu0 0.0
    %2427 = vmatpush1.msra.mxu0 %v1907
    %2428 = vmatprep.subr.mxu0 0.0
    %2429 = vmatpush1.msra.mxu0 %v1908
    %2430 = vmatprep.subr.mxu0 0.0
    %2431 = vmatpush1.msra.mxu0 %v1909
    %2432 = vmatprep.subr.mxu0 0.0
    %2433 = vmatpush1.msra.mxu0 %v1910
    %2434 = vmatprep.subr.mxu0 0.0
    %2435 = vmatpush1.msra.mxu0 %v1911
    %2436 = vmatprep.subr.mxu0 0.0
    %2437 = vmatpush1.msra.mxu0 %v1912
    %2438 = vmatprep.subr.mxu0 0.0
    %2439 = vmatpush1.msra.mxu0 %v1913
    %2440 = vmatprep.subr.mxu0 0.0
    %2441 = vmatpush1.msra.mxu0 %v1914
    %2442 = vmatprep.subr.mxu0 0.0
    %2443 = vmatpush1.msra.mxu0 %v1915
    %2444 = vmatprep.subr.mxu0 0.0
    %2445 = vmatpush1.msra.mxu0 %v1916
    %2446 = vmatprep.mubr.f32.mxu0 %v1280
    %2447 = vmatmul.mubr.f32.gmra.mrb[0].mxu0 %v1279
    %v2448 = vpop.f32.mrb[0].mxu0
    %v2449 = vadd.f32 %v2064, %v2448
    %v2450 = vpop.f32.mrb[0].mxu0
    %2451 = vmatprep.mubr.f32.mxu0 %v1289
    %2452 = vmatmul.mubr.f32.gmra.mrb[0].mxu0 %v1288
    %v2453 = vpop.f32.mrb[0].mxu0
    %v2454 = vadd.f32 %v2069, %v2453
    %v2455 = vpop.f32.mrb[0].mxu0
    %2456 = vmatprep.mubr.f32.mxu0 %v1298
    %2457 = vmatmul.mubr.f32.gmra.mrb[0].mxu0 %v1297
    %v2458 = vpop.f32.mrb[0].mxu0
    %v2459 = vadd.f32 %v2074, %v2458
    %v2460 = vpop.f32.mrb[0].mxu0
    %2461 = vmatprep.mubr.f32.mxu0 %v1307
    %2462 = vmatmul.mubr.f32.gmra.mrb[0].mxu0 %v1306
    %v2463 = vpop.f32.mrb[0].mxu0
    %v2464 = vadd.f32 %v2079, %v2463
    %v2465 = vpop.f32.mrb[0].mxu0
    %2466 = vmatprep.mubr.f32.mxu0 %v1316
    %2467 = vmatmul.mubr.f32.gmra.mrb[0].mxu0 %v1315
    %v2468 = vpop.f32.mrb[0].mxu0
    %v2469 = vadd.f32 %v2084, %v2468
    %v2470 = vpop.f32.mrb[0].mxu0
    %2471 = vmatprep.mubr.f32.mxu0 %v1325
    %2472 = vmatmul.mubr.f32.gmra.mrb[0].mxu0 %v1324
    %v2473 = vpop.f32.mrb[0].mxu0
    %v2474 = vadd.f32 %v2089, %v2473
    %v2475 = vpop.f32.mrb[0].mxu0
    %2476 = vmatprep.mubr.f32.mxu0 %v1334
    %2477 = vmatmul.mubr.f32.gmra.mrb[0].mxu0 %v1333
    %v2478 = vpop.f32.mrb[0].mxu0
    %v2479 = vadd.f32 %v2094, %v2478
    %v2480 = vpop.f32.mrb[0].mxu0
    %2481 = vmatprep.mubr.f32.mxu0 %v1343
    %2482 = vmatmul.mubr.f32.gmra.mrb[0].mxu0 %v1342
    %v2483 = vpop.f32.mrb[0].mxu0
    %v2484 = vadd.f32 %v2099, %v2483
    %v2485 = vpop.f32.mrb[0].mxu0
    %2486 = vmatprep.mubr.f32.mxu0 %v1352
    %2487 = vmatmul.mubr.f32.gmra.mrb[0].mxu0 %v1351
    %v2488 = vpop.f32.mrb[0].mxu0
    %v2489 = vadd.f32 %v2104, %v2488
    %v2490 = vpop.f32.mrb[0].mxu0
    %2491 = vmatprep.mubr.f32.mxu0 %v1361
    %2492 = vmatmul.mubr.f32.gmra.mrb[0].mxu0 %v1360
    %v2493 = vpop.f32.mrb[0].mxu0
    %v2494 = vadd.f32 %v2109, %v2493
    %v2495 = vpop.f32.mrb[0].mxu0
    %2496 = vmatprep.mubr.f32.mxu0 %v1370
    %2497 = vmatmul.mubr.f32.gmra.mrb[0].mxu0 %v1369
    %v2498 = vpop.f32.mrb[0].mxu0
    %v2499 = vadd.f32 %v2114, %v2498
    %v2500 = vpop.f32.mrb[0].mxu0
    %2501 = vmatprep.mubr.f32.mxu0 %v1379
    %2502 = vmatmul.mubr.f32.gmra.mrb[0].mxu0 %v1378
    %v2503 = vpop.f32.mrb[0].mxu0
    %v2504 = vadd.f32 %v2119, %v2503
    %v2505 = vpop.f32.mrb[0].mxu0
    %2506 = vmatprep.mubr.f32.mxu0 %v1388
    %2507 = vmatmul.mubr.f32.gmra.mrb[0].mxu0 %v1387
    %v2508 = vpop.f32.mrb[0].mxu0
    %v2509 = vadd.f32 %v2124, %v2508
    %v2510 = vpop.f32.mrb[0].mxu0
    %2511 = vmatprep.mubr.f32.mxu0 %v1397
    %2512 = vmatmul.mubr.f32.gmra.mrb[0].mxu0 %v1396
    %v2513 = vpop.f32.mrb[0].mxu0
    %v2514 = vadd.f32 %v2129, %v2513
    %v2515 = vpop.f32.mrb[0].mxu0
    %2516 = vmatprep.mubr.f32.mxu0 %v1406
    %2517 = vmatmul.mubr.f32.gmra.mrb[0].mxu0 %v1405
    %v2518 = vpop.f32.mrb[0].mxu0
    %v2519 = vadd.f32 %v2134, %v2518
    %v2520 = vpop.f32.mrb[0].mxu0
    %2521 = vmatprep.mubr.f32.mxu0 %v1415
    %2522 = vmatmul.mubr.f32.gmra.mrb[0].mxu0 %v1414
    %v2523 = vpop.f32.mrb[0].mxu0
    %v2524 = vadd.f32 %v2139, %v2523
    %v2525 = vpop.f32.mrb[0].mxu0
    %2526 = vmatprep.mubr.f32.mxu0 %v1424
    %2527 = vmatmul.mubr.f32.gmra.mrb[0].mxu0 %v1423
    %v2528 = vpop.f32.mrb[0].mxu0
    %v2529 = vadd.f32 %v2144, %v2528
    %v2530 = vpop.f32.mrb[0].mxu0
    %2531 = vmatprep.mubr.f32.mxu0 %v1433
    %2532 = vmatmul.mubr.f32.gmra.mrb[0].mxu0 %v1432
    %v2533 = vpop.f32.mrb[0].mxu0
    %v2534 = vadd.f32 %v2149, %v2533
    %v2535 = vpop.f32.mrb[0].mxu0
    %2536 = vmatprep.mubr.f32.mxu0 %v1442
    %2537 = vmatmul.mubr.f32.gmra.mrb[0].mxu0 %v1441
    %v2538 = vpop.f32.mrb[0].mxu0
    %v2539 = vadd.f32 %v2154, %v2538
    %v2540 = vpop.f32.mrb[0].mxu0
    %2541 = vmatprep.mubr.f32.mxu0 %v1451
    %2542 = vmatmul.mubr.f32.gmra.mrb[0].mxu0 %v1450
    %v2543 = vpop.f32.mrb[0].mxu0
    %v2544 = vadd.f32 %v2159, %v2543
    %v2545 = vpop.f32.mrb[0].mxu0
    %2546 = vmatprep.mubr.f32.mxu0 %v1460
    %2547 = vmatmul.mubr.f32.gmra.mrb[0].mxu0 %v1459
    %v2548 = vpop.f32.mrb[0].mxu0
    %v2549 = vadd.f32 %v2164, %v2548
    %v2550 = vpop.f32.mrb[0].mxu0
    %2551 = vmatprep.mubr.f32.mxu0 %v1469
    %2552 = vmatmul.mubr.f32.gmra.mrb[0].mxu0 %v1468
    %v2553 = vpop.f32.mrb[0].mxu0
    %v2554 = vadd.f32 %v2169, %v2553
    %v2555 = vpop.f32.mrb[0].mxu0
    %2556 = vmatprep.mubr.f32.mxu0 %v1478
    %2557 = vmatmul.mubr.f32.gmra.mrb[0].mxu0 %v1477
    %v2558 = vpop.f32.mrb[0].mxu0
    %v2559 = vadd.f32 %v2174, %v2558
    %v2560 = vpop.f32.mrb[0].mxu0
    %2561 = vmatprep.mubr.f32.mxu0 %v1487
    %2562 = vmatmul.mubr.f32.gmra.mrb[0].mxu0 %v1486
    %v2563 = vpop.f32.mrb[0].mxu0
    %v2564 = vadd.f32 %v2179, %v2563
    %v2565 = vpop.f32.mrb[0].mxu0
    %2566 = vmatprep.mubr.f32.mxu0 %v1496
    %2567 = vmatmul.mubr.f32.gmra.mrb[0].mxu0 %v1495
    %v2568 = vpop.f32.mrb[0].mxu0
    %v2569 = vadd.f32 %v2184, %v2568
    %v2570 = vpop.f32.mrb[0].mxu0
    %2571 = vmatprep.mubr.f32.mxu0 %v1505
    %2572 = vmatmul.mubr.f32.gmra.mrb[0].mxu0 %v1504
    %v2573 = vpop.f32.mrb[0].mxu0
    %v2574 = vadd.f32 %v2189, %v2573
    %v2575 = vpop.f32.mrb[0].mxu0
    %2576 = vmatprep.mubr.f32.mxu0 %v1514
    %2577 = vmatmul.mubr.f32.gmra.mrb[0].mxu0 %v1513
    %v2578 = vpop.f32.mrb[0].mxu0
    %v2579 = vadd.f32 %v2194, %v2578
    %v2580 = vpop.f32.mrb[0].mxu0
    %2581 = vmatprep.mubr.f32.mxu0 %v1523
    %2582 = vmatmul.mubr.f32.gmra.mrb[0].mxu0 %v1522
    %v2583 = vpop.f32.mrb[0].mxu0
    %v2584 = vadd.f32 %v2199, %v2583
    %v2585 = vpop.f32.mrb[0].mxu0
    %2586 = vmatprep.mubr.f32.mxu0 %v1532
    %2587 = vmatmul.mubr.f32.gmra.mrb[0].mxu0 %v1531
    %v2588 = vpop.f32.mrb[0].mxu0
    %v2589 = vadd.f32 %v2204, %v2588
    %v2590 = vpop.f32.mrb[0].mxu0
    %2591 = vmatprep.mubr.f32.mxu0 %v1541
    %2592 = vmatmul.mubr.f32.gmra.mrb[0].mxu0 %v1540
    %v2593 = vpop.f32.mrb[0].mxu0
    %v2594 = vadd.f32 %v2209, %v2593
    %v2595 = vpop.f32.mrb[0].mxu0
    %2596 = vmatprep.mubr.f32.mxu0 %v1550
    %2597 = vmatmul.mubr.f32.gmra.mrb[0].mxu0 %v1549
    %v2598 = vpop.f32.mrb[0].mxu0
    %v2599 = vadd.f32 %v2214, %v2598
    %v2600 = vpop.f32.mrb[0].mxu0
    %2601 = vmatprep.mubr.f32.mxu0 %v1559
    %2602 = vmatmul.mubr.f32.gmra.mrb[0].mxu0 %v1558
    %v2603 = vpop.f32.mrb[0].mxu0
    %v2604 = vadd.f32 %v2219, %v2603
    %v2605 = vpop.f32.mrb[0].mxu0
    %2606 = vmatprep.mubr.f32.mxu0 %v1568
    %2607 = vmatmul.mubr.f32.gmra.mrb[0].mxu0 %v1567
    %v2608 = vpop.f32.mrb[0].mxu0
    %v2609 = vadd.f32 %v2224, %v2608
    %v2610 = vpop.f32.mrb[0].mxu0
    %2611 = vmatprep.mubr.f32.mxu0 %v1577
    %2612 = vmatmul.mubr.f32.gmra.mrb[0].mxu0 %v1576
    %v2613 = vpop.f32.mrb[0].mxu0
    %v2614 = vadd.f32 %v2229, %v2613
    %v2615 = vpop.f32.mrb[0].mxu0
    %2616 = vmatprep.mubr.f32.mxu0 %v1586
    %2617 = vmatmul.mubr.f32.gmra.mrb[0].mxu0 %v1585
    %v2618 = vpop.f32.mrb[0].mxu0
    %v2619 = vadd.f32 %v2234, %v2618
    %v2620 = vpop.f32.mrb[0].mxu0
    %2621 = vmatprep.mubr.f32.mxu0 %v1595
    %2622 = vmatmul.mubr.f32.gmra.mrb[0].mxu0 %v1594
    %v2623 = vpop.f32.mrb[0].mxu0
    %v2624 = vadd.f32 %v2239, %v2623
    %v2625 = vpop.f32.mrb[0].mxu0
    %2626 = vmatprep.mubr.f32.mxu0 %v1604
    %2627 = vmatmul.mubr.f32.gmra.mrb[0].mxu0 %v1603
    %v2628 = vpop.f32.mrb[0].mxu0
    %v2629 = vadd.f32 %v2244, %v2628
    %v2630 = vpop.f32.mrb[0].mxu0
    %2631 = vmatprep.mubr.f32.mxu0 %v1613
    %2632 = vmatmul.mubr.f32.gmra.mrb[0].mxu0 %v1612
    %v2633 = vpop.f32.mrb[0].mxu0
    %v2634 = vadd.f32 %v2249, %v2633
    %v2635 = vpop.f32.mrb[0].mxu0
    %2636 = vmatprep.mubr.f32.mxu0 %v1622
    %2637 = vmatmul.mubr.f32.gmra.mrb[0].mxu0 %v1621
    %v2638 = vpop.f32.mrb[0].mxu0
    %v2639 = vadd.f32 %v2254, %v2638
    %v2640 = vpop.f32.mrb[0].mxu0
    %2641 = vmatprep.mubr.f32.mxu0 %v1631
    %2642 = vmatmul.mubr.f32.gmra.mrb[0].mxu0 %v1630
    %v2643 = vpop.f32.mrb[0].mxu0
    %v2644 = vadd.f32 %v2259, %v2643
    %v2645 = vpop.f32.mrb[0].mxu0
    %2646 = vmatprep.mubr.f32.mxu0 %v1640
    %2647 = vmatmul.mubr.f32.gmra.mrb[0].mxu0 %v1639
    %v2648 = vpop.f32.mrb[0].mxu0
    %v2649 = vadd.f32 %v2264, %v2648
    %v2650 = vpop.f32.mrb[0].mxu0
    %2651 = vmatprep.mubr.f32.mxu0 %v1649
    %2652 = vmatmul.mubr.f32.gmra.mrb[0].mxu0 %v1648
    %v2653 = vpop.f32.mrb[0].mxu0
    %v2654 = vadd.f32 %v2269, %v2653
    %v2655 = vpop.f32.mrb[0].mxu0
    %2656 = vmatprep.mubr.f32.mxu0 %v1658
    %2657 = vmatmul.mubr.f32.gmra.mrb[0].mxu0 %v1657
    %v2658 = vpop.f32.mrb[0].mxu0
    %v2659 = vadd.f32 %v2274, %v2658
    %v2660 = vpop.f32.mrb[0].mxu0
    %2661 = vmatprep.mubr.f32.mxu0 %v1667
    %2662 = vmatmul.mubr.f32.gmra.mrb[0].mxu0 %v1666
    %v2663 = vpop.f32.mrb[0].mxu0
    %v2664 = vadd.f32 %v2279, %v2663
    %v2665 = vpop.f32.mrb[0].mxu0
    %2666 = vmatprep.mubr.f32.mxu0 %v1676
    %2667 = vmatmul.mubr.f32.gmra.mrb[0].mxu0 %v1675
    %v2668 = vpop.f32.mrb[0].mxu0
    %v2669 = vadd.f32 %v2284, %v2668
    %v2670 = vpop.f32.mrb[0].mxu0
    %2671 = vmatprep.mubr.f32.mxu0 %v1685
    %2672 = vmatmul.mubr.f32.gmra.mrb[0].mxu0 %v1684
    %v2673 = vpop.f32.mrb[0].mxu0
    %v2674 = vadd.f32 %v2289, %v2673
    %v2675 = vpop.f32.mrb[0].mxu0
    %2676 = vmatprep.mubr.f32.mxu0 %v1694
    %2677 = vmatmul.mubr.f32.gmra.mrb[0].mxu0 %v1693
    %v2678 = vpop.f32.mrb[0].mxu0
    %v2679 = vadd.f32 %v2294, %v2678
    %v2680 = vpop.f32.mrb[0].mxu0
    %2681 = vmatprep.mubr.f32.mxu0 %v1703
    %2682 = vmatmul.mubr.f32.gmra.mrb[0].mxu0 %v1702
    %v2683 = vpop.f32.mrb[0].mxu0
    %v2684 = vadd.f32 %v2299, %v2683
    %v2685 = vpop.f32.mrb[0].mxu0
    %2686 = vmatprep.mubr.f32.mxu0 %v1712
    %2687 = vmatmul.mubr.f32.gmra.mrb[0].mxu0 %v1711
    %v2688 = vpop.f32.mrb[0].mxu0
    %v2689 = vadd.f32 %v2304, %v2688
    %v2690 = vpop.f32.mrb[0].mxu0
    %2691 = vmatprep.mubr.f32.mxu0 %v1721
    %2692 = vmatmul.mubr.f32.gmra.mrb[0].mxu0 %v1720
    %v2693 = vpop.f32.mrb[0].mxu0
    %v2694 = vadd.f32 %v2309, %v2693
    %v2695 = vpop.f32.mrb[0].mxu0
    %2696 = vmatprep.mubr.f32.mxu0 %v1730
    %2697 = vmatmul.mubr.f32.gmra.mrb[0].mxu0 %v1729
    %v2698 = vpop.f32.mrb[0].mxu0
    %v2699 = vadd.f32 %v2314, %v2698
    %v2700 = vpop.f32.mrb[0].mxu0
    %2701 = vmatprep.mubr.f32.mxu0 %v1739
    %2702 = vmatmul.mubr.f32.gmra.mrb[0].mxu0 %v1738
    %v2703 = vpop.f32.mrb[0].mxu0
    %v2704 = vadd.f32 %v2319, %v2703
    %v2705 = vpop.f32.mrb[0].mxu0
    %2706 = vmatprep.mubr.f32.mxu0 %v1748
    %2707 = vmatmul.mubr.f32.gmra.mrb[0].mxu0 %v1747
    %v2708 = vpop.f32.mrb[0].mxu0
    %v2709 = vadd.f32 %v2324, %v2708
    %v2710 = vpop.f32.mrb[0].mxu0
    %2711 = vmatprep.mubr.f32.mxu0 %v1757
    %2712 = vmatmul.mubr.f32.gmra.mrb[0].mxu0 %v1756
    %v2713 = vpop.f32.mrb[0].mxu0
    %v2714 = vadd.f32 %v2329, %v2713
    %v2715 = vpop.f32.mrb[0].mxu0
    %2716 = vmatprep.mubr.f32.mxu0 %v1766
    %2717 = vmatmul.mubr.f32.gmra.mrb[0].mxu0 %v1765
    %v2718 = vpop.f32.mrb[0].mxu0
    %v2719 = vadd.f32 %v2334, %v2718
    %v2720 = vpop.f32.mrb[0].mxu0
    %2721 = vmatprep.mubr.f32.mxu0 %v1775
    %2722 = vmatmul.mubr.f32.gmra.mrb[0].mxu0 %v1774
    %v2723 = vpop.f32.mrb[0].mxu0
    %v2724 = vadd.f32 %v2339, %v2723
    %v2725 = vpop.f32.mrb[0].mxu0
    %2726 = vmatprep.mubr.f32.mxu0 %v1784
    %2727 = vmatmul.mubr.f32.gmra.mrb[0].mxu0 %v1783
    %v2728 = vpop.f32.mrb[0].mxu0
    %v2729 = vadd.f32 %v2344, %v2728
    %v2730 = vpop.f32.mrb[0].mxu0
    %2731 = vmatprep.mubr.f32.mxu0 %v1793
    %2732 = vmatmul.mubr.f32.gmra.mrb[0].mxu0 %v1792
    %v2733 = vpop.f32.mrb[0].mxu0
    %v2734 = vadd.f32 %v2349, %v2733
    %v2735 = vpop.f32.mrb[0].mxu0
    %2736 = vmatprep.mubr.f32.mxu0 %v1802
    %2737 = vmatmul.mubr.f32.gmra.mrb[0].mxu0 %v1801
    %v2738 = vpop.f32.mrb[0].mxu0
    %v2739 = vadd.f32 %v2354, %v2738
    %v2740 = vpop.f32.mrb[0].mxu0
    %2741 = vmatprep.mubr.f32.mxu0 %v1811
    %2742 = vmatmul.mubr.f32.gmra.mrb[0].mxu0 %v1810
    %v2743 = vpop.f32.mrb[0].mxu0
    %v2744 = vadd.f32 %v2359, %v2743
    %v2745 = vpop.f32.mrb[0].mxu0
    %2746 = vmatprep.mubr.f32.mxu0 %v1820
    %2747 = vmatmul.mubr.f32.gmra.mrb[0].mxu0 %v1819
    %v2748 = vpop.f32.mrb[0].mxu0
    %v2749 = vadd.f32 %v2364, %v2748
    %v2750 = vpop.f32.mrb[0].mxu0
    %2751 = vmatprep.mubr.f32.mxu0 %v1829
    %2752 = vmatmul.mubr.f32.gmra.mrb[0].mxu0 %v1828
    %v2753 = vpop.f32.mrb[0].mxu0
    %v2754 = vadd.f32 %v2369, %v2753
    %v2755 = vpop.f32.mrb[0].mxu0
    %2756 = vmatprep.mubr.f32.mxu0 %v1838
    %2757 = vmatmul.mubr.f32.gmra.mrb[0].mxu0 %v1837
    %v2758 = vpop.f32.mrb[0].mxu0
    %v2759 = vadd.f32 %v2374, %v2758
    %v2760 = vpop.f32.mrb[0].mxu0
    %2761 = vmatprep.mubr.f32.mxu0 %v1847
    %2762 = vmatmul.mubr.f32.gmra.mrb[0].mxu0 %v1846
    %v2763 = vpop.f32.mrb[0].mxu0
    %v2764 = vadd.f32 %v2379, %v2763
    %v2765 = vpop.f32.mrb[0].mxu0
    %2766 = vdwg.mxu0
    %2767 = vmatprep.subr.mxu0 0.0
    %2768 = vmatpush1.msra.mxu0 %v1917
    %2769 = vmatprep.subr.mxu0 0.0
    %2770 = vmatpush1.msra.mxu0 %v1918
    %2771 = vmatprep.subr.mxu0 0.0
    %2772 = vmatpush1.msra.mxu0 %v1919
    %2773 = vmatprep.subr.mxu0 0.0
    %2774 = vmatpush1.msra.mxu0 %v1920
    %2775 = vmatprep.subr.mxu0 0.0
    %2776 = vmatpush1.msra.mxu0 %v1921
    %2777 = vmatprep.subr.mxu0 0.0
    %2778 = vmatpush1.msra.mxu0 %v1922
    %2779 = vmatprep.subr.mxu0 0.0
    %2780 = vmatpush1.msra.mxu0 %v1923
    %2781 = vmatprep.subr.mxu0 0.0
    %2782 = vmatpush1.msra.mxu0 %v1924
    %2783 = vmatprep.subr.mxu0 0.0
    %2784 = vmatpush1.msra.mxu0 %v1925
    %2785 = vmatprep.subr.mxu0 0.0
    %2786 = vmatpush1.msra.mxu0 %v1926
    %2787 = vmatprep.subr.mxu0 0.0
    %2788 = vmatpush1.msra.mxu0 %v1927
    %2789 = vmatprep.subr.mxu0 0.0
    %2790 = vmatpush1.msra.mxu0 %v1928
    %2791 = vmatprep.subr.mxu0 0.0
    %2792 = vmatpush1.msra.mxu0 %v1929
    %2793 = vmatprep.subr.mxu0 0.0
    %2794 = vmatpush1.msra.mxu0 %v1930
    %2795 = vmatprep.subr.mxu0 0.0
    %2796 = vmatpush1.msra.mxu0 %v1931
    %2797 = vmatprep.subr.mxu0 0.0
    %2798 = vmatpush1.msra.mxu0 %v1932
    %2799 = vmatprep.subr.mxu0 0.0
    %2800 = vmatpush1.msra.mxu0 %v1933
    %2801 = vmatprep.subr.mxu0 0.0
    %2802 = vmatpush1.msra.mxu0 %v1934
    %2803 = vmatprep.subr.mxu0 0.0
    %2804 = vmatpush1.msra.mxu0 %v1935
    %2805 = vmatprep.subr.mxu0 0.0
    %2806 = vmatpush1.msra.mxu0 %v1936
    %2807 = vmatprep.subr.mxu0 0.0
    %2808 = vmatpush1.msra.mxu0 %v1937
    %2809 = vmatprep.subr.mxu0 0.0
    %2810 = vmatpush1.msra.mxu0 %v1938
    %2811 = vmatprep.subr.mxu0 0.0
    %2812 = vmatpush1.msra.mxu0 %v1939
    %2813 = vmatprep.subr.mxu0 0.0
    %2814 = vmatpush1.msra.mxu0 %v1940
    %2815 = vmatprep.subr.mxu0 0.0
    %2816 = vmatpush1.msra.mxu0 %v1941
    %2817 = vmatprep.subr.mxu0 0.0
    %2818 = vmatpush1.msra.mxu0 %v1942
    %2819 = vmatprep.subr.mxu0 0.0
    %2820 = vmatpush1.msra.mxu0 %v1943
    %2821 = vmatprep.subr.mxu0 0.0
    %2822 = vmatpush1.msra.mxu0 %v1944
    %2823 = vmatprep.subr.mxu0 0.0
    %2824 = vmatpush1.msra.mxu0 %v1945
    %2825 = vmatprep.subr.mxu0 0.0
    %2826 = vmatpush1.msra.mxu0 %v1946
    %2827 = vmatprep.subr.mxu0 0.0
    %2828 = vmatpush1.msra.mxu0 %v1947
    %2829 = vmatprep.subr.mxu0 0.0
    %2830 = vmatpush1.msra.mxu0 %v1948
    %2831 = vmatprep.mubr.f32.mxu0 %v1282
    %2832 = vmatmul.mubr.f32.gmra.mrb[0].mxu0 %v1281
    %v2833 = vpop.f32.mrb[0].mxu0
    %v2834 = vadd.f32 %v2449, %v2833
    %v2835 = vpop.f32.mrb[0].mxu0
    %2836 = vmatprep.mubr.f32.mxu0 %v1291
    %2837 = vmatmul.mubr.f32.gmra.mrb[0].mxu0 %v1290
    %v2838 = vpop.f32.mrb[0].mxu0
    %v2839 = vadd.f32 %v2454, %v2838
    %v2840 = vpop.f32.mrb[0].mxu0
    %2841 = vmatprep.mubr.f32.mxu0 %v1300
    %2842 = vmatmul.mubr.f32.gmra.mrb[0].mxu0 %v1299
    %v2843 = vpop.f32.mrb[0].mxu0
    %v2844 = vadd.f32 %v2459, %v2843
    %v2845 = vpop.f32.mrb[0].mxu0
    %2846 = vmatprep.mubr.f32.mxu0 %v1309
    %2847 = vmatmul.mubr.f32.gmra.mrb[0].mxu0 %v1308
    %v2848 = vpop.f32.mrb[0].mxu0
    %v2849 = vadd.f32 %v2464, %v2848
    %v2850 = vpop.f32.mrb[0].mxu0
    %2851 = vmatprep.mubr.f32.mxu0 %v1318
    %2852 = vmatmul.mubr.f32.gmra.mrb[0].mxu0 %v1317
    %v2853 = vpop.f32.mrb[0].mxu0
    %v2854 = vadd.f32 %v2469, %v2853
    %v2855 = vpop.f32.mrb[0].mxu0
    %2856 = vmatprep.mubr.f32.mxu0 %v1327
    %2857 = vmatmul.mubr.f32.gmra.mrb[0].mxu0 %v1326
    %v2858 = vpop.f32.mrb[0].mxu0
    %v2859 = vadd.f32 %v2474, %v2858
    %v2860 = vpop.f32.mrb[0].mxu0
    %2861 = vmatprep.mubr.f32.mxu0 %v1336
    %2862 = vmatmul.mubr.f32.gmra.mrb[0].mxu0 %v1335
    %v2863 = vpop.f32.mrb[0].mxu0
    %v2864 = vadd.f32 %v2479, %v2863
    %v2865 = vpop.f32.mrb[0].mxu0
    %2866 = vmatprep.mubr.f32.mxu0 %v1345
    %2867 = vmatmul.mubr.f32.gmra.mrb[0].mxu0 %v1344
    %v2868 = vpop.f32.mrb[0].mxu0
    %v2869 = vadd.f32 %v2484, %v2868
    %v2870 = vpop.f32.mrb[0].mxu0
    %2871 = vmatprep.mubr.f32.mxu0 %v1354
    %2872 = vmatmul.mubr.f32.gmra.mrb[0].mxu0 %v1353
    %v2873 = vpop.f32.mrb[0].mxu0
    %v2874 = vadd.f32 %v2489, %v2873
    %v2875 = vpop.f32.mrb[0].mxu0
    %2876 = vmatprep.mubr.f32.mxu0 %v1363
    %2877 = vmatmul.mubr.f32.gmra.mrb[0].mxu0 %v1362
    %v2878 = vpop.f32.mrb[0].mxu0
    %v2879 = vadd.f32 %v2494, %v2878
    %v2880 = vpop.f32.mrb[0].mxu0
    %2881 = vmatprep.mubr.f32.mxu0 %v1372
    %2882 = vmatmul.mubr.f32.gmra.mrb[0].mxu0 %v1371
    %v2883 = vpop.f32.mrb[0].mxu0
    %v2884 = vadd.f32 %v2499, %v2883
    %v2885 = vpop.f32.mrb[0].mxu0
    %2886 = vmatprep.mubr.f32.mxu0 %v1381
    %2887 = vmatmul.mubr.f32.gmra.mrb[0].mxu0 %v1380
    %v2888 = vpop.f32.mrb[0].mxu0
    %v2889 = vadd.f32 %v2504, %v2888
    %v2890 = vpop.f32.mrb[0].mxu0
    %2891 = vmatprep.mubr.f32.mxu0 %v1390
    %2892 = vmatmul.mubr.f32.gmra.mrb[0].mxu0 %v1389
    %v2893 = vpop.f32.mrb[0].mxu0
    %v2894 = vadd.f32 %v2509, %v2893
    %v2895 = vpop.f32.mrb[0].mxu0
    %2896 = vmatprep.mubr.f32.mxu0 %v1399
    %2897 = vmatmul.mubr.f32.gmra.mrb[0].mxu0 %v1398
    %v2898 = vpop.f32.mrb[0].mxu0
    %v2899 = vadd.f32 %v2514, %v2898
    %v2900 = vpop.f32.mrb[0].mxu0
    %2901 = vmatprep.mubr.f32.mxu0 %v1408
    %2902 = vmatmul.mubr.f32.gmra.mrb[0].mxu0 %v1407
    %v2903 = vpop.f32.mrb[0].mxu0
    %v2904 = vadd.f32 %v2519, %v2903
    %v2905 = vpop.f32.mrb[0].mxu0
    %2906 = vmatprep.mubr.f32.mxu0 %v1417
    %2907 = vmatmul.mubr.f32.gmra.mrb[0].mxu0 %v1416
    %v2908 = vpop.f32.mrb[0].mxu0
    %v2909 = vadd.f32 %v2524, %v2908
    %v2910 = vpop.f32.mrb[0].mxu0
    %2911 = vmatprep.mubr.f32.mxu0 %v1426
    %2912 = vmatmul.mubr.f32.gmra.mrb[0].mxu0 %v1425
    %v2913 = vpop.f32.mrb[0].mxu0
    %v2914 = vadd.f32 %v2529, %v2913
    %v2915 = vpop.f32.mrb[0].mxu0
    %2916 = vmatprep.mubr.f32.mxu0 %v1435
    %2917 = vmatmul.mubr.f32.gmra.mrb[0].mxu0 %v1434
    %v2918 = vpop.f32.mrb[0].mxu0
    %v2919 = vadd.f32 %v2534, %v2918
    %v2920 = vpop.f32.mrb[0].mxu0
    %2921 = vmatprep.mubr.f32.mxu0 %v1444
    %2922 = vmatmul.mubr.f32.gmra.mrb[0].mxu0 %v1443
    %v2923 = vpop.f32.mrb[0].mxu0
    %v2924 = vadd.f32 %v2539, %v2923
    %v2925 = vpop.f32.mrb[0].mxu0
    %2926 = vmatprep.mubr.f32.mxu0 %v1453
    %2927 = vmatmul.mubr.f32.gmra.mrb[0].mxu0 %v1452
    %v2928 = vpop.f32.mrb[0].mxu0
    %v2929 = vadd.f32 %v2544, %v2928
    %v2930 = vpop.f32.mrb[0].mxu0
    %2931 = vmatprep.mubr.f32.mxu0 %v1462
    %2932 = vmatmul.mubr.f32.gmra.mrb[0].mxu0 %v1461
    %v2933 = vpop.f32.mrb[0].mxu0
    %v2934 = vadd.f32 %v2549, %v2933
    %v2935 = vpop.f32.mrb[0].mxu0
    %2936 = vmatprep.mubr.f32.mxu0 %v1471
    %2937 = vmatmul.mubr.f32.gmra.mrb[0].mxu0 %v1470
    %v2938 = vpop.f32.mrb[0].mxu0
    %v2939 = vadd.f32 %v2554, %v2938
    %v2940 = vpop.f32.mrb[0].mxu0
    %2941 = vmatprep.mubr.f32.mxu0 %v1480
    %2942 = vmatmul.mubr.f32.gmra.mrb[0].mxu0 %v1479
    %v2943 = vpop.f32.mrb[0].mxu0
    %v2944 = vadd.f32 %v2559, %v2943
    %v2945 = vpop.f32.mrb[0].mxu0
    %2946 = vmatprep.mubr.f32.mxu0 %v1489
    %2947 = vmatmul.mubr.f32.gmra.mrb[0].mxu0 %v1488
    %v2948 = vpop.f32.mrb[0].mxu0
    %v2949 = vadd.f32 %v2564, %v2948
    %v2950 = vpop.f32.mrb[0].mxu0
    %2951 = vmatprep.mubr.f32.mxu0 %v1498
    %2952 = vmatmul.mubr.f32.gmra.mrb[0].mxu0 %v1497
    %v2953 = vpop.f32.mrb[0].mxu0
    %v2954 = vadd.f32 %v2569, %v2953
    %v2955 = vpop.f32.mrb[0].mxu0
    %2956 = vmatprep.mubr.f32.mxu0 %v1507
    %2957 = vmatmul.mubr.f32.gmra.mrb[0].mxu0 %v1506
    %v2958 = vpop.f32.mrb[0].mxu0
    %v2959 = vadd.f32 %v2574, %v2958
    %v2960 = vpop.f32.mrb[0].mxu0
    %2961 = vmatprep.mubr.f32.mxu0 %v1516
    %2962 = vmatmul.mubr.f32.gmra.mrb[0].mxu0 %v1515
    %v2963 = vpop.f32.mrb[0].mxu0
    %v2964 = vadd.f32 %v2579, %v2963
    %v2965 = vpop.f32.mrb[0].mxu0
    %2966 = vmatprep.mubr.f32.mxu0 %v1525
    %2967 = vmatmul.mubr.f32.gmra.mrb[0].mxu0 %v1524
    %v2968 = vpop.f32.mrb[0].mxu0
    %v2969 = vadd.f32 %v2584, %v2968
    %v2970 = vpop.f32.mrb[0].mxu0
    %2971 = vmatprep.mubr.f32.mxu0 %v1534
    %2972 = vmatmul.mubr.f32.gmra.mrb[0].mxu0 %v1533
    %v2973 = vpop.f32.mrb[0].mxu0
    %v2974 = vadd.f32 %v2589, %v2973
    %v2975 = vpop.f32.mrb[0].mxu0
    %2976 = vmatprep.mubr.f32.mxu0 %v1543
    %2977 = vmatmul.mubr.f32.gmra.mrb[0].mxu0 %v1542
    %v2978 = vpop.f32.mrb[0].mxu0
    %v2979 = vadd.f32 %v2594, %v2978
    %v2980 = vpop.f32.mrb[0].mxu0
    %2981 = vmatprep.mubr.f32.mxu0 %v1552
    %2982 = vmatmul.mubr.f32.gmra.mrb[0].mxu0 %v1551
    %v2983 = vpop.f32.mrb[0].mxu0
    %v2984 = vadd.f32 %v2599, %v2983
    %v2985 = vpop.f32.mrb[0].mxu0
    %2986 = vmatprep.mubr.f32.mxu0 %v1561
    %2987 = vmatmul.mubr.f32.gmra.mrb[0].mxu0 %v1560
    %v2988 = vpop.f32.mrb[0].mxu0
    %v2989 = vadd.f32 %v2604, %v2988
    %v2990 = vpop.f32.mrb[0].mxu0
    %2991 = vmatprep.mubr.f32.mxu0 %v1570
    %2992 = vmatmul.mubr.f32.gmra.mrb[0].mxu0 %v1569
    %v2993 = vpop.f32.mrb[0].mxu0
    %v2994 = vadd.f32 %v2609, %v2993
    %v2995 = vpop.f32.mrb[0].mxu0
    %2996 = vmatprep.mubr.f32.mxu0 %v1579
    %2997 = vmatmul.mubr.f32.gmra.mrb[0].mxu0 %v1578
    %v2998 = vpop.f32.mrb[0].mxu0
    %v2999 = vadd.f32 %v2614, %v2998
    %v3000 = vpop.f32.mrb[0].mxu0
    %3001 = vmatprep.mubr.f32.mxu0 %v1588
    %3002 = vmatmul.mubr.f32.gmra.mrb[0].mxu0 %v1587
    %v3003 = vpop.f32.mrb[0].mxu0
    %v3004 = vadd.f32 %v2619, %v3003
    %v3005 = vpop.f32.mrb[0].mxu0
    %3006 = vmatprep.mubr.f32.mxu0 %v1597
    %3007 = vmatmul.mubr.f32.gmra.mrb[0].mxu0 %v1596
    %v3008 = vpop.f32.mrb[0].mxu0
    %v3009 = vadd.f32 %v2624, %v3008
    %v3010 = vpop.f32.mrb[0].mxu0
    %3011 = vmatprep.mubr.f32.mxu0 %v1606
    %3012 = vmatmul.mubr.f32.gmra.mrb[0].mxu0 %v1605
    %v3013 = vpop.f32.mrb[0].mxu0
    %v3014 = vadd.f32 %v2629, %v3013
    %v3015 = vpop.f32.mrb[0].mxu0
    %3016 = vmatprep.mubr.f32.mxu0 %v1615
    %3017 = vmatmul.mubr.f32.gmra.mrb[0].mxu0 %v1614
    %v3018 = vpop.f32.mrb[0].mxu0
    %v3019 = vadd.f32 %v2634, %v3018
    %v3020 = vpop.f32.mrb[0].mxu0
    %3021 = vmatprep.mubr.f32.mxu0 %v1624
    %3022 = vmatmul.mubr.f32.gmra.mrb[0].mxu0 %v1623
    %v3023 = vpop.f32.mrb[0].mxu0
    %v3024 = vadd.f32 %v2639, %v3023
    %v3025 = vpop.f32.mrb[0].mxu0
    %3026 = vmatprep.mubr.f32.mxu0 %v1633
    %3027 = vmatmul.mubr.f32.gmra.mrb[0].mxu0 %v1632
    %v3028 = vpop.f32.mrb[0].mxu0
    %v3029 = vadd.f32 %v2644, %v3028
    %v3030 = vpop.f32.mrb[0].mxu0
    %3031 = vmatprep.mubr.f32.mxu0 %v1642
    %3032 = vmatmul.mubr.f32.gmra.mrb[0].mxu0 %v1641
    %v3033 = vpop.f32.mrb[0].mxu0
    %v3034 = vadd.f32 %v2649, %v3033
    %v3035 = vpop.f32.mrb[0].mxu0
    %3036 = vmatprep.mubr.f32.mxu0 %v1651
    %3037 = vmatmul.mubr.f32.gmra.mrb[0].mxu0 %v1650
    %v3038 = vpop.f32.mrb[0].mxu0
    %v3039 = vadd.f32 %v2654, %v3038
    %v3040 = vpop.f32.mrb[0].mxu0
    %3041 = vmatprep.mubr.f32.mxu0 %v1660
    %3042 = vmatmul.mubr.f32.gmra.mrb[0].mxu0 %v1659
    %v3043 = vpop.f32.mrb[0].mxu0
    %v3044 = vadd.f32 %v2659, %v3043
    %v3045 = vpop.f32.mrb[0].mxu0
    %3046 = vmatprep.mubr.f32.mxu0 %v1669
    %3047 = vmatmul.mubr.f32.gmra.mrb[0].mxu0 %v1668
    %v3048 = vpop.f32.mrb[0].mxu0
    %v3049 = vadd.f32 %v2664, %v3048
    %v3050 = vpop.f32.mrb[0].mxu0
    %3051 = vmatprep.mubr.f32.mxu0 %v1678
    %3052 = vmatmul.mubr.f32.gmra.mrb[0].mxu0 %v1677
    %v3053 = vpop.f32.mrb[0].mxu0
    %v3054 = vadd.f32 %v2669, %v3053
    %v3055 = vpop.f32.mrb[0].mxu0
    %3056 = vmatprep.mubr.f32.mxu0 %v1687
    %3057 = vmatmul.mubr.f32.gmra.mrb[0].mxu0 %v1686
    %v3058 = vpop.f32.mrb[0].mxu0
    %v3059 = vadd.f32 %v2674, %v3058
    %v3060 = vpop.f32.mrb[0].mxu0
    %3061 = vmatprep.mubr.f32.mxu0 %v1696
    %3062 = vmatmul.mubr.f32.gmra.mrb[0].mxu0 %v1695
    %v3063 = vpop.f32.mrb[0].mxu0
    %v3064 = vadd.f32 %v2679, %v3063
    %v3065 = vpop.f32.mrb[0].mxu0
    %3066 = vmatprep.mubr.f32.mxu0 %v1705
    %3067 = vmatmul.mubr.f32.gmra.mrb[0].mxu0 %v1704
    %v3068 = vpop.f32.mrb[0].mxu0
    %v3069 = vadd.f32 %v2684, %v3068
    %v3070 = vpop.f32.mrb[0].mxu0
    %3071 = vmatprep.mubr.f32.mxu0 %v1714
    %3072 = vmatmul.mubr.f32.gmra.mrb[0].mxu0 %v1713
    %v3073 = vpop.f32.mrb[0].mxu0
    %v3074 = vadd.f32 %v2689, %v3073
    %v3075 = vpop.f32.mrb[0].mxu0
    %3076 = vmatprep.mubr.f32.mxu0 %v1723
    %3077 = vmatmul.mubr.f32.gmra.mrb[0].mxu0 %v1722
    %v3078 = vpop.f32.mrb[0].mxu0
    %v3079 = vadd.f32 %v2694, %v3078
    %v3080 = vpop.f32.mrb[0].mxu0
    %3081 = vmatprep.mubr.f32.mxu0 %v1732
    %3082 = vmatmul.mubr.f32.gmra.mrb[0].mxu0 %v1731
    %v3083 = vpop.f32.mrb[0].mxu0
    %v3084 = vadd.f32 %v2699, %v3083
    %v3085 = vpop.f32.mrb[0].mxu0
    %3086 = vmatprep.mubr.f32.mxu0 %v1741
    %3087 = vmatmul.mubr.f32.gmra.mrb[0].mxu0 %v1740
    %v3088 = vpop.f32.mrb[0].mxu0
    %v3089 = vadd.f32 %v2704, %v3088
    %v3090 = vpop.f32.mrb[0].mxu0
    %3091 = vmatprep.mubr.f32.mxu0 %v1750
    %3092 = vmatmul.mubr.f32.gmra.mrb[0].mxu0 %v1749
    %v3093 = vpop.f32.mrb[0].mxu0
    %v3094 = vadd.f32 %v2709, %v3093
    %v3095 = vpop.f32.mrb[0].mxu0
    %3096 = vmatprep.mubr.f32.mxu0 %v1759
    %3097 = vmatmul.mubr.f32.gmra.mrb[0].mxu0 %v1758
    %v3098 = vpop.f32.mrb[0].mxu0
    %v3099 = vadd.f32 %v2714, %v3098
    %v3100 = vpop.f32.mrb[0].mxu0
    %3101 = vmatprep.mubr.f32.mxu0 %v1768
    %3102 = vmatmul.mubr.f32.gmra.mrb[0].mxu0 %v1767
    %v3103 = vpop.f32.mrb[0].mxu0
    %v3104 = vadd.f32 %v2719, %v3103
    %v3105 = vpop.f32.mrb[0].mxu0
    %3106 = vmatprep.mubr.f32.mxu0 %v1777
    %3107 = vmatmul.mubr.f32.gmra.mrb[0].mxu0 %v1776
    %v3108 = vpop.f32.mrb[0].mxu0
    %v3109 = vadd.f32 %v2724, %v3108
    %v3110 = vpop.f32.mrb[0].mxu0
    %3111 = vmatprep.mubr.f32.mxu0 %v1786
    %3112 = vmatmul.mubr.f32.gmra.mrb[0].mxu0 %v1785
    %v3113 = vpop.f32.mrb[0].mxu0
    %v3114 = vadd.f32 %v2729, %v3113
    %v3115 = vpop.f32.mrb[0].mxu0
    %3116 = vmatprep.mubr.f32.mxu0 %v1795
    %3117 = vmatmul.mubr.f32.gmra.mrb[0].mxu0 %v1794
    %v3118 = vpop.f32.mrb[0].mxu0
    %v3119 = vadd.f32 %v2734, %v3118
    %v3120 = vpop.f32.mrb[0].mxu0
    %3121 = vmatprep.mubr.f32.mxu0 %v1804
    %3122 = vmatmul.mubr.f32.gmra.mrb[0].mxu0 %v1803
    %v3123 = vpop.f32.mrb[0].mxu0
    %v3124 = vadd.f32 %v2739, %v3123
    %v3125 = vpop.f32.mrb[0].mxu0
    %3126 = vmatprep.mubr.f32.mxu0 %v1813
    %3127 = vmatmul.mubr.f32.gmra.mrb[0].mxu0 %v1812
    %v3128 = vpop.f32.mrb[0].mxu0
    %v3129 = vadd.f32 %v2744, %v3128
    %v3130 = vpop.f32.mrb[0].mxu0
    %3131 = vmatprep.mubr.f32.mxu0 %v1822
    %3132 = vmatmul.mubr.f32.gmra.mrb[0].mxu0 %v1821
    %v3133 = vpop.f32.mrb[0].mxu0
    %v3134 = vadd.f32 %v2749, %v3133
    %v3135 = vpop.f32.mrb[0].mxu0
    %3136 = vmatprep.mubr.f32.mxu0 %v1831
    %3137 = vmatmul.mubr.f32.gmra.mrb[0].mxu0 %v1830
    %v3138 = vpop.f32.mrb[0].mxu0
    %v3139 = vadd.f32 %v2754, %v3138
    %v3140 = vpop.f32.mrb[0].mxu0
    %3141 = vmatprep.mubr.f32.mxu0 %v1840
    %3142 = vmatmul.mubr.f32.gmra.mrb[0].mxu0 %v1839
    %v3143 = vpop.f32.mrb[0].mxu0
    %v3144 = vadd.f32 %v2759, %v3143
    %v3145 = vpop.f32.mrb[0].mxu0
    %3146 = vmatprep.mubr.f32.mxu0 %v1849
    %3147 = vmatmul.mubr.f32.gmra.mrb[0].mxu0 %v1848
    %v3148 = vpop.f32.mrb[0].mxu0
    %v3149 = vadd.f32 %v2764, %v3148
    %v3150 = vpop.f32.mrb[0].mxu0
    %3151 = vdwg.mxu0
    %3152 = vmatprep.subr.mxu0 0.0
    %3153 = vmatpush1.msra.mxu0 %v1949
    %3154 = vmatprep.subr.mxu0 0.0
    %3155 = vmatpush1.msra.mxu0 %v1950
    %3156 = vmatprep.subr.mxu0 0.0
    %3157 = vmatpush1.msra.mxu0 %v1951
    %3158 = vmatprep.subr.mxu0 0.0
    %3159 = vmatpush1.msra.mxu0 %v1952
    %3160 = vmatprep.subr.mxu0 0.0
    %3161 = vmatpush1.msra.mxu0 %v1953
    %3162 = vmatprep.subr.mxu0 0.0
    %3163 = vmatpush1.msra.mxu0 %v1954
    %3164 = vmatprep.subr.mxu0 0.0
    %3165 = vmatpush1.msra.mxu0 %v1955
    %3166 = vmatprep.subr.mxu0 0.0
    %3167 = vmatpush1.msra.mxu0 %v1956
    %3168 = vmatprep.subr.mxu0 0.0
    %3169 = vmatpush1.msra.mxu0 %v1957
    %3170 = vmatprep.subr.mxu0 0.0
    %3171 = vmatpush1.msra.mxu0 %v1958
    %3172 = vmatprep.subr.mxu0 0.0
    %3173 = vmatpush1.msra.mxu0 %v1959
    %3174 = vmatprep.subr.mxu0 0.0
    %3175 = vmatpush1.msra.mxu0 %v1960
    %3176 = vmatprep.subr.mxu0 0.0
    %3177 = vmatpush1.msra.mxu0 %v1961
    %3178 = vmatprep.subr.mxu0 0.0
    %3179 = vmatpush1.msra.mxu0 %v1962
    %3180 = vmatprep.subr.mxu0 0.0
    %3181 = vmatpush1.msra.mxu0 %v1963
    %3182 = vmatprep.subr.mxu0 0.0
    %3183 = vmatpush1.msra.mxu0 %v1964
    %3184 = vmatprep.subr.mxu0 0.0
    %3185 = vmatpush1.msra.mxu0 %v1965
    %3186 = vmatprep.subr.mxu0 0.0
    %3187 = vmatpush1.msra.mxu0 %v1966
    %3188 = vmatprep.subr.mxu0 0.0
    %3189 = vmatpush1.msra.mxu0 %v1967
    %3190 = vmatprep.subr.mxu0 0.0
    %3191 = vmatpush1.msra.mxu0 %v1968
    %3192 = vmatprep.subr.mxu0 0.0
    %3193 = vmatpush1.msra.mxu0 %v1969
    %3194 = vmatprep.subr.mxu0 0.0
    %3195 = vmatpush1.msra.mxu0 %v1970
    %3196 = vmatprep.subr.mxu0 0.0
    %3197 = vmatpush1.msra.mxu0 %v1971
    %3198 = vmatprep.subr.mxu0 0.0
    %3199 = vmatpush1.msra.mxu0 %v1972
    %3200 = vmatprep.subr.mxu0 0.0
    %3201 = vmatpush1.msra.mxu0 %v1973
    %3202 = vmatprep.subr.mxu0 0.0
    %3203 = vmatpush1.msra.mxu0 %v1974
    %3204 = vmatprep.subr.mxu0 0.0
    %3205 = vmatpush1.msra.mxu0 %v1975
    %3206 = vmatprep.subr.mxu0 0.0
    %3207 = vmatpush1.msra.mxu0 %v1976
    %3208 = vmatprep.subr.mxu0 0.0
    %3209 = vmatpush1.msra.mxu0 %v1977
    %3210 = vmatprep.subr.mxu0 0.0
    %3211 = vmatpush1.msra.mxu0 %v1978
    %3212 = vmatprep.subr.mxu0 0.0
    %3213 = vmatpush1.msra.mxu0 %v1979
    %3214 = vmatprep.subr.mxu0 0.0
    %3215 = vmatpush1.msra.mxu0 %v1980
    %3216 = vmatprep.mubr.f32.mxu0 %v1284
    %3217 = vmatmul.mubr.f32.gmra.mrb[0].mxu0 %v1283
    %v3218 = vpop.f32.mrb[0].mxu0
    %v3219 = vadd.f32 %v2834, %v3218
    %v3220 = vpop.f32.mrb[0].mxu0
    %3221 = vmatprep.mubr.f32.mxu0 %v1293
    %3222 = vmatmul.mubr.f32.gmra.mrb[0].mxu0 %v1292
    %v3223 = vpop.f32.mrb[0].mxu0
    %v3224 = vadd.f32 %v2839, %v3223
    %v3225 = vpop.f32.mrb[0].mxu0
    %3226 = vmatprep.mubr.f32.mxu0 %v1302
    %3227 = vmatmul.mubr.f32.gmra.mrb[0].mxu0 %v1301
    %v3228 = vpop.f32.mrb[0].mxu0
    %v3229 = vadd.f32 %v2844, %v3228
    %v3230 = vpop.f32.mrb[0].mxu0
    %3231 = vmatprep.mubr.f32.mxu0 %v1311
    %3232 = vmatmul.mubr.f32.gmra.mrb[0].mxu0 %v1310
    %v3233 = vpop.f32.mrb[0].mxu0
    %v3234 = vadd.f32 %v2849, %v3233
    %v3235 = vpop.f32.mrb[0].mxu0
    %3236 = vmatprep.mubr.f32.mxu0 %v1320
    %3237 = vmatmul.mubr.f32.gmra.mrb[0].mxu0 %v1319
    %v3238 = vpop.f32.mrb[0].mxu0
    %v3239 = vadd.f32 %v2854, %v3238
    %v3240 = vpop.f32.mrb[0].mxu0
    %3241 = vmatprep.mubr.f32.mxu0 %v1329
    %3242 = vmatmul.mubr.f32.gmra.mrb[0].mxu0 %v1328
    %v3243 = vpop.f32.mrb[0].mxu0
    %v3244 = vadd.f32 %v2859, %v3243
    %v3245 = vpop.f32.mrb[0].mxu0
    %3246 = vmatprep.mubr.f32.mxu0 %v1338
    %3247 = vmatmul.mubr.f32.gmra.mrb[0].mxu0 %v1337
    %v3248 = vpop.f32.mrb[0].mxu0
    %v3249 = vadd.f32 %v2864, %v3248
    %v3250 = vpop.f32.mrb[0].mxu0
    %3251 = vmatprep.mubr.f32.mxu0 %v1347
    %3252 = vmatmul.mubr.f32.gmra.mrb[0].mxu0 %v1346
    %v3253 = vpop.f32.mrb[0].mxu0
    %v3254 = vadd.f32 %v2869, %v3253
    %v3255 = vpop.f32.mrb[0].mxu0
    %3256 = vmatprep.mubr.f32.mxu0 %v1356
    %3257 = vmatmul.mubr.f32.gmra.mrb[0].mxu0 %v1355
    %v3258 = vpop.f32.mrb[0].mxu0
    %v3259 = vadd.f32 %v2874, %v3258
    %v3260 = vpop.f32.mrb[0].mxu0
    %3261 = vmatprep.mubr.f32.mxu0 %v1365
    %3262 = vmatmul.mubr.f32.gmra.mrb[0].mxu0 %v1364
    %v3263 = vpop.f32.mrb[0].mxu0
    %v3264 = vadd.f32 %v2879, %v3263
    %v3265 = vpop.f32.mrb[0].mxu0
    %3266 = vmatprep.mubr.f32.mxu0 %v1374
    %3267 = vmatmul.mubr.f32.gmra.mrb[0].mxu0 %v1373
    %v3268 = vpop.f32.mrb[0].mxu0
    %v3269 = vadd.f32 %v2884, %v3268
    %v3270 = vpop.f32.mrb[0].mxu0
    %3271 = vmatprep.mubr.f32.mxu0 %v1383
    %3272 = vmatmul.mubr.f32.gmra.mrb[0].mxu0 %v1382
    %v3273 = vpop.f32.mrb[0].mxu0
    %v3274 = vadd.f32 %v2889, %v3273
    %v3275 = vpop.f32.mrb[0].mxu0
    %3276 = vmatprep.mubr.f32.mxu0 %v1392
    %3277 = vmatmul.mubr.f32.gmra.mrb[0].mxu0 %v1391
    %v3278 = vpop.f32.mrb[0].mxu0
    %v3279 = vadd.f32 %v2894, %v3278
    %v3280 = vpop.f32.mrb[0].mxu0
    %3281 = vmatprep.mubr.f32.mxu0 %v1401
    %3282 = vmatmul.mubr.f32.gmra.mrb[0].mxu0 %v1400
    %v3283 = vpop.f32.mrb[0].mxu0
    %v3284 = vadd.f32 %v2899, %v3283
    %v3285 = vpop.f32.mrb[0].mxu0
    %3286 = vmatprep.mubr.f32.mxu0 %v1410
    %3287 = vmatmul.mubr.f32.gmra.mrb[0].mxu0 %v1409
    %v3288 = vpop.f32.mrb[0].mxu0
    %v3289 = vadd.f32 %v2904, %v3288
    %v3290 = vpop.f32.mrb[0].mxu0
    %3291 = vmatprep.mubr.f32.mxu0 %v1419
    %3292 = vmatmul.mubr.f32.gmra.mrb[0].mxu0 %v1418
    %v3293 = vpop.f32.mrb[0].mxu0
    %v3294 = vadd.f32 %v2909, %v3293
    %v3295 = vpop.f32.mrb[0].mxu0
    %3296 = vmatprep.mubr.f32.mxu0 %v1428
    %3297 = vmatmul.mubr.f32.gmra.mrb[0].mxu0 %v1427
    %v3298 = vpop.f32.mrb[0].mxu0
    %v3299 = vadd.f32 %v2914, %v3298
    %v3300 = vpop.f32.mrb[0].mxu0
    %3301 = vmatprep.mubr.f32.mxu0 %v1437
    %3302 = vmatmul.mubr.f32.gmra.mrb[0].mxu0 %v1436
    %v3303 = vpop.f32.mrb[0].mxu0
    %v3304 = vadd.f32 %v2919, %v3303
    %v3305 = vpop.f32.mrb[0].mxu0
    %3306 = vmatprep.mubr.f32.mxu0 %v1446
    %3307 = vmatmul.mubr.f32.gmra.mrb[0].mxu0 %v1445
    %v3308 = vpop.f32.mrb[0].mxu0
    %v3309 = vadd.f32 %v2924, %v3308
    %v3310 = vpop.f32.mrb[0].mxu0
    %3311 = vmatprep.mubr.f32.mxu0 %v1455
    %3312 = vmatmul.mubr.f32.gmra.mrb[0].mxu0 %v1454
    %v3313 = vpop.f32.mrb[0].mxu0
    %v3314 = vadd.f32 %v2929, %v3313
    %v3315 = vpop.f32.mrb[0].mxu0
    %3316 = vmatprep.mubr.f32.mxu0 %v1464
    %3317 = vmatmul.mubr.f32.gmra.mrb[0].mxu0 %v1463
    %v3318 = vpop.f32.mrb[0].mxu0
    %v3319 = vadd.f32 %v2934, %v3318
    %v3320 = vpop.f32.mrb[0].mxu0
    %3321 = vmatprep.mubr.f32.mxu0 %v1473
    %3322 = vmatmul.mubr.f32.gmra.mrb[0].mxu0 %v1472
    %v3323 = vpop.f32.mrb[0].mxu0
    %v3324 = vadd.f32 %v2939, %v3323
    %v3325 = vpop.f32.mrb[0].mxu0
    %3326 = vmatprep.mubr.f32.mxu0 %v1482
    %3327 = vmatmul.mubr.f32.gmra.mrb[0].mxu0 %v1481
    %v3328 = vpop.f32.mrb[0].mxu0
    %v3329 = vadd.f32 %v2944, %v3328
    %v3330 = vpop.f32.mrb[0].mxu0
    %3331 = vmatprep.mubr.f32.mxu0 %v1491
    %3332 = vmatmul.mubr.f32.gmra.mrb[0].mxu0 %v1490
    %v3333 = vpop.f32.mrb[0].mxu0
    %v3334 = vadd.f32 %v2949, %v3333
    %v3335 = vpop.f32.mrb[0].mxu0
    %3336 = vmatprep.mubr.f32.mxu0 %v1500
    %3337 = vmatmul.mubr.f32.gmra.mrb[0].mxu0 %v1499
    %v3338 = vpop.f32.mrb[0].mxu0
    %v3339 = vadd.f32 %v2954, %v3338
    %v3340 = vpop.f32.mrb[0].mxu0
    %3341 = vmatprep.mubr.f32.mxu0 %v1509
    %3342 = vmatmul.mubr.f32.gmra.mrb[0].mxu0 %v1508
    %v3343 = vpop.f32.mrb[0].mxu0
    %v3344 = vadd.f32 %v2959, %v3343
    %v3345 = vpop.f32.mrb[0].mxu0
    %3346 = vmatprep.mubr.f32.mxu0 %v1518
    %3347 = vmatmul.mubr.f32.gmra.mrb[0].mxu0 %v1517
    %v3348 = vpop.f32.mrb[0].mxu0
    %v3349 = vadd.f32 %v2964, %v3348
    %v3350 = vpop.f32.mrb[0].mxu0
    %3351 = vmatprep.mubr.f32.mxu0 %v1527
    %3352 = vmatmul.mubr.f32.gmra.mrb[0].mxu0 %v1526
    %v3353 = vpop.f32.mrb[0].mxu0
    %v3354 = vadd.f32 %v2969, %v3353
    %v3355 = vpop.f32.mrb[0].mxu0
    %3356 = vmatprep.mubr.f32.mxu0 %v1536
    %3357 = vmatmul.mubr.f32.gmra.mrb[0].mxu0 %v1535
    %v3358 = vpop.f32.mrb[0].mxu0
    %v3359 = vadd.f32 %v2974, %v3358
    %v3360 = vpop.f32.mrb[0].mxu0
    %3361 = vmatprep.mubr.f32.mxu0 %v1545
    %3362 = vmatmul.mubr.f32.gmra.mrb[0].mxu0 %v1544
    %v3363 = vpop.f32.mrb[0].mxu0
    %v3364 = vadd.f32 %v2979, %v3363
    %v3365 = vpop.f32.mrb[0].mxu0
    %3366 = vmatprep.mubr.f32.mxu0 %v1554
    %3367 = vmatmul.mubr.f32.gmra.mrb[0].mxu0 %v1553
    %v3368 = vpop.f32.mrb[0].mxu0
    %v3369 = vadd.f32 %v2984, %v3368
    %v3370 = vpop.f32.mrb[0].mxu0
    %3371 = vmatprep.mubr.f32.mxu0 %v1563
    %3372 = vmatmul.mubr.f32.gmra.mrb[0].mxu0 %v1562
    %v3373 = vpop.f32.mrb[0].mxu0
    %v3374 = vadd.f32 %v2989, %v3373
    %v3375 = vpop.f32.mrb[0].mxu0
    %3376 = vmatprep.mubr.f32.mxu0 %v1572
    %3377 = vmatmul.mubr.f32.gmra.mrb[0].mxu0 %v1571
    %v3378 = vpop.f32.mrb[0].mxu0
    %v3379 = vadd.f32 %v2994, %v3378
    %v3380 = vpop.f32.mrb[0].mxu0
    %3381 = vmatprep.mubr.f32.mxu0 %v1581
    %3382 = vmatmul.mubr.f32.gmra.mrb[0].mxu0 %v1580
    %v3383 = vpop.f32.mrb[0].mxu0
    %v3384 = vadd.f32 %v2999, %v3383
    %v3385 = vpop.f32.mrb[0].mxu0
    %3386 = vmatprep.mubr.f32.mxu0 %v1590
    %3387 = vmatmul.mubr.f32.gmra.mrb[0].mxu0 %v1589
    %v3388 = vpop.f32.mrb[0].mxu0
    %v3389 = vadd.f32 %v3004, %v3388
    %v3390 = vpop.f32.mrb[0].mxu0
    %3391 = vmatprep.mubr.f32.mxu0 %v1599
    %3392 = vmatmul.mubr.f32.gmra.mrb[0].mxu0 %v1598
    %v3393 = vpop.f32.mrb[0].mxu0
    %v3394 = vadd.f32 %v3009, %v3393
    %v3395 = vpop.f32.mrb[0].mxu0
    %3396 = vmatprep.mubr.f32.mxu0 %v1608
    %3397 = vmatmul.mubr.f32.gmra.mrb[0].mxu0 %v1607
    %v3398 = vpop.f32.mrb[0].mxu0
    %v3399 = vadd.f32 %v3014, %v3398
    %v3400 = vpop.f32.mrb[0].mxu0
    %3401 = vmatprep.mubr.f32.mxu0 %v1617
    %3402 = vmatmul.mubr.f32.gmra.mrb[0].mxu0 %v1616
    %v3403 = vpop.f32.mrb[0].mxu0
    %v3404 = vadd.f32 %v3019, %v3403
    %v3405 = vpop.f32.mrb[0].mxu0
    %3406 = vmatprep.mubr.f32.mxu0 %v1626
    %3407 = vmatmul.mubr.f32.gmra.mrb[0].mxu0 %v1625
    %v3408 = vpop.f32.mrb[0].mxu0
    %v3409 = vadd.f32 %v3024, %v3408
    %v3410 = vpop.f32.mrb[0].mxu0
    %3411 = vmatprep.mubr.f32.mxu0 %v1635
    %3412 = vmatmul.mubr.f32.gmra.mrb[0].mxu0 %v1634
    %v3413 = vpop.f32.mrb[0].mxu0
    %v3414 = vadd.f32 %v3029, %v3413
    %v3415 = vpop.f32.mrb[0].mxu0
    %3416 = vmatprep.mubr.f32.mxu0 %v1644
    %3417 = vmatmul.mubr.f32.gmra.mrb[0].mxu0 %v1643
    %v3418 = vpop.f32.mrb[0].mxu0
    %v3419 = vadd.f32 %v3034, %v3418
    %v3420 = vpop.f32.mrb[0].mxu0
    %3421 = vmatprep.mubr.f32.mxu0 %v1653
    %3422 = vmatmul.mubr.f32.gmra.mrb[0].mxu0 %v1652
    %v3423 = vpop.f32.mrb[0].mxu0
    %v3424 = vadd.f32 %v3039, %v3423
    %v3425 = vpop.f32.mrb[0].mxu0
    %3426 = vmatprep.mubr.f32.mxu0 %v1662
    %3427 = vmatmul.mubr.f32.gmra.mrb[0].mxu0 %v1661
    %v3428 = vpop.f32.mrb[0].mxu0
    %v3429 = vadd.f32 %v3044, %v3428
    %v3430 = vpop.f32.mrb[0].mxu0
    %3431 = vmatprep.mubr.f32.mxu0 %v1671
    %3432 = vmatmul.mubr.f32.gmra.mrb[0].mxu0 %v1670
    %v3433 = vpop.f32.mrb[0].mxu0
    %v3434 = vadd.f32 %v3049, %v3433
    %v3435 = vpop.f32.mrb[0].mxu0
    %3436 = vmatprep.mubr.f32.mxu0 %v1680
    %3437 = vmatmul.mubr.f32.gmra.mrb[0].mxu0 %v1679
    %v3438 = vpop.f32.mrb[0].mxu0
    %v3439 = vadd.f32 %v3054, %v3438
    %v3440 = vpop.f32.mrb[0].mxu0
    %3441 = vmatprep.mubr.f32.mxu0 %v1689
    %3442 = vmatmul.mubr.f32.gmra.mrb[0].mxu0 %v1688
    %v3443 = vpop.f32.mrb[0].mxu0
    %v3444 = vadd.f32 %v3059, %v3443
    %v3445 = vpop.f32.mrb[0].mxu0
    %3446 = vmatprep.mubr.f32.mxu0 %v1698
    %3447 = vmatmul.mubr.f32.gmra.mrb[0].mxu0 %v1697
    %v3448 = vpop.f32.mrb[0].mxu0
    %v3449 = vadd.f32 %v3064, %v3448
    %v3450 = vpop.f32.mrb[0].mxu0
    %3451 = vmatprep.mubr.f32.mxu0 %v1707
    %3452 = vmatmul.mubr.f32.gmra.mrb[0].mxu0 %v1706
    %v3453 = vpop.f32.mrb[0].mxu0
    %v3454 = vadd.f32 %v3069, %v3453
    %v3455 = vpop.f32.mrb[0].mxu0
    %3456 = vmatprep.mubr.f32.mxu0 %v1716
    %3457 = vmatmul.mubr.f32.gmra.mrb[0].mxu0 %v1715
    %v3458 = vpop.f32.mrb[0].mxu0
    %v3459 = vadd.f32 %v3074, %v3458
    %v3460 = vpop.f32.mrb[0].mxu0
    %3461 = vmatprep.mubr.f32.mxu0 %v1725
    %3462 = vmatmul.mubr.f32.gmra.mrb[0].mxu0 %v1724
    %v3463 = vpop.f32.mrb[0].mxu0
    %v3464 = vadd.f32 %v3079, %v3463
    %v3465 = vpop.f32.mrb[0].mxu0
    %3466 = vmatprep.mubr.f32.mxu0 %v1734
    %3467 = vmatmul.mubr.f32.gmra.mrb[0].mxu0 %v1733
    %v3468 = vpop.f32.mrb[0].mxu0
    %v3469 = vadd.f32 %v3084, %v3468
    %v3470 = vpop.f32.mrb[0].mxu0
    %3471 = vmatprep.mubr.f32.mxu0 %v1743
    %3472 = vmatmul.mubr.f32.gmra.mrb[0].mxu0 %v1742
    %v3473 = vpop.f32.mrb[0].mxu0
    %v3474 = vadd.f32 %v3089, %v3473
    %v3475 = vpop.f32.mrb[0].mxu0
    %3476 = vmatprep.mubr.f32.mxu0 %v1752
    %3477 = vmatmul.mubr.f32.gmra.mrb[0].mxu0 %v1751
    %v3478 = vpop.f32.mrb[0].mxu0
    %v3479 = vadd.f32 %v3094, %v3478
    %v3480 = vpop.f32.mrb[0].mxu0
    %3481 = vmatprep.mubr.f32.mxu0 %v1761
    %3482 = vmatmul.mubr.f32.gmra.mrb[0].mxu0 %v1760
    %v3483 = vpop.f32.mrb[0].mxu0
    %v3484 = vadd.f32 %v3099, %v3483
    %v3485 = vpop.f32.mrb[0].mxu0
    %3486 = vmatprep.mubr.f32.mxu0 %v1770
    %3487 = vmatmul.mubr.f32.gmra.mrb[0].mxu0 %v1769
    %v3488 = vpop.f32.mrb[0].mxu0
    %v3489 = vadd.f32 %v3104, %v3488
    %v3490 = vpop.f32.mrb[0].mxu0
    %3491 = vmatprep.mubr.f32.mxu0 %v1779
    %3492 = vmatmul.mubr.f32.gmra.mrb[0].mxu0 %v1778
    %v3493 = vpop.f32.mrb[0].mxu0
    %v3494 = vadd.f32 %v3109, %v3493
    %v3495 = vpop.f32.mrb[0].mxu0
    %3496 = vmatprep.mubr.f32.mxu0 %v1788
    %3497 = vmatmul.mubr.f32.gmra.mrb[0].mxu0 %v1787
    %v3498 = vpop.f32.mrb[0].mxu0
    %v3499 = vadd.f32 %v3114, %v3498
    %v3500 = vpop.f32.mrb[0].mxu0
    %3501 = vmatprep.mubr.f32.mxu0 %v1797
    %3502 = vmatmul.mubr.f32.gmra.mrb[0].mxu0 %v1796
    %v3503 = vpop.f32.mrb[0].mxu0
    %v3504 = vadd.f32 %v3119, %v3503
    %v3505 = vpop.f32.mrb[0].mxu0
    %3506 = vmatprep.mubr.f32.mxu0 %v1806
    %3507 = vmatmul.mubr.f32.gmra.mrb[0].mxu0 %v1805
    %v3508 = vpop.f32.mrb[0].mxu0
    %v3509 = vadd.f32 %v3124, %v3508
    %v3510 = vpop.f32.mrb[0].mxu0
    %3511 = vmatprep.mubr.f32.mxu0 %v1815
    %3512 = vmatmul.mubr.f32.gmra.mrb[0].mxu0 %v1814
    %v3513 = vpop.f32.mrb[0].mxu0
    %v3514 = vadd.f32 %v3129, %v3513
    %v3515 = vpop.f32.mrb[0].mxu0
    %3516 = vmatprep.mubr.f32.mxu0 %v1824
    %3517 = vmatmul.mubr.f32.gmra.mrb[0].mxu0 %v1823
    %v3518 = vpop.f32.mrb[0].mxu0
    %v3519 = vadd.f32 %v3134, %v3518
    %v3520 = vpop.f32.mrb[0].mxu0
    %3521 = vmatprep.mubr.f32.mxu0 %v1833
    %3522 = vmatmul.mubr.f32.gmra.mrb[0].mxu0 %v1832
    %v3523 = vpop.f32.mrb[0].mxu0
    %v3524 = vadd.f32 %v3139, %v3523
    %v3525 = vpop.f32.mrb[0].mxu0
    %3526 = vmatprep.mubr.f32.mxu0 %v1842
    %3527 = vmatmul.mubr.f32.gmra.mrb[0].mxu0 %v1841
    %v3528 = vpop.f32.mrb[0].mxu0
    %v3529 = vadd.f32 %v3144, %v3528
    %v3530 = vpop.f32.mrb[0].mxu0
    %3531 = vmatprep.mubr.f32.mxu0 %v1851
    %3532 = vmatmul.mubr.f32.gmra.mrb[0].mxu0 %v1850
    %v3533 = vpop.f32.mrb[0].mxu0
    %v3534 = vadd.f32 %v3149, %v3533
    %v3535 = vpop.f32.mrb[0].mxu0
    %3536 = vdwg.mxu0
    %3537 = vmatprep.subr.mxu0 0.0
    %3538 = vmatpush1.msra.mxu0 %v1981
    %3539 = vmatprep.subr.mxu0 0.0
    %3540 = vmatpush1.msra.mxu0 %v1982
    %3541 = vmatprep.subr.mxu0 0.0
    %3542 = vmatpush1.msra.mxu0 %v1983
    %3543 = vmatprep.subr.mxu0 0.0
    %3544 = vmatpush1.msra.mxu0 %v1984
    %3545 = vmatprep.subr.mxu0 0.0
    %3546 = vmatpush1.msra.mxu0 %v1985
    %3547 = vmatprep.subr.mxu0 0.0
    %3548 = vmatpush1.msra.mxu0 %v1986
    %3549 = vmatprep.subr.mxu0 0.0
    %3550 = vmatpush1.msra.mxu0 %v1987
    %3551 = vmatprep.subr.mxu0 0.0
    %3552 = vmatpush1.msra.mxu0 %v1988
    %3553 = vmatprep.subr.mxu0 0.0
    %3554 = vmatpush1.msra.mxu0 %v1989
    %3555 = vmatprep.subr.mxu0 0.0
    %3556 = vmatpush1.msra.mxu0 %v1990
    %3557 = vmatprep.subr.mxu0 0.0
    %3558 = vmatpush1.msra.mxu0 %v1991
    %3559 = vmatprep.subr.mxu0 0.0
    %3560 = vmatpush1.msra.mxu0 %v1992
    %3561 = vmatprep.subr.mxu0 0.0
    %3562 = vmatpush1.msra.mxu0 %v1993
    %3563 = vmatprep.subr.mxu0 0.0
    %3564 = vmatpush1.msra.mxu0 %v1994
    %3565 = vmatprep.subr.mxu0 0.0
    %3566 = vmatpush1.msra.mxu0 %v1995
    %3567 = vmatprep.subr.mxu0 0.0
    %3568 = vmatpush1.msra.mxu0 %v1996
    %3569 = vmatprep.subr.mxu0 0.0
    %3570 = vmatpush1.msra.mxu0 0.0
    %3571 = vmatprep.subr.mxu0 0.0
    %3572 = vmatpush1.msra.mxu0 0.0
    %3573 = vmatprep.subr.mxu0 0.0
    %3574 = vmatpush1.msra.mxu0 0.0
    %3575 = vmatprep.subr.mxu0 0.0
    %3576 = vmatpush1.msra.mxu0 0.0
    %3577 = vmatprep.subr.mxu0 0.0
    %3578 = vmatpush1.msra.mxu0 0.0
    %3579 = vmatprep.subr.mxu0 0.0
    %3580 = vmatpush1.msra.mxu0 0.0
    %3581 = vmatprep.subr.mxu0 0.0
    %3582 = vmatpush1.msra.mxu0 0.0
    %3583 = vmatprep.subr.mxu0 0.0
    %3584 = vmatpush1.msra.mxu0 0.0
    %3585 = vmatprep.subr.mxu0 0.0
    %3586 = vmatpush1.msra.mxu0 0.0
    %3587 = vmatprep.subr.mxu0 0.0
    %3588 = vmatpush1.msra.mxu0 0.0
    %3589 = vmatprep.subr.mxu0 0.0
    %3590 = vmatpush1.msra.mxu0 0.0
    %3591 = vmatprep.subr.mxu0 0.0
    %3592 = vmatpush1.msra.mxu0 0.0
    %3593 = vmatprep.subr.mxu0 0.0
    %3594 = vmatpush1.msra.mxu0 0.0
    %3595 = vmatprep.subr.mxu0 0.0
    %3596 = vmatpush1.msra.mxu0 0.0
    %3597 = vmatprep.subr.mxu0 0.0
    %3598 = vmatpush1.msra.mxu0 0.0
    %3599 = vmatprep.subr.mxu0 0.0
    %3600 = vmatpush1.msra.mxu0 0.0
    %3601 = vmatprep.mubr.f32.mxu0 0.0
    %3602 = vmatmul.mubr.f32.gmra.mrb[0].mxu0 %v1285
    %v3603 = vpop.f32.mrb[0].mxu0
    %v3604 = vadd.f32 %v3219, %v3603
    %v3605 = vpop.f32.mrb[0].mxu0
    %3606 = vmatprep.mubr.f32.mxu0 0.0
    %3607 = vmatmul.mubr.f32.gmra.mrb[0].mxu0 %v1294
    %v3608 = vpop.f32.mrb[0].mxu0
    %v3609 = vadd.f32 %v3224, %v3608
    %v3610 = vpop.f32.mrb[0].mxu0
    %3611 = vmatprep.mubr.f32.mxu0 0.0
    %3612 = vmatmul.mubr.f32.gmra.mrb[0].mxu0 %v1303
    %v3613 = vpop.f32.mrb[0].mxu0
    %v3614 = vadd.f32 %v3229, %v3613
    %v3615 = vpop.f32.mrb[0].mxu0
    %3616 = vmatprep.mubr.f32.mxu0 0.0
    %3617 = vmatmul.mubr.f32.gmra.mrb[0].mxu0 %v1312
    %v3618 = vpop.f32.mrb[0].mxu0
    %v3619 = vadd.f32 %v3234, %v3618
    %v3620 = vpop.f32.mrb[0].mxu0
    %3621 = vmatprep.mubr.f32.mxu0 0.0
    %3622 = vmatmul.mubr.f32.gmra.mrb[0].mxu0 %v1321
    %v3623 = vpop.f32.mrb[0].mxu0
    %v3624 = vadd.f32 %v3239, %v3623
    %v3625 = vpop.f32.mrb[0].mxu0
    %3626 = vmatprep.mubr.f32.mxu0 0.0
    %3627 = vmatmul.mubr.f32.gmra.mrb[0].mxu0 %v1330
    %v3628 = vpop.f32.mrb[0].mxu0
    %v3629 = vadd.f32 %v3244, %v3628
    %v3630 = vpop.f32.mrb[0].mxu0
    %3631 = vmatprep.mubr.f32.mxu0 0.0
    %3632 = vmatmul.mubr.f32.gmra.mrb[0].mxu0 %v1339
    %v3633 = vpop.f32.mrb[0].mxu0
    %v3634 = vadd.f32 %v3249, %v3633
    %v3635 = vpop.f32.mrb[0].mxu0
    %3636 = vmatprep.mubr.f32.mxu0 0.0
    %3637 = vmatmul.mubr.f32.gmra.mrb[0].mxu0 %v1348
    %v3638 = vpop.f32.mrb[0].mxu0
    %v3639 = vadd.f32 %v3254, %v3638
    %v3640 = vpop.f32.mrb[0].mxu0
    %3641 = vmatprep.mubr.f32.mxu0 0.0
    %3642 = vmatmul.mubr.f32.gmra.mrb[0].mxu0 %v1357
    %v3643 = vpop.f32.mrb[0].mxu0
    %v3644 = vadd.f32 %v3259, %v3643
    %v3645 = vpop.f32.mrb[0].mxu0
    %3646 = vmatprep.mubr.f32.mxu0 0.0
    %3647 = vmatmul.mubr.f32.gmra.mrb[0].mxu0 %v1366
    %v3648 = vpop.f32.mrb[0].mxu0
    %v3649 = vadd.f32 %v3264, %v3648
    %v3650 = vpop.f32.mrb[0].mxu0
    %3651 = vmatprep.mubr.f32.mxu0 0.0
    %3652 = vmatmul.mubr.f32.gmra.mrb[0].mxu0 %v1375
    %v3653 = vpop.f32.mrb[0].mxu0
    %v3654 = vadd.f32 %v3269, %v3653
    %v3655 = vpop.f32.mrb[0].mxu0
    %3656 = vmatprep.mubr.f32.mxu0 0.0
    %3657 = vmatmul.mubr.f32.gmra.mrb[0].mxu0 %v1384
    %v3658 = vpop.f32.mrb[0].mxu0
    %v3659 = vadd.f32 %v3274, %v3658
    %v3660 = vpop.f32.mrb[0].mxu0
    %3661 = vmatprep.mubr.f32.mxu0 0.0
    %3662 = vmatmul.mubr.f32.gmra.mrb[0].mxu0 %v1393
    %v3663 = vpop.f32.mrb[0].mxu0
    %v3664 = vadd.f32 %v3279, %v3663
    %v3665 = vpop.f32.mrb[0].mxu0
    %3666 = vmatprep.mubr.f32.mxu0 0.0
    %3667 = vmatmul.mubr.f32.gmra.mrb[0].mxu0 %v1402
    %v3668 = vpop.f32.mrb[0].mxu0
    %v3669 = vadd.f32 %v3284, %v3668
    %v3670 = vpop.f32.mrb[0].mxu0
    %3671 = vmatprep.mubr.f32.mxu0 0.0
    %3672 = vmatmul.mubr.f32.gmra.mrb[0].mxu0 %v1411
    %v3673 = vpop.f32.mrb[0].mxu0
    %v3674 = vadd.f32 %v3289, %v3673
    %v3675 = vpop.f32.mrb[0].mxu0
    %3676 = vmatprep.mubr.f32.mxu0 0.0
    %3677 = vmatmul.mubr.f32.gmra.mrb[0].mxu0 %v1420
    %v3678 = vpop.f32.mrb[0].mxu0
    %v3679 = vadd.f32 %v3294, %v3678
    %v3680 = vpop.f32.mrb[0].mxu0
    %3681 = vmatprep.mubr.f32.mxu0 0.0
    %3682 = vmatmul.mubr.f32.gmra.mrb[0].mxu0 %v1429
    %v3683 = vpop.f32.mrb[0].mxu0
    %v3684 = vadd.f32 %v3299, %v3683
    %v3685 = vpop.f32.mrb[0].mxu0
    %3686 = vmatprep.mubr.f32.mxu0 0.0
    %3687 = vmatmul.mubr.f32.gmra.mrb[0].mxu0 %v1438
    %v3688 = vpop.f32.mrb[0].mxu0
    %v3689 = vadd.f32 %v3304, %v3688
    %v3690 = vpop.f32.mrb[0].mxu0
    %3691 = vmatprep.mubr.f32.mxu0 0.0
    %3692 = vmatmul.mubr.f32.gmra.mrb[0].mxu0 %v1447
    %v3693 = vpop.f32.mrb[0].mxu0
    %v3694 = vadd.f32 %v3309, %v3693
    %v3695 = vpop.f32.mrb[0].mxu0
    %3696 = vmatprep.mubr.f32.mxu0 0.0
    %3697 = vmatmul.mubr.f32.gmra.mrb[0].mxu0 %v1456
    %v3698 = vpop.f32.mrb[0].mxu0
    %v3699 = vadd.f32 %v3314, %v3698
    %v3700 = vpop.f32.mrb[0].mxu0
    %3701 = vmatprep.mubr.f32.mxu0 0.0
    %3702 = vmatmul.mubr.f32.gmra.mrb[0].mxu0 %v1465
    %v3703 = vpop.f32.mrb[0].mxu0
    %v3704 = vadd.f32 %v3319, %v3703
    %v3705 = vpop.f32.mrb[0].mxu0
    %3706 = vmatprep.mubr.f32.mxu0 0.0
    %3707 = vmatmul.mubr.f32.gmra.mrb[0].mxu0 %v1474
    %v3708 = vpop.f32.mrb[0].mxu0
    %v3709 = vadd.f32 %v3324, %v3708
    %v3710 = vpop.f32.mrb[0].mxu0
    %3711 = vmatprep.mubr.f32.mxu0 0.0
    %3712 = vmatmul.mubr.f32.gmra.mrb[0].mxu0 %v1483
    %v3713 = vpop.f32.mrb[0].mxu0
    %v3714 = vadd.f32 %v3329, %v3713
    %v3715 = vpop.f32.mrb[0].mxu0
    %3716 = vmatprep.mubr.f32.mxu0 0.0
    %3717 = vmatmul.mubr.f32.gmra.mrb[0].mxu0 %v1492
    %v3718 = vpop.f32.mrb[0].mxu0
    %v3719 = vadd.f32 %v3334, %v3718
    %v3720 = vpop.f32.mrb[0].mxu0
    %3721 = vmatprep.mubr.f32.mxu0 0.0
    %3722 = vmatmul.mubr.f32.gmra.mrb[0].mxu0 %v1501
    %v3723 = vpop.f32.mrb[0].mxu0
    %v3724 = vadd.f32 %v3339, %v3723
    %v3725 = vpop.f32.mrb[0].mxu0
    %3726 = vmatprep.mubr.f32.mxu0 0.0
    %3727 = vmatmul.mubr.f32.gmra.mrb[0].mxu0 %v1510
    %v3728 = vpop.f32.mrb[0].mxu0
    %v3729 = vadd.f32 %v3344, %v3728
    %v3730 = vpop.f32.mrb[0].mxu0
    %3731 = vmatprep.mubr.f32.mxu0 0.0
    %3732 = vmatmul.mubr.f32.gmra.mrb[0].mxu0 %v1519
    %v3733 = vpop.f32.mrb[0].mxu0
    %v3734 = vadd.f32 %v3349, %v3733
    %v3735 = vpop.f32.mrb[0].mxu0
    %3736 = vmatprep.mubr.f32.mxu0 0.0
    %3737 = vmatmul.mubr.f32.gmra.mrb[0].mxu0 %v1528
    %v3738 = vpop.f32.mrb[0].mxu0
    %v3739 = vadd.f32 %v3354, %v3738
    %v3740 = vpop.f32.mrb[0].mxu0
    %3741 = vmatprep.mubr.f32.mxu0 0.0
    %3742 = vmatmul.mubr.f32.gmra.mrb[0].mxu0 %v1537
    %v3743 = vpop.f32.mrb[0].mxu0
    %v3744 = vadd.f32 %v3359, %v3743
    %v3745 = vpop.f32.mrb[0].mxu0
    %3746 = vmatprep.mubr.f32.mxu0 0.0
    %3747 = vmatmul.mubr.f32.gmra.mrb[0].mxu0 %v1546
    %v3748 = vpop.f32.mrb[0].mxu0
    %v3749 = vadd.f32 %v3364, %v3748
    %v3750 = vpop.f32.mrb[0].mxu0
    %3751 = vmatprep.mubr.f32.mxu0 0.0
    %3752 = vmatmul.mubr.f32.gmra.mrb[0].mxu0 %v1555
    %v3753 = vpop.f32.mrb[0].mxu0
    %v3754 = vadd.f32 %v3369, %v3753
    %v3755 = vpop.f32.mrb[0].mxu0
    %3756 = vmatprep.mubr.f32.mxu0 0.0
    %3757 = vmatmul.mubr.f32.gmra.mrb[0].mxu0 %v1564
    %v3758 = vpop.f32.mrb[0].mxu0
    %v3759 = vadd.f32 %v3374, %v3758
    %v3760 = vpop.f32.mrb[0].mxu0
    %3761 = vmatprep.mubr.f32.mxu0 0.0
    %3762 = vmatmul.mubr.f32.gmra.mrb[0].mxu0 %v1573
    %v3763 = vpop.f32.mrb[0].mxu0
    %v3764 = vadd.f32 %v3379, %v3763
    %v3765 = vpop.f32.mrb[0].mxu0
    %3766 = vmatprep.mubr.f32.mxu0 0.0
    %3767 = vmatmul.mubr.f32.gmra.mrb[0].mxu0 %v1582
    %v3768 = vpop.f32.mrb[0].mxu0
    %v3769 = vadd.f32 %v3384, %v3768
    %v3770 = vpop.f32.mrb[0].mxu0
    %3771 = vmatprep.mubr.f32.mxu0 0.0
    %3772 = vmatmul.mubr.f32.gmra.mrb[0].mxu0 %v1591
    %v3773 = vpop.f32.mrb[0].mxu0
    %v3774 = vadd.f32 %v3389, %v3773
    %v3775 = vpop.f32.mrb[0].mxu0
    %3776 = vmatprep.mubr.f32.mxu0 0.0
    %3777 = vmatmul.mubr.f32.gmra.mrb[0].mxu0 %v1600
    %v3778 = vpop.f32.mrb[0].mxu0
    %v3779 = vadd.f32 %v3394, %v3778
    %v3780 = vpop.f32.mrb[0].mxu0
    %3781 = vmatprep.mubr.f32.mxu0 0.0
    %3782 = vmatmul.mubr.f32.gmra.mrb[0].mxu0 %v1609
    %v3783 = vpop.f32.mrb[0].mxu0
    %v3784 = vadd.f32 %v3399, %v3783
    %v3785 = vpop.f32.mrb[0].mxu0
    %3786 = vmatprep.mubr.f32.mxu0 0.0
    %3787 = vmatmul.mubr.f32.gmra.mrb[0].mxu0 %v1618
    %v3788 = vpop.f32.mrb[0].mxu0
    %v3789 = vadd.f32 %v3404, %v3788
    %v3790 = vpop.f32.mrb[0].mxu0
    %3791 = vmatprep.mubr.f32.mxu0 0.0
    %3792 = vmatmul.mubr.f32.gmra.mrb[0].mxu0 %v1627
    %v3793 = vpop.f32.mrb[0].mxu0
    %v3794 = vadd.f32 %v3409, %v3793
    %v3795 = vpop.f32.mrb[0].mxu0
    %3796 = vmatprep.mubr.f32.mxu0 0.0
    %3797 = vmatmul.mubr.f32.gmra.mrb[0].mxu0 %v1636
    %v3798 = vpop.f32.mrb[0].mxu0
    %v3799 = vadd.f32 %v3414, %v3798
    %v3800 = vpop.f32.mrb[0].mxu0
    %3801 = vmatprep.mubr.f32.mxu0 0.0
    %3802 = vmatmul.mubr.f32.gmra.mrb[0].mxu0 %v1645
    %v3803 = vpop.f32.mrb[0].mxu0
    %v3804 = vadd.f32 %v3419, %v3803
    %v3805 = vpop.f32.mrb[0].mxu0
    %3806 = vmatprep.mubr.f32.mxu0 0.0
    %3807 = vmatmul.mubr.f32.gmra.mrb[0].mxu0 %v1654
    %v3808 = vpop.f32.mrb[0].mxu0
    %v3809 = vadd.f32 %v3424, %v3808
    %v3810 = vpop.f32.mrb[0].mxu0
    %3811 = vmatprep.mubr.f32.mxu0 0.0
    %3812 = vmatmul.mubr.f32.gmra.mrb[0].mxu0 %v1663
    %v3813 = vpop.f32.mrb[0].mxu0
    %v3814 = vadd.f32 %v3429, %v3813
    %v3815 = vpop.f32.mrb[0].mxu0
    %3816 = vmatprep.mubr.f32.mxu0 0.0
    %3817 = vmatmul.mubr.f32.gmra.mrb[0].mxu0 %v1672
    %v3818 = vpop.f32.mrb[0].mxu0
    %v3819 = vadd.f32 %v3434, %v3818
    %v3820 = vpop.f32.mrb[0].mxu0
    %3821 = vmatprep.mubr.f32.mxu0 0.0
    %3822 = vmatmul.mubr.f32.gmra.mrb[0].mxu0 %v1681
    %v3823 = vpop.f32.mrb[0].mxu0
    %v3824 = vadd.f32 %v3439, %v3823
    %v3825 = vpop.f32.mrb[0].mxu0
    %3826 = vmatprep.mubr.f32.mxu0 0.0
    %3827 = vmatmul.mubr.f32.gmra.mrb[0].mxu0 %v1690
    %v3828 = vpop.f32.mrb[0].mxu0
    %v3829 = vadd.f32 %v3444, %v3828
    %v3830 = vpop.f32.mrb[0].mxu0
    %3831 = vmatprep.mubr.f32.mxu0 0.0
    %3832 = vmatmul.mubr.f32.gmra.mrb[0].mxu0 %v1699
    %v3833 = vpop.f32.mrb[0].mxu0
    %v3834 = vadd.f32 %v3449, %v3833
    %v3835 = vpop.f32.mrb[0].mxu0
    %3836 = vmatprep.mubr.f32.mxu0 0.0
    %3837 = vmatmul.mubr.f32.gmra.mrb[0].mxu0 %v1708
    %v3838 = vpop.f32.mrb[0].mxu0
    %v3839 = vadd.f32 %v3454, %v3838
    %v3840 = vpop.f32.mrb[0].mxu0
    %3841 = vmatprep.mubr.f32.mxu0 0.0
    %3842 = vmatmul.mubr.f32.gmra.mrb[0].mxu0 %v1717
    %v3843 = vpop.f32.mrb[0].mxu0
    %v3844 = vadd.f32 %v3459, %v3843
    %v3845 = vpop.f32.mrb[0].mxu0
    %3846 = vmatprep.mubr.f32.mxu0 0.0
    %3847 = vmatmul.mubr.f32.gmra.mrb[0].mxu0 %v1726
    %v3848 = vpop.f32.mrb[0].mxu0
    %v3849 = vadd.f32 %v3464, %v3848
    %v3850 = vpop.f32.mrb[0].mxu0
    %3851 = vmatprep.mubr.f32.mxu0 0.0
    %3852 = vmatmul.mubr.f32.gmra.mrb[0].mxu0 %v1735
    %v3853 = vpop.f32.mrb[0].mxu0
    %v3854 = vadd.f32 %v3469, %v3853
    %v3855 = vpop.f32.mrb[0].mxu0
    %3856 = vmatprep.mubr.f32.mxu0 0.0
    %3857 = vmatmul.mubr.f32.gmra.mrb[0].mxu0 %v1744
    %v3858 = vpop.f32.mrb[0].mxu0
    %v3859 = vadd.f32 %v3474, %v3858
    %v3860 = vpop.f32.mrb[0].mxu0
    %3861 = vmatprep.mubr.f32.mxu0 0.0
    %3862 = vmatmul.mubr.f32.gmra.mrb[0].mxu0 %v1753
    %v3863 = vpop.f32.mrb[0].mxu0
    %v3864 = vadd.f32 %v3479, %v3863
    %v3865 = vpop.f32.mrb[0].mxu0
    %3866 = vmatprep.mubr.f32.mxu0 0.0
    %3867 = vmatmul.mubr.f32.gmra.mrb[0].mxu0 %v1762
    %v3868 = vpop.f32.mrb[0].mxu0
    %v3869 = vadd.f32 %v3484, %v3868
    %v3870 = vpop.f32.mrb[0].mxu0
    %3871 = vmatprep.mubr.f32.mxu0 0.0
    %3872 = vmatmul.mubr.f32.gmra.mrb[0].mxu0 %v1771
    %v3873 = vpop.f32.mrb[0].mxu0
    %v3874 = vadd.f32 %v3489, %v3873
    %v3875 = vpop.f32.mrb[0].mxu0
    %3876 = vmatprep.mubr.f32.mxu0 0.0
    %3877 = vmatmul.mubr.f32.gmra.mrb[0].mxu0 %v1780
    %v3878 = vpop.f32.mrb[0].mxu0
    %v3879 = vadd.f32 %v3494, %v3878
    %v3880 = vpop.f32.mrb[0].mxu0
    %3881 = vmatprep.mubr.f32.mxu0 0.0
    %3882 = vmatmul.mubr.f32.gmra.mrb[0].mxu0 %v1789
    %v3883 = vpop.f32.mrb[0].mxu0
    %v3884 = vadd.f32 %v3499, %v3883
    %v3885 = vpop.f32.mrb[0].mxu0
    %3886 = vmatprep.mubr.f32.mxu0 0.0
    %3887 = vmatmul.mubr.f32.gmra.mrb[0].mxu0 %v1798
    %v3888 = vpop.f32.mrb[0].mxu0
    %v3889 = vadd.f32 %v3504, %v3888
    %v3890 = vpop.f32.mrb[0].mxu0
    %3891 = vmatprep.mubr.f32.mxu0 0.0
    %3892 = vmatmul.mubr.f32.gmra.mrb[0].mxu0 %v1807
    %v3893 = vpop.f32.mrb[0].mxu0
    %v3894 = vadd.f32 %v3509, %v3893
    %v3895 = vpop.f32.mrb[0].mxu0
    %3896 = vmatprep.mubr.f32.mxu0 0.0
    %3897 = vmatmul.mubr.f32.gmra.mrb[0].mxu0 %v1816
    %v3898 = vpop.f32.mrb[0].mxu0
    %v3899 = vadd.f32 %v3514, %v3898
    %v3900 = vpop.f32.mrb[0].mxu0
    %3901 = vmatprep.mubr.f32.mxu0 0.0
    %3902 = vmatmul.mubr.f32.gmra.mrb[0].mxu0 %v1825
    %v3903 = vpop.f32.mrb[0].mxu0
    %v3904 = vadd.f32 %v3519, %v3903
    %v3905 = vpop.f32.mrb[0].mxu0
    %3906 = vmatprep.mubr.f32.mxu0 0.0
    %3907 = vmatmul.mubr.f32.gmra.mrb[0].mxu0 %v1834
    %v3908 = vpop.f32.mrb[0].mxu0
    %v3909 = vadd.f32 %v3524, %v3908
    %v3910 = vpop.f32.mrb[0].mxu0
    %3911 = vmatprep.mubr.f32.mxu0 0.0
    %3912 = vmatmul.mubr.f32.gmra.mrb[0].mxu0 %v1843
    %v3913 = vpop.f32.mrb[0].mxu0
    %v3914 = vadd.f32 %v3529, %v3913
    %v3915 = vpop.f32.mrb[0].mxu0
    %3916 = vmatprep.mubr.f32.mxu0 0.0
    %3917 = vmatmul.mubr.f32.gmra.mrb[0].mxu0 %v1852
    %v3918 = vpop.f32.mrb[0].mxu0
    %v3919 = vadd.f32 %v3534, %v3918
    %v3920 = vpop.f32.mrb[0].mxu0
    %3921 = vdwg.mxu0
    %v3922 = vld [vmem:[%s2] sm:$0x1]
    %v3923 = vld [vmem:[%s3] sm:$0x1]
    %v3924 = vadd.f32 %v3604, %v3609
    %v3925 = vadd.f32 %v3924, %v3614
    %v3926 = vadd.f32 %v3925, %v3619
    %v3927 = vadd.f32 %v3926, %v3624
    %v3928 = vadd.f32 %v3927, %v3629
    %v3929 = vadd.f32 %v3928, %v3634
    %v3930 = vadd.f32 %v3929, %v3639
    %v3931 = vadd.f32 %v3930, %v3644
    %v3932 = vadd.f32 %v3931, %v3649
    %v3933 = vadd.f32 %v3932, %v3654
    %v3934 = vadd.f32 %v3933, %v3659
    %v3935 = vadd.f32 %v3934, %v3664
    %v3936 = vadd.f32 %v3935, %v3669
    %v3937 = vadd.f32 %v3936, %v3674
    %v3938 = vadd.f32 %v3937, %v3679
    %v3939 = vadd.f32 %v3938, %v3684
    %v3940 = vadd.f32 %v3939, %v3689
    %v3941 = vadd.f32 %v3940, %v3694
    %v3942 = vadd.f32 %v3941, %v3699
    %v3943 = vadd.f32 %v3942, %v3704
    %v3944 = vadd.f32 %v3943, %v3709
    %v3945 = vadd.f32 %v3944, %v3714
    %v3946 = vadd.f32 %v3945, %v3719
    %v3947 = vadd.f32 %v3946, %v3724
    %v3948 = vadd.f32 %v3947, %v3729
    %v3949 = vadd.f32 %v3948, %v3734
    %v3950 = vadd.f32 %v3949, %v3739
    %v3951 = vadd.f32 %v3950, %v3744
    %v3952 = vadd.f32 %v3951, %v3749
    %v3953 = vadd.f32 %v3952, %v3754
    %v3954 = vadd.f32 %v3953, %v3759
    %v3955 = vadd.f32 %v3954, %v3764
    %v3956 = vadd.f32 %v3955, %v3769
    %v3957 = vadd.f32 %v3956, %v3774
    %v3958 = vadd.f32 %v3957, %v3779
    %v3959 = vadd.f32 %v3958, %v3784
    %v3960 = vadd.f32 %v3959, %v3789
    %v3961 = vadd.f32 %v3960, %v3794
    %v3962 = vadd.f32 %v3961, %v3799
    %v3963 = vadd.f32 %v3962, %v3804
    %v3964 = vadd.f32 %v3963, %v3809
    %v3965 = vadd.f32 %v3964, %v3814
    %v3966 = vadd.f32 %v3965, %v3819
    %v3967 = vadd.f32 %v3966, %v3824
    %v3968 = vadd.f32 %v3967, %v3829
    %v3969 = vadd.f32 %v3968, %v3834
    %v3970 = vadd.f32 %v3969, %v3839
    %v3971 = vadd.f32 %v3970, %v3844
    %v3972 = vadd.f32 %v3971, %v3849
    %v3973 = vadd.f32 %v3972, %v3854
    %v3974 = vadd.f32 %v3973, %v3859
    %v3975 = vadd.f32 %v3974, %v3864
    %v3976 = vadd.f32 %v3975, %v3869
    %v3977 = vadd.f32 %v3976, %v3874
    %v3978 = vadd.f32 %v3977, %v3879
    %v3979 = vadd.f32 %v3978, %v3884
    %v3980 = vadd.f32 %v3979, %v3889
    %v3981 = vadd.f32 %v3980, %v3894
    %v3982 = vadd.f32 %v3981, %v3899
    %v3983 = vadd.f32 %v3982, %v3904
    %v3984 = vadd.f32 %v3983, %v3909
    %v3985 = vadd.f32 %v3984, %v3914
    %v3986 = vadd.f32 %v3985, %v3919
    %v3987 = vrot.slane %v3986, 4
    %v3988 = vadd.f32 %v3986, %v3987
    %v3989 = vrot.slane %v3988, 2
    %v3990 = vadd.f32 %v3988, %v3989
    %v3991 = vrot.slane %v3990, 1
    %v3992 = vadd.f32 %v3990, %v3991
    %v3993 = vmul.f32 %v3992, 0.001953125
    %v3994 = vsub.f32 %v3604, %v3993
    %v3995 = vsub.f32 %v3609, %v3993
    %v3996 = vsub.f32 %v3614, %v3993
    %v3997 = vsub.f32 %v3619, %v3993
    %v3998 = vsub.f32 %v3624, %v3993
    %v3999 = vsub.f32 %v3629, %v3993
    %v4000 = vsub.f32 %v3634, %v3993
    %v4001 = vsub.f32 %v3639, %v3993
    %v4002 = vsub.f32 %v3644, %v3993
    %v4003 = vsub.f32 %v3649, %v3993
    %v4004 = vsub.f32 %v3654, %v3993
    %v4005 = vsub.f32 %v3659, %v3993
    %v4006 = vsub.f32 %v3664, %v3993
    %v4007 = vsub.f32 %v3669, %v3993
    %v4008 = vsub.f32 %v3674, %v3993
    %v4009 = vsub.f32 %v3679, %v3993
    %v4010 = vsub.f32 %v3684, %v3993
    %v4011 = vsub.f32 %v3689, %v3993
    %v4012 = vsub.f32 %v3694, %v3993
    %v4013 = vsub.f32 %v3699, %v3993
    %v4014 = vsub.f32 %v3704, %v3993
    %v4015 = vsub.f32 %v3709, %v3993
    %v4016 = vsub.f32 %v3714, %v3993
    %v4017 = vsub.f32 %v3719, %v3993
    %v4018 = vsub.f32 %v3724, %v3993
    %v4019 = vsub.f32 %v3729, %v3993
    %v4020 = vsub.f32 %v3734, %v3993
    %v4021 = vsub.f32 %v3739, %v3993
    %v4022 = vsub.f32 %v3744, %v3993
    %v4023 = vsub.f32 %v3749, %v3993
    %v4024 = vsub.f32 %v3754, %v3993
    %v4025 = vsub.f32 %v3759, %v3993
    %v4026 = vsub.f32 %v3764, %v3993
    %v4027 = vsub.f32 %v3769, %v3993
    %v4028 = vsub.f32 %v3774, %v3993
    %v4029 = vsub.f32 %v3779, %v3993
    %v4030 = vsub.f32 %v3784, %v3993
    %v4031 = vsub.f32 %v3789, %v3993
    %v4032 = vsub.f32 %v3794, %v3993
    %v4033 = vsub.f32 %v3799, %v3993
    %v4034 = vsub.f32 %v3804, %v3993
    %v4035 = vsub.f32 %v3809, %v3993
    %v4036 = vsub.f32 %v3814, %v3993
    %v4037 = vsub.f32 %v3819, %v3993
    %v4038 = vsub.f32 %v3824, %v3993
    %v4039 = vsub.f32 %v3829, %v3993
    %v4040 = vsub.f32 %v3834, %v3993
    %v4041 = vsub.f32 %v3839, %v3993
    %v4042 = vsub.f32 %v3844, %v3993
    %v4043 = vsub.f32 %v3849, %v3993
    %v4044 = vsub.f32 %v3854, %v3993
    %v4045 = vsub.f32 %v3859, %v3993
    %v4046 = vsub.f32 %v3864, %v3993
    %v4047 = vsub.f32 %v3869, %v3993
    %v4048 = vsub.f32 %v3874, %v3993
    %v4049 = vsub.f32 %v3879, %v3993
    %v4050 = vsub.f32 %v3884, %v3993
    %v4051 = vsub.f32 %v3889, %v3993
    %v4052 = vsub.f32 %v3894, %v3993
    %v4053 = vsub.f32 %v3899, %v3993
    %v4054 = vsub.f32 %v3904, %v3993
    %v4055 = vsub.f32 %v3909, %v3993
    %v4056 = vsub.f32 %v3914, %v3993
    %v4057 = vsub.f32 %v3919, %v3993
    %v4058 = vmul.f32 %v3994, %v3994
    %v4059 = vmul.f32 %v3995, %v3995
    %v4060 = vmul.f32 %v3996, %v3996
    %v4061 = vmul.f32 %v3997, %v3997
    %v4062 = vmul.f32 %v3998, %v3998
    %v4063 = vmul.f32 %v3999, %v3999
    %v4064 = vmul.f32 %v4000, %v4000
    %v4065 = vmul.f32 %v4001, %v4001
    %v4066 = vmul.f32 %v4002, %v4002
    %v4067 = vmul.f32 %v4003, %v4003
    %v4068 = vmul.f32 %v4004, %v4004
    %v4069 = vmul.f32 %v4005, %v4005
    %v4070 = vmul.f32 %v4006, %v4006
    %v4071 = vmul.f32 %v4007, %v4007
    %v4072 = vmul.f32 %v4008, %v4008
    %v4073 = vmul.f32 %v4009, %v4009
    %v4074 = vmul.f32 %v4010, %v4010
    %v4075 = vmul.f32 %v4011, %v4011
    %v4076 = vmul.f32 %v4012, %v4012
    %v4077 = vmul.f32 %v4013, %v4013
    %v4078 = vmul.f32 %v4014, %v4014
    %v4079 = vmul.f32 %v4015, %v4015
    %v4080 = vmul.f32 %v4016, %v4016
    %v4081 = vmul.f32 %v4017, %v4017
    %v4082 = vmul.f32 %v4018, %v4018
    %v4083 = vmul.f32 %v4019, %v4019
    %v4084 = vmul.f32 %v4020, %v4020
    %v4085 = vmul.f32 %v4021, %v4021
    %v4086 = vmul.f32 %v4022, %v4022
    %v4087 = vmul.f32 %v4023, %v4023
    %v4088 = vmul.f32 %v4024, %v4024
    %v4089 = vmul.f32 %v4025, %v4025
    %v4090 = vmul.f32 %v4026, %v4026
    %v4091 = vmul.f32 %v4027, %v4027
    %v4092 = vmul.f32 %v4028, %v4028
    %v4093 = vmul.f32 %v4029, %v4029
    %v4094 = vmul.f32 %v4030, %v4030
    %v4095 = vmul.f32 %v4031, %v4031
    %v4096 = vmul.f32 %v4032, %v4032
    %v4097 = vmul.f32 %v4033, %v4033
    %v4098 = vmul.f32 %v4034, %v4034
    %v4099 = vmul.f32 %v4035, %v4035
    %v4100 = vmul.f32 %v4036, %v4036
    %v4101 = vmul.f32 %v4037, %v4037
    %v4102 = vmul.f32 %v4038, %v4038
    %v4103 = vmul.f32 %v4039, %v4039
    %v4104 = vmul.f32 %v4040, %v4040
    %v4105 = vmul.f32 %v4041, %v4041
    %v4106 = vmul.f32 %v4042, %v4042
    %v4107 = vmul.f32 %v4043, %v4043
    %v4108 = vmul.f32 %v4044, %v4044
    %v4109 = vmul.f32 %v4045, %v4045
    %v4110 = vmul.f32 %v4046, %v4046
    %v4111 = vmul.f32 %v4047, %v4047
    %v4112 = vmul.f32 %v4048, %v4048
    %v4113 = vmul.f32 %v4049, %v4049
    %v4114 = vmul.f32 %v4050, %v4050
    %v4115 = vmul.f32 %v4051, %v4051
    %v4116 = vmul.f32 %v4052, %v4052
    %v4117 = vmul.f32 %v4053, %v4053
    %v4118 = vmul.f32 %v4054, %v4054
    %v4119 = vmul.f32 %v4055, %v4055
    %v4120 = vmul.f32 %v4056, %v4056
    %v4121 = vmul.f32 %v4057, %v4057
    %v4122 = vadd.f32 %v4058, %v4059
    %v4123 = vadd.f32 %v4122, %v4060
    %v4124 = vadd.f32 %v4123, %v4061
    %v4125 = vadd.f32 %v4124, %v4062
    %v4126 = vadd.f32 %v4125, %v4063
    %v4127 = vadd.f32 %v4126, %v4064
    %v4128 = vadd.f32 %v4127, %v4065
    %v4129 = vadd.f32 %v4128, %v4066
    %v4130 = vadd.f32 %v4129, %v4067
    %v4131 = vadd.f32 %v4130, %v4068
    %v4132 = vadd.f32 %v4131, %v4069
    %v4133 = vadd.f32 %v4132, %v4070
    %v4134 = vadd.f32 %v4133, %v4071
    %v4135 = vadd.f32 %v4134, %v4072
    %v4136 = vadd.f32 %v4135, %v4073
    %v4137 = vadd.f32 %v4136, %v4074
    %v4138 = vadd.f32 %v4137, %v4075
    %v4139 = vadd.f32 %v4138, %v4076
    %v4140 = vadd.f32 %v4139, %v4077
    %v4141 = vadd.f32 %v4140, %v4078
    %v4142 = vadd.f32 %v4141, %v4079
    %v4143 = vadd.f32 %v4142, %v4080
    %v4144 = vadd.f32 %v4143, %v4081
    %v4145 = vadd.f32 %v4144, %v4082
    %v4146 = vadd.f32 %v4145, %v4083
    %v4147 = vadd.f32 %v4146, %v4084
    %v4148 = vadd.f32 %v4147, %v4085
    %v4149 = vadd.f32 %v4148, %v4086
    %v4150 = vadd.f32 %v4149, %v4087
    %v4151 = vadd.f32 %v4150, %v4088
    %v4152 = vadd.f32 %v4151, %v4089
    %v4153 = vadd.f32 %v4152, %v4090
    %v4154 = vadd.f32 %v4153, %v4091
    %v4155 = vadd.f32 %v4154, %v4092
    %v4156 = vadd.f32 %v4155, %v4093
    %v4157 = vadd.f32 %v4156, %v4094
    %v4158 = vadd.f32 %v4157, %v4095
    %v4159 = vadd.f32 %v4158, %v4096
    %v4160 = vadd.f32 %v4159, %v4097
    %v4161 = vadd.f32 %v4160, %v4098
    %v4162 = vadd.f32 %v4161, %v4099
    %v4163 = vadd.f32 %v4162, %v4100
    %v4164 = vadd.f32 %v4163, %v4101
    %v4165 = vadd.f32 %v4164, %v4102
    %v4166 = vadd.f32 %v4165, %v4103
    %v4167 = vadd.f32 %v4166, %v4104
    %v4168 = vadd.f32 %v4167, %v4105
    %v4169 = vadd.f32 %v4168, %v4106
    %v4170 = vadd.f32 %v4169, %v4107
    %v4171 = vadd.f32 %v4170, %v4108
    %v4172 = vadd.f32 %v4171, %v4109
    %v4173 = vadd.f32 %v4172, %v4110
    %v4174 = vadd.f32 %v4173, %v4111
    %v4175 = vadd.f32 %v4174, %v4112
    %v4176 = vadd.f32 %v4175, %v4113
    %v4177 = vadd.f32 %v4176, %v4114
    %v4178 = vadd.f32 %v4177, %v4115
    %v4179 = vadd.f32 %v4178, %v4116
    %v4180 = vadd.f32 %v4179, %v4117
    %v4181 = vadd.f32 %v4180, %v4118
    %v4182 = vadd.f32 %v4181, %v4119
    %v4183 = vadd.f32 %v4182, %v4120
    %v4184 = vadd.f32 %v4183, %v4121
    %v4185 = vrot.slane %v4184, 4
    %v4186 = vadd.f32 %v4184, %v4185
    %v4187 = vrot.slane %v4186, 2
    %v4188 = vadd.f32 %v4186, %v4187
    %v4189 = vrot.slane %v4188, 1
    %v4190 = vadd.f32 %v4188, %v4189
    %v4191 = vmul.f32 %v4190, 0.001953125
    %v4192 = vadd.f32 %v4191, 1e-05
    %v4193 = vrsqrt.pop %v4192
    %v4194 = vmul.f32 %v3922, %v4193
    %v4196 = vlaneseq
    %v4197 = vshrl.u32 %v4196, 7
    %v4198 = vsub.s32 0, %v4197
    %v4199 = vrot.slane %v4194, %v4198
    %v4201 = vmul.f32 %v3994, %v4199
    %v4202 = vmul.f32 %v3995, %v4199
    %v4203 = vmul.f32 %v3996, %v4199
    %v4204 = vmul.f32 %v3997, %v4199
    %v4205 = vmul.f32 %v3998, %v4199
    %v4206 = vmul.f32 %v3999, %v4199
    %v4207 = vmul.f32 %v4000, %v4199
    %v4208 = vmul.f32 %v4001, %v4199
    %v4209 = vmul.f32 %v4002, %v4199
    %v4210 = vmul.f32 %v4003, %v4199
    %v4211 = vmul.f32 %v4004, %v4199
    %v4212 = vmul.f32 %v4005, %v4199
    %v4213 = vmul.f32 %v4006, %v4199
    %v4214 = vmul.f32 %v4007, %v4199
    %v4215 = vmul.f32 %v4008, %v4199
    %v4216 = vmul.f32 %v4009, %v4199
    %v4217 = vmul.f32 %v4010, %v4199
    %v4218 = vmul.f32 %v4011, %v4199
    %v4219 = vmul.f32 %v4012, %v4199
    %v4220 = vmul.f32 %v4013, %v4199
    %v4221 = vmul.f32 %v4014, %v4199
    %v4222 = vmul.f32 %v4015, %v4199
    %v4223 = vmul.f32 %v4016, %v4199
    %v4224 = vmul.f32 %v4017, %v4199
    %v4225 = vmul.f32 %v4018, %v4199
    %v4226 = vmul.f32 %v4019, %v4199
    %v4227 = vmul.f32 %v4020, %v4199
    %v4228 = vmul.f32 %v4021, %v4199
    %v4229 = vmul.f32 %v4022, %v4199
    %v4230 = vmul.f32 %v4023, %v4199
    %v4231 = vmul.f32 %v4024, %v4199
    %v4232 = vmul.f32 %v4025, %v4199
    %v4233 = vmul.f32 %v4026, %v4199
    %v4234 = vmul.f32 %v4027, %v4199
    %v4235 = vmul.f32 %v4028, %v4199
    %v4236 = vmul.f32 %v4029, %v4199
    %v4237 = vmul.f32 %v4030, %v4199
    %v4238 = vmul.f32 %v4031, %v4199
    %v4239 = vmul.f32 %v4032, %v4199
    %v4240 = vmul.f32 %v4033, %v4199
    %v4241 = vmul.f32 %v4034, %v4199
    %v4242 = vmul.f32 %v4035, %v4199
    %v4243 = vmul.f32 %v4036, %v4199
    %v4244 = vmul.f32 %v4037, %v4199
    %v4245 = vmul.f32 %v4038, %v4199
    %v4246 = vmul.f32 %v4039, %v4199
    %v4247 = vmul.f32 %v4040, %v4199
    %v4248 = vmul.f32 %v4041, %v4199
    %v4249 = vmul.f32 %v4042, %v4199
    %v4250 = vmul.f32 %v4043, %v4199
    %v4251 = vmul.f32 %v4044, %v4199
    %v4252 = vmul.f32 %v4045, %v4199
    %v4253 = vmul.f32 %v4046, %v4199
    %v4254 = vmul.f32 %v4047, %v4199
    %v4255 = vmul.f32 %v4048, %v4199
    %v4256 = vmul.f32 %v4049, %v4199
    %v4257 = vmul.f32 %v4050, %v4199
    %v4258 = vmul.f32 %v4051, %v4199
    %v4259 = vmul.f32 %v4052, %v4199
    %v4260 = vmul.f32 %v4053, %v4199
    %v4261 = vmul.f32 %v4054, %v4199
    %v4262 = vmul.f32 %v4055, %v4199
    %v4263 = vmul.f32 %v4056, %v4199
    %v4264 = vmul.f32 %v4057, %v4199
    %v4266 = vlaneseq
    %v4267 = vshrl.u32 %v4266, 7
    %v4268 = vsub.s32 0, %v4267
    %v4269 = vrot.slane %v3923, %v4268
    %v4271 = vadd.f32 %v4201, %v4269
    %v4272 = vadd.f32 %v4202, %v4269
    %v4273 = vadd.f32 %v4203, %v4269
    %v4274 = vadd.f32 %v4204, %v4269
    %v4275 = vadd.f32 %v4205, %v4269
    %v4276 = vadd.f32 %v4206, %v4269
    %v4277 = vadd.f32 %v4207, %v4269
    %v4278 = vadd.f32 %v4208, %v4269
    %v4279 = vadd.f32 %v4209, %v4269
    %v4280 = vadd.f32 %v4210, %v4269
    %v4281 = vadd.f32 %v4211, %v4269
    %v4282 = vadd.f32 %v4212, %v4269
    %v4283 = vadd.f32 %v4213, %v4269
    %v4284 = vadd.f32 %v4214, %v4269
    %v4285 = vadd.f32 %v4215, %v4269
    %v4286 = vadd.f32 %v4216, %v4269
    %v4287 = vadd.f32 %v4217, %v4269
    %v4288 = vadd.f32 %v4218, %v4269
    %v4289 = vadd.f32 %v4219, %v4269
    %v4290 = vadd.f32 %v4220, %v4269
    %v4291 = vadd.f32 %v4221, %v4269
    %v4292 = vadd.f32 %v4222, %v4269
    %v4293 = vadd.f32 %v4223, %v4269
    %v4294 = vadd.f32 %v4224, %v4269
    %v4295 = vadd.f32 %v4225, %v4269
    %v4296 = vadd.f32 %v4226, %v4269
    %v4297 = vadd.f32 %v4227, %v4269
    %v4298 = vadd.f32 %v4228, %v4269
    %v4299 = vadd.f32 %v4229, %v4269
    %v4300 = vadd.f32 %v4230, %v4269
    %v4301 = vadd.f32 %v4231, %v4269
    %v4302 = vadd.f32 %v4232, %v4269
    %v4303 = vadd.f32 %v4233, %v4269
    %v4304 = vadd.f32 %v4234, %v4269
    %v4305 = vadd.f32 %v4235, %v4269
    %v4306 = vadd.f32 %v4236, %v4269
    %v4307 = vadd.f32 %v4237, %v4269
    %v4308 = vadd.f32 %v4238, %v4269
    %v4309 = vadd.f32 %v4239, %v4269
    %v4310 = vadd.f32 %v4240, %v4269
    %v4311 = vadd.f32 %v4241, %v4269
    %v4312 = vadd.f32 %v4242, %v4269
    %v4313 = vadd.f32 %v4243, %v4269
    %v4314 = vadd.f32 %v4244, %v4269
    %v4315 = vadd.f32 %v4245, %v4269
    %v4316 = vadd.f32 %v4246, %v4269
    %v4317 = vadd.f32 %v4247, %v4269
    %v4318 = vadd.f32 %v4248, %v4269
    %v4319 = vadd.f32 %v4249, %v4269
    %v4320 = vadd.f32 %v4250, %v4269
    %v4321 = vadd.f32 %v4251, %v4269
    %v4322 = vadd.f32 %v4252, %v4269
    %v4323 = vadd.f32 %v4253, %v4269
    %v4324 = vadd.f32 %v4254, %v4269
    %v4325 = vadd.f32 %v4255, %v4269
    %v4326 = vadd.f32 %v4256, %v4269
    %v4327 = vadd.f32 %v4257, %v4269
    %v4328 = vadd.f32 %v4258, %v4269
    %v4329 = vadd.f32 %v4259, %v4269
    %v4330 = vadd.f32 %v4260, %v4269
    %v4331 = vadd.f32 %v4261, %v4269
    %v4332 = vadd.f32 %v4262, %v4269
    %v4333 = vadd.f32 %v4263, %v4269
    %v4334 = vadd.f32 %v4264, %v4269
    %v4335 = vmax.f32 %v4271, 0.0
    %v4336 = vmax.f32 %v4272, 0.0
    %v4337 = vmax.f32 %v4273, 0.0
    %v4338 = vmax.f32 %v4274, 0.0
    %v4339 = vmax.f32 %v4275, 0.0
    %v4340 = vmax.f32 %v4276, 0.0
    %v4341 = vmax.f32 %v4277, 0.0
    %v4342 = vmax.f32 %v4278, 0.0
    %v4343 = vmax.f32 %v4279, 0.0
    %v4344 = vmax.f32 %v4280, 0.0
    %v4345 = vmax.f32 %v4281, 0.0
    %v4346 = vmax.f32 %v4282, 0.0
    %v4347 = vmax.f32 %v4283, 0.0
    %v4348 = vmax.f32 %v4284, 0.0
    %v4349 = vmax.f32 %v4285, 0.0
    %v4350 = vmax.f32 %v4286, 0.0
    %v4351 = vmax.f32 %v4287, 0.0
    %v4352 = vmax.f32 %v4288, 0.0
    %v4353 = vmax.f32 %v4289, 0.0
    %v4354 = vmax.f32 %v4290, 0.0
    %v4355 = vmax.f32 %v4291, 0.0
    %v4356 = vmax.f32 %v4292, 0.0
    %v4357 = vmax.f32 %v4293, 0.0
    %v4358 = vmax.f32 %v4294, 0.0
    %v4359 = vmax.f32 %v4295, 0.0
    %v4360 = vmax.f32 %v4296, 0.0
    %v4361 = vmax.f32 %v4297, 0.0
    %v4362 = vmax.f32 %v4298, 0.0
    %v4363 = vmax.f32 %v4299, 0.0
    %v4364 = vmax.f32 %v4300, 0.0
    %v4365 = vmax.f32 %v4301, 0.0
    %v4366 = vmax.f32 %v4302, 0.0
    %v4367 = vmax.f32 %v4303, 0.0
    %v4368 = vmax.f32 %v4304, 0.0
    %v4369 = vmax.f32 %v4305, 0.0
    %v4370 = vmax.f32 %v4306, 0.0
    %v4371 = vmax.f32 %v4307, 0.0
    %v4372 = vmax.f32 %v4308, 0.0
    %v4373 = vmax.f32 %v4309, 0.0
    %v4374 = vmax.f32 %v4310, 0.0
    %v4375 = vmax.f32 %v4311, 0.0
    %v4376 = vmax.f32 %v4312, 0.0
    %v4377 = vmax.f32 %v4313, 0.0
    %v4378 = vmax.f32 %v4314, 0.0
    %v4379 = vmax.f32 %v4315, 0.0
    %v4380 = vmax.f32 %v4316, 0.0
    %v4381 = vmax.f32 %v4317, 0.0
    %v4382 = vmax.f32 %v4318, 0.0
    %v4383 = vmax.f32 %v4319, 0.0
    %v4384 = vmax.f32 %v4320, 0.0
    %v4385 = vmax.f32 %v4321, 0.0
    %v4386 = vmax.f32 %v4322, 0.0
    %v4387 = vmax.f32 %v4323, 0.0
    %v4388 = vmax.f32 %v4324, 0.0
    %v4389 = vmax.f32 %v4325, 0.0
    %v4390 = vmax.f32 %v4326, 0.0
    %v4391 = vmax.f32 %v4327, 0.0
    %v4392 = vmax.f32 %v4328, 0.0
    %v4393 = vmax.f32 %v4329, 0.0
    %v4394 = vmax.f32 %v4330, 0.0
    %v4395 = vmax.f32 %v4331, 0.0
    %v4396 = vmax.f32 %v4332, 0.0
    %v4397 = vmax.f32 %v4333, 0.0
    %v4398 = vmax.f32 %v4334, 0.0
    %4399 = vst [vmem:[%s420 + $0x1] sm:$0xff] %v4335
    %4400 = vst [vmem:[%s420 + $0x9] sm:$0xff] %v4336
    %4401 = vst [vmem:[%s420 + $0x19] sm:$0xff] %v4337
    %4402 = vst [vmem:[%s420 + $0x21] sm:$0xff] %v4338
    %4403 = vst [vmem:[%s420 + $0x31] sm:$0xff] %v4339
    %4404 = vst [vmem:[%s420 + $0x39] sm:$0xff] %v4340
    %4405 = vst [vmem:[%s420 + $0x49] sm:$0xff] %v4341
    %4406 = vst [vmem:[%s420 + $0x51] sm:$0xff] %v4342
    %4407 = vst [vmem:[%s420 + $0x61] sm:$0xff] %v4343
    %4408 = vst [vmem:[%s420 + $0x69] sm:$0xff] %v4344
    %4409 = vst [vmem:[%s420 + $0x79] sm:$0xff] %v4345
    %4410 = vst [vmem:[%s420 + $0x81] sm:$0xff] %v4346
    %4411 = vst [vmem:[%s420 + $0x91] sm:$0xff] %v4347
    %4412 = vst [vmem:[%s420 + $0x99] sm:$0xff] %v4348
    %4413 = vst [vmem:[%s420 + $0xa9] sm:$0xff] %v4349
    %4414 = vst [vmem:[%s420 + $0xb1] sm:$0xff] %v4350
    %4415 = vst [vmem:[%s420 + $0xc1] sm:$0xff] %v4351
    %4416 = vst [vmem:[%s420 + $0xc9] sm:$0xff] %v4352
    %4417 = vst [vmem:[%s420 + $0xd9] sm:$0xff] %v4353
    %4418 = vst [vmem:[%s420 + $0xe1] sm:$0xff] %v4354
    %4419 = vst [vmem:[%s420 + $0xf1] sm:$0xff] %v4355
    %4420 = vst [vmem:[%s420 + $0xf9] sm:$0xff] %v4356
    %4421 = vst [vmem:[%s420 + $0x109] sm:$0xff] %v4357
    %4422 = vst [vmem:[%s420 + $0x111] sm:$0xff] %v4358
    %4423 = vst [vmem:[%s420 + $0x121] sm:$0xff] %v4359
    %4424 = vst [vmem:[%s420 + $0x129] sm:$0xff] %v4360
    %4425 = vst [vmem:[%s420 + $0x139] sm:$0xff] %v4361
    %4426 = vst [vmem:[%s420 + $0x141] sm:$0xff] %v4362
    %4427 = vst [vmem:[%s420 + $0x151] sm:$0xff] %v4363
    %4428 = vst [vmem:[%s420 + $0x159] sm:$0xff] %v4364
    %4429 = vst [vmem:[%s420 + $0x169] sm:$0xff] %v4365
    %4430 = vst [vmem:[%s420 + $0x171] sm:$0xff] %v4366
    %4431 = vst [vmem:[%s420 + $0x1b1] sm:$0xff] %v4367
    %4432 = vst [vmem:[%s420 + $0x1b9] sm:$0xff] %v4368
    %4433 = vst [vmem:[%s420 + $0x1c9] sm:$0xff] %v4369
    %4434 = vst [vmem:[%s420 + $0x1d1] sm:$0xff] %v4370
    %4435 = vst [vmem:[%s420 + $0x1e1] sm:$0xff] %v4371
    %4436 = vst [vmem:[%s420 + $0x1e9] sm:$0xff] %v4372
    %4437 = vst [vmem:[%s420 + $0x1f9] sm:$0xff] %v4373
    %4438 = vst [vmem:[%s420 + $0x201] sm:$0xff] %v4374
    %4439 = vst [vmem:[%s420 + $0x211] sm:$0xff] %v4375
    %4440 = vst [vmem:[%s420 + $0x219] sm:$0xff] %v4376
    %4441 = vst [vmem:[%s420 + $0x229] sm:$0xff] %v4377
    %4442 = vst [vmem:[%s420 + $0x231] sm:$0xff] %v4378
    %4443 = vst [vmem:[%s420 + $0x241] sm:$0xff] %v4379
    %4444 = vst [vmem:[%s420 + $0x249] sm:$0xff] %v4380
    %4445 = vst [vmem:[%s420 + $0x259] sm:$0xff] %v4381
    %4446 = vst [vmem:[%s420 + $0x261] sm:$0xff] %v4382
    %4447 = vst [vmem:[%s420 + $0x271] sm:$0xff] %v4383
    %4448 = vst [vmem:[%s420 + $0x279] sm:$0xff] %v4384
    %4449 = vst [vmem:[%s420 + $0x289] sm:$0xff] %v4385
    %4450 = vst [vmem:[%s420 + $0x291] sm:$0xff] %v4386
    %4451 = vst [vmem:[%s420 + $0x2a1] sm:$0xff] %v4387
    %4452 = vst [vmem:[%s420 + $0x2a9] sm:$0xff] %v4388
    %4453 = vst [vmem:[%s420 + $0x2b9] sm:$0xff] %v4389
    %4454 = vst [vmem:[%s420 + $0x2c1] sm:$0xff] %v4390
    %4455 = vst [vmem:[%s420 + $0x2d1] sm:$0xff] %v4391
    %4456 = vst [vmem:[%s420 + $0x2d9] sm:$0xff] %v4392
    %4457 = vst [vmem:[%s420 + $0x2e9] sm:$0xff] %v4393
    %4458 = vst [vmem:[%s420 + $0x2f1] sm:$0xff] %v4394
    %4459 = vst [vmem:[%s420 + $0x301] sm:$0xff] %v4395
    %4460 = vst [vmem:[%s420 + $0x309] sm:$0xff] %v4396
    %4461 = vst [vmem:[%s420 + $0x319] sm:$0xff] %v4397
    %4462 = vst [vmem:[%s420 + $0x321] sm:$0xff] %v4398
    %v4463 = vld [vmem:[#allocation2] sm:$0xff]
    %v4464 = vld [vmem:[#allocation2 + $0x8] sm:$0xff]
    %v4465 = vld [vmem:[#allocation2 + $0x18] sm:$0xff]
    %v4466 = vld [vmem:[#allocation2 + $0x20] sm:$0xff]
    %v4467 = vld [vmem:[#allocation2 + $0x30] sm:$0xff]
    %v4468 = vld [vmem:[#allocation2 + $0x38] sm:$0xff]
    %v4469 = vld [vmem:[#allocation2 + $0x48] sm:$0xff]
    %v4470 = vld [vmem:[#allocation2 + $0x50] sm:$0xff]
    %v4471 = vld [vmem:[#allocation2 + $0x60] sm:$0xff]
    %v4472 = vld [vmem:[#allocation2 + $0x68] sm:$0xff]
    %v4473 = vld [vmem:[#allocation2 + $0x78] sm:$0xff]
    %v4474 = vld [vmem:[#allocation2 + $0x80] sm:$0xff]
    %v4475 = vld [vmem:[#allocation2 + $0x90] sm:$0xff]
    %v4476 = vld [vmem:[#allocation2 + $0x98] sm:$0xff]
    %v4477 = vld [vmem:[#allocation2 + $0xa8] sm:$0xff]
    %v4478 = vld [vmem:[#allocation2 + $0xb0] sm:$0xff]
    %v4479 = vld [vmem:[#allocation2 + $0xc0] sm:$0xff]
    %v4480 = vld [vmem:[#allocation2 + $0xc8] sm:$0xff]
    %v4481 = vld [vmem:[#allocation2 + $0xd8] sm:$0xff]
    %v4482 = vld [vmem:[#allocation2 + $0xe0] sm:$0xff]
    %v4483 = vld [vmem:[#allocation2 + $0xf0] sm:$0xff]
    %v4484 = vld [vmem:[#allocation2 + $0xf8] sm:$0xff]
    %v4485 = vld [vmem:[#allocation2 + $0x108] sm:$0xff]
    %v4486 = vld [vmem:[#allocation2 + $0x110] sm:$0xff]
    %v4487 = vld [vmem:[#allocation2 + $0x120] sm:$0xff]
    %v4488 = vld [vmem:[#allocation2 + $0x128] sm:$0xff]
    %v4489 = vld [vmem:[#allocation2 + $0x138] sm:$0xff]
    %v4490 = vld [vmem:[#allocation2 + $0x140] sm:$0xff]
    %v4491 = vld [vmem:[#allocation2 + $0x150] sm:$0xff]
    %v4492 = vld [vmem:[#allocation2 + $0x158] sm:$0xff]
    %v4493 = vld [vmem:[#allocation2 + $0x168] sm:$0xff]
    %v4494 = vld [vmem:[#allocation2 + $0x170] sm:$0xff]
    %v4495 = vld [vmem:[#allocation2 + $0x180] sm:$0xff]
    %v4496 = vld [vmem:[#allocation2 + $0x188] sm:$0xff]
    %v4497 = vld [vmem:[#allocation2 + $0x198] sm:$0xff]
    %v4498 = vld [vmem:[#allocation2 + $0x1a0] sm:$0xff]
    %v4499 = vld [vmem:[#allocation2 + $0x1b0] sm:$0xff]
    %v4500 = vld [vmem:[#allocation2 + $0x1b8] sm:$0xff]
    %v4501 = vld [vmem:[#allocation2 + $0x1c8] sm:$0xff]
    %v4502 = vld [vmem:[#allocation2 + $0x1d0] sm:$0xff]
    %v4503 = vld [vmem:[#allocation2 + $0x1e0] sm:$0xff]
    %v4504 = vld [vmem:[#allocation2 + $0x1e8] sm:$0xff]
    %v4505 = vld [vmem:[#allocation2 + $0x1f8] sm:$0xff]
    %v4506 = vld [vmem:[#allocation2 + $0x200] sm:$0xff]
    %v4507 = vld [vmem:[#allocation2 + $0x210] sm:$0xff]
    %v4508 = vld [vmem:[#allocation2 + $0x218] sm:$0xff]
    %v4509 = vld [vmem:[#allocation2 + $0x228] sm:$0xff]
    %v4510 = vld [vmem:[#allocation2 + $0x230] sm:$0xff]
    %v4511 = vld [vmem:[#allocation2 + $0x240] sm:$0xff]
    %v4512 = vld [vmem:[#allocation2 + $0x248] sm:$0xff]
    %v4513 = vld [vmem:[#allocation2 + $0x258] sm:$0xff]
    %v4514 = vld [vmem:[#allocation2 + $0x260] sm:$0xff]
    %v4515 = vld [vmem:[#allocation2 + $0x270] sm:$0xff]
    %v4516 = vld [vmem:[#allocation2 + $0x278] sm:$0xff]
    %v4517 = vld [vmem:[#allocation2 + $0x288] sm:$0xff]
    %v4518 = vld [vmem:[#allocation2 + $0x290] sm:$0xff]
    %v4519 = vld [vmem:[#allocation2 + $0x2a0] sm:$0xff]
    %v4520 = vld [vmem:[#allocation2 + $0x2a8] sm:$0xff]
    %v4521 = vld [vmem:[#allocation2 + $0x2b8] sm:$0xff]
    %v4522 = vld [vmem:[#allocation2 + $0x2c0] sm:$0xff]
    %v4523 = vld [vmem:[#allocation2 + $0x2d0] sm:$0xff]
    %v4524 = vld [vmem:[#allocation2 + $0x2d8] sm:$0xff]
    %v4525 = vld [vmem:[#allocation2 + $0x2e8] sm:$0xff]
    %v4526 = vld [vmem:[#allocation2 + $0x2f0] sm:$0xff]
    %v4527 = vld [vmem:[#allocation2 + $0x300] sm:$0xff]
    %v4528 = vld [vmem:[#allocation2 + $0x308] sm:$0xff]
    %v4529 = vld [vmem:[#allocation2 + $0x318] sm:$0xff]
    %v4530 = vld [vmem:[#allocation2 + $0x320] sm:$0xff]
    %v4531 = vld [vmem:[#allocation2 + $0x330] sm:$0xff]
    %v4532 = vld [vmem:[#allocation2 + $0x338] sm:$0xff]
    %v4533 = vld [vmem:[#allocation2 + $0x348] sm:$0xff]
    %v4534 = vld [vmem:[#allocation2 + $0x350] sm:$0xff]
    %4535 = vst [vmem:[#allocation3] sm:$0xff] %v4463
    %4536 = vst [vmem:[#allocation3 + $0x48] sm:$0xff] %v4464
    %4537 = vst [vmem:[#allocation3 + $0x90] sm:$0xff] %v4465
    %4538 = vst [vmem:[#allocation3 + $0xd8] sm:$0xff] %v4466
    %4539 = vst [vmem:[#allocation3 + $0x120] sm:$0xff] %v4467
    %4540 = vst [vmem:[#allocation3 + $0x168] sm:$0xff] %v4468
    %4541 = vst [vmem:[#allocation3 + $0x1b0] sm:$0xff] %v4469
    %4542 = vst [vmem:[#allocation3 + $0x1f8] sm:$0xff] %v4470
    %4543 = vst [vmem:[#allocation3 + $0x240] sm:$0xff] %v4471
    %4544 = vst [vmem:[#allocation3 + $0x288] sm:$0xff] %v4472
    %4545 = vst [vmem:[#allocation3 + $0x2d0] sm:$0xff] %v4473
    %4546 = vst [vmem:[#allocation3 + $0x318] sm:$0xff] %v4474
    %4547 = vst [vmem:[#allocation3 + $0x360] sm:$0xff] %v4475
    %4548 = vst [vmem:[#allocation3 + $0x3a8] sm:$0xff] %v4476
    %4549 = vst [vmem:[#allocation3 + $0x3f0] sm:$0xff] %v4477
    %4550 = vst [vmem:[#allocation3 + $0x438] sm:$0xff] %v4478
    %4551 = vst [vmem:[#allocation3 + $0x480] sm:$0xff] %v4479
    %4552 = vst [vmem:[#allocation3 + $0x4c8] sm:$0xff] %v4480
    %4553 = vst [vmem:[#allocation3 + $0x510] sm:$0xff] %v4481
    %4554 = vst [vmem:[#allocation3 + $0x558] sm:$0xff] %v4482
    %4555 = vst [vmem:[#allocation3 + $0x5a0] sm:$0xff] %v4483
    %4556 = vst [vmem:[#allocation3 + $0x5e8] sm:$0xff] %v4484
    %4557 = vst [vmem:[#allocation3 + $0x630] sm:$0xff] %v4485
    %4558 = vst [vmem:[#allocation3 + $0x678] sm:$0xff] %v4486
    %4559 = vst [vmem:[#allocation3 + $0x6c0] sm:$0xff] %v4487
    %4560 = vst [vmem:[#allocation3 + $0x708] sm:$0xff] %v4488
    %4561 = vst [vmem:[#allocation3 + $0x750] sm:$0xff] %v4489
    %4562 = vst [vmem:[#allocation3 + $0x798] sm:$0xff] %v4490
    %4563 = vst [vmem:[#allocation3 + $0x7e0] sm:$0xff] %v4491
    %4564 = vst [vmem:[#allocation3 + $0x828] sm:$0xff] %v4492
    %4565 = vst [vmem:[#allocation3 + $0x870] sm:$0xff] %v4493
    %4566 = vst [vmem:[#allocation3 + $0x8b8] sm:$0xff] %v4494
    %4567 = vst [vmem:[#allocation3 + $0x900] sm:$0xff] %v4499
    %4568 = vst [vmem:[#allocation3 + $0x948] sm:$0xff] %v4500
    %4569 = vst [vmem:[#allocation3 + $0x990] sm:$0xff] %v4501
    %4570 = vst [vmem:[#allocation3 + $0x9d8] sm:$0xff] %v4502
    %4571 = vst [vmem:[#allocation3 + $0xa20] sm:$0xff] %v4503
    %4572 = vst [vmem:[#allocation3 + $0xa68] sm:$0xff] %v4504
    %4573 = vst [vmem:[#allocation3 + $0xab0] sm:$0xff] %v4505
    %4574 = vst [vmem:[#allocation3 + $0xaf8] sm:$0xff] %v4506
    %4575 = vst [vmem:[#allocation3 + $0xb40] sm:$0xff] %v4507
    %4576 = vst [vmem:[#allocation3 + $0xb88] sm:$0xff] %v4508
    %4577 = vst [vmem:[#allocation3 + $0xbd0] sm:$0xff] %v4509
    %4578 = vst [vmem:[#allocation3 + $0xc18] sm:$0xff] %v4510
    %4579 = vst [vmem:[#allocation3 + $0xc60] sm:$0xff] %v4511
    %4580 = vst [vmem:[#allocation3 + $0xca8] sm:$0xff] %v4512
    %4581 = vst [vmem:[#allocation3 + $0xcf0] sm:$0xff] %v4513
    %4582 = vst [vmem:[#allocation3 + $0xd38] sm:$0xff] %v4514
    %4583 = vst [vmem:[#allocation3 + $0xd80] sm:$0xff] %v4515
    %4584 = vst [vmem:[#allocation3 + $0xdc8] sm:$0xff] %v4516
    %4585 = vst [vmem:[#allocation3 + $0xe10] sm:$0xff] %v4517
    %4586 = vst [vmem:[#allocation3 + $0xe58] sm:$0xff] %v4518
    %4587 = vst [vmem:[#allocation3 + $0xea0] sm:$0xff] %v4519
    %4588 = vst [vmem:[#allocation3 + $0xee8] sm:$0xff] %v4520
    %4589 = vst [vmem:[#allocation3 + $0xf30] sm:$0xff] %v4521
    %4590 = vst [vmem:[#allocation3 + $0xf78] sm:$0xff] %v4522
    %4591 = vst [vmem:[#allocation3 + $0xfc0] sm:$0xff] %v4523
    %4592 = vst [vmem:[#allocation3 + $0x1008] sm:$0xff] %v4524
    %4593 = vst [vmem:[#allocation3 + $0x1050] sm:$0xff] %v4525
    %4594 = vst [vmem:[#allocation3 + $0x1098] sm:$0xff] %v4526
    %4595 = vst [vmem:[#allocation3 + $0x10e0] sm:$0xff] %v4527
    %4596 = vst [vmem:[#allocation3 + $0x1128] sm:$0xff] %v4528
    %4597 = vst [vmem:[#allocation3 + $0x1170] sm:$0xff] %v4529
    %4598 = vst [vmem:[#allocation3 + $0x11b8] sm:$0xff] %v4530
    %4599 = vst [vmem:[#allocation3 + $0x18] sm:$0xff] %v4465
    %4600 = vst [vmem:[#allocation3 + $0x60] sm:$0xff] %v4466
    %4601 = vst [vmem:[#allocation3 + $0xa8] sm:$0xff] %v4467
    %4602 = vst [vmem:[#allocation3 + $0xf0] sm:$0xff] %v4468
    %4603 = vst [vmem:[#allocation3 + $0x138] sm:$0xff] %v4469
    %4604 = vst [vmem:[#allocation3 + $0x180] sm:$0xff] %v4470
    %4605 = vst [vmem:[#allocation3 + $0x1c8] sm:$0xff] %v4471
    %4606 = vst [vmem:[#allocation3 + $0x210] sm:$0xff] %v4472
    %4607 = vst [vmem:[#allocation3 + $0x258] sm:$0xff] %v4473
    %4608 = vst [vmem:[#allocation3 + $0x2a0] sm:$0xff] %v4474
    %4609 = vst [vmem:[#allocation3 + $0x2e8] sm:$0xff] %v4475
    %4610 = vst [vmem:[#allocation3 + $0x330] sm:$0xff] %v4476
    %4611 = vst [vmem:[#allocation3 + $0x378] sm:$0xff] %v4477
    %4612 = vst [vmem:[#allocation3 + $0x3c0] sm:$0xff] %v4478
    %4613 = vst [vmem:[#allocation3 + $0x408] sm:$0xff] %v4479
    %4614 = vst [vmem:[#allocation3 + $0x450] sm:$0xff] %v4480
    %4615 = vst [vmem:[#allocation3 + $0x498] sm:$0xff] %v4481
    %4616 = vst [vmem:[#allocation3 + $0x4e0] sm:$0xff] %v4482
    %4617 = vst [vmem:[#allocation3 + $0x528] sm:$0xff] %v4483
    %4618 = vst [vmem:[#allocation3 + $0x570] sm:$0xff] %v4484
    %4619 = vst [vmem:[#allocation3 + $0x5b8] sm:$0xff] %v4485
    %4620 = vst [vmem:[#allocation3 + $0x600] sm:$0xff] %v4486
    %4621 = vst [vmem:[#allocation3 + $0x648] sm:$0xff] %v4487
    %4622 = vst [vmem:[#allocation3 + $0x690] sm:$0xff] %v4488
    %4623 = vst [vmem:[#allocation3 + $0x6d8] sm:$0xff] %v4489
    %4624 = vst [vmem:[#allocation3 + $0x720] sm:$0xff] %v4490
    %4625 = vst [vmem:[#allocation3 + $0x768] sm:$0xff] %v4491
    %4626 = vst [vmem:[#allocation3 + $0x7b0] sm:$0xff] %v4492
    %4627 = vst [vmem:[#allocation3 + $0x7f8] sm:$0xff] %v4493
    %4628 = vst [vmem:[#allocation3 + $0x840] sm:$0xff] %v4494
    %4629 = vst [vmem:[#allocation3 + $0x888] sm:$0xff] %v4495
    %4630 = vst [vmem:[#allocation3 + $0x8d0] sm:$0xff] %v4496
    %4631 = vst [vmem:[#allocation3 + $0x918] sm:$0xff] %v4501
    %4632 = vst [vmem:[#allocation3 + $0x960] sm:$0xff] %v4502
    %4633 = vst [vmem:[#allocation3 + $0x9a8] sm:$0xff] %v4503
    %4634 = vst [vmem:[#allocation3 + $0x9f0] sm:$0xff] %v4504
    %4635 = vst [vmem:[#allocation3 + $0xa38] sm:$0xff] %v4505
    %4636 = vst [vmem:[#allocation3 + $0xa80] sm:$0xff] %v4506
    %4637 = vst [vmem:[#allocation3 + $0xac8] sm:$0xff] %v4507
    %4638 = vst [vmem:[#allocation3 + $0xb10] sm:$0xff] %v4508
    %4639 = vst [vmem:[#allocation3 + $0xb58] sm:$0xff] %v4509
    %4640 = vst [vmem:[#allocation3 + $0xba0] sm:$0xff] %v4510
    %4641 = vst [vmem:[#allocation3 + $0xbe8] sm:$0xff] %v4511
    %4642 = vst [vmem:[#allocation3 + $0xc30] sm:$0xff] %v4512
    %4643 = vst [vmem:[#allocation3 + $0xc78] sm:$0xff] %v4513
    %4644 = vst [vmem:[#allocation3 + $0xcc0] sm:$0xff] %v4514
    %4645 = vst [vmem:[#allocation3 + $0xd08] sm:$0xff] %v4515
    %4646 = vst [vmem:[#allocation3 + $0xd50] sm:$0xff] %v4516
    %4647 = vst [vmem:[#allocation3 + $0xd98] sm:$0xff] %v4517
    %4648 = vst [vmem:[#allocation3 + $0xde0] sm:$0xff] %v4518
    %4649 = vst [vmem:[#allocation3 + $0xe28] sm:$0xff] %v4519
    %4650 = vst [vmem:[#allocation3 + $0xe70] sm:$0xff] %v4520
    %4651 = vst [vmem:[#allocation3 + $0xeb8] sm:$0xff] %v4521
    %4652 = vst [vmem:[#allocation3 + $0xf00] sm:$0xff] %v4522
    %4653 = vst [vmem:[#allocation3 + $0xf48] sm:$0xff] %v4523
    %4654 = vst [vmem:[#allocation3 + $0xf90] sm:$0xff] %v4524
    %4655 = vst [vmem:[#allocation3 + $0xfd8] sm:$0xff] %v4525
    %4656 = vst [vmem:[#allocation3 + $0x1020] sm:$0xff] %v4526
    %4657 = vst [vmem:[#allocation3 + $0x1068] sm:$0xff] %v4527
    %4658 = vst [vmem:[#allocation3 + $0x10b0] sm:$0xff] %v4528
    %4659 = vst [vmem:[#allocation3 + $0x10f8] sm:$0xff] %v4529
    %4660 = vst [vmem:[#allocation3 + $0x1140] sm:$0xff] %v4530
    %4661 = vst [vmem:[#allocation3 + $0x1188] sm:$0xff] %v4531
    %4662 = vst [vmem:[#allocation3 + $0x11d0] sm:$0xff] %v4532
    %4663 = vst [vmem:[#allocation3 + $0x30] sm:$0xff] %v4467
    %4664 = vst [vmem:[#allocation3 + $0x78] sm:$0xff] %v4468
    %4665 = vst [vmem:[#allocation3 + $0xc0] sm:$0xff] %v4469
    %4666 = vst [vmem:[#allocation3 + $0x108] sm:$0xff] %v4470
    %4667 = vst [vmem:[#allocation3 + $0x150] sm:$0xff] %v4471
    %4668 = vst [vmem:[#allocation3 + $0x198] sm:$0xff] %v4472
    %4669 = vst [vmem:[#allocation3 + $0x1e0] sm:$0xff] %v4473
    %4670 = vst [vmem:[#allocation3 + $0x228] sm:$0xff] %v4474
    %4671 = vst [vmem:[#allocation3 + $0x270] sm:$0xff] %v4475
    %4672 = vst [vmem:[#allocation3 + $0x2b8] sm:$0xff] %v4476
    %4673 = vst [vmem:[#allocation3 + $0x300] sm:$0xff] %v4477
    %4674 = vst [vmem:[#allocation3 + $0x348] sm:$0xff] %v4478
    %4675 = vst [vmem:[#allocation3 + $0x390] sm:$0xff] %v4479
    %4676 = vst [vmem:[#allocation3 + $0x3d8] sm:$0xff] %v4480
    %4677 = vst [vmem:[#allocation3 + $0x420] sm:$0xff] %v4481
    %4678 = vst [vmem:[#allocation3 + $0x468] sm:$0xff] %v4482
    %4679 = vst [vmem:[#allocation3 + $0x4b0] sm:$0xff] %v4483
    %4680 = vst [vmem:[#allocation3 + $0x4f8] sm:$0xff] %v4484
    %4681 = vst [vmem:[#allocation3 + $0x540] sm:$0xff] %v4485
    %4682 = vst [vmem:[#allocation3 + $0x588] sm:$0xff] %v4486
    %4683 = vst [vmem:[#allocation3 + $0x5d0] sm:$0xff] %v4487
    %4684 = vst [vmem:[#allocation3 + $0x618] sm:$0xff] %v4488
    %4685 = vst [vmem:[#allocation3 + $0x660] sm:$0xff] %v4489
    %4686 = vst [vmem:[#allocation3 + $0x6a8] sm:$0xff] %v4490
    %4687 = vst [vmem:[#allocation3 + $0x6f0] sm:$0xff] %v4491
    %4688 = vst [vmem:[#allocation3 + $0x738] sm:$0xff] %v4492
    %4689 = vst [vmem:[#allocation3 + $0x780] sm:$0xff] %v4493
    %4690 = vst [vmem:[#allocation3 + $0x7c8] sm:$0xff] %v4494
    %4691 = vst [vmem:[#allocation3 + $0x810] sm:$0xff] %v4495
    %4692 = vst [vmem:[#allocation3 + $0x858] sm:$0xff] %v4496
    %4693 = vst [vmem:[#allocation3 + $0x8a0] sm:$0xff] %v4497
    %4694 = vst [vmem:[#allocation3 + $0x8e8] sm:$0xff] %v4498
    %4695 = vst [vmem:[#allocation3 + $0x930] sm:$0xff] %v4503
    %4696 = vst [vmem:[#allocation3 + $0x978] sm:$0xff] %v4504
    %4697 = vst [vmem:[#allocation3 + $0x9c0] sm:$0xff] %v4505
    %4698 = vst [vmem:[#allocation3 + $0xa08] sm:$0xff] %v4506
    %4699 = vst [vmem:[#allocation3 + $0xa50] sm:$0xff] %v4507
    %4700 = vst [vmem:[#allocation3 + $0xa98] sm:$0xff] %v4508
    %4701 = vst [vmem:[#allocation3 + $0xae0] sm:$0xff] %v4509
    %4702 = vst [vmem:[#allocation3 + $0xb28] sm:$0xff] %v4510
    %4703 = vst [vmem:[#allocation3 + $0xb70] sm:$0xff] %v4511
    %4704 = vst [vmem:[#allocation3 + $0xbb8] sm:$0xff] %v4512
    %4705 = vst [vmem:[#allocation3 + $0xc00] sm:$0xff] %v4513
    %4706 = vst [vmem:[#allocation3 + $0xc48] sm:$0xff] %v4514
    %4707 = vst [vmem:[#allocation3 + $0xc90] sm:$0xff] %v4515
    %4708 = vst [vmem:[#allocation3 + $0xcd8] sm:$0xff] %v4516
    %4709 = vst [vmem:[#allocation3 + $0xd20] sm:$0xff] %v4517
    %4710 = vst [vmem:[#allocation3 + $0xd68] sm:$0xff] %v4518
    %4711 = vst [vmem:[#allocation3 + $0xdb0] sm:$0xff] %v4519
    %4712 = vst [vmem:[#allocation3 + $0xdf8] sm:$0xff] %v4520
    %4713 = vst [vmem:[#allocation3 + $0xe40] sm:$0xff] %v4521
    %4714 = vst [vmem:[#allocation3 + $0xe88] sm:$0xff] %v4522
    %4715 = vst [vmem:[#allocation3 + $0xed0] sm:$0xff] %v4523
    %4716 = vst [vmem:[#allocation3 + $0xf18] sm:$0xff] %v4524
    %4717 = vst [vmem:[#allocation3 + $0xf60] sm:$0xff] %v4525
    %4718 = vst [vmem:[#allocation3 + $0xfa8] sm:$0xff] %v4526
    %4719 = vst [vmem:[#allocation3 + $0xff0] sm:$0xff] %v4527
    %4720 = vst [vmem:[#allocation3 + $0x1038] sm:$0xff] %v4528
    %4721 = vst [vmem:[#allocation3 + $0x1080] sm:$0xff] %v4529
    %4722 = vst [vmem:[#allocation3 + $0x10c8] sm:$0xff] %v4530
    %4723 = vst [vmem:[#allocation3 + $0x1110] sm:$0xff] %v4531
    %4724 = vst [vmem:[#allocation3 + $0x1158] sm:$0xff] %v4532
    %4725 = vst [vmem:[#allocation3 + $0x11a0] sm:$0xff] %v4533
    %4726 = vst [vmem:[#allocation3 + $0x11e8] sm:$0xff] %v4534
    %v4727 = vld [vmem:[#allocation2 + $0x1] sm:$0xff]
    %v4728 = vld [vmem:[#allocation2 + $0x9] sm:$0xff]
    %v4729 = vld [vmem:[#allocation2 + $0x19] sm:$0xff]
    %v4730 = vld [vmem:[#allocation2 + $0x21] sm:$0xff]
    %v4731 = vld [vmem:[#allocation2 + $0x31] sm:$0xff]
    %v4732 = vld [vmem:[#allocation2 + $0x39] sm:$0xff]
    %v4733 = vld [vmem:[#allocation2 + $0x49] sm:$0xff]
    %v4734 = vld [vmem:[#allocation2 + $0x51] sm:$0xff]
    %v4735 = vld [vmem:[#allocation2 + $0x61] sm:$0xff]
    %v4736 = vld [vmem:[#allocation2 + $0x69] sm:$0xff]
    %v4737 = vld [vmem:[#allocation2 + $0x79] sm:$0xff]
    %v4738 = vld [vmem:[#allocation2 + $0x81] sm:$0xff]
    %v4739 = vld [vmem:[#allocation2 + $0x91] sm:$0xff]
    %v4740 = vld [vmem:[#allocation2 + $0x99] sm:$0xff]
    %v4741 = vld [vmem:[#allocation2 + $0xa9] sm:$0xff]
    %v4742 = vld [vmem:[#allocation2 + $0xb1] sm:$0xff]
    %v4743 = vld [vmem:[#allocation2 + $0xc1] sm:$0xff]
    %v4744 = vld [vmem:[#allocation2 + $0xc9] sm:$0xff]
    %v4745 = vld [vmem:[#allocation2 + $0xd9] sm:$0xff]
    %v4746 = vld [vmem:[#allocation2 + $0xe1] sm:$0xff]
    %v4747 = vld [vmem:[#allocation2 + $0xf1] sm:$0xff]
    %v4748 = vld [vmem:[#allocation2 + $0xf9] sm:$0xff]
    %v4749 = vld [vmem:[#allocation2 + $0x109] sm:$0xff]
    %v4750 = vld [vmem:[#allocation2 + $0x111] sm:$0xff]
    %v4751 = vld [vmem:[#allocation2 + $0x121] sm:$0xff]
    %v4752 = vld [vmem:[#allocation2 + $0x129] sm:$0xff]
    %v4753 = vld [vmem:[#allocation2 + $0x139] sm:$0xff]
    %v4754 = vld [vmem:[#allocation2 + $0x141] sm:$0xff]
    %v4755 = vld [vmem:[#allocation2 + $0x151] sm:$0xff]
    %v4756 = vld [vmem:[#allocation2 + $0x159] sm:$0xff]
    %v4757 = vld [vmem:[#allocation2 + $0x169] sm:$0xff]
    %v4758 = vld [vmem:[#allocation2 + $0x171] sm:$0xff]
    %v4759 = vld [vmem:[#allocation2 + $0x181] sm:$0xff]
    %v4760 = vld [vmem:[#allocation2 + $0x189] sm:$0xff]
    %v4761 = vld [vmem:[#allocation2 + $0x199] sm:$0xff]
    %v4762 = vld [vmem:[#allocation2 + $0x1a1] sm:$0xff]
    %v4763 = vld [vmem:[#allocation2 + $0x1b1] sm:$0xff]
    %v4764 = vld [vmem:[#allocation2 + $0x1b9] sm:$0xff]
    %v4765 = vld [vmem:[#allocation2 + $0x1c9] sm:$0xff]
    %v4766 = vld [vmem:[#allocation2 + $0x1d1] sm:$0xff]
    %v4767 = vld [vmem:[#allocation2 + $0x1e1] sm:$0xff]
    %v4768 = vld [vmem:[#allocation2 + $0x1e9] sm:$0xff]
    %v4769 = vld [vmem:[#allocation2 + $0x1f9] sm:$0xff]
    %v4770 = vld [vmem:[#allocation2 + $0x201] sm:$0xff]
    %v4771 = vld [vmem:[#allocation2 + $0x211] sm:$0xff]
    %v4772 = vld [vmem:[#allocation2 + $0x219] sm:$0xff]
    %v4773 = vld [vmem:[#allocation2 + $0x229] sm:$0xff]
    %v4774 = vld [vmem:[#allocation2 + $0x231] sm:$0xff]
    %v4775 = vld [vmem:[#allocation2 + $0x241] sm:$0xff]
    %v4776 = vld [vmem:[#allocation2 + $0x249] sm:$0xff]
    %v4777 = vld [vmem:[#allocation2 + $0x259] sm:$0xff]
    %v4778 = vld [vmem:[#allocation2 + $0x261] sm:$0xff]
    %v4779 = vld [vmem:[#allocation2 + $0x271] sm:$0xff]
    %v4780 = vld [vmem:[#allocation2 + $0x279] sm:$0xff]
    %v4781 = vld [vmem:[#allocation2 + $0x289] sm:$0xff]
    %v4782 = vld [vmem:[#allocation2 + $0x291] sm:$0xff]
    %v4783 = vld [vmem:[#allocation2 + $0x2a1] sm:$0xff]
    %v4784 = vld [vmem:[#allocation2 + $0x2a9] sm:$0xff]
    %v4785 = vld [vmem:[#allocation2 + $0x2b9] sm:$0xff]
    %v4786 = vld [vmem:[#allocation2 + $0x2c1] sm:$0xff]
    %v4787 = vld [vmem:[#allocation2 + $0x2d1] sm:$0xff]
    %v4788 = vld [vmem:[#allocation2 + $0x2d9] sm:$0xff]
    %v4789 = vld [vmem:[#allocation2 + $0x2e9] sm:$0xff]
    %v4790 = vld [vmem:[#allocation2 + $0x2f1] sm:$0xff]
    %v4791 = vld [vmem:[#allocation2 + $0x301] sm:$0xff]
    %v4792 = vld [vmem:[#allocation2 + $0x309] sm:$0xff]
    %v4793 = vld [vmem:[#allocation2 + $0x319] sm:$0xff]
    %v4794 = vld [vmem:[#allocation2 + $0x321] sm:$0xff]
    %v4795 = vld [vmem:[#allocation2 + $0x331] sm:$0xff]
    %v4796 = vld [vmem:[#allocation2 + $0x339] sm:$0xff]
    %v4797 = vld [vmem:[#allocation2 + $0x349] sm:$0xff]
    %v4798 = vld [vmem:[#allocation2 + $0x351] sm:$0xff]
    %4799 = vst [vmem:[#allocation3 + $0x8] sm:$0xff] %v4727
    %4800 = vst [vmem:[#allocation3 + $0x50] sm:$0xff] %v4728
    %4801 = vst [vmem:[#allocation3 + $0x98] sm:$0xff] %v4729
    %4802 = vst [vmem:[#allocation3 + $0xe0] sm:$0xff] %v4730
    %4803 = vst [vmem:[#allocation3 + $0x128] sm:$0xff] %v4731
    %4804 = vst [vmem:[#allocation3 + $0x170] sm:$0xff] %v4732
    %4805 = vst [vmem:[#allocation3 + $0x1b8] sm:$0xff] %v4733
    %4806 = vst [vmem:[#allocation3 + $0x200] sm:$0xff] %v4734
    %4807 = vst [vmem:[#allocation3 + $0x248] sm:$0xff] %v4735
    %4808 = vst [vmem:[#allocation3 + $0x290] sm:$0xff] %v4736
    %4809 = vst [vmem:[#allocation3 + $0x2d8] sm:$0xff] %v4737
    %4810 = vst [vmem:[#allocation3 + $0x320] sm:$0xff] %v4738
    %4811 = vst [vmem:[#allocation3 + $0x368] sm:$0xff] %v4739
    %4812 = vst [vmem:[#allocation3 + $0x3b0] sm:$0xff] %v4740
    %4813 = vst [vmem:[#allocation3 + $0x3f8] sm:$0xff] %v4741
    %4814 = vst [vmem:[#allocation3 + $0x440] sm:$0xff] %v4742
    %4815 = vst [vmem:[#allocation3 + $0x488] sm:$0xff] %v4743
    %4816 = vst [vmem:[#allocation3 + $0x4d0] sm:$0xff] %v4744
    %4817 = vst [vmem:[#allocation3 + $0x518] sm:$0xff] %v4745
    %4818 = vst [vmem:[#allocation3 + $0x560] sm:$0xff] %v4746
    %4819 = vst [vmem:[#allocation3 + $0x5a8] sm:$0xff] %v4747
    %4820 = vst [vmem:[#allocation3 + $0x5f0] sm:$0xff] %v4748
    %4821 = vst [vmem:[#allocation3 + $0x638] sm:$0xff] %v4749
    %4822 = vst [vmem:[#allocation3 + $0x680] sm:$0xff] %v4750
    %4823 = vst [vmem:[#allocation3 + $0x6c8] sm:$0xff] %v4751
    %4824 = vst [vmem:[#allocation3 + $0x710] sm:$0xff] %v4752
    %4825 = vst [vmem:[#allocation3 + $0x758] sm:$0xff] %v4753
    %4826 = vst [vmem:[#allocation3 + $0x7a0] sm:$0xff] %v4754
    %4827 = vst [vmem:[#allocation3 + $0x7e8] sm:$0xff] %v4755
    %4828 = vst [vmem:[#allocation3 + $0x830] sm:$0xff] %v4756
    %4829 = vst [vmem:[#allocation3 + $0x878] sm:$0xff] %v4757
    %4830 = vst [vmem:[#allocation3 + $0x8c0] sm:$0xff] %v4758
    %4831 = vst [vmem:[#allocation3 + $0x908] sm:$0xff] %v4763
    %4832 = vst [vmem:[#allocation3 + $0x950] sm:$0xff] %v4764
    %4833 = vst [vmem:[#allocation3 + $0x998] sm:$0xff] %v4765
    %4834 = vst [vmem:[#allocation3 + $0x9e0] sm:$0xff] %v4766
    %4835 = vst [vmem:[#allocation3 + $0xa28] sm:$0xff] %v4767
    %4836 = vst [vmem:[#allocation3 + $0xa70] sm:$0xff] %v4768
    %4837 = vst [vmem:[#allocation3 + $0xab8] sm:$0xff] %v4769
    %4838 = vst [vmem:[#allocation3 + $0xb00] sm:$0xff] %v4770
    %4839 = vst [vmem:[#allocation3 + $0xb48] sm:$0xff] %v4771
    %4840 = vst [vmem:[#allocation3 + $0xb90] sm:$0xff] %v4772
    %4841 = vst [vmem:[#allocation3 + $0xbd8] sm:$0xff] %v4773
    %4842 = vst [vmem:[#allocation3 + $0xc20] sm:$0xff] %v4774
    %4843 = vst [vmem:[#allocation3 + $0xc68] sm:$0xff] %v4775
    %4844 = vst [vmem:[#allocation3 + $0xcb0] sm:$0xff] %v4776
    %4845 = vst [vmem:[#allocation3 + $0xcf8] sm:$0xff] %v4777
    %4846 = vst [vmem:[#allocation3 + $0xd40] sm:$0xff] %v4778
    %4847 = vst [vmem:[#allocation3 + $0xd88] sm:$0xff] %v4779
    %4848 = vst [vmem:[#allocation3 + $0xdd0] sm:$0xff] %v4780
    %4849 = vst [vmem:[#allocation3 + $0xe18] sm:$0xff] %v4781
    %4850 = vst [vmem:[#allocation3 + $0xe60] sm:$0xff] %v4782
    %4851 = vst [vmem:[#allocation3 + $0xea8] sm:$0xff] %v4783
    %4852 = vst [vmem:[#allocation3 + $0xef0] sm:$0xff] %v4784
    %4853 = vst [vmem:[#allocation3 + $0xf38] sm:$0xff] %v4785
    %4854 = vst [vmem:[#allocation3 + $0xf80] sm:$0xff] %v4786
    %4855 = vst [vmem:[#allocation3 + $0xfc8] sm:$0xff] %v4787
    %4856 = vst [vmem:[#allocation3 + $0x1010] sm:$0xff] %v4788
    %4857 = vst [vmem:[#allocation3 + $0x1058] sm:$0xff] %v4789
    %4858 = vst [vmem:[#allocation3 + $0x10a0] sm:$0xff] %v4790
    %4859 = vst [vmem:[#allocation3 + $0x10e8] sm:$0xff] %v4791
    %4860 = vst [vmem:[#allocation3 + $0x1130] sm:$0xff] %v4792
    %4861 = vst [vmem:[#allocation3 + $0x1178] sm:$0xff] %v4793
    %4862 = vst [vmem:[#allocation3 + $0x11c0] sm:$0xff] %v4794
    %4863 = vst [vmem:[#allocation3 + $0x20] sm:$0xff] %v4729
    %4864 = vst [vmem:[#allocation3 + $0x68] sm:$0xff] %v4730
    %4865 = vst [vmem:[#allocation3 + $0xb0] sm:$0xff] %v4731
    %4866 = vst [vmem:[#allocation3 + $0xf8] sm:$0xff] %v4732
    %4867 = vst [vmem:[#allocation3 + $0x140] sm:$0xff] %v4733
    %4868 = vst [vmem:[#allocation3 + $0x188] sm:$0xff] %v4734
    %4869 = vst [vmem:[#allocation3 + $0x1d0] sm:$0xff] %v4735
    %4870 = vst [vmem:[#allocation3 + $0x218] sm:$0xff] %v4736
    %4871 = vst [vmem:[#allocation3 + $0x260] sm:$0xff] %v4737
    %4872 = vst [vmem:[#allocation3 + $0x2a8] sm:$0xff] %v4738
    %4873 = vst [vmem:[#allocation3 + $0x2f0] sm:$0xff] %v4739
    %4874 = vst [vmem:[#allocation3 + $0x338] sm:$0xff] %v4740
    %4875 = vst [vmem:[#allocation3 + $0x380] sm:$0xff] %v4741
    %4876 = vst [vmem:[#allocation3 + $0x3c8] sm:$0xff] %v4742
    %4877 = vst [vmem:[#allocation3 + $0x410] sm:$0xff] %v4743
    %4878 = vst [vmem:[#allocation3 + $0x458] sm:$0xff] %v4744
    %4879 = vst [vmem:[#allocation3 + $0x4a0] sm:$0xff] %v4745
    %4880 = vst [vmem:[#allocation3 + $0x4e8] sm:$0xff] %v4746
    %4881 = vst [vmem:[#allocation3 + $0x530] sm:$0xff] %v4747
    %4882 = vst [vmem:[#allocation3 + $0x578] sm:$0xff] %v4748
    %4883 = vst [vmem:[#allocation3 + $0x5c0] sm:$0xff] %v4749
    %4884 = vst [vmem:[#allocation3 + $0x608] sm:$0xff] %v4750
    %4885 = vst [vmem:[#allocation3 + $0x650] sm:$0xff] %v4751
    %4886 = vst [vmem:[#allocation3 + $0x698] sm:$0xff] %v4752
    %4887 = vst [vmem:[#allocation3 + $0x6e0] sm:$0xff] %v4753
    %4888 = vst [vmem:[#allocation3 + $0x728] sm:$0xff] %v4754
    %4889 = vst [vmem:[#allocation3 + $0x770] sm:$0xff] %v4755
    %4890 = vst [vmem:[#allocation3 + $0x7b8] sm:$0xff] %v4756
    %4891 = vst [vmem:[#allocation3 + $0x800] sm:$0xff] %v4757
    %4892 = vst [vmem:[#allocation3 + $0x848] sm:$0xff] %v4758
    %4893 = vst [vmem:[#allocation3 + $0x890] sm:$0xff] %v4759
    %4894 = vst [vmem:[#allocation3 + $0x8d8] sm:$0xff] %v4760
    %4895 = vst [vmem:[#allocation3 + $0x920] sm:$0xff] %v4765
    %4896 = vst [vmem:[#allocation3 + $0x968] sm:$0xff] %v4766
    %4897 = vst [vmem:[#allocation3 + $0x9b0] sm:$0xff] %v4767
    %4898 = vst [vmem:[#allocation3 + $0x9f8] sm:$0xff] %v4768
    %4899 = vst [vmem:[#allocation3 + $0xa40] sm:$0xff] %v4769
    %4900 = vst [vmem:[#allocation3 + $0xa88] sm:$0xff] %v4770
    %4901 = vst [vmem:[#allocation3 + $0xad0] sm:$0xff] %v4771
    %4902 = vst [vmem:[#allocation3 + $0xb18] sm:$0xff] %v4772
    %4903 = vst [vmem:[#allocation3 + $0xb60] sm:$0xff] %v4773
    %4904 = vst [vmem:[#allocation3 + $0xba8] sm:$0xff] %v4774
    %4905 = vst [vmem:[#allocation3 + $0xbf0] sm:$0xff] %v4775
    %4906 = vst [vmem:[#allocation3 + $0xc38] sm:$0xff] %v4776
    %4907 = vst [vmem:[#allocation3 + $0xc80] sm:$0xff] %v4777
    %4908 = vst [vmem:[#allocation3 + $0xcc8] sm:$0xff] %v4778
    %4909 = vst [vmem:[#allocation3 + $0xd10] sm:$0xff] %v4779
    %4910 = vst [vmem:[#allocation3 + $0xd58] sm:$0xff] %v4780
    %4911 = vst [vmem:[#allocation3 + $0xda0] sm:$0xff] %v4781
    %4912 = vst [vmem:[#allocation3 + $0xde8] sm:$0xff] %v4782
    %4913 = vst [vmem:[#allocation3 + $0xe30] sm:$0xff] %v4783
    %4914 = vst [vmem:[#allocation3 + $0xe78] sm:$0xff] %v4784
    %4915 = vst [vmem:[#allocation3 + $0xec0] sm:$0xff] %v4785
    %4916 = vst [vmem:[#allocation3 + $0xf08] sm:$0xff] %v4786
    %4917 = vst [vmem:[#allocation3 + $0xf50] sm:$0xff] %v4787
    %4918 = vst [vmem:[#allocation3 + $0xf98] sm:$0xff] %v4788
    %4919 = vst [vmem:[#allocation3 + $0xfe0] sm:$0xff] %v4789
    %4920 = vst [vmem:[#allocation3 + $0x1028] sm:$0xff] %v4790
    %4921 = vst [vmem:[#allocation3 + $0x1070] sm:$0xff] %v4791
    %4922 = vst [vmem:[#allocation3 + $0x10b8] sm:$0xff] %v4792
    %4923 = vst [vmem:[#allocation3 + $0x1100] sm:$0xff] %v4793
    %4924 = vst [vmem:[#allocation3 + $0x1148] sm:$0xff] %v4794
    %4925 = vst [vmem:[#allocation3 + $0x1190] sm:$0xff] %v4795
    %4926 = vst [vmem:[#allocation3 + $0x11d8] sm:$0xff] %v4796
    %4927 = vst [vmem:[#allocation3 + $0x38] sm:$0xff] %v4731
    %4928 = vst [vmem:[#allocation3 + $0x80] sm:$0xff] %v4732
    %4929 = vst [vmem:[#allocation3 + $0xc8] sm:$0xff] %v4733
    %4930 = vst [vmem:[#allocation3 + $0x110] sm:$0xff] %v4734
    %4931 = vst [vmem:[#allocation3 + $0x158] sm:$0xff] %v4735
    %4932 = vst [vmem:[#allocation3 + $0x1a0] sm:$0xff] %v4736
    %4933 = vst [vmem:[#allocation3 + $0x1e8] sm:$0xff] %v4737
    %4934 = vst [vmem:[#allocation3 + $0x230] sm:$0xff] %v4738
    %4935 = vst [vmem:[#allocation3 + $0x278] sm:$0xff] %v4739
    %4936 = vst [vmem:[#allocation3 + $0x2c0] sm:$0xff] %v4740
    %4937 = vst [vmem:[#allocation3 + $0x308] sm:$0xff] %v4741
    %4938 = vst [vmem:[#allocation3 + $0x350] sm:$0xff] %v4742
    %4939 = vst [vmem:[#allocation3 + $0x398] sm:$0xff] %v4743
    %4940 = vst [vmem:[#allocation3 + $0x3e0] sm:$0xff] %v4744
    %4941 = vst [vmem:[#allocation3 + $0x428] sm:$0xff] %v4745
    %4942 = vst [vmem:[#allocation3 + $0x470] sm:$0xff] %v4746
    %4943 = vst [vmem:[#allocation3 + $0x4b8] sm:$0xff] %v4747
    %4944 = vst [vmem:[#allocation3 + $0x500] sm:$0xff] %v4748
    %4945 = vst [vmem:[#allocation3 + $0x548] sm:$0xff] %v4749
    %4946 = vst [vmem:[#allocation3 + $0x590] sm:$0xff] %v4750
    %4947 = vst [vmem:[#allocation3 + $0x5d8] sm:$0xff] %v4751
    %4948 = vst [vmem:[#allocation3 + $0x620] sm:$0xff] %v4752
    %4949 = vst [vmem:[#allocation3 + $0x668] sm:$0xff] %v4753
    %4950 = vst [vmem:[#allocation3 + $0x6b0] sm:$0xff] %v4754
    %4951 = vst [vmem:[#allocation3 + $0x6f8] sm:$0xff] %v4755
    %4952 = vst [vmem:[#allocation3 + $0x740] sm:$0xff] %v4756
    %4953 = vst [vmem:[#allocation3 + $0x788] sm:$0xff] %v4757
    %4954 = vst [vmem:[#allocation3 + $0x7d0] sm:$0xff] %v4758
    %4955 = vst [vmem:[#allocation3 + $0x818] sm:$0xff] %v4759
    %4956 = vst [vmem:[#allocation3 + $0x860] sm:$0xff] %v4760
    %4957 = vst [vmem:[#allocation3 + $0x8a8] sm:$0xff] %v4761
    %4958 = vst [vmem:[#allocation3 + $0x8f0] sm:$0xff] %v4762
    %4959 = vst [vmem:[#allocation3 + $0x938] sm:$0xff] %v4767
    %4960 = vst [vmem:[#allocation3 + $0x980] sm:$0xff] %v4768
    %4961 = vst [vmem:[#allocation3 + $0x9c8] sm:$0xff] %v4769
    %4962 = vst [vmem:[#allocation3 + $0xa10] sm:$0xff] %v4770
    %4963 = vst [vmem:[#allocation3 + $0xa58] sm:$0xff] %v4771
    %4964 = vst [vmem:[#allocation3 + $0xaa0] sm:$0xff] %v4772
    %4965 = vst [vmem:[#allocation3 + $0xae8] sm:$0xff] %v4773
    %4966 = vst [vmem:[#allocation3 + $0xb30] sm:$0xff] %v4774
    %4967 = vst [vmem:[#allocation3 + $0xb78] sm:$0xff] %v4775
    %4968 = vst [vmem:[#allocation3 + $0xbc0] sm:$0xff] %v4776
    %4969 = vst [vmem:[#allocation3 + $0xc08] sm:$0xff] %v4777
    %4970 = vst [vmem:[#allocation3 + $0xc50] sm:$0xff] %v4778
    %4971 = vst [vmem:[#allocation3 + $0xc98] sm:$0xff] %v4779
    %4972 = vst [vmem:[#allocation3 + $0xce0] sm:$0xff] %v4780
    %4973 = vst [vmem:[#allocation3 + $0xd28] sm:$0xff] %v4781
    %4974 = vst [vmem:[#allocation3 + $0xd70] sm:$0xff] %v4782
    %4975 = vst [vmem:[#allocation3 + $0xdb8] sm:$0xff] %v4783
    %4976 = vst [vmem:[#allocation3 + $0xe00] sm:$0xff] %v4784
    %4977 = vst [vmem:[#allocation3 + $0xe48] sm:$0xff] %v4785
    %4978 = vst [vmem:[#allocation3 + $0xe90] sm:$0xff] %v4786
    %4979 = vst [vmem:[#allocation3 + $0xed8] sm:$0xff] %v4787
    %4980 = vst [vmem:[#allocation3 + $0xf20] sm:$0xff] %v4788
    %4981 = vst [vmem:[#allocation3 + $0xf68] sm:$0xff] %v4789
    %4982 = vst [vmem:[#allocation3 + $0xfb0] sm:$0xff] %v4790
    %4983 = vst [vmem:[#allocation3 + $0xff8] sm:$0xff] %v4791
    %4984 = vst [vmem:[#allocation3 + $0x1040] sm:$0xff] %v4792
    %4985 = vst [vmem:[#allocation3 + $0x1088] sm:$0xff] %v4793
    %4986 = vst [vmem:[#allocation3 + $0x10d0] sm:$0xff] %v4794
    %4987 = vst [vmem:[#allocation3 + $0x1118] sm:$0xff] %v4795
    %4988 = vst [vmem:[#allocation3 + $0x1160] sm:$0xff] %v4796
    %4989 = vst [vmem:[#allocation3 + $0x11a8] sm:$0xff] %v4797
    %4990 = vst [vmem:[#allocation3 + $0x11f0] sm:$0xff] %v4798
    %v4991 = vld [vmem:[#allocation2 + $0x2] sm:$0xff]
    %v4992 = vld [vmem:[#allocation2 + $0xa] sm:$0xff]
    %v4993 = vld [vmem:[#allocation2 + $0x1a] sm:$0xff]
    %v4994 = vld [vmem:[#allocation2 + $0x22] sm:$0xff]
    %v4995 = vld [vmem:[#allocation2 + $0x32] sm:$0xff]
    %v4996 = vld [vmem:[#allocation2 + $0x3a] sm:$0xff]
    %v4997 = vld [vmem:[#allocation2 + $0x4a] sm:$0xff]
    %v4998 = vld [vmem:[#allocation2 + $0x52] sm:$0xff]
    %v4999 = vld [vmem:[#allocation2 + $0x62] sm:$0xff]
    %v5000 = vld [vmem:[#allocation2 + $0x6a] sm:$0xff]
    %v5001 = vld [vmem:[#allocation2 + $0x7a] sm:$0xff]
    %v5002 = vld [vmem:[#allocation2 + $0x82] sm:$0xff]
    %v5003 = vld [vmem:[#allocation2 + $0x92] sm:$0xff]
    %v5004 = vld [vmem:[#allocation2 + $0x9a] sm:$0xff]
    %v5005 = vld [vmem:[#allocation2 + $0xaa] sm:$0xff]
    %v5006 = vld [vmem:[#allocation2 + $0xb2] sm:$0xff]
    %v5007 = vld [vmem:[#allocation2 + $0xc2] sm:$0xff]
    %v5008 = vld [vmem:[#allocation2 + $0xca] sm:$0xff]
    %v5009 = vld [vmem:[#allocation2 + $0xda] sm:$0xff]
    %v5010 = vld [vmem:[#allocation2 + $0xe2] sm:$0xff]
    %v5011 = vld [vmem:[#allocation2 + $0xf2] sm:$0xff]
    %v5012 = vld [vmem:[#allocation2 + $0xfa] sm:$0xff]
    %v5013 = vld [vmem:[#allocation2 + $0x10a] sm:$0xff]
    %v5014 = vld [vmem:[#allocation2 + $0x112] sm:$0xff]
    %v5015 = vld [vmem:[#allocation2 + $0x122] sm:$0xff]
    %v5016 = vld [vmem:[#allocation2 + $0x12a] sm:$0xff]
    %v5017 = vld [vmem:[#allocation2 + $0x13a] sm:$0xff]
    %v5018 = vld [vmem:[#allocation2 + $0x142] sm:$0xff]
    %v5019 = vld [vmem:[#allocation2 + $0x152] sm:$0xff]
    %v5020 = vld [vmem:[#allocation2 + $0x15a] sm:$0xff]
    %v5021 = vld [vmem:[#allocation2 + $0x16a] sm:$0xff]
    %v5022 = vld [vmem:[#allocation2 + $0x172] sm:$0xff]
    %v5023 = vld [vmem:[#allocation2 + $0x182] sm:$0xff]
    %v5024 = vld [vmem:[#allocation2 + $0x18a] sm:$0xff]
    %v5025 = vld [vmem:[#allocation2 + $0x19a] sm:$0xff]
    %v5026 = vld [vmem:[#allocation2 + $0x1a2] sm:$0xff]
    %v5027 = vld [vmem:[#allocation2 + $0x1b2] sm:$0xff]
    %v5028 = vld [vmem:[#allocation2 + $0x1ba] sm:$0xff]
    %v5029 = vld [vmem:[#allocation2 + $0x1ca] sm:$0xff]
    %v5030 = vld [vmem:[#allocation2 + $0x1d2] sm:$0xff]
    %v5031 = vld [vmem:[#allocation2 + $0x1e2] sm:$0xff]
    %v5032 = vld [vmem:[#allocation2 + $0x1ea] sm:$0xff]
    %v5033 = vld [vmem:[#allocation2 + $0x1fa] sm:$0xff]
    %v5034 = vld [vmem:[#allocation2 + $0x202] sm:$0xff]
    %v5035 = vld [vmem:[#allocation2 + $0x212] sm:$0xff]
    %v5036 = vld [vmem:[#allocation2 + $0x21a] sm:$0xff]
    %v5037 = vld [vmem:[#allocation2 + $0x22a] sm:$0xff]
    %v5038 = vld [vmem:[#allocation2 + $0x232] sm:$0xff]
    %v5039 = vld [vmem:[#allocation2 + $0x242] sm:$0xff]
    %v5040 = vld [vmem:[#allocation2 + $0x24a] sm:$0xff]
    %v5041 = vld [vmem:[#allocation2 + $0x25a] sm:$0xff]
    %v5042 = vld [vmem:[#allocation2 + $0x262] sm:$0xff]
    %v5043 = vld [vmem:[#allocation2 + $0x272] sm:$0xff]
    %v5044 = vld [vmem:[#allocation2 + $0x27a] sm:$0xff]
    %v5045 = vld [vmem:[#allocation2 + $0x28a] sm:$0xff]
    %v5046 = vld [vmem:[#allocation2 + $0x292] sm:$0xff]
    %v5047 = vld [vmem:[#allocation2 + $0x2a2] sm:$0xff]
    %v5048 = vld [vmem:[#allocation2 + $0x2aa] sm:$0xff]
    %v5049 = vld [vmem:[#allocation2 + $0x2ba] sm:$0xff]
    %v5050 = vld [vmem:[#allocation2 + $0x2c2] sm:$0xff]
    %v5051 = vld [vmem:[#allocation2 + $0x2d2] sm:$0xff]
    %v5052 = vld [vmem:[#allocation2 + $0x2da] sm:$0xff]
    %v5053 = vld [vmem:[#allocation2 + $0x2ea] sm:$0xff]
    %v5054 = vld [vmem:[#allocation2 + $0x2f2] sm:$0xff]
    %v5055 = vld [vmem:[#allocation2 + $0x302] sm:$0xff]
    %v5056 = vld [vmem:[#allocation2 + $0x30a] sm:$0xff]
    %v5057 = vld [vmem:[#allocation2 + $0x31a] sm:$0xff]
    %v5058 = vld [vmem:[#allocation2 + $0x322] sm:$0xff]
    %v5059 = vld [vmem:[#allocation2 + $0x332] sm:$0xff]
    %v5060 = vld [vmem:[#allocation2 + $0x33a] sm:$0xff]
    %v5061 = vld [vmem:[#allocation2 + $0x34a] sm:$0xff]
    %v5062 = vld [vmem:[#allocation2 + $0x352] sm:$0xff]
    %5063 = vst [vmem:[#allocation3 + $0x10] sm:$0xff] %v4991
    %5064 = vst [vmem:[#allocation3 + $0x58] sm:$0xff] %v4992
    %5065 = vst [vmem:[#allocation3 + $0xa0] sm:$0xff] %v4993
    %5066 = vst [vmem:[#allocation3 + $0xe8] sm:$0xff] %v4994
    %5067 = vst [vmem:[#allocation3 + $0x130] sm:$0xff] %v4995
    %5068 = vst [vmem:[#allocation3 + $0x178] sm:$0xff] %v4996
    %5069 = vst [vmem:[#allocation3 + $0x1c0] sm:$0xff] %v4997
    %5070 = vst [vmem:[#allocation3 + $0x208] sm:$0xff] %v4998
    %5071 = vst [vmem:[#allocation3 + $0x250] sm:$0xff] %v4999
    %5072 = vst [vmem:[#allocation3 + $0x298] sm:$0xff] %v5000
    %5073 = vst [vmem:[#allocation3 + $0x2e0] sm:$0xff] %v5001
    %5074 = vst [vmem:[#allocation3 + $0x328] sm:$0xff] %v5002
    %5075 = vst [vmem:[#allocation3 + $0x370] sm:$0xff] %v5003
    %5076 = vst [vmem:[#allocation3 + $0x3b8] sm:$0xff] %v5004
    %5077 = vst [vmem:[#allocation3 + $0x400] sm:$0xff] %v5005
    %5078 = vst [vmem:[#allocation3 + $0x448] sm:$0xff] %v5006
    %5079 = vst [vmem:[#allocation3 + $0x490] sm:$0xff] %v5007
    %5080 = vst [vmem:[#allocation3 + $0x4d8] sm:$0xff] %v5008
    %5081 = vst [vmem:[#allocation3 + $0x520] sm:$0xff] %v5009
    %5082 = vst [vmem:[#allocation3 + $0x568] sm:$0xff] %v5010
    %5083 = vst [vmem:[#allocation3 + $0x5b0] sm:$0xff] %v5011
    %5084 = vst [vmem:[#allocation3 + $0x5f8] sm:$0xff] %v5012
    %5085 = vst [vmem:[#allocation3 + $0x640] sm:$0xff] %v5013
    %5086 = vst [vmem:[#allocation3 + $0x688] sm:$0xff] %v5014
    %5087 = vst [vmem:[#allocation3 + $0x6d0] sm:$0xff] %v5015
    %5088 = vst [vmem:[#allocation3 + $0x718] sm:$0xff] %v5016
    %5089 = vst [vmem:[#allocation3 + $0x760] sm:$0xff] %v5017
    %5090 = vst [vmem:[#allocation3 + $0x7a8] sm:$0xff] %v5018
    %5091 = vst [vmem:[#allocation3 + $0x7f0] sm:$0xff] %v5019
    %5092 = vst [vmem:[#allocation3 + $0x838] sm:$0xff] %v5020
    %5093 = vst [vmem:[#allocation3 + $0x880] sm:$0xff] %v5021
    %5094 = vst [vmem:[#allocation3 + $0x8c8] sm:$0xff] %v5022
    %5095 = vst [vmem:[#allocation3 + $0x910] sm:$0xff] %v5027
    %5096 = vst [vmem:[#allocation3 + $0x958] sm:$0xff] %v5028
    %5097 = vst [vmem:[#allocation3 + $0x9a0] sm:$0xff] %v5029
    %5098 = vst [vmem:[#allocation3 + $0x9e8] sm:$0xff] %v5030
    %5099 = vst [vmem:[#allocation3 + $0xa30] sm:$0xff] %v5031
    %5100 = vst [vmem:[#allocation3 + $0xa78] sm:$0xff] %v5032
    %5101 = vst [vmem:[#allocation3 + $0xac0] sm:$0xff] %v5033
    %5102 = vst [vmem:[#allocation3 + $0xb08] sm:$0xff] %v5034
    %5103 = vst [vmem:[#allocation3 + $0xb50] sm:$0xff] %v5035
    %5104 = vst [vmem:[#allocation3 + $0xb98] sm:$0xff] %v5036
    %5105 = vst [vmem:[#allocation3 + $0xbe0] sm:$0xff] %v5037
    %5106 = vst [vmem:[#allocation3 + $0xc28] sm:$0xff] %v5038
    %5107 = vst [vmem:[#allocation3 + $0xc70] sm:$0xff] %v5039
    %5108 = vst [vmem:[#allocation3 + $0xcb8] sm:$0xff] %v5040
    %5109 = vst [vmem:[#allocation3 + $0xd00] sm:$0xff] %v5041
    %5110 = vst [vmem:[#allocation3 + $0xd48] sm:$0xff] %v5042
    %5111 = vst [vmem:[#allocation3 + $0xd90] sm:$0xff] %v5043
    %5112 = vst [vmem:[#allocation3 + $0xdd8] sm:$0xff] %v5044
    %5113 = vst [vmem:[#allocation3 + $0xe20] sm:$0xff] %v5045
    %5114 = vst [vmem:[#allocation3 + $0xe68] sm:$0xff] %v5046
    %5115 = vst [vmem:[#allocation3 + $0xeb0] sm:$0xff] %v5047
    %5116 = vst [vmem:[#allocation3 + $0xef8] sm:$0xff] %v5048
    %5117 = vst [vmem:[#allocation3 + $0xf40] sm:$0xff] %v5049
    %5118 = vst [vmem:[#allocation3 + $0xf88] sm:$0xff] %v5050
    %5119 = vst [vmem:[#allocation3 + $0xfd0] sm:$0xff] %v5051
    %5120 = vst [vmem:[#allocation3 + $0x1018] sm:$0xff] %v5052
    %5121 = vst [vmem:[#allocation3 + $0x1060] sm:$0xff] %v5053
    %5122 = vst [vmem:[#allocation3 + $0x10a8] sm:$0xff] %v5054
    %5123 = vst [vmem:[#allocation3 + $0x10f0] sm:$0xff] %v5055
    %5124 = vst [vmem:[#allocation3 + $0x1138] sm:$0xff] %v5056
    %5125 = vst [vmem:[#allocation3 + $0x1180] sm:$0xff] %v5057
    %5126 = vst [vmem:[#allocation3 + $0x11c8] sm:$0xff] %v5058
    %5127 = vst [vmem:[#allocation3 + $0x28] sm:$0xff] %v4993
    %5128 = vst [vmem:[#allocation3 + $0x70] sm:$0xff] %v4994
    %5129 = vst [vmem:[#allocation3 + $0xb8] sm:$0xff] %v4995
    %5130 = vst [vmem:[#allocation3 + $0x100] sm:$0xff] %v4996
    %5131 = vst [vmem:[#allocation3 + $0x148] sm:$0xff] %v4997
    %5132 = vst [vmem:[#allocation3 + $0x190] sm:$0xff] %v4998
    %5133 = vst [vmem:[#allocation3 + $0x1d8] sm:$0xff] %v4999
    %5134 = vst [vmem:[#allocation3 + $0x220] sm:$0xff] %v5000
    %5135 = vst [vmem:[#allocation3 + $0x268] sm:$0xff] %v5001
    %5136 = vst [vmem:[#allocation3 + $0x2b0] sm:$0xff] %v5002
    %5137 = vst [vmem:[#allocation3 + $0x2f8] sm:$0xff] %v5003
    %5138 = vst [vmem:[#allocation3 + $0x340] sm:$0xff] %v5004
    %5139 = vst [vmem:[#allocation3 + $0x388] sm:$0xff] %v5005
    %5140 = vst [vmem:[#allocation3 + $0x3d0] sm:$0xff] %v5006
    %5141 = vst [vmem:[#allocation3 + $0x418] sm:$0xff] %v5007
    %5142 = vst [vmem:[#allocation3 + $0x460] sm:$0xff] %v5008
    %5143 = vst [vmem:[#allocation3 + $0x4a8] sm:$0xff] %v5009
    %5144 = vst [vmem:[#allocation3 + $0x4f0] sm:$0xff] %v5010
    %5145 = vst [vmem:[#allocation3 + $0x538] sm:$0xff] %v5011
    %5146 = vst [vmem:[#allocation3 + $0x580] sm:$0xff] %v5012
    %5147 = vst [vmem:[#allocation3 + $0x5c8] sm:$0xff] %v5013
    %5148 = vst [vmem:[#allocation3 + $0x610] sm:$0xff] %v5014
    %5149 = vst [vmem:[#allocation3 + $0x658] sm:$0xff] %v5015
    %5150 = vst [vmem:[#allocation3 + $0x6a0] sm:$0xff] %v5016
    %5151 = vst [vmem:[#allocation3 + $0x6e8] sm:$0xff] %v5017
    %5152 = vst [vmem:[#allocation3 + $0x730] sm:$0xff] %v5018
    %5153 = vst [vmem:[#allocation3 + $0x778] sm:$0xff] %v5019
    %5154 = vst [vmem:[#allocation3 + $0x7c0] sm:$0xff] %v5020
    %5155 = vst [vmem:[#allocation3 + $0x808] sm:$0xff] %v5021
    %5156 = vst [vmem:[#allocation3 + $0x850] sm:$0xff] %v5022
    %5157 = vst [vmem:[#allocation3 + $0x898] sm:$0xff] %v5023
    %5158 = vst [vmem:[#allocation3 + $0x8e0] sm:$0xff] %v5024
    %5159 = vst [vmem:[#allocation3 + $0x928] sm:$0xff] %v5029
    %5160 = vst [vmem:[#allocation3 + $0x970] sm:$0xff] %v5030
    %5161 = vst [vmem:[#allocation3 + $0x9b8] sm:$0xff] %v5031
    %5162 = vst [vmem:[#allocation3 + $0xa00] sm:$0xff] %v5032
    %5163 = vst [vmem:[#allocation3 + $0xa48] sm:$0xff] %v5033
    %5164 = vst [vmem:[#allocation3 + $0xa90] sm:$0xff] %v5034
    %5165 = vst [vmem:[#allocation3 + $0xad8] sm:$0xff] %v5035
    %5166 = vst [vmem:[#allocation3 + $0xb20] sm:$0xff] %v5036
    %5167 = vst [vmem:[#allocation3 + $0xb68] sm:$0xff] %v5037
    %5168 = vst [vmem:[#allocation3 + $0xbb0] sm:$0xff] %v5038
    %5169 = vst [vmem:[#allocation3 + $0xbf8] sm:$0xff] %v5039
    %5170 = vst [vmem:[#allocation3 + $0xc40] sm:$0xff] %v5040
    %5171 = vst [vmem:[#allocation3 + $0xc88] sm:$0xff] %v5041
    %5172 = vst [vmem:[#allocation3 + $0xcd0] sm:$0xff] %v5042
    %5173 = vst [vmem:[#allocation3 + $0xd18] sm:$0xff] %v5043
    %5174 = vst [vmem:[#allocation3 + $0xd60] sm:$0xff] %v5044
    %5175 = vst [vmem:[#allocation3 + $0xda8] sm:$0xff] %v5045
    %5176 = vst [vmem:[#allocation3 + $0xdf0] sm:$0xff] %v5046
    %5177 = vst [vmem:[#allocation3 + $0xe38] sm:$0xff] %v5047
    %5178 = vst [vmem:[#allocation3 + $0xe80] sm:$0xff] %v5048
    %5179 = vst [vmem:[#allocation3 + $0xec8] sm:$0xff] %v5049
    %5180 = vst [vmem:[#allocation3 + $0xf10] sm:$0xff] %v5050
    %5181 = vst [vmem:[#allocation3 + $0xf58] sm:$0xff] %v5051
    %5182 = vst [vmem:[#allocation3 + $0xfa0] sm:$0xff] %v5052
    %5183 = vst [vmem:[#allocation3 + $0xfe8] sm:$0xff] %v5053
    %5184 = vst [vmem:[#allocation3 + $0x1030] sm:$0xff] %v5054
    %5185 = vst [vmem:[#allocation3 + $0x1078] sm:$0xff] %v5055
    %5186 = vst [vmem:[#allocation3 + $0x10c0] sm:$0xff] %v5056
    %5187 = vst [vmem:[#allocation3 + $0x1108] sm:$0xff] %v5057
    %5188 = vst [vmem:[#allocation3 + $0x1150] sm:$0xff] %v5058
    %5189 = vst [vmem:[#allocation3 + $0x1198] sm:$0xff] %v5059
    %5190 = vst [vmem:[#allocation3 + $0x11e0] sm:$0xff] %v5060
    %5191 = vst [vmem:[#allocation3 + $0x40] sm:$0xff] %v4995
    %5192 = vst [vmem:[#allocation3 + $0x88] sm:$0xff] %v4996
    %5193 = vst [vmem:[#allocation3 + $0xd0] sm:$0xff] %v4997
    %5194 = vst [vmem:[#allocation3 + $0x118] sm:$0xff] %v4998
    %5195 = vst [vmem:[#allocation3 + $0x160] sm:$0xff] %v4999
    %5196 = vst [vmem:[#allocation3 + $0x1a8] sm:$0xff] %v5000
    %5197 = vst [vmem:[#allocation3 + $0x1f0] sm:$0xff] %v5001
    %5198 = vst [vmem:[#allocation3 + $0x238] sm:$0xff] %v5002
    %5199 = vst [vmem:[#allocation3 + $0x280] sm:$0xff] %v5003
    %5200 = vst [vmem:[#allocation3 + $0x2c8] sm:$0xff] %v5004
    %5201 = vst [vmem:[#allocation3 + $0x310] sm:$0xff] %v5005
    %5202 = vst [vmem:[#allocation3 + $0x358] sm:$0xff] %v5006
    %5203 = vst [vmem:[#allocation3 + $0x3a0] sm:$0xff] %v5007
    %5204 = vst [vmem:[#allocation3 + $0x3e8] sm:$0xff] %v5008
    %5205 = vst [vmem:[#allocation3 + $0x430] sm:$0xff] %v5009
    %5206 = vst [vmem:[#allocation3 + $0x478] sm:$0xff] %v5010
    %5207 = vst [vmem:[#allocation3 + $0x4c0] sm:$0xff] %v5011
    %5208 = vst [vmem:[#allocation3 + $0x508] sm:$0xff] %v5012
    %5209 = vst [vmem:[#allocation3 + $0x550] sm:$0xff] %v5013
    %5210 = vst [vmem:[#allocation3 + $0x598] sm:$0xff] %v5014
    %5211 = vst [vmem:[#allocation3 + $0x5e0] sm:$0xff] %v5015
    %5212 = vst [vmem:[#allocation3 + $0x628] sm:$0xff] %v5016
    %5213 = vst [vmem:[#allocation3 + $0x670] sm:$0xff] %v5017
    %5214 = vst [vmem:[#allocation3 + $0x6b8] sm:$0xff] %v5018
    %5215 = vst [vmem:[#allocation3 + $0x700] sm:$0xff] %v5019
    %5216 = vst [vmem:[#allocation3 + $0x748] sm:$0xff] %v5020
    %5217 = vst [vmem:[#allocation3 + $0x790] sm:$0xff] %v5021
    %5218 = vst [vmem:[#allocation3 + $0x7d8] sm:$0xff] %v5022
    %5219 = vst [vmem:[#allocation3 + $0x820] sm:$0xff] %v5023
    %5220 = vst [vmem:[#allocation3 + $0x868] sm:$0xff] %v5024
    %5221 = vst [vmem:[#allocation3 + $0x8b0] sm:$0xff] %v5025
    %5222 = vst [vmem:[#allocation3 + $0x8f8] sm:$0xff] %v5026
    %5223 = vst [vmem:[#allocation3 + $0x940] sm:$0xff] %v5031
    %5224 = vst [vmem:[#allocation3 + $0x988] sm:$0xff] %v5032
    %5225 = vst [vmem:[#allocation3 + $0x9d0] sm:$0xff] %v5033
    %5226 = vst [vmem:[#allocation3 + $0xa18] sm:$0xff] %v5034
    %5227 = vst [vmem:[#allocation3 + $0xa60] sm:$0xff] %v5035
    %5228 = vst [vmem:[#allocation3 + $0xaa8] sm:$0xff] %v5036
    %5229 = vst [vmem:[#allocation3 + $0xaf0] sm:$0xff] %v5037
    %5230 = vst [vmem:[#allocation3 + $0xb38] sm:$0xff] %v5038
    %5231 = vst [vmem:[#allocation3 + $0xb80] sm:$0xff] %v5039
    %5232 = vst [vmem:[#allocation3 + $0xbc8] sm:$0xff] %v5040
    %5233 = vst [vmem:[#allocation3 + $0xc10] sm:$0xff] %v5041
    %5234 = vst [vmem:[#allocation3 + $0xc58] sm:$0xff] %v5042
    %5235 = vst [vmem:[#allocation3 + $0xca0] sm:$0xff] %v5043
    %5236 = vst [vmem:[#allocation3 + $0xce8] sm:$0xff] %v5044
    %5237 = vst [vmem:[#allocation3 + $0xd30] sm:$0xff] %v5045
    %5238 = vst [vmem:[#allocation3 + $0xd78] sm:$0xff] %v5046
    %5239 = vst [vmem:[#allocation3 + $0xdc0] sm:$0xff] %v5047
    %5240 = vst [vmem:[#allocation3 + $0xe08] sm:$0xff] %v5048
    %5241 = vst [vmem:[#allocation3 + $0xe50] sm:$0xff] %v5049
    %5242 = vst [vmem:[#allocation3 + $0xe98] sm:$0xff] %v5050
    %5243 = vst [vmem:[#allocation3 + $0xee0] sm:$0xff] %v5051
    %5244 = vst [vmem:[#allocation3 + $0xf28] sm:$0xff] %v5052
    %5245 = vst [vmem:[#allocation3 + $0xf70] sm:$0xff] %v5053
    %5246 = vst [vmem:[#allocation3 + $0xfb8] sm:$0xff] %v5054
    %5247 = vst [vmem:[#allocation3 + $0x1000] sm:$0xff] %v5055
    %5248 = vst [vmem:[#allocation3 + $0x1048] sm:$0xff] %v5056
    %5249 = vst [vmem:[#allocation3 + $0x1090] sm:$0xff] %v5057
    %5250 = vst [vmem:[#allocation3 + $0x10d8] sm:$0xff] %v5058
    %5251 = vst [vmem:[#allocation3 + $0x1120] sm:$0xff] %v5059
    %5252 = vst [vmem:[#allocation3 + $0x1168] sm:$0xff] %v5060
    %5253 = vst [vmem:[#allocation3 + $0x11b0] sm:$0xff] %v5061
    %5254 = vst [vmem:[#allocation3 + $0x11f8] sm:$0xff] %v5062
    %v5255 = vld [vmem:[#allocation3] sm:$0xff]
    %v5256 = vld [vmem:[#allocation3 + $0x8] sm:$0xff]
    %v5257 = vld [vmem:[#allocation3 + $0x10] sm:$0xff]
    %v5258 = vld [vmem:[#allocation3 + $0x18] sm:$0xff]
    %v5259 = vld [vmem:[#allocation3 + $0x20] sm:$0xff]
    %v5260 = vld [vmem:[#allocation3 + $0x28] sm:$0xff]
    %v5261 = vld [vmem:[#allocation3 + $0x30] sm:$0xff]
    %v5262 = vld [vmem:[#allocation3 + $0x38] sm:$0xff]
    %v5263 = vld [vmem:[#allocation3 + $0x40] sm:$0xff]
    %v5264 = vld [vmem:[#allocation3 + $0x48] sm:$0xff]
    %v5265 = vld [vmem:[#allocation3 + $0x50] sm:$0xff]
    %v5266 = vld [vmem:[#allocation3 + $0x58] sm:$0xff]
    %v5267 = vld [vmem:[#allocation3 + $0x60] sm:$0xff]
    %v5268 = vld [vmem:[#allocation3 + $0x68] sm:$0xff]
    %v5269 = vld [vmem:[#allocation3 + $0x70] sm:$0xff]
    %v5270 = vld [vmem:[#allocation3 + $0x78] sm:$0xff]
    %v5271 = vld [vmem:[#allocation3 + $0x80] sm:$0xff]
    %v5272 = vld [vmem:[#allocation3 + $0x88] sm:$0xff]
    %v5273 = vld [vmem:[#allocation3 + $0x90] sm:$0xff]
    %v5274 = vld [vmem:[#allocation3 + $0x98] sm:$0xff]
    %v5275 = vld [vmem:[#allocation3 + $0xa0] sm:$0xff]
    %v5276 = vld [vmem:[#allocation3 + $0xa8] sm:$0xff]
    %v5277 = vld [vmem:[#allocation3 + $0xb0] sm:$0xff]
    %v5278 = vld [vmem:[#allocation3 + $0xb8] sm:$0xff]
    %v5279 = vld [vmem:[#allocation3 + $0xc0] sm:$0xff]
    %v5280 = vld [vmem:[#allocation3 + $0xc8] sm:$0xff]
    %v5281 = vld [vmem:[#allocation3 + $0xd0] sm:$0xff]
    %v5282 = vld [vmem:[#allocation3 + $0xd8] sm:$0xff]
    %v5283 = vld [vmem:[#allocation3 + $0xe0] sm:$0xff]
    %v5284 = vld [vmem:[#allocation3 + $0xe8] sm:$0xff]
    %v5285 = vld [vmem:[#allocation3 + $0xf0] sm:$0xff]
    %v5286 = vld [vmem:[#allocation3 + $0xf8] sm:$0xff]
    %v5287 = vld [vmem:[#allocation3 + $0x100] sm:$0xff]
    %v5288 = vld [vmem:[#allocation3 + $0x108] sm:$0xff]
    %v5289 = vld [vmem:[#allocation3 + $0x110] sm:$0xff]
    %v5290 = vld [vmem:[#allocation3 + $0x118] sm:$0xff]
    %v5291 = vld [vmem:[#allocation3 + $0x120] sm:$0xff]
    %v5292 = vld [vmem:[#allocation3 + $0x128] sm:$0xff]
    %v5293 = vld [vmem:[#allocation3 + $0x130] sm:$0xff]
    %v5294 = vld [vmem:[#allocation3 + $0x138] sm:$0xff]
    %v5295 = vld [vmem:[#allocation3 + $0x140] sm:$0xff]
    %v5296 = vld [vmem:[#allocation3 + $0x148] sm:$0xff]
    %v5297 = vld [vmem:[#allocation3 + $0x150] sm:$0xff]
    %v5298 = vld [vmem:[#allocation3 + $0x158] sm:$0xff]
    %v5299 = vld [vmem:[#allocation3 + $0x160] sm:$0xff]
    %v5300 = vld [vmem:[#allocation3 + $0x168] sm:$0xff]
    %v5301 = vld [vmem:[#allocation3 + $0x170] sm:$0xff]
    %v5302 = vld [vmem:[#allocation3 + $0x178] sm:$0xff]
    %v5303 = vld [vmem:[#allocation3 + $0x180] sm:$0xff]
    %v5304 = vld [vmem:[#allocation3 + $0x188] sm:$0xff]
    %v5305 = vld [vmem:[#allocation3 + $0x190] sm:$0xff]
    %v5306 = vld [vmem:[#allocation3 + $0x198] sm:$0xff]
    %v5307 = vld [vmem:[#allocation3 + $0x1a0] sm:$0xff]
    %v5308 = vld [vmem:[#allocation3 + $0x1a8] sm:$0xff]
    %v5309 = vld [vmem:[#allocation3 + $0x1b0] sm:$0xff]
    %v5310 = vld [vmem:[#allocation3 + $0x1b8] sm:$0xff]
    %v5311 = vld [vmem:[#allocation3 + $0x1c0] sm:$0xff]
    %v5312 = vld [vmem:[#allocation3 + $0x1c8] sm:$0xff]
    %v5313 = vld [vmem:[#allocation3 + $0x1d0] sm:$0xff]
    %v5314 = vld [vmem:[#allocation3 + $0x1d8] sm:$0xff]
    %v5315 = vld [vmem:[#allocation3 + $0x1e0] sm:$0xff]
    %v5316 = vld [vmem:[#allocation3 + $0x1e8] sm:$0xff]
    %v5317 = vld [vmem:[#allocation3 + $0x1f0] sm:$0xff]
    %v5318 = vld [vmem:[#allocation3 + $0x1f8] sm:$0xff]
    %v5319 = vld [vmem:[#allocation3 + $0x200] sm:$0xff]
    %v5320 = vld [vmem:[#allocation3 + $0x208] sm:$0xff]
    %v5321 = vld [vmem:[#allocation3 + $0x210] sm:$0xff]
    %v5322 = vld [vmem:[#allocation3 + $0x218] sm:$0xff]
    %v5323 = vld [vmem:[#allocation3 + $0x220] sm:$0xff]
    %v5324 = vld [vmem:[#allocation3 + $0x228] sm:$0xff]
    %v5325 = vld [vmem:[#allocation3 + $0x230] sm:$0xff]
    %v5326 = vld [vmem:[#allocation3 + $0x238] sm:$0xff]
    %v5327 = vld [vmem:[#allocation3 + $0x240] sm:$0xff]
    %v5328 = vld [vmem:[#allocation3 + $0x248] sm:$0xff]
    %v5329 = vld [vmem:[#allocation3 + $0x250] sm:$0xff]
    %v5330 = vld [vmem:[#allocation3 + $0x258] sm:$0xff]
    %v5331 = vld [vmem:[#allocation3 + $0x260] sm:$0xff]
    %v5332 = vld [vmem:[#allocation3 + $0x268] sm:$0xff]
    %v5333 = vld [vmem:[#allocation3 + $0x270] sm:$0xff]
    %v5334 = vld [vmem:[#allocation3 + $0x278] sm:$0xff]
    %v5335 = vld [vmem:[#allocation3 + $0x280] sm:$0xff]
    %v5336 = vld [vmem:[#allocation3 + $0x288] sm:$0xff]
    %v5337 = vld [vmem:[#allocation3 + $0x290] sm:$0xff]
    %v5338 = vld [vmem:[#allocation3 + $0x298] sm:$0xff]
    %v5339 = vld [vmem:[#allocation3 + $0x2a0] sm:$0xff]
    %v5340 = vld [vmem:[#allocation3 + $0x2a8] sm:$0xff]
    %v5341 = vld [vmem:[#allocation3 + $0x2b0] sm:$0xff]
    %v5342 = vld [vmem:[#allocation3 + $0x2b8] sm:$0xff]
    %v5343 = vld [vmem:[#allocation3 + $0x2c0] sm:$0xff]
    %v5344 = vld [vmem:[#allocation3 + $0x2c8] sm:$0xff]
    %v5345 = vld [vmem:[#allocation3 + $0x2d0] sm:$0xff]
    %v5346 = vld [vmem:[#allocation3 + $0x2d8] sm:$0xff]
    %v5347 = vld [vmem:[#allocation3 + $0x2e0] sm:$0xff]
    %v5348 = vld [vmem:[#allocation3 + $0x2e8] sm:$0xff]
    %v5349 = vld [vmem:[#allocation3 + $0x2f0] sm:$0xff]
    %v5350 = vld [vmem:[#allocation3 + $0x2f8] sm:$0xff]
    %v5351 = vld [vmem:[#allocation3 + $0x300] sm:$0xff]
    %v5352 = vld [vmem:[#allocation3 + $0x308] sm:$0xff]
    %v5353 = vld [vmem:[#allocation3 + $0x310] sm:$0xff]
    %v5354 = vld [vmem:[#allocation3 + $0x318] sm:$0xff]
    %v5355 = vld [vmem:[#allocation3 + $0x320] sm:$0xff]
    %v5356 = vld [vmem:[#allocation3 + $0x328] sm:$0xff]
    %v5357 = vld [vmem:[#allocation3 + $0x330] sm:$0xff]
    %v5358 = vld [vmem:[#allocation3 + $0x338] sm:$0xff]
    %v5359 = vld [vmem:[#allocation3 + $0x340] sm:$0xff]
    %v5360 = vld [vmem:[#allocation3 + $0x348] sm:$0xff]
    %v5361 = vld [vmem:[#allocation3 + $0x350] sm:$0xff]
    %v5362 = vld [vmem:[#allocation3 + $0x358] sm:$0xff]
    %v5363 = vld [vmem:[#allocation3 + $0x360] sm:$0xff]
    %v5364 = vld [vmem:[#allocation3 + $0x368] sm:$0xff]
    %v5365 = vld [vmem:[#allocation3 + $0x370] sm:$0xff]
    %v5366 = vld [vmem:[#allocation3 + $0x378] sm:$0xff]
    %v5367 = vld [vmem:[#allocation3 + $0x380] sm:$0xff]
    %v5368 = vld [vmem:[#allocation3 + $0x388] sm:$0xff]
    %v5369 = vld [vmem:[#allocation3 + $0x390] sm:$0xff]
    %v5370 = vld [vmem:[#allocation3 + $0x398] sm:$0xff]
    %v5371 = vld [vmem:[#allocation3 + $0x3a0] sm:$0xff]
    %v5372 = vld [vmem:[#allocation3 + $0x3a8] sm:$0xff]
    %v5373 = vld [vmem:[#allocation3 + $0x3b0] sm:$0xff]
    %v5374 = vld [vmem:[#allocation3 + $0x3b8] sm:$0xff]
    %v5375 = vld [vmem:[#allocation3 + $0x3c0] sm:$0xff]
    %v5376 = vld [vmem:[#allocation3 + $0x3c8] sm:$0xff]
    %v5377 = vld [vmem:[#allocation3 + $0x3d0] sm:$0xff]
    %v5378 = vld [vmem:[#allocation3 + $0x3d8] sm:$0xff]
    %v5379 = vld [vmem:[#allocation3 + $0x3e0] sm:$0xff]
    %v5380 = vld [vmem:[#allocation3 + $0x3e8] sm:$0xff]
    %v5381 = vld [vmem:[#allocation3 + $0x3f0] sm:$0xff]
    %v5382 = vld [vmem:[#allocation3 + $0x3f8] sm:$0xff]
    %v5383 = vld [vmem:[#allocation3 + $0x400] sm:$0xff]
    %v5384 = vld [vmem:[#allocation3 + $0x408] sm:$0xff]
    %v5385 = vld [vmem:[#allocation3 + $0x410] sm:$0xff]
    %v5386 = vld [vmem:[#allocation3 + $0x418] sm:$0xff]
    %v5387 = vld [vmem:[#allocation3 + $0x420] sm:$0xff]
    %v5388 = vld [vmem:[#allocation3 + $0x428] sm:$0xff]
    %v5389 = vld [vmem:[#allocation3 + $0x430] sm:$0xff]
    %v5390 = vld [vmem:[#allocation3 + $0x438] sm:$0xff]
    %v5391 = vld [vmem:[#allocation3 + $0x440] sm:$0xff]
    %v5392 = vld [vmem:[#allocation3 + $0x448] sm:$0xff]
    %v5393 = vld [vmem:[#allocation3 + $0x450] sm:$0xff]
    %v5394 = vld [vmem:[#allocation3 + $0x458] sm:$0xff]
    %v5395 = vld [vmem:[#allocation3 + $0x460] sm:$0xff]
    %v5396 = vld [vmem:[#allocation3 + $0x468] sm:$0xff]
    %v5397 = vld [vmem:[#allocation3 + $0x470] sm:$0xff]
    %v5398 = vld [vmem:[#allocation3 + $0x478] sm:$0xff]
    %v5399 = vld [vmem:[#allocation3 + $0x480] sm:$0xff]
    %v5400 = vld [vmem:[#allocation3 + $0x488] sm:$0xff]
    %v5401 = vld [vmem:[#allocation3 + $0x490] sm:$0xff]
    %v5402 = vld [vmem:[#allocation3 + $0x498] sm:$0xff]
    %v5403 = vld [vmem:[#allocation3 + $0x4a0] sm:$0xff]
    %v5404 = vld [vmem:[#allocation3 + $0x4a8] sm:$0xff]
    %v5405 = vld [vmem:[#allocation3 + $0x4b0] sm:$0xff]
    %v5406 = vld [vmem:[#allocation3 + $0x4b8] sm:$0xff]
    %v5407 = vld [vmem:[#allocation3 + $0x4c0] sm:$0xff]
    %v5408 = vld [vmem:[#allocation3 + $0x4c8] sm:$0xff]
    %v5409 = vld [vmem:[#allocation3 + $0x4d0] sm:$0xff]
    %v5410 = vld [vmem:[#allocation3 + $0x4d8] sm:$0xff]
    %v5411 = vld [vmem:[#allocation3 + $0x4e0] sm:$0xff]
    %v5412 = vld [vmem:[#allocation3 + $0x4e8] sm:$0xff]
    %v5413 = vld [vmem:[#allocation3 + $0x4f0] sm:$0xff]
    %v5414 = vld [vmem:[#allocation3 + $0x4f8] sm:$0xff]
    %v5415 = vld [vmem:[#allocation3 + $0x500] sm:$0xff]
    %v5416 = vld [vmem:[#allocation3 + $0x508] sm:$0xff]
    %v5417 = vld [vmem:[#allocation3 + $0x510] sm:$0xff]
    %v5418 = vld [vmem:[#allocation3 + $0x518] sm:$0xff]
    %v5419 = vld [vmem:[#allocation3 + $0x520] sm:$0xff]
    %v5420 = vld [vmem:[#allocation3 + $0x528] sm:$0xff]
    %v5421 = vld [vmem:[#allocation3 + $0x530] sm:$0xff]
    %v5422 = vld [vmem:[#allocation3 + $0x538] sm:$0xff]
    %v5423 = vld [vmem:[#allocation3 + $0x540] sm:$0xff]
    %v5424 = vld [vmem:[#allocation3 + $0x548] sm:$0xff]
    %v5425 = vld [vmem:[#allocation3 + $0x550] sm:$0xff]
    %v5426 = vld [vmem:[#allocation3 + $0x558] sm:$0xff]
    %v5427 = vld [vmem:[#allocation3 + $0x560] sm:$0xff]
    %v5428 = vld [vmem:[#allocation3 + $0x568] sm:$0xff]
    %v5429 = vld [vmem:[#allocation3 + $0x570] sm:$0xff]
    %v5430 = vld [vmem:[#allocation3 + $0x578] sm:$0xff]
    %v5431 = vld [vmem:[#allocation3 + $0x580] sm:$0xff]
    %v5432 = vld [vmem:[#allocation3 + $0x588] sm:$0xff]
    %v5433 = vld [vmem:[#allocation3 + $0x590] sm:$0xff]
    %v5434 = vld [vmem:[#allocation3 + $0x598] sm:$0xff]
    %v5435 = vld [vmem:[#allocation3 + $0x5a0] sm:$0xff]
    %v5436 = vld [vmem:[#allocation3 + $0x5a8] sm:$0xff]
    %v5437 = vld [vmem:[#allocation3 + $0x5b0] sm:$0xff]
    %v5438 = vld [vmem:[#allocation3 + $0x5b8] sm:$0xff]
    %v5439 = vld [vmem:[#allocation3 + $0x5c0] sm:$0xff]
    %v5440 = vld [vmem:[#allocation3 + $0x5c8] sm:$0xff]
    %v5441 = vld [vmem:[#allocation3 + $0x5d0] sm:$0xff]
    %v5442 = vld [vmem:[#allocation3 + $0x5d8] sm:$0xff]
    %v5443 = vld [vmem:[#allocation3 + $0x5e0] sm:$0xff]
    %v5444 = vld [vmem:[#allocation3 + $0x5e8] sm:$0xff]
    %v5445 = vld [vmem:[#allocation3 + $0x5f0] sm:$0xff]
    %v5446 = vld [vmem:[#allocation3 + $0x5f8] sm:$0xff]
    %v5447 = vld [vmem:[#allocation3 + $0x600] sm:$0xff]
    %v5448 = vld [vmem:[#allocation3 + $0x608] sm:$0xff]
    %v5449 = vld [vmem:[#allocation3 + $0x610] sm:$0xff]
    %v5450 = vld [vmem:[#allocation3 + $0x618] sm:$0xff]
    %v5451 = vld [vmem:[#allocation3 + $0x620] sm:$0xff]
    %v5452 = vld [vmem:[#allocation3 + $0x628] sm:$0xff]
    %v5453 = vld [vmem:[#allocation3 + $0x630] sm:$0xff]
    %v5454 = vld [vmem:[#allocation3 + $0x638] sm:$0xff]
    %v5455 = vld [vmem:[#allocation3 + $0x640] sm:$0xff]
    %v5456 = vld [vmem:[#allocation3 + $0x648] sm:$0xff]
    %v5457 = vld [vmem:[#allocation3 + $0x650] sm:$0xff]
    %v5458 = vld [vmem:[#allocation3 + $0x658] sm:$0xff]
    %v5459 = vld [vmem:[#allocation3 + $0x660] sm:$0xff]
    %v5460 = vld [vmem:[#allocation3 + $0x668] sm:$0xff]
    %v5461 = vld [vmem:[#allocation3 + $0x670] sm:$0xff]
    %v5462 = vld [vmem:[#allocation3 + $0x678] sm:$0xff]
    %v5463 = vld [vmem:[#allocation3 + $0x680] sm:$0xff]
    %v5464 = vld [vmem:[#allocation3 + $0x688] sm:$0xff]
    %v5465 = vld [vmem:[#allocation3 + $0x690] sm:$0xff]
    %v5466 = vld [vmem:[#allocation3 + $0x698] sm:$0xff]
    %v5467 = vld [vmem:[#allocation3 + $0x6a0] sm:$0xff]
    %v5468 = vld [vmem:[#allocation3 + $0x6a8] sm:$0xff]
    %v5469 = vld [vmem:[#allocation3 + $0x6b0] sm:$0xff]
    %v5470 = vld [vmem:[#allocation3 + $0x6b8] sm:$0xff]
    %v5471 = vld [vmem:[#allocation3 + $0x6c0] sm:$0xff]
    %v5472 = vld [vmem:[#allocation3 + $0x6c8] sm:$0xff]
    %v5473 = vld [vmem:[#allocation3 + $0x6d0] sm:$0xff]
    %v5474 = vld [vmem:[#allocation3 + $0x6d8] sm:$0xff]
    %v5475 = vld [vmem:[#allocation3 + $0x6e0] sm:$0xff]
    %v5476 = vld [vmem:[#allocation3 + $0x6e8] sm:$0xff]
    %v5477 = vld [vmem:[#allocation3 + $0x6f0] sm:$0xff]
    %v5478 = vld [vmem:[#allocation3 + $0x6f8] sm:$0xff]
    %v5479 = vld [vmem:[#allocation3 + $0x700] sm:$0xff]
    %v5480 = vld [vmem:[#allocation3 + $0x708] sm:$0xff]
    %v5481 = vld [vmem:[#allocation3 + $0x710] sm:$0xff]
    %v5482 = vld [vmem:[#allocation3 + $0x718] sm:$0xff]
    %v5483 = vld [vmem:[#allocation3 + $0x720] sm:$0xff]
    %v5484 = vld [vmem:[#allocation3 + $0x728] sm:$0xff]
    %v5485 = vld [vmem:[#allocation3 + $0x730] sm:$0xff]
    %v5486 = vld [vmem:[#allocation3 + $0x738] sm:$0xff]
    %v5487 = vld [vmem:[#allocation3 + $0x740] sm:$0xff]
    %v5488 = vld [vmem:[#allocation3 + $0x748] sm:$0xff]
    %v5489 = vld [vmem:[#allocation3 + $0x750] sm:$0xff]
    %v5490 = vld [vmem:[#allocation3 + $0x758] sm:$0xff]
    %v5491 = vld [vmem:[#allocation3 + $0x760] sm:$0xff]
    %v5492 = vld [vmem:[#allocation3 + $0x768] sm:$0xff]
    %v5493 = vld [vmem:[#allocation3 + $0x770] sm:$0xff]
    %v5494 = vld [vmem:[#allocation3 + $0x778] sm:$0xff]
    %v5495 = vld [vmem:[#allocation3 + $0x780] sm:$0xff]
    %v5496 = vld [vmem:[#allocation3 + $0x788] sm:$0xff]
    %v5497 = vld [vmem:[#allocation3 + $0x790] sm:$0xff]
    %v5498 = vld [vmem:[#allocation3 + $0x798] sm:$0xff]
    %v5499 = vld [vmem:[#allocation3 + $0x7a0] sm:$0xff]
    %v5500 = vld [vmem:[#allocation3 + $0x7a8] sm:$0xff]
    %v5501 = vld [vmem:[#allocation3 + $0x7b0] sm:$0xff]
    %v5502 = vld [vmem:[#allocation3 + $0x7b8] sm:$0xff]
    %v5503 = vld [vmem:[#allocation3 + $0x7c0] sm:$0xff]
    %v5504 = vld [vmem:[#allocation3 + $0x7c8] sm:$0xff]
    %v5505 = vld [vmem:[#allocation3 + $0x7d0] sm:$0xff]
    %v5506 = vld [vmem:[#allocation3 + $0x7d8] sm:$0xff]
    %v5507 = vld [vmem:[#allocation3 + $0x7e0] sm:$0xff]
    %v5508 = vld [vmem:[#allocation3 + $0x7e8] sm:$0xff]
    %v5509 = vld [vmem:[#allocation3 + $0x7f0] sm:$0xff]
    %v5510 = vld [vmem:[#allocation3 + $0x7f8] sm:$0xff]
    %v5511 = vld [vmem:[#allocation3 + $0x800] sm:$0xff]
    %v5512 = vld [vmem:[#allocation3 + $0x808] sm:$0xff]
    %v5513 = vld [vmem:[#allocation3 + $0x810] sm:$0xff]
    %v5514 = vld [vmem:[#allocation3 + $0x818] sm:$0xff]
    %v5515 = vld [vmem:[#allocation3 + $0x820] sm:$0xff]
    %v5516 = vld [vmem:[#allocation3 + $0x828] sm:$0xff]
    %v5517 = vld [vmem:[#allocation3 + $0x830] sm:$0xff]
    %v5518 = vld [vmem:[#allocation3 + $0x838] sm:$0xff]
    %v5519 = vld [vmem:[#allocation3 + $0x840] sm:$0xff]
    %v5520 = vld [vmem:[#allocation3 + $0x848] sm:$0xff]
    %v5521 = vld [vmem:[#allocation3 + $0x850] sm:$0xff]
    %v5522 = vld [vmem:[#allocation3 + $0x858] sm:$0xff]
    %v5523 = vld [vmem:[#allocation3 + $0x860] sm:$0xff]
    %v5524 = vld [vmem:[#allocation3 + $0x868] sm:$0xff]
    %v5525 = vld [vmem:[#allocation3 + $0x870] sm:$0xff]
    %v5526 = vld [vmem:[#allocation3 + $0x878] sm:$0xff]
    %v5527 = vld [vmem:[#allocation3 + $0x880] sm:$0xff]
    %v5528 = vld [vmem:[#allocation3 + $0x888] sm:$0xff]
    %v5529 = vld [vmem:[#allocation3 + $0x890] sm:$0xff]
    %v5530 = vld [vmem:[#allocation3 + $0x898] sm:$0xff]
    %v5531 = vld [vmem:[#allocation3 + $0x8a0] sm:$0xff]
    %v5532 = vld [vmem:[#allocation3 + $0x8a8] sm:$0xff]
    %v5533 = vld [vmem:[#allocation3 + $0x8b0] sm:$0xff]
    %v5534 = vld [vmem:[#allocation3 + $0x8b8] sm:$0xff]
    %v5535 = vld [vmem:[#allocation3 + $0x8c0] sm:$0xff]
    %v5536 = vld [vmem:[#allocation3 + $0x8c8] sm:$0xff]
    %v5537 = vld [vmem:[#allocation3 + $0x8d0] sm:$0xff]
    %v5538 = vld [vmem:[#allocation3 + $0x8d8] sm:$0xff]
    %v5539 = vld [vmem:[#allocation3 + $0x8e0] sm:$0xff]
    %v5540 = vld [vmem:[#allocation3 + $0x8e8] sm:$0xff]
    %v5541 = vld [vmem:[#allocation3 + $0x8f0] sm:$0xff]
    %v5542 = vld [vmem:[#allocation3 + $0x8f8] sm:$0xff]
    %v5543 = vld [vmem:[#allocation3 + $0x900] sm:$0xff]
    %v5544 = vld [vmem:[#allocation3 + $0x908] sm:$0xff]
    %v5545 = vld [vmem:[#allocation3 + $0x910] sm:$0xff]
    %v5546 = vld [vmem:[#allocation3 + $0x918] sm:$0xff]
    %v5547 = vld [vmem:[#allocation3 + $0x920] sm:$0xff]
    %v5548 = vld [vmem:[#allocation3 + $0x928] sm:$0xff]
    %v5549 = vld [vmem:[#allocation3 + $0x930] sm:$0xff]
    %v5550 = vld [vmem:[#allocation3 + $0x938] sm:$0xff]
    %v5551 = vld [vmem:[#allocation3 + $0x940] sm:$0xff]
    %v5552 = vld [vmem:[#allocation3 + $0x948] sm:$0xff]
    %v5553 = vld [vmem:[#allocation3 + $0x950] sm:$0xff]
    %v5554 = vld [vmem:[#allocation3 + $0x958] sm:$0xff]
    %v5555 = vld [vmem:[#allocation3 + $0x960] sm:$0xff]
    %v5556 = vld [vmem:[#allocation3 + $0x968] sm:$0xff]
    %v5557 = vld [vmem:[#allocation3 + $0x970] sm:$0xff]
    %v5558 = vld [vmem:[#allocation3 + $0x978] sm:$0xff]
    %v5559 = vld [vmem:[#allocation3 + $0x980] sm:$0xff]
    %v5560 = vld [vmem:[#allocation3 + $0x988] sm:$0xff]
    %v5561 = vld [vmem:[#allocation3 + $0x990] sm:$0xff]
    %v5562 = vld [vmem:[#allocation3 + $0x998] sm:$0xff]
    %v5563 = vld [vmem:[#allocation3 + $0x9a0] sm:$0xff]
    %v5564 = vld [vmem:[#allocation3 + $0x9a8] sm:$0xff]
    %v5565 = vld [vmem:[#allocation3 + $0x9b0] sm:$0xff]
    %v5566 = vld [vmem:[#allocation3 + $0x9b8] sm:$0xff]
    %v5567 = vld [vmem:[#allocation3 + $0x9c0] sm:$0xff]
    %v5568 = vld [vmem:[#allocation3 + $0x9c8] sm:$0xff]
    %v5569 = vld [vmem:[#allocation3 + $0x9d0] sm:$0xff]
    %v5570 = vld [vmem:[#allocation3 + $0x9d8] sm:$0xff]
    %v5571 = vld [vmem:[#allocation3 + $0x9e0] sm:$0xff]
    %v5572 = vld [vmem:[#allocation3 + $0x9e8] sm:$0xff]
    %v5573 = vld [vmem:[#allocation3 + $0x9f0] sm:$0xff]
    %v5574 = vld [vmem:[#allocation3 + $0x9f8] sm:$0xff]
    %v5575 = vld [vmem:[#allocation3 + $0xa00] sm:$0xff]
    %v5576 = vld [vmem:[#allocation3 + $0xa08] sm:$0xff]
    %v5577 = vld [vmem:[#allocation3 + $0xa10] sm:$0xff]
    %v5578 = vld [vmem:[#allocation3 + $0xa18] sm:$0xff]
    %v5579 = vld [vmem:[#allocation3 + $0xa20] sm:$0xff]
    %v5580 = vld [vmem:[#allocation3 + $0xa28] sm:$0xff]
    %v5581 = vld [vmem:[#allocation3 + $0xa30] sm:$0xff]
    %v5582 = vld [vmem:[#allocation3 + $0xa38] sm:$0xff]
    %v5583 = vld [vmem:[#allocation3 + $0xa40] sm:$0xff]
    %v5584 = vld [vmem:[#allocation3 + $0xa48] sm:$0xff]
    %v5585 = vld [vmem:[#allocation3 + $0xa50] sm:$0xff]
    %v5586 = vld [vmem:[#allocation3 + $0xa58] sm:$0xff]
    %v5587 = vld [vmem:[#allocation3 + $0xa60] sm:$0xff]
    %v5588 = vld [vmem:[#allocation3 + $0xa68] sm:$0xff]
    %v5589 = vld [vmem:[#allocation3 + $0xa70] sm:$0xff]
    %v5590 = vld [vmem:[#allocation3 + $0xa78] sm:$0xff]
    %v5591 = vld [vmem:[#allocation3 + $0xa80] sm:$0xff]
    %v5592 = vld [vmem:[#allocation3 + $0xa88] sm:$0xff]
    %v5593 = vld [vmem:[#allocation3 + $0xa90] sm:$0xff]
    %v5594 = vld [vmem:[#allocation3 + $0xa98] sm:$0xff]
    %v5595 = vld [vmem:[#allocation3 + $0xaa0] sm:$0xff]
    %v5596 = vld [vmem:[#allocation3 + $0xaa8] sm:$0xff]
    %v5597 = vld [vmem:[#allocation3 + $0xab0] sm:$0xff]
    %v5598 = vld [vmem:[#allocation3 + $0xab8] sm:$0xff]
    %v5599 = vld [vmem:[#allocation3 + $0xac0] sm:$0xff]
    %v5600 = vld [vmem:[#allocation3 + $0xac8] sm:$0xff]
    %v5601 = vld [vmem:[#allocation3 + $0xad0] sm:$0xff]
    %v5602 = vld [vmem:[#allocation3 + $0xad8] sm:$0xff]
    %v5603 = vld [vmem:[#allocation3 + $0xae0] sm:$0xff]
    %v5604 = vld [vmem:[#allocation3 + $0xae8] sm:$0xff]
    %v5605 = vld [vmem:[#allocation3 + $0xaf0] sm:$0xff]
    %v5606 = vld [vmem:[#allocation3 + $0xaf8] sm:$0xff]
    %v5607 = vld [vmem:[#allocation3 + $0xb00] sm:$0xff]
    %v5608 = vld [vmem:[#allocation3 + $0xb08] sm:$0xff]
    %v5609 = vld [vmem:[#allocation3 + $0xb10] sm:$0xff]
    %v5610 = vld [vmem:[#allocation3 + $0xb18] sm:$0xff]
    %v5611 = vld [vmem:[#allocation3 + $0xb20] sm:$0xff]
    %v5612 = vld [vmem:[#allocation3 + $0xb28] sm:$0xff]
    %v5613 = vld [vmem:[#allocation3 + $0xb30] sm:$0xff]
    %v5614 = vld [vmem:[#allocation3 + $0xb38] sm:$0xff]
    %v5615 = vld [vmem:[#allocation3 + $0xb40] sm:$0xff]
    %v5616 = vld [vmem:[#allocation3 + $0xb48] sm:$0xff]
    %v5617 = vld [vmem:[#allocation3 + $0xb50] sm:$0xff]
    %v5618 = vld [vmem:[#allocation3 + $0xb58] sm:$0xff]
    %v5619 = vld [vmem:[#allocation3 + $0xb60] sm:$0xff]
    %v5620 = vld [vmem:[#allocation3 + $0xb68] sm:$0xff]
    %v5621 = vld [vmem:[#allocation3 + $0xb70] sm:$0xff]
    %v5622 = vld [vmem:[#allocation3 + $0xb78] sm:$0xff]
    %v5623 = vld [vmem:[#allocation3 + $0xb80] sm:$0xff]
    %v5624 = vld [vmem:[#allocation3 + $0xb88] sm:$0xff]
    %v5625 = vld [vmem:[#allocation3 + $0xb90] sm:$0xff]
    %v5626 = vld [vmem:[#allocation3 + $0xb98] sm:$0xff]
    %v5627 = vld [vmem:[#allocation3 + $0xba0] sm:$0xff]
    %v5628 = vld [vmem:[#allocation3 + $0xba8] sm:$0xff]
    %v5629 = vld [vmem:[#allocation3 + $0xbb0] sm:$0xff]
    %v5630 = vld [vmem:[#allocation3 + $0xbb8] sm:$0xff]
    %v5631 = vld [vmem:[#allocation3 + $0xbc0] sm:$0xff]
    %v5632 = vld [vmem:[#allocation3 + $0xbc8] sm:$0xff]
    %v5633 = vld [vmem:[#allocation3 + $0xbd0] sm:$0xff]
    %v5634 = vld [vmem:[#allocation3 + $0xbd8] sm:$0xff]
    %v5635 = vld [vmem:[#allocation3 + $0xbe0] sm:$0xff]
    %v5636 = vld [vmem:[#allocation3 + $0xbe8] sm:$0xff]
    %v5637 = vld [vmem:[#allocation3 + $0xbf0] sm:$0xff]
    %v5638 = vld [vmem:[#allocation3 + $0xbf8] sm:$0xff]
    %v5639 = vld [vmem:[#allocation3 + $0xc00] sm:$0xff]
    %v5640 = vld [vmem:[#allocation3 + $0xc08] sm:$0xff]
    %v5641 = vld [vmem:[#allocation3 + $0xc10] sm:$0xff]
    %v5642 = vld [vmem:[#allocation3 + $0xc18] sm:$0xff]
    %v5643 = vld [vmem:[#allocation3 + $0xc20] sm:$0xff]
    %v5644 = vld [vmem:[#allocation3 + $0xc28] sm:$0xff]
    %v5645 = vld [vmem:[#allocation3 + $0xc30] sm:$0xff]
    %v5646 = vld [vmem:[#allocation3 + $0xc38] sm:$0xff]
    %v5647 = vld [vmem:[#allocation3 + $0xc40] sm:$0xff]
    %v5648 = vld [vmem:[#allocation3 + $0xc48] sm:$0xff]
    %v5649 = vld [vmem:[#allocation3 + $0xc50] sm:$0xff]
    %v5650 = vld [vmem:[#allocation3 + $0xc58] sm:$0xff]
    %v5651 = vld [vmem:[#allocation3 + $0xc60] sm:$0xff]
    %v5652 = vld [vmem:[#allocation3 + $0xc68] sm:$0xff]
    %v5653 = vld [vmem:[#allocation3 + $0xc70] sm:$0xff]
    %v5654 = vld [vmem:[#allocation3 + $0xc78] sm:$0xff]
    %v5655 = vld [vmem:[#allocation3 + $0xc80] sm:$0xff]
    %v5656 = vld [vmem:[#allocation3 + $0xc88] sm:$0xff]
    %v5657 = vld [vmem:[#allocation3 + $0xc90] sm:$0xff]
    %v5658 = vld [vmem:[#allocation3 + $0xc98] sm:$0xff]
    %v5659 = vld [vmem:[#allocation3 + $0xca0] sm:$0xff]
    %v5660 = vld [vmem:[#allocation3 + $0xca8] sm:$0xff]
    %v5661 = vld [vmem:[#allocation3 + $0xcb0] sm:$0xff]
    %v5662 = vld [vmem:[#allocation3 + $0xcb8] sm:$0xff]
    %v5663 = vld [vmem:[#allocation3 + $0xcc0] sm:$0xff]
    %v5664 = vld [vmem:[#allocation3 + $0xcc8] sm:$0xff]
    %v5665 = vld [vmem:[#allocation3 + $0xcd0] sm:$0xff]
    %v5666 = vld [vmem:[#allocation3 + $0xcd8] sm:$0xff]
    %v5667 = vld [vmem:[#allocation3 + $0xce0] sm:$0xff]
    %v5668 = vld [vmem:[#allocation3 + $0xce8] sm:$0xff]
    %v5669 = vld [vmem:[#allocation3 + $0xcf0] sm:$0xff]
    %v5670 = vld [vmem:[#allocation3 + $0xcf8] sm:$0xff]
    %v5671 = vld [vmem:[#allocation3 + $0xd00] sm:$0xff]
    %v5672 = vld [vmem:[#allocation3 + $0xd08] sm:$0xff]
    %v5673 = vld [vmem:[#allocation3 + $0xd10] sm:$0xff]
    %v5674 = vld [vmem:[#allocation3 + $0xd18] sm:$0xff]
    %v5675 = vld [vmem:[#allocation3 + $0xd20] sm:$0xff]
    %v5676 = vld [vmem:[#allocation3 + $0xd28] sm:$0xff]
    %v5677 = vld [vmem:[#allocation3 + $0xd30] sm:$0xff]
    %v5678 = vld [vmem:[#allocation3 + $0xd38] sm:$0xff]
    %v5679 = vld [vmem:[#allocation3 + $0xd40] sm:$0xff]
    %v5680 = vld [vmem:[#allocation3 + $0xd48] sm:$0xff]
    %v5681 = vld [vmem:[#allocation3 + $0xd50] sm:$0xff]
    %v5682 = vld [vmem:[#allocation3 + $0xd58] sm:$0xff]
    %v5683 = vld [vmem:[#allocation3 + $0xd60] sm:$0xff]
    %v5684 = vld [vmem:[#allocation3 + $0xd68] sm:$0xff]
    %v5685 = vld [vmem:[#allocation3 + $0xd70] sm:$0xff]
    %v5686 = vld [vmem:[#allocation3 + $0xd78] sm:$0xff]
    %v5687 = vld [vmem:[#allocation3 + $0xd80] sm:$0xff]
    %v5688 = vld [vmem:[#allocation3 + $0xd88] sm:$0xff]
    %v5689 = vld [vmem:[#allocation3 + $0xd90] sm:$0xff]
    %v5690 = vld [vmem:[#allocation3 + $0xd98] sm:$0xff]
    %v5691 = vld [vmem:[#allocation3 + $0xda0] sm:$0xff]
    %v5692 = vld [vmem:[#allocation3 + $0xda8] sm:$0xff]
    %v5693 = vld [vmem:[#allocation3 + $0xdb0] sm:$0xff]
    %v5694 = vld [vmem:[#allocation3 + $0xdb8] sm:$0xff]
    %v5695 = vld [vmem:[#allocation3 + $0xdc0] sm:$0xff]
    %v5696 = vld [vmem:[#allocation3 + $0xdc8] sm:$0xff]
    %v5697 = vld [vmem:[#allocation3 + $0xdd0] sm:$0xff]
    %v5698 = vld [vmem:[#allocation3 + $0xdd8] sm:$0xff]
    %v5699 = vld [vmem:[#allocation3 + $0xde0] sm:$0xff]
    %v5700 = vld [vmem:[#allocation3 + $0xde8] sm:$0xff]
    %v5701 = vld [vmem:[#allocation3 + $0xdf0] sm:$0xff]
    %v5702 = vld [vmem:[#allocation3 + $0xdf8] sm:$0xff]
    %v5703 = vld [vmem:[#allocation3 + $0xe00] sm:$0xff]
    %v5704 = vld [vmem:[#allocation3 + $0xe08] sm:$0xff]
    %v5705 = vld [vmem:[#allocation3 + $0xe10] sm:$0xff]
    %v5706 = vld [vmem:[#allocation3 + $0xe18] sm:$0xff]
    %v5707 = vld [vmem:[#allocation3 + $0xe20] sm:$0xff]
    %v5708 = vld [vmem:[#allocation3 + $0xe28] sm:$0xff]
    %v5709 = vld [vmem:[#allocation3 + $0xe30] sm:$0xff]
    %v5710 = vld [vmem:[#allocation3 + $0xe38] sm:$0xff]
    %v5711 = vld [vmem:[#allocation3 + $0xe40] sm:$0xff]
    %v5712 = vld [vmem:[#allocation3 + $0xe48] sm:$0xff]
    %v5713 = vld [vmem:[#allocation3 + $0xe50] sm:$0xff]
    %v5714 = vld [vmem:[#allocation3 + $0xe58] sm:$0xff]
    %v5715 = vld [vmem:[#allocation3 + $0xe60] sm:$0xff]
    %v5716 = vld [vmem:[#allocation3 + $0xe68] sm:$0xff]
    %v5717 = vld [vmem:[#allocation3 + $0xe70] sm:$0xff]
    %v5718 = vld [vmem:[#allocation3 + $0xe78] sm:$0xff]
    %v5719 = vld [vmem:[#allocation3 + $0xe80] sm:$0xff]
    %v5720 = vld [vmem:[#allocation3 + $0xe88] sm:$0xff]
    %v5721 = vld [vmem:[#allocation3 + $0xe90] sm:$0xff]
    %v5722 = vld [vmem:[#allocation3 + $0xe98] sm:$0xff]
    %v5723 = vld [vmem:[#allocation3 + $0xea0] sm:$0xff]
    %v5724 = vld [vmem:[#allocation3 + $0xea8] sm:$0xff]
    %v5725 = vld [vmem:[#allocation3 + $0xeb0] sm:$0xff]
    %v5726 = vld [vmem:[#allocation3 + $0xeb8] sm:$0xff]
    %v5727 = vld [vmem:[#allocation3 + $0xec0] sm:$0xff]
    %v5728 = vld [vmem:[#allocation3 + $0xec8] sm:$0xff]
    %v5729 = vld [vmem:[#allocation3 + $0xed0] sm:$0xff]
    %v5730 = vld [vmem:[#allocation3 + $0xed8] sm:$0xff]
    %v5731 = vld [vmem:[#allocation3 + $0xee0] sm:$0xff]
    %v5732 = vld [vmem:[#allocation3 + $0xee8] sm:$0xff]
    %v5733 = vld [vmem:[#allocation3 + $0xef0] sm:$0xff]
    %v5734 = vld [vmem:[#allocation3 + $0xef8] sm:$0xff]
    %v5735 = vld [vmem:[#allocation3 + $0xf00] sm:$0xff]
    %v5736 = vld [vmem:[#allocation3 + $0xf08] sm:$0xff]
    %v5737 = vld [vmem:[#allocation3 + $0xf10] sm:$0xff]
    %v5738 = vld [vmem:[#allocation3 + $0xf18] sm:$0xff]
    %v5739 = vld [vmem:[#allocation3 + $0xf20] sm:$0xff]
    %v5740 = vld [vmem:[#allocation3 + $0xf28] sm:$0xff]
    %v5741 = vld [vmem:[#allocation3 + $0xf30] sm:$0xff]
    %v5742 = vld [vmem:[#allocation3 + $0xf38] sm:$0xff]
    %v5743 = vld [vmem:[#allocation3 + $0xf40] sm:$0xff]
    %v5744 = vld [vmem:[#allocation3 + $0xf48] sm:$0xff]
    %v5745 = vld [vmem:[#allocation3 + $0xf50] sm:$0xff]
    %v5746 = vld [vmem:[#allocation3 + $0xf58] sm:$0xff]
    %v5747 = vld [vmem:[#allocation3 + $0xf60] sm:$0xff]
    %v5748 = vld [vmem:[#allocation3 + $0xf68] sm:$0xff]
    %v5749 = vld [vmem:[#allocation3 + $0xf70] sm:$0xff]
    %v5750 = vld [vmem:[#allocation3 + $0xf78] sm:$0xff]
    %v5751 = vld [vmem:[#allocation3 + $0xf80] sm:$0xff]
    %v5752 = vld [vmem:[#allocation3 + $0xf88] sm:$0xff]
    %v5753 = vld [vmem:[#allocation3 + $0xf90] sm:$0xff]
    %v5754 = vld [vmem:[#allocation3 + $0xf98] sm:$0xff]
    %v5755 = vld [vmem:[#allocation3 + $0xfa0] sm:$0xff]
    %v5756 = vld [vmem:[#allocation3 + $0xfa8] sm:$0xff]
    %v5757 = vld [vmem:[#allocation3 + $0xfb0] sm:$0xff]
    %v5758 = vld [vmem:[#allocation3 + $0xfb8] sm:$0xff]
    %v5759 = vld [vmem:[#allocation3 + $0xfc0] sm:$0xff]
    %v5760 = vld [vmem:[#allocation3 + $0xfc8] sm:$0xff]
    %v5761 = vld [vmem:[#allocation3 + $0xfd0] sm:$0xff]
    %v5762 = vld [vmem:[#allocation3 + $0xfd8] sm:$0xff]
    %v5763 = vld [vmem:[#allocation3 + $0xfe0] sm:$0xff]
    %v5764 = vld [vmem:[#allocation3 + $0xfe8] sm:$0xff]
    %v5765 = vld [vmem:[#allocation3 + $0xff0] sm:$0xff]
    %v5766 = vld [vmem:[#allocation3 + $0xff8] sm:$0xff]
    %v5767 = vld [vmem:[#allocation3 + $0x1000] sm:$0xff]
    %v5768 = vld [vmem:[#allocation3 + $0x1008] sm:$0xff]
    %v5769 = vld [vmem:[#allocation3 + $0x1010] sm:$0xff]
    %v5770 = vld [vmem:[#allocation3 + $0x1018] sm:$0xff]
    %v5771 = vld [vmem:[#allocation3 + $0x1020] sm:$0xff]
    %v5772 = vld [vmem:[#allocation3 + $0x1028] sm:$0xff]
    %v5773 = vld [vmem:[#allocation3 + $0x1030] sm:$0xff]
    %v5774 = vld [vmem:[#allocation3 + $0x1038] sm:$0xff]
    %v5775 = vld [vmem:[#allocation3 + $0x1040] sm:$0xff]
    %v5776 = vld [vmem:[#allocation3 + $0x1048] sm:$0xff]
    %v5777 = vld [vmem:[#allocation3 + $0x1050] sm:$0xff]
    %v5778 = vld [vmem:[#allocation3 + $0x1058] sm:$0xff]
    %v5779 = vld [vmem:[#allocation3 + $0x1060] sm:$0xff]
    %v5780 = vld [vmem:[#allocation3 + $0x1068] sm:$0xff]
    %v5781 = vld [vmem:[#allocation3 + $0x1070] sm:$0xff]
    %v5782 = vld [vmem:[#allocation3 + $0x1078] sm:$0xff]
    %v5783 = vld [vmem:[#allocation3 + $0x1080] sm:$0xff]
    %v5784 = vld [vmem:[#allocation3 + $0x1088] sm:$0xff]
    %v5785 = vld [vmem:[#allocation3 + $0x1090] sm:$0xff]
    %v5786 = vld [vmem:[#allocation3 + $0x1098] sm:$0xff]
    %v5787 = vld [vmem:[#allocation3 + $0x10a0] sm:$0xff]
    %v5788 = vld [vmem:[#allocation3 + $0x10a8] sm:$0xff]
    %v5789 = vld [vmem:[#allocation3 + $0x10b0] sm:$0xff]
    %v5790 = vld [vmem:[#allocation3 + $0x10b8] sm:$0xff]
    %v5791 = vld [vmem:[#allocation3 + $0x10c0] sm:$0xff]
    %v5792 = vld [vmem:[#allocation3 + $0x10c8] sm:$0xff]
    %v5793 = vld [vmem:[#allocation3 + $0x10d0] sm:$0xff]
    %v5794 = vld [vmem:[#allocation3 + $0x10d8] sm:$0xff]
    %v5795 = vld [vmem:[#allocation3 + $0x10e0] sm:$0xff]
    %v5796 = vld [vmem:[#allocation3 + $0x10e8] sm:$0xff]
    %v5797 = vld [vmem:[#allocation3 + $0x10f0] sm:$0xff]
    %v5798 = vld [vmem:[#allocation3 + $0x10f8] sm:$0xff]
    %v5799 = vld [vmem:[#allocation3 + $0x1100] sm:$0xff]
    %v5800 = vld [vmem:[#allocation3 + $0x1108] sm:$0xff]
    %v5801 = vld [vmem:[#allocation3 + $0x1110] sm:$0xff]
    %v5802 = vld [vmem:[#allocation3 + $0x1118] sm:$0xff]
    %v5803 = vld [vmem:[#allocation3 + $0x1120] sm:$0xff]
    %v5804 = vld [vmem:[#allocation3 + $0x1128] sm:$0xff]
    %v5805 = vld [vmem:[#allocation3 + $0x1130] sm:$0xff]
    %v5806 = vld [vmem:[#allocation3 + $0x1138] sm:$0xff]
    %v5807 = vld [vmem:[#allocation3 + $0x1140] sm:$0xff]
    %v5808 = vld [vmem:[#allocation3 + $0x1148] sm:$0xff]
    %v5809 = vld [vmem:[#allocation3 + $0x1150] sm:$0xff]
    %v5810 = vld [vmem:[#allocation3 + $0x1158] sm:$0xff]
    %v5811 = vld [vmem:[#allocation3 + $0x1160] sm:$0xff]
    %v5812 = vld [vmem:[#allocation3 + $0x1168] sm:$0xff]
    %v5813 = vld [vmem:[#allocation3 + $0x1170] sm:$0xff]
    %v5814 = vld [vmem:[#allocation3 + $0x1178] sm:$0xff]
    %v5815 = vld [vmem:[#allocation3 + $0x1180] sm:$0xff]
    %v5816 = vld [vmem:[#allocation3 + $0x1188] sm:$0xff]
    %v5817 = vld [vmem:[#allocation3 + $0x1190] sm:$0xff]
    %v5818 = vld [vmem:[#allocation3 + $0x1198] sm:$0xff]
    %v5819 = vld [vmem:[#allocation3 + $0x11a0] sm:$0xff]
    %v5820 = vld [vmem:[#allocation3 + $0x11a8] sm:$0xff]
    %v5821 = vld [vmem:[#allocation3 + $0x11b0] sm:$0xff]
    %v5822 = vld [vmem:[#allocation3 + $0x11b8] sm:$0xff]
    %v5823 = vld [vmem:[#allocation3 + $0x11c0] sm:$0xff]
    %v5824 = vld [vmem:[#allocation3 + $0x11c8] sm:$0xff]
    %v5825 = vld [vmem:[#allocation3 + $0x11d0] sm:$0xff]
    %v5826 = vld [vmem:[#allocation3 + $0x11d8] sm:$0xff]
    %v5827 = vld [vmem:[#allocation3 + $0x11e0] sm:$0xff]
    %v5828 = vld [vmem:[#allocation3 + $0x11e8] sm:$0xff]
    %v5829 = vld [vmem:[#allocation3 + $0x11f0] sm:$0xff]
    %v5830 = vld [vmem:[#allocation3 + $0x11f8] sm:$0xff]
    %v5831 = vld [vmem:[#allocation8] sm:$0xff]
    %v5832 = vld [vmem:[#allocation8 + $0x8] sm:$0xff]
    %v5833 = vld [vmem:[#allocation8 + $0x10] sm:$0xff]
    %v5834 = vld [vmem:[#allocation8 + $0x18] sm:$0xff]
    %v5835 = vld [vmem:[#allocation8 + $0x20] sm:$0xff]
    %v5836 = vld [vmem:[#allocation8 + $0x28] sm:$0xff]
    %v5837 = vld [vmem:[#allocation8 + $0x30] sm:$0xff]
    %v5838 = vld [vmem:[#allocation8 + $0x38] sm:$0xff]
    %v5839 = vld [vmem:[#allocation8 + $0x40] sm:$0xff]
    %v5840 = vld [vmem:[#allocation8 + $0x48] sm:$0xff]
    %v5841 = vld [vmem:[#allocation8 + $0x50] sm:$0xff]
    %v5842 = vld [vmem:[#allocation8 + $0x58] sm:$0xff]
    %v5843 = vld [vmem:[#allocation8 + $0x60] sm:$0xff]
    %v5844 = vld [vmem:[#allocation8 + $0x68] sm:$0xff]
    %v5845 = vld [vmem:[#allocation8 + $0x70] sm:$0xff]
    %v5846 = vld [vmem:[#allocation8 + $0x78] sm:$0xff]
    %v5847 = vld [vmem:[#allocation8 + $0x80] sm:$0xff]
    %v5848 = vld [vmem:[#allocation8 + $0x88] sm:$0xff]
    %v5849 = vld [vmem:[#allocation8 + $0x90] sm:$0xff]
    %v5850 = vld [vmem:[#allocation8 + $0x98] sm:$0xff]
    %v5851 = vld [vmem:[#allocation8 + $0xa0] sm:$0xff]
    %v5852 = vld [vmem:[#allocation8 + $0xa8] sm:$0xff]
    %v5853 = vld [vmem:[#allocation8 + $0xb0] sm:$0xff]
    %v5854 = vld [vmem:[#allocation8 + $0xb8] sm:$0xff]
    %v5855 = vld [vmem:[#allocation8 + $0xc0] sm:$0xff]
    %v5856 = vld [vmem:[#allocation8 + $0xc8] sm:$0xff]
    %v5857 = vld [vmem:[#allocation8 + $0xd0] sm:$0xff]
    %v5858 = vld [vmem:[#allocation8 + $0xd8] sm:$0xff]
    %v5859 = vld [vmem:[#allocation8 + $0xe0] sm:$0xff]
    %v5860 = vld [vmem:[#allocation8 + $0xe8] sm:$0xff]
    %v5861 = vld [vmem:[#allocation8 + $0xf0] sm:$0xff]
    %v5862 = vld [vmem:[#allocation8 + $0xf8] sm:$0xff]
    %v5863 = vld [vmem:[#allocation8 + $0x100] sm:$0xff]
    %v5864 = vld [vmem:[#allocation8 + $0x108] sm:$0xff]
    %v5865 = vld [vmem:[#allocation8 + $0x110] sm:$0xff]
    %v5866 = vld [vmem:[#allocation8 + $0x118] sm:$0xff]
    %v5867 = vld [vmem:[#allocation8 + $0x120] sm:$0xff]
    %v5868 = vld [vmem:[#allocation8 + $0x128] sm:$0xff]
    %v5869 = vld [vmem:[#allocation8 + $0x130] sm:$0xff]
    %v5870 = vld [vmem:[#allocation8 + $0x138] sm:$0xff]
    %v5871 = vld [vmem:[#allocation8 + $0x140] sm:$0xff]
    %v5872 = vld [vmem:[#allocation8 + $0x148] sm:$0xff]
    %v5873 = vld [vmem:[#allocation8 + $0x150] sm:$0xff]
    %v5874 = vld [vmem:[#allocation8 + $0x158] sm:$0xff]
    %v5875 = vld [vmem:[#allocation8 + $0x160] sm:$0xff]
    %v5876 = vld [vmem:[#allocation8 + $0x168] sm:$0xff]
    %v5877 = vld [vmem:[#allocation8 + $0x170] sm:$0xff]
    %v5878 = vld [vmem:[#allocation8 + $0x178] sm:$0xff]
    %v5879 = vld [vmem:[#allocation8 + $0x180] sm:$0xff]
    %v5880 = vld [vmem:[#allocation8 + $0x188] sm:$0xff]
    %v5881 = vld [vmem:[#allocation8 + $0x190] sm:$0xff]
    %v5882 = vld [vmem:[#allocation8 + $0x198] sm:$0xff]
    %v5883 = vld [vmem:[#allocation8 + $0x1a0] sm:$0xff]
    %v5884 = vld [vmem:[#allocation8 + $0x1a8] sm:$0xff]
    %v5885 = vld [vmem:[#allocation8 + $0x1b0] sm:$0xff]
    %v5886 = vld [vmem:[#allocation8 + $0x1b8] sm:$0xff]
    %v5887 = vld [vmem:[#allocation8 + $0x1c0] sm:$0xff]
    %v5888 = vld [vmem:[#allocation8 + $0x1c8] sm:$0xff]
    %v5889 = vld [vmem:[#allocation8 + $0x1d0] sm:$0xff]
    %v5890 = vld [vmem:[#allocation8 + $0x1d8] sm:$0xff]
    %v5891 = vld [vmem:[#allocation8 + $0x1e0] sm:$0xff]
    %v5892 = vld [vmem:[#allocation8 + $0x1e8] sm:$0xff]
    %v5893 = vld [vmem:[#allocation8 + $0x1f0] sm:$0xff]
    %v5894 = vld [vmem:[#allocation8 + $0x1f8] sm:$0xff]
    %v5895 = vld [vmem:[#allocation8 + $0x200] sm:$0xff]
    %v5896 = vld [vmem:[#allocation8 + $0x208] sm:$0xff]
    %v5897 = vld [vmem:[#allocation8 + $0x210] sm:$0xff]
    %v5898 = vld [vmem:[#allocation8 + $0x218] sm:$0xff]
    %v5899 = vld [vmem:[#allocation8 + $0x220] sm:$0xff]
    %v5900 = vld [vmem:[#allocation8 + $0x228] sm:$0xff]
    %v5901 = vld [vmem:[#allocation8 + $0x230] sm:$0xff]
    %v5902 = vld [vmem:[#allocation8 + $0x238] sm:$0xff]
    %v5903 = vld [vmem:[#allocation8 + $0x240] sm:$0xff]
    %v5904 = vld [vmem:[#allocation8 + $0x248] sm:$0xff]
    %v5905 = vld [vmem:[#allocation8 + $0x250] sm:$0xff]
    %v5906 = vld [vmem:[#allocation8 + $0x258] sm:$0xff]
    %v5907 = vld [vmem:[#allocation8 + $0x260] sm:$0xff]
    %v5908 = vld [vmem:[#allocation8 + $0x268] sm:$0xff]
    %v5909 = vld [vmem:[#allocation8 + $0x270] sm:$0xff]
    %v5910 = vld [vmem:[#allocation8 + $0x278] sm:$0xff]
    %v5911 = vld [vmem:[#allocation8 + $0x280] sm:$0xff]
    %v5912 = vld [vmem:[#allocation8 + $0x288] sm:$0xff]
    %v5913 = vld [vmem:[#allocation8 + $0x290] sm:$0xff]
    %v5914 = vld [vmem:[#allocation8 + $0x298] sm:$0xff]
    %v5915 = vld [vmem:[#allocation8 + $0x2a0] sm:$0xff]
    %v5916 = vld [vmem:[#allocation8 + $0x2a8] sm:$0xff]
    %v5917 = vld [vmem:[#allocation8 + $0x2b0] sm:$0xff]
    %v5918 = vld [vmem:[#allocation8 + $0x2b8] sm:$0xff]
    %v5919 = vld [vmem:[#allocation8 + $0x2c0] sm:$0xff]
    %v5920 = vld [vmem:[#allocation8 + $0x2c8] sm:$0xff]
    %v5921 = vld [vmem:[#allocation8 + $0x2d0] sm:$0xff]
    %v5922 = vld [vmem:[#allocation8 + $0x2d8] sm:$0xff]
    %v5923 = vld [vmem:[#allocation8 + $0x2e0] sm:$0xff]
    %v5924 = vld [vmem:[#allocation8 + $0x2e8] sm:$0xff]
    %v5925 = vld [vmem:[#allocation8 + $0x2f0] sm:$0xff]
    %v5926 = vld [vmem:[#allocation8 + $0x2f8] sm:$0xff]
    %v5927 = vld [vmem:[#allocation8 + $0x300] sm:$0xff]
    %v5928 = vld [vmem:[#allocation8 + $0x308] sm:$0xff]
    %v5929 = vld [vmem:[#allocation8 + $0x310] sm:$0xff]
    %v5930 = vld [vmem:[#allocation8 + $0x318] sm:$0xff]
    %v5931 = vld [vmem:[#allocation8 + $0x320] sm:$0xff]
    %v5932 = vld [vmem:[#allocation8 + $0x328] sm:$0xff]
    %v5933 = vld [vmem:[#allocation8 + $0x330] sm:$0xff]
    %v5934 = vld [vmem:[#allocation8 + $0x338] sm:$0xff]
    %v5935 = vld [vmem:[#allocation8 + $0x340] sm:$0xff]
    %v5936 = vld [vmem:[#allocation8 + $0x348] sm:$0xff]
    %v5937 = vld [vmem:[#allocation8 + $0x350] sm:$0xff]
    %v5938 = vld [vmem:[#allocation8 + $0x358] sm:$0xff]
    %v5939 = vld [vmem:[#allocation8 + $0x360] sm:$0xff]
    %v5940 = vld [vmem:[#allocation8 + $0x368] sm:$0xff]
    %v5941 = vld [vmem:[#allocation8 + $0x370] sm:$0xff]
    %v5942 = vld [vmem:[#allocation8 + $0x378] sm:$0xff]
    %v5943 = vld [vmem:[#allocation8 + $0x380] sm:$0xff]
    %v5944 = vld [vmem:[#allocation8 + $0x388] sm:$0xff]
    %v5945 = vld [vmem:[#allocation8 + $0x390] sm:$0xff]
    %v5946 = vld [vmem:[#allocation8 + $0x398] sm:$0xff]
    %v5947 = vld [vmem:[#allocation8 + $0x3a0] sm:$0xff]
    %v5948 = vld [vmem:[#allocation8 + $0x3a8] sm:$0xff]
    %v5949 = vld [vmem:[#allocation8 + $0x3b0] sm:$0xff]
    %v5950 = vld [vmem:[#allocation8 + $0x3b8] sm:$0xff]
    %v5951 = vld [vmem:[#allocation8 + $0x3c0] sm:$0xff]
    %v5952 = vld [vmem:[#allocation8 + $0x3c8] sm:$0xff]
    %v5953 = vld [vmem:[#allocation8 + $0x3d0] sm:$0xff]
    %v5954 = vld [vmem:[#allocation8 + $0x3d8] sm:$0xff]
    %v5955 = vld [vmem:[#allocation8 + $0x3e0] sm:$0xff]
    %v5956 = vld [vmem:[#allocation8 + $0x3e8] sm:$0xff]
    %v5957 = vld [vmem:[#allocation8 + $0x3f0] sm:$0xff]
    %v5958 = vld [vmem:[#allocation8 + $0x3f8] sm:$0xff]
    %v5959 = vld [vmem:[#allocation8 + $0x400] sm:$0xff]
    %v5960 = vld [vmem:[#allocation8 + $0x408] sm:$0xff]
    %v5961 = vld [vmem:[#allocation8 + $0x410] sm:$0xff]
    %v5962 = vld [vmem:[#allocation8 + $0x418] sm:$0xff]
    %v5963 = vld [vmem:[#allocation8 + $0x420] sm:$0xff]
    %v5964 = vld [vmem:[#allocation8 + $0x428] sm:$0xff]
    %v5965 = vld [vmem:[#allocation8 + $0x430] sm:$0xff]
    %v5966 = vld [vmem:[#allocation8 + $0x438] sm:$0xff]
    %v5967 = vld [vmem:[#allocation8 + $0x440] sm:$0xff]
    %v5968 = vld [vmem:[#allocation8 + $0x448] sm:$0xff]
    %v5969 = vld [vmem:[#allocation8 + $0x450] sm:$0xff]
    %v5970 = vld [vmem:[#allocation8 + $0x458] sm:$0xff]
    %v5971 = vld [vmem:[#allocation8 + $0x460] sm:$0xff]
    %v5972 = vld [vmem:[#allocation8 + $0x468] sm:$0xff]
    %v5973 = vld [vmem:[#allocation8 + $0x470] sm:$0xff]
    %v5974 = vld [vmem:[#allocation8 + $0x478] sm:$0xff]
    %5975 = vmatprep.subr.mxu0 0.0
    %5976 = vmatpush1.msra.mxu0 %v5831
    %5977 = vmatprep.subr.mxu0 0.0
    %5978 = vmatpush1.msra.mxu0 %v5832
    %5979 = vmatprep.subr.mxu0 0.0
    %5980 = vmatpush1.msra.mxu0 %v5833
    %5981 = vmatprep.subr.mxu0 0.0
    %5982 = vmatpush1.msra.mxu0 %v5834
    %5983 = vmatprep.subr.mxu0 0.0
    %5984 = vmatpush1.msra.mxu0 %v5835
    %5985 = vmatprep.subr.mxu0 0.0
    %5986 = vmatpush1.msra.mxu0 %v5836
    %5987 = vmatprep.subr.mxu0 0.0
    %5988 = vmatpush1.msra.mxu0 %v5837
    %5989 = vmatprep.subr.mxu0 0.0
    %5990 = vmatpush1.msra.mxu0 %v5838
    %5991 = vmatprep.subr.mxu0 0.0
    %5992 = vmatpush1.msra.mxu0 %v5839
    %5993 = vmatprep.subr.mxu0 0.0
    %5994 = vmatpush1.msra.mxu0 %v5840
    %5995 = vmatprep.subr.mxu0 0.0
    %5996 = vmatpush1.msra.mxu0 %v5841
    %5997 = vmatprep.subr.mxu0 0.0
    %5998 = vmatpush1.msra.mxu0 %v5842
    %5999 = vmatprep.subr.mxu0 0.0
    %6000 = vmatpush1.msra.mxu0 %v5843
    %6001 = vmatprep.subr.mxu0 0.0
    %6002 = vmatpush1.msra.mxu0 %v5844
    %6003 = vmatprep.subr.mxu0 0.0
    %6004 = vmatpush1.msra.mxu0 %v5845
    %6005 = vmatprep.subr.mxu0 0.0
    %6006 = vmatpush1.msra.mxu0 %v5846
    %6007 = vmatprep.subr.mxu0 0.0
    %6008 = vmatpush1.msra.mxu0 %v5847
    %6009 = vmatprep.subr.mxu0 0.0
    %6010 = vmatpush1.msra.mxu0 %v5848
    %6011 = vmatprep.subr.mxu0 0.0
    %6012 = vmatpush1.msra.mxu0 %v5849
    %6013 = vmatprep.subr.mxu0 0.0
    %6014 = vmatpush1.msra.mxu0 %v5850
    %6015 = vmatprep.subr.mxu0 0.0
    %6016 = vmatpush1.msra.mxu0 %v5851
    %6017 = vmatprep.subr.mxu0 0.0
    %6018 = vmatpush1.msra.mxu0 %v5852
    %6019 = vmatprep.subr.mxu0 0.0
    %6020 = vmatpush1.msra.mxu0 %v5853
    %6021 = vmatprep.subr.mxu0 0.0
    %6022 = vmatpush1.msra.mxu0 %v5854
    %6023 = vmatprep.subr.mxu0 0.0
    %6024 = vmatpush1.msra.mxu0 %v5855
    %6025 = vmatprep.subr.mxu0 0.0
    %6026 = vmatpush1.msra.mxu0 %v5856
    %6027 = vmatprep.subr.mxu0 0.0
    %6028 = vmatpush1.msra.mxu0 %v5857
    %6029 = vmatprep.subr.mxu0 0.0
    %6030 = vmatpush1.msra.mxu0 %v5858
    %6031 = vmatprep.subr.mxu0 0.0
    %6032 = vmatpush1.msra.mxu0 %v5859
    %6033 = vmatprep.subr.mxu0 0.0
    %6034 = vmatpush1.msra.mxu0 %v5860
    %6035 = vmatprep.subr.mxu0 0.0
    %6036 = vmatpush1.msra.mxu0 %v5861
    %6037 = vmatprep.subr.mxu0 0.0
    %6038 = vmatpush1.msra.mxu0 %v5862
    %6039 = vmatprep.mubr.f32.mxu0 %v5256
    %6040 = vmatmul.mubr.f32.gmra.mrb[0].mxu0 %v5255
    %v6041 = vpop.f32.mrb[0].mxu0
    %v6042 = vadd.f32 0.0, %v6041
    %v6043 = vpop.f32.mrb[0].mxu0
    %6044 = vmatprep.mubr.f32.mxu0 %v5265
    %6045 = vmatmul.mubr.f32.gmra.mrb[0].mxu0 %v5264
    %v6046 = vpop.f32.mrb[0].mxu0
    %v6047 = vadd.f32 0.0, %v6046
    %v6048 = vpop.f32.mrb[0].mxu0
    %6049 = vmatprep.mubr.f32.mxu0 %v5274
    %6050 = vmatmul.mubr.f32.gmra.mrb[0].mxu0 %v5273
    %v6051 = vpop.f32.mrb[0].mxu0
    %v6052 = vadd.f32 0.0, %v6051
    %v6053 = vpop.f32.mrb[0].mxu0
    %6054 = vmatprep.mubr.f32.mxu0 %v5283
    %6055 = vmatmul.mubr.f32.gmra.mrb[0].mxu0 %v5282
    %v6056 = vpop.f32.mrb[0].mxu0
    %v6057 = vadd.f32 0.0, %v6056
    %v6058 = vpop.f32.mrb[0].mxu0
    %6059 = vmatprep.mubr.f32.mxu0 %v5292
    %6060 = vmatmul.mubr.f32.gmra.mrb[0].mxu0 %v5291
    %v6061 = vpop.f32.mrb[0].mxu0
    %v6062 = vadd.f32 0.0, %v6061
    %v6063 = vpop.f32.mrb[0].mxu0
    %6064 = vmatprep.mubr.f32.mxu0 %v5301
    %6065 = vmatmul.mubr.f32.gmra.mrb[0].mxu0 %v5300
    %v6066 = vpop.f32.mrb[0].mxu0
    %v6067 = vadd.f32 0.0, %v6066
    %v6068 = vpop.f32.mrb[0].mxu0
    %6069 = vmatprep.mubr.f32.mxu0 %v5310
    %6070 = vmatmul.mubr.f32.gmra.mrb[0].mxu0 %v5309
    %v6071 = vpop.f32.mrb[0].mxu0
    %v6072 = vadd.f32 0.0, %v6071
    %v6073 = vpop.f32.mrb[0].mxu0
    %6074 = vmatprep.mubr.f32.mxu0 %v5319
    %6075 = vmatmul.mubr.f32.gmra.mrb[0].mxu0 %v5318
    %v6076 = vpop.f32.mrb[0].mxu0
    %v6077 = vadd.f32 0.0, %v6076
    %v6078 = vpop.f32.mrb[0].mxu0
    %6079 = vmatprep.mubr.f32.mxu0 %v5328
    %6080 = vmatmul.mubr.f32.gmra.mrb[0].mxu0 %v5327
    %v6081 = vpop.f32.mrb[0].mxu0
    %v6082 = vadd.f32 0.0, %v6081
    %v6083 = vpop.f32.mrb[0].mxu0
    %6084 = vmatprep.mubr.f32.mxu0 %v5337
    %6085 = vmatmul.mubr.f32.gmra.mrb[0].mxu0 %v5336
    %v6086 = vpop.f32.mrb[0].mxu0
    %v6087 = vadd.f32 0.0, %v6086
    %v6088 = vpop.f32.mrb[0].mxu0
    %6089 = vmatprep.mubr.f32.mxu0 %v5346
    %6090 = vmatmul.mubr.f32.gmra.mrb[0].mxu0 %v5345
    %v6091 = vpop.f32.mrb[0].mxu0
    %v6092 = vadd.f32 0.0, %v6091
    %v6093 = vpop.f32.mrb[0].mxu0
    %6094 = vmatprep.mubr.f32.mxu0 %v5355
    %6095 = vmatmul.mubr.f32.gmra.mrb[0].mxu0 %v5354
    %v6096 = vpop.f32.mrb[0].mxu0
    %v6097 = vadd.f32 0.0, %v6096
    %v6098 = vpop.f32.mrb[0].mxu0
    %6099 = vmatprep.mubr.f32.mxu0 %v5364
    %6100 = vmatmul.mubr.f32.gmra.mrb[0].mxu0 %v5363
    %v6101 = vpop.f32.mrb[0].mxu0
    %v6102 = vadd.f32 0.0, %v6101
    %v6103 = vpop.f32.mrb[0].mxu0
    %6104 = vmatprep.mubr.f32.mxu0 %v5373
    %6105 = vmatmul.mubr.f32.gmra.mrb[0].mxu0 %v5372
    %v6106 = vpop.f32.mrb[0].mxu0
    %v6107 = vadd.f32 0.0, %v6106
    %v6108 = vpop.f32.mrb[0].mxu0
    %6109 = vmatprep.mubr.f32.mxu0 %v5382
    %6110 = vmatmul.mubr.f32.gmra.mrb[0].mxu0 %v5381
    %v6111 = vpop.f32.mrb[0].mxu0
    %v6112 = vadd.f32 0.0, %v6111
    %v6113 = vpop.f32.mrb[0].mxu0
    %6114 = vmatprep.mubr.f32.mxu0 %v5391
    %6115 = vmatmul.mubr.f32.gmra.mrb[0].mxu0 %v5390
    %v6116 = vpop.f32.mrb[0].mxu0
    %v6117 = vadd.f32 0.0, %v6116
    %v6118 = vpop.f32.mrb[0].mxu0
    %6119 = vmatprep.mubr.f32.mxu0 %v5400
    %6120 = vmatmul.mubr.f32.gmra.mrb[0].mxu0 %v5399
    %v6121 = vpop.f32.mrb[0].mxu0
    %v6122 = vadd.f32 0.0, %v6121
    %v6123 = vpop.f32.mrb[0].mxu0
    %6124 = vmatprep.mubr.f32.mxu0 %v5409
    %6125 = vmatmul.mubr.f32.gmra.mrb[0].mxu0 %v5408
    %v6126 = vpop.f32.mrb[0].mxu0
    %v6127 = vadd.f32 0.0, %v6126
    %v6128 = vpop.f32.mrb[0].mxu0
    %6129 = vmatprep.mubr.f32.mxu0 %v5418
    %6130 = vmatmul.mubr.f32.gmra.mrb[0].mxu0 %v5417
    %v6131 = vpop.f32.mrb[0].mxu0
    %v6132 = vadd.f32 0.0, %v6131
    %v6133 = vpop.f32.mrb[0].mxu0
    %6134 = vmatprep.mubr.f32.mxu0 %v5427
    %6135 = vmatmul.mubr.f32.gmra.mrb[0].mxu0 %v5426
    %v6136 = vpop.f32.mrb[0].mxu0
    %v6137 = vadd.f32 0.0, %v6136
    %v6138 = vpop.f32.mrb[0].mxu0
    %6139 = vmatprep.mubr.f32.mxu0 %v5436
    %6140 = vmatmul.mubr.f32.gmra.mrb[0].mxu0 %v5435
    %v6141 = vpop.f32.mrb[0].mxu0
    %v6142 = vadd.f32 0.0, %v6141
    %v6143 = vpop.f32.mrb[0].mxu0
    %6144 = vmatprep.mubr.f32.mxu0 %v5445
    %6145 = vmatmul.mubr.f32.gmra.mrb[0].mxu0 %v5444
    %v6146 = vpop.f32.mrb[0].mxu0
    %v6147 = vadd.f32 0.0, %v6146
    %v6148 = vpop.f32.mrb[0].mxu0
    %6149 = vmatprep.mubr.f32.mxu0 %v5454
    %6150 = vmatmul.mubr.f32.gmra.mrb[0].mxu0 %v5453
    %v6151 = vpop.f32.mrb[0].mxu0
    %v6152 = vadd.f32 0.0, %v6151
    %v6153 = vpop.f32.mrb[0].mxu0
    %6154 = vmatprep.mubr.f32.mxu0 %v5463
    %6155 = vmatmul.mubr.f32.gmra.mrb[0].mxu0 %v5462
    %v6156 = vpop.f32.mrb[0].mxu0
    %v6157 = vadd.f32 0.0, %v6156
    %v6158 = vpop.f32.mrb[0].mxu0
    %6159 = vmatprep.mubr.f32.mxu0 %v5472
    %6160 = vmatmul.mubr.f32.gmra.mrb[0].mxu0 %v5471
    %v6161 = vpop.f32.mrb[0].mxu0
    %v6162 = vadd.f32 0.0, %v6161
    %v6163 = vpop.f32.mrb[0].mxu0
    %6164 = vmatprep.mubr.f32.mxu0 %v5481
    %6165 = vmatmul.mubr.f32.gmra.mrb[0].mxu0 %v5480
    %v6166 = vpop.f32.mrb[0].mxu0
    %v6167 = vadd.f32 0.0, %v6166
    %v6168 = vpop.f32.mrb[0].mxu0
    %6169 = vmatprep.mubr.f32.mxu0 %v5490
    %6170 = vmatmul.mubr.f32.gmra.mrb[0].mxu0 %v5489
    %v6171 = vpop.f32.mrb[0].mxu0
    %v6172 = vadd.f32 0.0, %v6171
    %v6173 = vpop.f32.mrb[0].mxu0
    %6174 = vmatprep.mubr.f32.mxu0 %v5499
    %6175 = vmatmul.mubr.f32.gmra.mrb[0].mxu0 %v5498
    %v6176 = vpop.f32.mrb[0].mxu0
    %v6177 = vadd.f32 0.0, %v6176
    %v6178 = vpop.f32.mrb[0].mxu0
    %6179 = vmatprep.mubr.f32.mxu0 %v5508
    %6180 = vmatmul.mubr.f32.gmra.mrb[0].mxu0 %v5507
    %v6181 = vpop.f32.mrb[0].mxu0
    %v6182 = vadd.f32 0.0, %v6181
    %v6183 = vpop.f32.mrb[0].mxu0
    %6184 = vmatprep.mubr.f32.mxu0 %v5517
    %6185 = vmatmul.mubr.f32.gmra.mrb[0].mxu0 %v5516
    %v6186 = vpop.f32.mrb[0].mxu0
    %v6187 = vadd.f32 0.0, %v6186
    %v6188 = vpop.f32.mrb[0].mxu0
    %6189 = vmatprep.mubr.f32.mxu0 %v5526
    %6190 = vmatmul.mubr.f32.gmra.mrb[0].mxu0 %v5525
    %v6191 = vpop.f32.mrb[0].mxu0
    %v6192 = vadd.f32 0.0, %v6191
    %v6193 = vpop.f32.mrb[0].mxu0
    %6194 = vmatprep.mubr.f32.mxu0 %v5535
    %6195 = vmatmul.mubr.f32.gmra.mrb[0].mxu0 %v5534
    %v6196 = vpop.f32.mrb[0].mxu0
    %v6197 = vadd.f32 0.0, %v6196
    %v6198 = vpop.f32.mrb[0].mxu0
    %6199 = vmatprep.mubr.f32.mxu0 %v5544
    %6200 = vmatmul.mubr.f32.gmra.mrb[0].mxu0 %v5543
    %v6201 = vpop.f32.mrb[0].mxu0
    %v6202 = vadd.f32 0.0, %v6201
    %v6203 = vpop.f32.mrb[0].mxu0
    %6204 = vmatprep.mubr.f32.mxu0 %v5553
    %6205 = vmatmul.mubr.f32.gmra.mrb[0].mxu0 %v5552
    %v6206 = vpop.f32.mrb[0].mxu0
    %v6207 = vadd.f32 0.0, %v6206
    %v6208 = vpop.f32.mrb[0].mxu0
    %6209 = vmatprep.mubr.f32.mxu0 %v5562
    %6210 = vmatmul.mubr.f32.gmra.mrb[0].mxu0 %v5561
    %v6211 = vpop.f32.mrb[0].mxu0
    %v6212 = vadd.f32 0.0, %v6211
    %v6213 = vpop.f32.mrb[0].mxu0
    %6214 = vmatprep.mubr.f32.mxu0 %v5571
    %6215 = vmatmul.mubr.f32.gmra.mrb[0].mxu0 %v5570
    %v6216 = vpop.f32.mrb[0].mxu0
    %v6217 = vadd.f32 0.0, %v6216
    %v6218 = vpop.f32.mrb[0].mxu0
    %6219 = vmatprep.mubr.f32.mxu0 %v5580
    %6220 = vmatmul.mubr.f32.gmra.mrb[0].mxu0 %v5579
    %v6221 = vpop.f32.mrb[0].mxu0
    %v6222 = vadd.f32 0.0, %v6221
    %v6223 = vpop.f32.mrb[0].mxu0
    %6224 = vmatprep.mubr.f32.mxu0 %v5589
    %6225 = vmatmul.mubr.f32.gmra.mrb[0].mxu0 %v5588
    %v6226 = vpop.f32.mrb[0].mxu0
    %v6227 = vadd.f32 0.0, %v6226
    %v6228 = vpop.f32.mrb[0].mxu0
    %6229 = vmatprep.mubr.f32.mxu0 %v5598
    %6230 = vmatmul.mubr.f32.gmra.mrb[0].mxu0 %v5597
    %v6231 = vpop.f32.mrb[0].mxu0
    %v6232 = vadd.f32 0.0, %v6231
    %v6233 = vpop.f32.mrb[0].mxu0
    %6234 = vmatprep.mubr.f32.mxu0 %v5607
    %6235 = vmatmul.mubr.f32.gmra.mrb[0].mxu0 %v5606
    %v6236 = vpop.f32.mrb[0].mxu0
    %v6237 = vadd.f32 0.0, %v6236
    %v6238 = vpop.f32.mrb[0].mxu0
    %6239 = vmatprep.mubr.f32.mxu0 %v5616
    %6240 = vmatmul.mubr.f32.gmra.mrb[0].mxu0 %v5615
    %v6241 = vpop.f32.mrb[0].mxu0
    %v6242 = vadd.f32 0.0, %v6241
    %v6243 = vpop.f32.mrb[0].mxu0
    %6244 = vmatprep.mubr.f32.mxu0 %v5625
    %6245 = vmatmul.mubr.f32.gmra.mrb[0].mxu0 %v5624
    %v6246 = vpop.f32.mrb[0].mxu0
    %v6247 = vadd.f32 0.0, %v6246
    %v6248 = vpop.f32.mrb[0].mxu0
    %6249 = vmatprep.mubr.f32.mxu0 %v5634
    %6250 = vmatmul.mubr.f32.gmra.mrb[0].mxu0 %v5633
    %v6251 = vpop.f32.mrb[0].mxu0
    %v6252 = vadd.f32 0.0, %v6251
    %v6253 = vpop.f32.mrb[0].mxu0
    %6254 = vmatprep.mubr.f32.mxu0 %v5643
    %6255 = vmatmul.mubr.f32.gmra.mrb[0].mxu0 %v5642
    %v6256 = vpop.f32.mrb[0].mxu0
    %v6257 = vadd.f32 0.0, %v6256
    %v6258 = vpop.f32.mrb[0].mxu0
    %6259 = vmatprep.mubr.f32.mxu0 %v5652
    %6260 = vmatmul.mubr.f32.gmra.mrb[0].mxu0 %v5651
    %v6261 = vpop.f32.mrb[0].mxu0
    %v6262 = vadd.f32 0.0, %v6261
    %v6263 = vpop.f32.mrb[0].mxu0
    %6264 = vmatprep.mubr.f32.mxu0 %v5661
    %6265 = vmatmul.mubr.f32.gmra.mrb[0].mxu0 %v5660
    %v6266 = vpop.f32.mrb[0].mxu0
    %v6267 = vadd.f32 0.0, %v6266
    %v6268 = vpop.f32.mrb[0].mxu0
    %6269 = vmatprep.mubr.f32.mxu0 %v5670
    %6270 = vmatmul.mubr.f32.gmra.mrb[0].mxu0 %v5669
    %v6271 = vpop.f32.mrb[0].mxu0
    %v6272 = vadd.f32 0.0, %v6271
    %v6273 = vpop.f32.mrb[0].mxu0
    %6274 = vmatprep.mubr.f32.mxu0 %v5679
    %6275 = vmatmul.mubr.f32.gmra.mrb[0].mxu0 %v5678
    %v6276 = vpop.f32.mrb[0].mxu0
    %v6277 = vadd.f32 0.0, %v6276
    %v6278 = vpop.f32.mrb[0].mxu0
    %6279 = vmatprep.mubr.f32.mxu0 %v5688
    %6280 = vmatmul.mubr.f32.gmra.mrb[0].mxu0 %v5687
    %v6281 = vpop.f32.mrb[0].mxu0
    %v6282 = vadd.f32 0.0, %v6281
    %v6283 = vpop.f32.mrb[0].mxu0
    %6284 = vmatprep.mubr.f32.mxu0 %v5697
    %6285 = vmatmul.mubr.f32.gmra.mrb[0].mxu0 %v5696
    %v6286 = vpop.f32.mrb[0].mxu0
    %v6287 = vadd.f32 0.0, %v6286
    %v6288 = vpop.f32.mrb[0].mxu0
    %6289 = vmatprep.mubr.f32.mxu0 %v5706
    %6290 = vmatmul.mubr.f32.gmra.mrb[0].mxu0 %v5705
    %v6291 = vpop.f32.mrb[0].mxu0
    %v6292 = vadd.f32 0.0, %v6291
    %v6293 = vpop.f32.mrb[0].mxu0
    %6294 = vmatprep.mubr.f32.mxu0 %v5715
    %6295 = vmatmul.mubr.f32.gmra.mrb[0].mxu0 %v5714
    %v6296 = vpop.f32.mrb[0].mxu0
    %v6297 = vadd.f32 0.0, %v6296
    %v6298 = vpop.f32.mrb[0].mxu0
    %6299 = vmatprep.mubr.f32.mxu0 %v5724
    %6300 = vmatmul.mubr.f32.gmra.mrb[0].mxu0 %v5723
    %v6301 = vpop.f32.mrb[0].mxu0
    %v6302 = vadd.f32 0.0, %v6301
    %v6303 = vpop.f32.mrb[0].mxu0
    %6304 = vmatprep.mubr.f32.mxu0 %v5733
    %6305 = vmatmul.mubr.f32.gmra.mrb[0].mxu0 %v5732
    %v6306 = vpop.f32.mrb[0].mxu0
    %v6307 = vadd.f32 0.0, %v6306
    %v6308 = vpop.f32.mrb[0].mxu0
    %6309 = vmatprep.mubr.f32.mxu0 %v5742
    %6310 = vmatmul.mubr.f32.gmra.mrb[0].mxu0 %v5741
    %v6311 = vpop.f32.mrb[0].mxu0
    %v6312 = vadd.f32 0.0, %v6311
    %v6313 = vpop.f32.mrb[0].mxu0
    %6314 = vmatprep.mubr.f32.mxu0 %v5751
    %6315 = vmatmul.mubr.f32.gmra.mrb[0].mxu0 %v5750
    %v6316 = vpop.f32.mrb[0].mxu0
    %v6317 = vadd.f32 0.0, %v6316
    %v6318 = vpop.f32.mrb[0].mxu0
    %6319 = vmatprep.mubr.f32.mxu0 %v5760
    %6320 = vmatmul.mubr.f32.gmra.mrb[0].mxu0 %v5759
    %v6321 = vpop.f32.mrb[0].mxu0
    %v6322 = vadd.f32 0.0, %v6321
    %v6323 = vpop.f32.mrb[0].mxu0
    %6324 = vmatprep.mubr.f32.mxu0 %v5769
    %6325 = vmatmul.mubr.f32.gmra.mrb[0].mxu0 %v5768
    %v6326 = vpop.f32.mrb[0].mxu0
    %v6327 = vadd.f32 0.0, %v6326
    %v6328 = vpop.f32.mrb[0].mxu0
    %6329 = vmatprep.mubr.f32.mxu0 %v5778
    %6330 = vmatmul.mubr.f32.gmra.mrb[0].mxu0 %v5777
    %v6331 = vpop.f32.mrb[0].mxu0
    %v6332 = vadd.f32 0.0, %v6331
    %v6333 = vpop.f32.mrb[0].mxu0
    %6334 = vmatprep.mubr.f32.mxu0 %v5787
    %6335 = vmatmul.mubr.f32.gmra.mrb[0].mxu0 %v5786
    %v6336 = vpop.f32.mrb[0].mxu0
    %v6337 = vadd.f32 0.0, %v6336
    %v6338 = vpop.f32.mrb[0].mxu0
    %6339 = vmatprep.mubr.f32.mxu0 %v5796
    %6340 = vmatmul.mubr.f32.gmra.mrb[0].mxu0 %v5795
    %v6341 = vpop.f32.mrb[0].mxu0
    %v6342 = vadd.f32 0.0, %v6341
    %v6343 = vpop.f32.mrb[0].mxu0
    %6344 = vmatprep.mubr.f32.mxu0 %v5805
    %6345 = vmatmul.mubr.f32.gmra.mrb[0].mxu0 %v5804
    %v6346 = vpop.f32.mrb[0].mxu0
    %v6347 = vadd.f32 0.0, %v6346
    %v6348 = vpop.f32.mrb[0].mxu0
    %6349 = vmatprep.mubr.f32.mxu0 %v5814
    %6350 = vmatmul.mubr.f32.gmra.mrb[0].mxu0 %v5813
    %v6351 = vpop.f32.mrb[0].mxu0
    %v6352 = vadd.f32 0.0, %v6351
    %v6353 = vpop.f32.mrb[0].mxu0
    %6354 = vmatprep.mubr.f32.mxu0 %v5823
    %6355 = vmatmul.mubr.f32.gmra.mrb[0].mxu0 %v5822
    %v6356 = vpop.f32.mrb[0].mxu0
    %v6357 = vadd.f32 0.0, %v6356
    %v6358 = vpop.f32.mrb[0].mxu0
    %6359 = vdwg.mxu0
    %6360 = vmatprep.subr.mxu0 0.0
    %6361 = vmatpush1.msra.mxu0 %v5863
    %6362 = vmatprep.subr.mxu0 0.0
    %6363 = vmatpush1.msra.mxu0 %v5864
    %6364 = vmatprep.subr.mxu0 0.0
    %6365 = vmatpush1.msra.mxu0 %v5865
    %6366 = vmatprep.subr.mxu0 0.0
    %6367 = vmatpush1.msra.mxu0 %v5866
    %6368 = vmatprep.subr.mxu0 0.0
    %6369 = vmatpush1.msra.mxu0 %v5867
    %6370 = vmatprep.subr.mxu0 0.0
    %6371 = vmatpush1.msra.mxu0 %v5868
    %6372 = vmatprep.subr.mxu0 0.0
    %6373 = vmatpush1.msra.mxu0 %v5869
    %6374 = vmatprep.subr.mxu0 0.0
    %6375 = vmatpush1.msra.mxu0 %v5870
    %6376 = vmatprep.subr.mxu0 0.0
    %6377 = vmatpush1.msra.mxu0 %v5871
    %6378 = vmatprep.subr.mxu0 0.0
    %6379 = vmatpush1.msra.mxu0 %v5872
    %6380 = vmatprep.subr.mxu0 0.0
    %6381 = vmatpush1.msra.mxu0 %v5873
    %6382 = vmatprep.subr.mxu0 0.0
    %6383 = vmatpush1.msra.mxu0 %v5874
    %6384 = vmatprep.subr.mxu0 0.0
    %6385 = vmatpush1.msra.mxu0 %v5875
    %6386 = vmatprep.subr.mxu0 0.0
    %6387 = vmatpush1.msra.mxu0 %v5876
    %6388 = vmatprep.subr.mxu0 0.0
    %6389 = vmatpush1.msra.mxu0 %v5877
    %6390 = vmatprep.subr.mxu0 0.0
    %6391 = vmatpush1.msra.mxu0 %v5878
    %6392 = vmatprep.subr.mxu0 0.0
    %6393 = vmatpush1.msra.mxu0 %v5879
    %6394 = vmatprep.subr.mxu0 0.0
    %6395 = vmatpush1.msra.mxu0 %v5880
    %6396 = vmatprep.subr.mxu0 0.0
    %6397 = vmatpush1.msra.mxu0 %v5881
    %6398 = vmatprep.subr.mxu0 0.0
    %6399 = vmatpush1.msra.mxu0 %v5882
    %6400 = vmatprep.subr.mxu0 0.0
    %6401 = vmatpush1.msra.mxu0 %v5883
    %6402 = vmatprep.subr.mxu0 0.0
    %6403 = vmatpush1.msra.mxu0 %v5884
    %6404 = vmatprep.subr.mxu0 0.0
    %6405 = vmatpush1.msra.mxu0 %v5885
    %6406 = vmatprep.subr.mxu0 0.0
    %6407 = vmatpush1.msra.mxu0 %v5886
    %6408 = vmatprep.subr.mxu0 0.0
    %6409 = vmatpush1.msra.mxu0 %v5887
    %6410 = vmatprep.subr.mxu0 0.0
    %6411 = vmatpush1.msra.mxu0 %v5888
    %6412 = vmatprep.subr.mxu0 0.0
    %6413 = vmatpush1.msra.mxu0 %v5889
    %6414 = vmatprep.subr.mxu0 0.0
    %6415 = vmatpush1.msra.mxu0 %v5890
    %6416 = vmatprep.subr.mxu0 0.0
    %6417 = vmatpush1.msra.mxu0 %v5891
    %6418 = vmatprep.subr.mxu0 0.0
    %6419 = vmatpush1.msra.mxu0 %v5892
    %6420 = vmatprep.subr.mxu0 0.0
    %6421 = vmatpush1.msra.mxu0 %v5893
    %6422 = vmatprep.subr.mxu0 0.0
    %6423 = vmatpush1.msra.mxu0 %v5894
    %6424 = vmatprep.mubr.f32.mxu0 %v5258
    %6425 = vmatmul.mubr.f32.gmra.mrb[0].mxu0 %v5257
    %v6426 = vpop.f32.mrb[0].mxu0
    %v6427 = vadd.f32 %v6042, %v6426
    %v6428 = vpop.f32.mrb[0].mxu0
    %6429 = vmatprep.mubr.f32.mxu0 %v5267
    %6430 = vmatmul.mubr.f32.gmra.mrb[0].mxu0 %v5266
    %v6431 = vpop.f32.mrb[0].mxu0
    %v6432 = vadd.f32 %v6047, %v6431
    %v6433 = vpop.f32.mrb[0].mxu0
    %6434 = vmatprep.mubr.f32.mxu0 %v5276
    %6435 = vmatmul.mubr.f32.gmra.mrb[0].mxu0 %v5275
    %v6436 = vpop.f32.mrb[0].mxu0
    %v6437 = vadd.f32 %v6052, %v6436
    %v6438 = vpop.f32.mrb[0].mxu0
    %6439 = vmatprep.mubr.f32.mxu0 %v5285
    %6440 = vmatmul.mubr.f32.gmra.mrb[0].mxu0 %v5284
    %v6441 = vpop.f32.mrb[0].mxu0
    %v6442 = vadd.f32 %v6057, %v6441
    %v6443 = vpop.f32.mrb[0].mxu0
    %6444 = vmatprep.mubr.f32.mxu0 %v5294
    %6445 = vmatmul.mubr.f32.gmra.mrb[0].mxu0 %v5293
    %v6446 = vpop.f32.mrb[0].mxu0
    %v6447 = vadd.f32 %v6062, %v6446
    %v6448 = vpop.f32.mrb[0].mxu0
    %6449 = vmatprep.mubr.f32.mxu0 %v5303
    %6450 = vmatmul.mubr.f32.gmra.mrb[0].mxu0 %v5302
    %v6451 = vpop.f32.mrb[0].mxu0
    %v6452 = vadd.f32 %v6067, %v6451
    %v6453 = vpop.f32.mrb[0].mxu0
    %6454 = vmatprep.mubr.f32.mxu0 %v5312
    %6455 = vmatmul.mubr.f32.gmra.mrb[0].mxu0 %v5311
    %v6456 = vpop.f32.mrb[0].mxu0
    %v6457 = vadd.f32 %v6072, %v6456
    %v6458 = vpop.f32.mrb[0].mxu0
    %6459 = vmatprep.mubr.f32.mxu0 %v5321
    %6460 = vmatmul.mubr.f32.gmra.mrb[0].mxu0 %v5320
    %v6461 = vpop.f32.mrb[0].mxu0
    %v6462 = vadd.f32 %v6077, %v6461
    %v6463 = vpop.f32.mrb[0].mxu0
    %6464 = vmatprep.mubr.f32.mxu0 %v5330
    %6465 = vmatmul.mubr.f32.gmra.mrb[0].mxu0 %v5329
    %v6466 = vpop.f32.mrb[0].mxu0
    %v6467 = vadd.f32 %v6082, %v6466
    %v6468 = vpop.f32.mrb[0].mxu0
    %6469 = vmatprep.mubr.f32.mxu0 %v5339
    %6470 = vmatmul.mubr.f32.gmra.mrb[0].mxu0 %v5338
    %v6471 = vpop.f32.mrb[0].mxu0
    %v6472 = vadd.f32 %v6087, %v6471
    %v6473 = vpop.f32.mrb[0].mxu0
    %6474 = vmatprep.mubr.f32.mxu0 %v5348
    %6475 = vmatmul.mubr.f32.gmra.mrb[0].mxu0 %v5347
    %v6476 = vpop.f32.mrb[0].mxu0
    %v6477 = vadd.f32 %v6092, %v6476
    %v6478 = vpop.f32.mrb[0].mxu0
    %6479 = vmatprep.mubr.f32.mxu0 %v5357
    %6480 = vmatmul.mubr.f32.gmra.mrb[0].mxu0 %v5356
    %v6481 = vpop.f32.mrb[0].mxu0
    %v6482 = vadd.f32 %v6097, %v6481
    %v6483 = vpop.f32.mrb[0].mxu0
    %6484 = vmatprep.mubr.f32.mxu0 %v5366
    %6485 = vmatmul.mubr.f32.gmra.mrb[0].mxu0 %v5365
    %v6486 = vpop.f32.mrb[0].mxu0
    %v6487 = vadd.f32 %v6102, %v6486
    %v6488 = vpop.f32.mrb[0].mxu0
    %6489 = vmatprep.mubr.f32.mxu0 %v5375
    %6490 = vmatmul.mubr.f32.gmra.mrb[0].mxu0 %v5374
    %v6491 = vpop.f32.mrb[0].mxu0
    %v6492 = vadd.f32 %v6107, %v6491
    %v6493 = vpop.f32.mrb[0].mxu0
    %6494 = vmatprep.mubr.f32.mxu0 %v5384
    %6495 = vmatmul.mubr.f32.gmra.mrb[0].mxu0 %v5383
    %v6496 = vpop.f32.mrb[0].mxu0
    %v6497 = vadd.f32 %v6112, %v6496
    %v6498 = vpop.f32.mrb[0].mxu0
    %6499 = vmatprep.mubr.f32.mxu0 %v5393
    %6500 = vmatmul.mubr.f32.gmra.mrb[0].mxu0 %v5392
    %v6501 = vpop.f32.mrb[0].mxu0
    %v6502 = vadd.f32 %v6117, %v6501
    %v6503 = vpop.f32.mrb[0].mxu0
    %6504 = vmatprep.mubr.f32.mxu0 %v5402
    %6505 = vmatmul.mubr.f32.gmra.mrb[0].mxu0 %v5401
    %v6506 = vpop.f32.mrb[0].mxu0
    %v6507 = vadd.f32 %v6122, %v6506
    %v6508 = vpop.f32.mrb[0].mxu0
    %6509 = vmatprep.mubr.f32.mxu0 %v5411
    %6510 = vmatmul.mubr.f32.gmra.mrb[0].mxu0 %v5410
    %v6511 = vpop.f32.mrb[0].mxu0
    %v6512 = vadd.f32 %v6127, %v6511
    %v6513 = vpop.f32.mrb[0].mxu0
    %6514 = vmatprep.mubr.f32.mxu0 %v5420
    %6515 = vmatmul.mubr.f32.gmra.mrb[0].mxu0 %v5419
    %v6516 = vpop.f32.mrb[0].mxu0
    %v6517 = vadd.f32 %v6132, %v6516
    %v6518 = vpop.f32.mrb[0].mxu0
    %6519 = vmatprep.mubr.f32.mxu0 %v5429
    %6520 = vmatmul.mubr.f32.gmra.mrb[0].mxu0 %v5428
    %v6521 = vpop.f32.mrb[0].mxu0
    %v6522 = vadd.f32 %v6137, %v6521
    %v6523 = vpop.f32.mrb[0].mxu0
    %6524 = vmatprep.mubr.f32.mxu0 %v5438
    %6525 = vmatmul.mubr.f32.gmra.mrb[0].mxu0 %v5437
    %v6526 = vpop.f32.mrb[0].mxu0
    %v6527 = vadd.f32 %v6142, %v6526
    %v6528 = vpop.f32.mrb[0].mxu0
    %6529 = vmatprep.mubr.f32.mxu0 %v5447
    %6530 = vmatmul.mubr.f32.gmra.mrb[0].mxu0 %v5446
    %v6531 = vpop.f32.mrb[0].mxu0
    %v6532 = vadd.f32 %v6147, %v6531
    %v6533 = vpop.f32.mrb[0].mxu0
    %6534 = vmatprep.mubr.f32.mxu0 %v5456
    %6535 = vmatmul.mubr.f32.gmra.mrb[0].mxu0 %v5455
    %v6536 = vpop.f32.mrb[0].mxu0
    %v6537 = vadd.f32 %v6152, %v6536
    %v6538 = vpop.f32.mrb[0].mxu0
    %6539 = vmatprep.mubr.f32.mxu0 %v5465
    %6540 = vmatmul.mubr.f32.gmra.mrb[0].mxu0 %v5464
    %v6541 = vpop.f32.mrb[0].mxu0
    %v6542 = vadd.f32 %v6157, %v6541
    %v6543 = vpop.f32.mrb[0].mxu0
    %6544 = vmatprep.mubr.f32.mxu0 %v5474
    %6545 = vmatmul.mubr.f32.gmra.mrb[0].mxu0 %v5473
    %v6546 = vpop.f32.mrb[0].mxu0
    %v6547 = vadd.f32 %v6162, %v6546
    %v6548 = vpop.f32.mrb[0].mxu0
    %6549 = vmatprep.mubr.f32.mxu0 %v5483
    %6550 = vmatmul.mubr.f32.gmra.mrb[0].mxu0 %v5482
    %v6551 = vpop.f32.mrb[0].mxu0
    %v6552 = vadd.f32 %v6167, %v6551
    %v6553 = vpop.f32.mrb[0].mxu0
    %6554 = vmatprep.mubr.f32.mxu0 %v5492
    %6555 = vmatmul.mubr.f32.gmra.mrb[0].mxu0 %v5491
    %v6556 = vpop.f32.mrb[0].mxu0
    %v6557 = vadd.f32 %v6172, %v6556
    %v6558 = vpop.f32.mrb[0].mxu0
    %6559 = vmatprep.mubr.f32.mxu0 %v5501
    %6560 = vmatmul.mubr.f32.gmra.mrb[0].mxu0 %v5500
    %v6561 = vpop.f32.mrb[0].mxu0
    %v6562 = vadd.f32 %v6177, %v6561
    %v6563 = vpop.f32.mrb[0].mxu0
    %6564 = vmatprep.mubr.f32.mxu0 %v5510
    %6565 = vmatmul.mubr.f32.gmra.mrb[0].mxu0 %v5509
    %v6566 = vpop.f32.mrb[0].mxu0
    %v6567 = vadd.f32 %v6182, %v6566
    %v6568 = vpop.f32.mrb[0].mxu0
    %6569 = vmatprep.mubr.f32.mxu0 %v5519
    %6570 = vmatmul.mubr.f32.gmra.mrb[0].mxu0 %v5518
    %v6571 = vpop.f32.mrb[0].mxu0
    %v6572 = vadd.f32 %v6187, %v6571
    %v6573 = vpop.f32.mrb[0].mxu0
    %6574 = vmatprep.mubr.f32.mxu0 %v5528
    %6575 = vmatmul.mubr.f32.gmra.mrb[0].mxu0 %v5527
    %v6576 = vpop.f32.mrb[0].mxu0
    %v6577 = vadd.f32 %v6192, %v6576
    %v6578 = vpop.f32.mrb[0].mxu0
    %6579 = vmatprep.mubr.f32.mxu0 %v5537
    %6580 = vmatmul.mubr.f32.gmra.mrb[0].mxu0 %v5536
    %v6581 = vpop.f32.mrb[0].mxu0
    %v6582 = vadd.f32 %v6197, %v6581
    %v6583 = vpop.f32.mrb[0].mxu0
    %6584 = vmatprep.mubr.f32.mxu0 %v5546
    %6585 = vmatmul.mubr.f32.gmra.mrb[0].mxu0 %v5545
    %v6586 = vpop.f32.mrb[0].mxu0
    %v6587 = vadd.f32 %v6202, %v6586
    %v6588 = vpop.f32.mrb[0].mxu0
    %6589 = vmatprep.mubr.f32.mxu0 %v5555
    %6590 = vmatmul.mubr.f32.gmra.mrb[0].mxu0 %v5554
    %v6591 = vpop.f32.mrb[0].mxu0
    %v6592 = vadd.f32 %v6207, %v6591
    %v6593 = vpop.f32.mrb[0].mxu0
    %6594 = vmatprep.mubr.f32.mxu0 %v5564
    %6595 = vmatmul.mubr.f32.gmra.mrb[0].mxu0 %v5563
    %v6596 = vpop.f32.mrb[0].mxu0
    %v6597 = vadd.f32 %v6212, %v6596
    %v6598 = vpop.f32.mrb[0].mxu0
    %6599 = vmatprep.mubr.f32.mxu0 %v5573
    %6600 = vmatmul.mubr.f32.gmra.mrb[0].mxu0 %v5572
    %v6601 = vpop.f32.mrb[0].mxu0
    %v6602 = vadd.f32 %v6217, %v6601
    %v6603 = vpop.f32.mrb[0].mxu0
    %6604 = vmatprep.mubr.f32.mxu0 %v5582
    %6605 = vmatmul.mubr.f32.gmra.mrb[0].mxu0 %v5581
    %v6606 = vpop.f32.mrb[0].mxu0
    %v6607 = vadd.f32 %v6222, %v6606
    %v6608 = vpop.f32.mrb[0].mxu0
    %6609 = vmatprep.mubr.f32.mxu0 %v5591
    %6610 = vmatmul.mubr.f32.gmra.mrb[0].mxu0 %v5590
    %v6611 = vpop.f32.mrb[0].mxu0
    %v6612 = vadd.f32 %v6227, %v6611
    %v6613 = vpop.f32.mrb[0].mxu0
    %6614 = vmatprep.mubr.f32.mxu0 %v5600
    %6615 = vmatmul.mubr.f32.gmra.mrb[0].mxu0 %v5599
    %v6616 = vpop.f32.mrb[0].mxu0
    %v6617 = vadd.f32 %v6232, %v6616
    %v6618 = vpop.f32.mrb[0].mxu0
    %6619 = vmatprep.mubr.f32.mxu0 %v5609
    %6620 = vmatmul.mubr.f32.gmra.mrb[0].mxu0 %v5608
    %v6621 = vpop.f32.mrb[0].mxu0
    %v6622 = vadd.f32 %v6237, %v6621
    %v6623 = vpop.f32.mrb[0].mxu0
    %6624 = vmatprep.mubr.f32.mxu0 %v5618
    %6625 = vmatmul.mubr.f32.gmra.mrb[0].mxu0 %v5617
    %v6626 = vpop.f32.mrb[0].mxu0
    %v6627 = vadd.f32 %v6242, %v6626
    %v6628 = vpop.f32.mrb[0].mxu0
    %6629 = vmatprep.mubr.f32.mxu0 %v5627
    %6630 = vmatmul.mubr.f32.gmra.mrb[0].mxu0 %v5626
    %v6631 = vpop.f32.mrb[0].mxu0
    %v6632 = vadd.f32 %v6247, %v6631
    %v6633 = vpop.f32.mrb[0].mxu0
    %6634 = vmatprep.mubr.f32.mxu0 %v5636
    %6635 = vmatmul.mubr.f32.gmra.mrb[0].mxu0 %v5635
    %v6636 = vpop.f32.mrb[0].mxu0
    %v6637 = vadd.f32 %v6252, %v6636
    %v6638 = vpop.f32.mrb[0].mxu0
    %6639 = vmatprep.mubr.f32.mxu0 %v5645
    %6640 = vmatmul.mubr.f32.gmra.mrb[0].mxu0 %v5644
    %v6641 = vpop.f32.mrb[0].mxu0
    %v6642 = vadd.f32 %v6257, %v6641
    %v6643 = vpop.f32.mrb[0].mxu0
    %6644 = vmatprep.mubr.f32.mxu0 %v5654
    %6645 = vmatmul.mubr.f32.gmra.mrb[0].mxu0 %v5653
    %v6646 = vpop.f32.mrb[0].mxu0
    %v6647 = vadd.f32 %v6262, %v6646
    %v6648 = vpop.f32.mrb[0].mxu0
    %6649 = vmatprep.mubr.f32.mxu0 %v5663
    %6650 = vmatmul.mubr.f32.gmra.mrb[0].mxu0 %v5662
    %v6651 = vpop.f32.mrb[0].mxu0
    %v6652 = vadd.f32 %v6267, %v6651
    %v6653 = vpop.f32.mrb[0].mxu0
    %6654 = vmatprep.mubr.f32.mxu0 %v5672
    %6655 = vmatmul.mubr.f32.gmra.mrb[0].mxu0 %v5671
    %v6656 = vpop.f32.mrb[0].mxu0
    %v6657 = vadd.f32 %v6272, %v6656
    %v6658 = vpop.f32.mrb[0].mxu0
    %6659 = vmatprep.mubr.f32.mxu0 %v5681
    %6660 = vmatmul.mubr.f32.gmra.mrb[0].mxu0 %v5680
    %v6661 = vpop.f32.mrb[0].mxu0
    %v6662 = vadd.f32 %v6277, %v6661
    %v6663 = vpop.f32.mrb[0].mxu0
    %6664 = vmatprep.mubr.f32.mxu0 %v5690
    %6665 = vmatmul.mubr.f32.gmra.mrb[0].mxu0 %v5689
    %v6666 = vpop.f32.mrb[0].mxu0
    %v6667 = vadd.f32 %v6282, %v6666
    %v6668 = vpop.f32.mrb[0].mxu0
    %6669 = vmatprep.mubr.f32.mxu0 %v5699
    %6670 = vmatmul.mubr.f32.gmra.mrb[0].mxu0 %v5698
    %v6671 = vpop.f32.mrb[0].mxu0
    %v6672 = vadd.f32 %v6287, %v6671
    %v6673 = vpop.f32.mrb[0].mxu0
    %6674 = vmatprep.mubr.f32.mxu0 %v5708
    %6675 = vmatmul.mubr.f32.gmra.mrb[0].mxu0 %v5707
    %v6676 = vpop.f32.mrb[0].mxu0
    %v6677 = vadd.f32 %v6292, %v6676
    %v6678 = vpop.f32.mrb[0].mxu0
    %6679 = vmatprep.mubr.f32.mxu0 %v5717
    %6680 = vmatmul.mubr.f32.gmra.mrb[0].mxu0 %v5716
    %v6681 = vpop.f32.mrb[0].mxu0
    %v6682 = vadd.f32 %v6297, %v6681
    %v6683 = vpop.f32.mrb[0].mxu0
    %6684 = vmatprep.mubr.f32.mxu0 %v5726
    %6685 = vmatmul.mubr.f32.gmra.mrb[0].mxu0 %v5725
    %v6686 = vpop.f32.mrb[0].mxu0
    %v6687 = vadd.f32 %v6302, %v6686
    %v6688 = vpop.f32.mrb[0].mxu0
    %6689 = vmatprep.mubr.f32.mxu0 %v5735
    %6690 = vmatmul.mubr.f32.gmra.mrb[0].mxu0 %v5734
    %v6691 = vpop.f32.mrb[0].mxu0
    %v6692 = vadd.f32 %v6307, %v6691
    %v6693 = vpop.f32.mrb[0].mxu0
    %6694 = vmatprep.mubr.f32.mxu0 %v5744
    %6695 = vmatmul.mubr.f32.gmra.mrb[0].mxu0 %v5743
    %v6696 = vpop.f32.mrb[0].mxu0
    %v6697 = vadd.f32 %v6312, %v6696
    %v6698 = vpop.f32.mrb[0].mxu0
    %6699 = vmatprep.mubr.f32.mxu0 %v5753
    %6700 = vmatmul.mubr.f32.gmra.mrb[0].mxu0 %v5752
    %v6701 = vpop.f32.mrb[0].mxu0
    %v6702 = vadd.f32 %v6317, %v6701
    %v6703 = vpop.f32.mrb[0].mxu0
    %6704 = vmatprep.mubr.f32.mxu0 %v5762
    %6705 = vmatmul.mubr.f32.gmra.mrb[0].mxu0 %v5761
    %v6706 = vpop.f32.mrb[0].mxu0
    %v6707 = vadd.f32 %v6322, %v6706
    %v6708 = vpop.f32.mrb[0].mxu0
    %6709 = vmatprep.mubr.f32.mxu0 %v5771
    %6710 = vmatmul.mubr.f32.gmra.mrb[0].mxu0 %v5770
    %v6711 = vpop.f32.mrb[0].mxu0
    %v6712 = vadd.f32 %v6327, %v6711
    %v6713 = vpop.f32.mrb[0].mxu0
    %6714 = vmatprep.mubr.f32.mxu0 %v5780
    %6715 = vmatmul.mubr.f32.gmra.mrb[0].mxu0 %v5779
    %v6716 = vpop.f32.mrb[0].mxu0
    %v6717 = vadd.f32 %v6332, %v6716
    %v6718 = vpop.f32.mrb[0].mxu0
    %6719 = vmatprep.mubr.f32.mxu0 %v5789
    %6720 = vmatmul.mubr.f32.gmra.mrb[0].mxu0 %v5788
    %v6721 = vpop.f32.mrb[0].mxu0
    %v6722 = vadd.f32 %v6337, %v6721
    %v6723 = vpop.f32.mrb[0].mxu0
    %6724 = vmatprep.mubr.f32.mxu0 %v5798
    %6725 = vmatmul.mubr.f32.gmra.mrb[0].mxu0 %v5797
    %v6726 = vpop.f32.mrb[0].mxu0
    %v6727 = vadd.f32 %v6342, %v6726
    %v6728 = vpop.f32.mrb[0].mxu0
    %6729 = vmatprep.mubr.f32.mxu0 %v5807
    %6730 = vmatmul.mubr.f32.gmra.mrb[0].mxu0 %v5806
    %v6731 = vpop.f32.mrb[0].mxu0
    %v6732 = vadd.f32 %v6347, %v6731
    %v6733 = vpop.f32.mrb[0].mxu0
    %6734 = vmatprep.mubr.f32.mxu0 %v5816
    %6735 = vmatmul.mubr.f32.gmra.mrb[0].mxu0 %v5815
    %v6736 = vpop.f32.mrb[0].mxu0
    %v6737 = vadd.f32 %v6352, %v6736
    %v6738 = vpop.f32.mrb[0].mxu0
    %6739 = vmatprep.mubr.f32.mxu0 %v5825
    %6740 = vmatmul.mubr.f32.gmra.mrb[0].mxu0 %v5824
    %v6741 = vpop.f32.mrb[0].mxu0
    %v6742 = vadd.f32 %v6357, %v6741
    %v6743 = vpop.f32.mrb[0].mxu0
    %6744 = vdwg.mxu0
    %6745 = vmatprep.subr.mxu0 0.0
    %6746 = vmatpush1.msra.mxu0 %v5895
    %6747 = vmatprep.subr.mxu0 0.0
    %6748 = vmatpush1.msra.mxu0 %v5896
    %6749 = vmatprep.subr.mxu0 0.0
    %6750 = vmatpush1.msra.mxu0 %v5897
    %6751 = vmatprep.subr.mxu0 0.0
    %6752 = vmatpush1.msra.mxu0 %v5898
    %6753 = vmatprep.subr.mxu0 0.0
    %6754 = vmatpush1.msra.mxu0 %v5899
    %6755 = vmatprep.subr.mxu0 0.0
    %6756 = vmatpush1.msra.mxu0 %v5900
    %6757 = vmatprep.subr.mxu0 0.0
    %6758 = vmatpush1.msra.mxu0 %v5901
    %6759 = vmatprep.subr.mxu0 0.0
    %6760 = vmatpush1.msra.mxu0 %v5902
    %6761 = vmatprep.subr.mxu0 0.0
    %6762 = vmatpush1.msra.mxu0 %v5903
    %6763 = vmatprep.subr.mxu0 0.0
    %6764 = vmatpush1.msra.mxu0 %v5904
    %6765 = vmatprep.subr.mxu0 0.0
    %6766 = vmatpush1.msra.mxu0 %v5905
    %6767 = vmatprep.subr.mxu0 0.0
    %6768 = vmatpush1.msra.mxu0 %v5906
    %6769 = vmatprep.subr.mxu0 0.0
    %6770 = vmatpush1.msra.mxu0 %v5907
    %6771 = vmatprep.subr.mxu0 0.0
    %6772 = vmatpush1.msra.mxu0 %v5908
    %6773 = vmatprep.subr.mxu0 0.0
    %6774 = vmatpush1.msra.mxu0 %v5909
    %6775 = vmatprep.subr.mxu0 0.0
    %6776 = vmatpush1.msra.mxu0 %v5910
    %6777 = vmatprep.subr.mxu0 0.0
    %6778 = vmatpush1.msra.mxu0 %v5911
    %6779 = vmatprep.subr.mxu0 0.0
    %6780 = vmatpush1.msra.mxu0 %v5912
    %6781 = vmatprep.subr.mxu0 0.0
    %6782 = vmatpush1.msra.mxu0 %v5913
    %6783 = vmatprep.subr.mxu0 0.0
    %6784 = vmatpush1.msra.mxu0 %v5914
    %6785 = vmatprep.subr.mxu0 0.0
    %6786 = vmatpush1.msra.mxu0 %v5915
    %6787 = vmatprep.subr.mxu0 0.0
    %6788 = vmatpush1.msra.mxu0 %v5916
    %6789 = vmatprep.subr.mxu0 0.0
    %6790 = vmatpush1.msra.mxu0 %v5917
    %6791 = vmatprep.subr.mxu0 0.0
    %6792 = vmatpush1.msra.mxu0 %v5918
    %6793 = vmatprep.subr.mxu0 0.0
    %6794 = vmatpush1.msra.mxu0 %v5919
    %6795 = vmatprep.subr.mxu0 0.0
    %6796 = vmatpush1.msra.mxu0 %v5920
    %6797 = vmatprep.subr.mxu0 0.0
    %6798 = vmatpush1.msra.mxu0 %v5921
    %6799 = vmatprep.subr.mxu0 0.0
    %6800 = vmatpush1.msra.mxu0 %v5922
    %6801 = vmatprep.subr.mxu0 0.0
    %6802 = vmatpush1.msra.mxu0 %v5923
    %6803 = vmatprep.subr.mxu0 0.0
    %6804 = vmatpush1.msra.mxu0 %v5924
    %6805 = vmatprep.subr.mxu0 0.0
    %6806 = vmatpush1.msra.mxu0 %v5925
    %6807 = vmatprep.subr.mxu0 0.0
    %6808 = vmatpush1.msra.mxu0 %v5926
    %6809 = vmatprep.mubr.f32.mxu0 %v5260
    %6810 = vmatmul.mubr.f32.gmra.mrb[0].mxu0 %v5259
    %v6811 = vpop.f32.mrb[0].mxu0
    %v6812 = vadd.f32 %v6427, %v6811
    %v6813 = vpop.f32.mrb[0].mxu0
    %6814 = vmatprep.mubr.f32.mxu0 %v5269
    %6815 = vmatmul.mubr.f32.gmra.mrb[0].mxu0 %v5268
    %v6816 = vpop.f32.mrb[0].mxu0
    %v6817 = vadd.f32 %v6432, %v6816
    %v6818 = vpop.f32.mrb[0].mxu0
    %6819 = vmatprep.mubr.f32.mxu0 %v5278
    %6820 = vmatmul.mubr.f32.gmra.mrb[0].mxu0 %v5277
    %v6821 = vpop.f32.mrb[0].mxu0
    %v6822 = vadd.f32 %v6437, %v6821
    %v6823 = vpop.f32.mrb[0].mxu0
    %6824 = vmatprep.mubr.f32.mxu0 %v5287
    %6825 = vmatmul.mubr.f32.gmra.mrb[0].mxu0 %v5286
    %v6826 = vpop.f32.mrb[0].mxu0
    %v6827 = vadd.f32 %v6442, %v6826
    %v6828 = vpop.f32.mrb[0].mxu0
    %6829 = vmatprep.mubr.f32.mxu0 %v5296
    %6830 = vmatmul.mubr.f32.gmra.mrb[0].mxu0 %v5295
    %v6831 = vpop.f32.mrb[0].mxu0
    %v6832 = vadd.f32 %v6447, %v6831
    %v6833 = vpop.f32.mrb[0].mxu0
    %6834 = vmatprep.mubr.f32.mxu0 %v5305
    %6835 = vmatmul.mubr.f32.gmra.mrb[0].mxu0 %v5304
    %v6836 = vpop.f32.mrb[0].mxu0
    %v6837 = vadd.f32 %v6452, %v6836
    %v6838 = vpop.f32.mrb[0].mxu0
    %6839 = vmatprep.mubr.f32.mxu0 %v5314
    %6840 = vmatmul.mubr.f32.gmra.mrb[0].mxu0 %v5313
    %v6841 = vpop.f32.mrb[0].mxu0
    %v6842 = vadd.f32 %v6457, %v6841
    %v6843 = vpop.f32.mrb[0].mxu0
    %6844 = vmatprep.mubr.f32.mxu0 %v5323
    %6845 = vmatmul.mubr.f32.gmra.mrb[0].mxu0 %v5322
    %v6846 = vpop.f32.mrb[0].mxu0
    %v6847 = vadd.f32 %v6462, %v6846
    %v6848 = vpop.f32.mrb[0].mxu0
    %6849 = vmatprep.mubr.f32.mxu0 %v5332
    %6850 = vmatmul.mubr.f32.gmra.mrb[0].mxu0 %v5331
    %v6851 = vpop.f32.mrb[0].mxu0
    %v6852 = vadd.f32 %v6467, %v6851
    %v6853 = vpop.f32.mrb[0].mxu0
    %6854 = vmatprep.mubr.f32.mxu0 %v5341
    %6855 = vmatmul.mubr.f32.gmra.mrb[0].mxu0 %v5340
    %v6856 = vpop.f32.mrb[0].mxu0
    %v6857 = vadd.f32 %v6472, %v6856
    %v6858 = vpop.f32.mrb[0].mxu0
    %6859 = vmatprep.mubr.f32.mxu0 %v5350
    %6860 = vmatmul.mubr.f32.gmra.mrb[0].mxu0 %v5349
    %v6861 = vpop.f32.mrb[0].mxu0
    %v6862 = vadd.f32 %v6477, %v6861
    %v6863 = vpop.f32.mrb[0].mxu0
    %6864 = vmatprep.mubr.f32.mxu0 %v5359
    %6865 = vmatmul.mubr.f32.gmra.mrb[0].mxu0 %v5358
    %v6866 = vpop.f32.mrb[0].mxu0
    %v6867 = vadd.f32 %v6482, %v6866
    %v6868 = vpop.f32.mrb[0].mxu0
    %6869 = vmatprep.mubr.f32.mxu0 %v5368
    %6870 = vmatmul.mubr.f32.gmra.mrb[0].mxu0 %v5367
    %v6871 = vpop.f32.mrb[0].mxu0
    %v6872 = vadd.f32 %v6487, %v6871
    %v6873 = vpop.f32.mrb[0].mxu0
    %6874 = vmatprep.mubr.f32.mxu0 %v5377
    %6875 = vmatmul.mubr.f32.gmra.mrb[0].mxu0 %v5376
    %v6876 = vpop.f32.mrb[0].mxu0
    %v6877 = vadd.f32 %v6492, %v6876
    %v6878 = vpop.f32.mrb[0].mxu0
    %6879 = vmatprep.mubr.f32.mxu0 %v5386
    %6880 = vmatmul.mubr.f32.gmra.mrb[0].mxu0 %v5385
    %v6881 = vpop.f32.mrb[0].mxu0
    %v6882 = vadd.f32 %v6497, %v6881
    %v6883 = vpop.f32.mrb[0].mxu0
    %6884 = vmatprep.mubr.f32.mxu0 %v5395
    %6885 = vmatmul.mubr.f32.gmra.mrb[0].mxu0 %v5394
    %v6886 = vpop.f32.mrb[0].mxu0
    %v6887 = vadd.f32 %v6502, %v6886
    %v6888 = vpop.f32.mrb[0].mxu0
    %6889 = vmatprep.mubr.f32.mxu0 %v5404
    %6890 = vmatmul.mubr.f32.gmra.mrb[0].mxu0 %v5403
    %v6891 = vpop.f32.mrb[0].mxu0
    %v6892 = vadd.f32 %v6507, %v6891
    %v6893 = vpop.f32.mrb[0].mxu0
    %6894 = vmatprep.mubr.f32.mxu0 %v5413
    %6895 = vmatmul.mubr.f32.gmra.mrb[0].mxu0 %v5412
    %v6896 = vpop.f32.mrb[0].mxu0
    %v6897 = vadd.f32 %v6512, %v6896
    %v6898 = vpop.f32.mrb[0].mxu0
    %6899 = vmatprep.mubr.f32.mxu0 %v5422
    %6900 = vmatmul.mubr.f32.gmra.mrb[0].mxu0 %v5421
    %v6901 = vpop.f32.mrb[0].mxu0
    %v6902 = vadd.f32 %v6517, %v6901
    %v6903 = vpop.f32.mrb[0].mxu0
    %6904 = vmatprep.mubr.f32.mxu0 %v5431
    %6905 = vmatmul.mubr.f32.gmra.mrb[0].mxu0 %v5430
    %v6906 = vpop.f32.mrb[0].mxu0
    %v6907 = vadd.f32 %v6522, %v6906
    %v6908 = vpop.f32.mrb[0].mxu0
    %6909 = vmatprep.mubr.f32.mxu0 %v5440
    %6910 = vmatmul.mubr.f32.gmra.mrb[0].mxu0 %v5439
    %v6911 = vpop.f32.mrb[0].mxu0
    %v6912 = vadd.f32 %v6527, %v6911
    %v6913 = vpop.f32.mrb[0].mxu0
    %6914 = vmatprep.mubr.f32.mxu0 %v5449
    %6915 = vmatmul.mubr.f32.gmra.mrb[0].mxu0 %v5448
    %v6916 = vpop.f32.mrb[0].mxu0
    %v6917 = vadd.f32 %v6532, %v6916
    %v6918 = vpop.f32.mrb[0].mxu0
    %6919 = vmatprep.mubr.f32.mxu0 %v5458
    %6920 = vmatmul.mubr.f32.gmra.mrb[0].mxu0 %v5457
    %v6921 = vpop.f32.mrb[0].mxu0
    %v6922 = vadd.f32 %v6537, %v6921
    %v6923 = vpop.f32.mrb[0].mxu0
    %6924 = vmatprep.mubr.f32.mxu0 %v5467
    %6925 = vmatmul.mubr.f32.gmra.mrb[0].mxu0 %v5466
    %v6926 = vpop.f32.mrb[0].mxu0
    %v6927 = vadd.f32 %v6542, %v6926
    %v6928 = vpop.f32.mrb[0].mxu0
    %6929 = vmatprep.mubr.f32.mxu0 %v5476
    %6930 = vmatmul.mubr.f32.gmra.mrb[0].mxu0 %v5475
    %v6931 = vpop.f32.mrb[0].mxu0
    %v6932 = vadd.f32 %v6547, %v6931
    %v6933 = vpop.f32.mrb[0].mxu0
    %6934 = vmatprep.mubr.f32.mxu0 %v5485
    %6935 = vmatmul.mubr.f32.gmra.mrb[0].mxu0 %v5484
    %v6936 = vpop.f32.mrb[0].mxu0
    %v6937 = vadd.f32 %v6552, %v6936
    %v6938 = vpop.f32.mrb[0].mxu0
    %6939 = vmatprep.mubr.f32.mxu0 %v5494
    %6940 = vmatmul.mubr.f32.gmra.mrb[0].mxu0 %v5493
    %v6941 = vpop.f32.mrb[0].mxu0
    %v6942 = vadd.f32 %v6557, %v6941
    %v6943 = vpop.f32.mrb[0].mxu0
    %6944 = vmatprep.mubr.f32.mxu0 %v5503
    %6945 = vmatmul.mubr.f32.gmra.mrb[0].mxu0 %v5502
    %v6946 = vpop.f32.mrb[0].mxu0
    %v6947 = vadd.f32 %v6562, %v6946
    %v6948 = vpop.f32.mrb[0].mxu0
    %6949 = vmatprep.mubr.f32.mxu0 %v5512
    %6950 = vmatmul.mubr.f32.gmra.mrb[0].mxu0 %v5511
    %v6951 = vpop.f32.mrb[0].mxu0
    %v6952 = vadd.f32 %v6567, %v6951
    %v6953 = vpop.f32.mrb[0].mxu0
    %6954 = vmatprep.mubr.f32.mxu0 %v5521
    %6955 = vmatmul.mubr.f32.gmra.mrb[0].mxu0 %v5520
    %v6956 = vpop.f32.mrb[0].mxu0
    %v6957 = vadd.f32 %v6572, %v6956
    %v6958 = vpop.f32.mrb[0].mxu0
    %6959 = vmatprep.mubr.f32.mxu0 %v5530
    %6960 = vmatmul.mubr.f32.gmra.mrb[0].mxu0 %v5529
    %v6961 = vpop.f32.mrb[0].mxu0
    %v6962 = vadd.f32 %v6577, %v6961
    %v6963 = vpop.f32.mrb[0].mxu0
    %6964 = vmatprep.mubr.f32.mxu0 %v5539
    %6965 = vmatmul.mubr.f32.gmra.mrb[0].mxu0 %v5538
    %v6966 = vpop.f32.mrb[0].mxu0
    %v6967 = vadd.f32 %v6582, %v6966
    %v6968 = vpop.f32.mrb[0].mxu0
    %6969 = vmatprep.mubr.f32.mxu0 %v5548
    %6970 = vmatmul.mubr.f32.gmra.mrb[0].mxu0 %v5547
    %v6971 = vpop.f32.mrb[0].mxu0
    %v6972 = vadd.f32 %v6587, %v6971
    %v6973 = vpop.f32.mrb[0].mxu0
    %6974 = vmatprep.mubr.f32.mxu0 %v5557
    %6975 = vmatmul.mubr.f32.gmra.mrb[0].mxu0 %v5556
    %v6976 = vpop.f32.mrb[0].mxu0
    %v6977 = vadd.f32 %v6592, %v6976
    %v6978 = vpop.f32.mrb[0].mxu0
    %6979 = vmatprep.mubr.f32.mxu0 %v5566
    %6980 = vmatmul.mubr.f32.gmra.mrb[0].mxu0 %v5565
    %v6981 = vpop.f32.mrb[0].mxu0
    %v6982 = vadd.f32 %v6597, %v6981
    %v6983 = vpop.f32.mrb[0].mxu0
    %6984 = vmatprep.mubr.f32.mxu0 %v5575
    %6985 = vmatmul.mubr.f32.gmra.mrb[0].mxu0 %v5574
    %v6986 = vpop.f32.mrb[0].mxu0
    %v6987 = vadd.f32 %v6602, %v6986
    %v6988 = vpop.f32.mrb[0].mxu0
    %6989 = vmatprep.mubr.f32.mxu0 %v5584
    %6990 = vmatmul.mubr.f32.gmra.mrb[0].mxu0 %v5583
    %v6991 = vpop.f32.mrb[0].mxu0
    %v6992 = vadd.f32 %v6607, %v6991
    %v6993 = vpop.f32.mrb[0].mxu0
    %6994 = vmatprep.mubr.f32.mxu0 %v5593
    %6995 = vmatmul.mubr.f32.gmra.mrb[0].mxu0 %v5592
    %v6996 = vpop.f32.mrb[0].mxu0
    %v6997 = vadd.f32 %v6612, %v6996
    %v6998 = vpop.f32.mrb[0].mxu0
    %6999 = vmatprep.mubr.f32.mxu0 %v5602
    %7000 = vmatmul.mubr.f32.gmra.mrb[0].mxu0 %v5601
    %v7001 = vpop.f32.mrb[0].mxu0
    %v7002 = vadd.f32 %v6617, %v7001
    %v7003 = vpop.f32.mrb[0].mxu0
    %7004 = vmatprep.mubr.f32.mxu0 %v5611
    %7005 = vmatmul.mubr.f32.gmra.mrb[0].mxu0 %v5610
    %v7006 = vpop.f32.mrb[0].mxu0
    %v7007 = vadd.f32 %v6622, %v7006
    %v7008 = vpop.f32.mrb[0].mxu0
    %7009 = vmatprep.mubr.f32.mxu0 %v5620
    %7010 = vmatmul.mubr.f32.gmra.mrb[0].mxu0 %v5619
    %v7011 = vpop.f32.mrb[0].mxu0
    %v7012 = vadd.f32 %v6627, %v7011
    %v7013 = vpop.f32.mrb[0].mxu0
    %7014 = vmatprep.mubr.f32.mxu0 %v5629
    %7015 = vmatmul.mubr.f32.gmra.mrb[0].mxu0 %v5628
    %v7016 = vpop.f32.mrb[0].mxu0
    %v7017 = vadd.f32 %v6632, %v7016
    %v7018 = vpop.f32.mrb[0].mxu0
    %7019 = vmatprep.mubr.f32.mxu0 %v5638
    %7020 = vmatmul.mubr.f32.gmra.mrb[0].mxu0 %v5637
    %v7021 = vpop.f32.mrb[0].mxu0
    %v7022 = vadd.f32 %v6637, %v7021
    %v7023 = vpop.f32.mrb[0].mxu0
    %7024 = vmatprep.mubr.f32.mxu0 %v5647
    %7025 = vmatmul.mubr.f32.gmra.mrb[0].mxu0 %v5646
    %v7026 = vpop.f32.mrb[0].mxu0
    %v7027 = vadd.f32 %v6642, %v7026
    %v7028 = vpop.f32.mrb[0].mxu0
    %7029 = vmatprep.mubr.f32.mxu0 %v5656
    %7030 = vmatmul.mubr.f32.gmra.mrb[0].mxu0 %v5655
    %v7031 = vpop.f32.mrb[0].mxu0
    %v7032 = vadd.f32 %v6647, %v7031
    %v7033 = vpop.f32.mrb[0].mxu0
    %7034 = vmatprep.mubr.f32.mxu0 %v5665
    %7035 = vmatmul.mubr.f32.gmra.mrb[0].mxu0 %v5664
    %v7036 = vpop.f32.mrb[0].mxu0
    %v7037 = vadd.f32 %v6652, %v7036
    %v7038 = vpop.f32.mrb[0].mxu0
    %7039 = vmatprep.mubr.f32.mxu0 %v5674
    %7040 = vmatmul.mubr.f32.gmra.mrb[0].mxu0 %v5673
    %v7041 = vpop.f32.mrb[0].mxu0
    %v7042 = vadd.f32 %v6657, %v7041
    %v7043 = vpop.f32.mrb[0].mxu0
    %7044 = vmatprep.mubr.f32.mxu0 %v5683
    %7045 = vmatmul.mubr.f32.gmra.mrb[0].mxu0 %v5682
    %v7046 = vpop.f32.mrb[0].mxu0
    %v7047 = vadd.f32 %v6662, %v7046
    %v7048 = vpop.f32.mrb[0].mxu0
    %7049 = vmatprep.mubr.f32.mxu0 %v5692
    %7050 = vmatmul.mubr.f32.gmra.mrb[0].mxu0 %v5691
    %v7051 = vpop.f32.mrb[0].mxu0
    %v7052 = vadd.f32 %v6667, %v7051
    %v7053 = vpop.f32.mrb[0].mxu0
    %7054 = vmatprep.mubr.f32.mxu0 %v5701
    %7055 = vmatmul.mubr.f32.gmra.mrb[0].mxu0 %v5700
    %v7056 = vpop.f32.mrb[0].mxu0
    %v7057 = vadd.f32 %v6672, %v7056
    %v7058 = vpop.f32.mrb[0].mxu0
    %7059 = vmatprep.mubr.f32.mxu0 %v5710
    %7060 = vmatmul.mubr.f32.gmra.mrb[0].mxu0 %v5709
    %v7061 = vpop.f32.mrb[0].mxu0
    %v7062 = vadd.f32 %v6677, %v7061
    %v7063 = vpop.f32.mrb[0].mxu0
    %7064 = vmatprep.mubr.f32.mxu0 %v5719
    %7065 = vmatmul.mubr.f32.gmra.mrb[0].mxu0 %v5718
    %v7066 = vpop.f32.mrb[0].mxu0
    %v7067 = vadd.f32 %v6682, %v7066
    %v7068 = vpop.f32.mrb[0].mxu0
    %7069 = vmatprep.mubr.f32.mxu0 %v5728
    %7070 = vmatmul.mubr.f32.gmra.mrb[0].mxu0 %v5727
    %v7071 = vpop.f32.mrb[0].mxu0
    %v7072 = vadd.f32 %v6687, %v7071
    %v7073 = vpop.f32.mrb[0].mxu0
    %7074 = vmatprep.mubr.f32.mxu0 %v5737
    %7075 = vmatmul.mubr.f32.gmra.mrb[0].mxu0 %v5736
    %v7076 = vpop.f32.mrb[0].mxu0
    %v7077 = vadd.f32 %v6692, %v7076
    %v7078 = vpop.f32.mrb[0].mxu0
    %7079 = vmatprep.mubr.f32.mxu0 %v5746
    %7080 = vmatmul.mubr.f32.gmra.mrb[0].mxu0 %v5745
    %v7081 = vpop.f32.mrb[0].mxu0
    %v7082 = vadd.f32 %v6697, %v7081
    %v7083 = vpop.f32.mrb[0].mxu0
    %7084 = vmatprep.mubr.f32.mxu0 %v5755
    %7085 = vmatmul.mubr.f32.gmra.mrb[0].mxu0 %v5754
    %v7086 = vpop.f32.mrb[0].mxu0
    %v7087 = vadd.f32 %v6702, %v7086
    %v7088 = vpop.f32.mrb[0].mxu0
    %7089 = vmatprep.mubr.f32.mxu0 %v5764
    %7090 = vmatmul.mubr.f32.gmra.mrb[0].mxu0 %v5763
    %v7091 = vpop.f32.mrb[0].mxu0
    %v7092 = vadd.f32 %v6707, %v7091
    %v7093 = vpop.f32.mrb[0].mxu0
    %7094 = vmatprep.mubr.f32.mxu0 %v5773
    %7095 = vmatmul.mubr.f32.gmra.mrb[0].mxu0 %v5772
    %v7096 = vpop.f32.mrb[0].mxu0
    %v7097 = vadd.f32 %v6712, %v7096
    %v7098 = vpop.f32.mrb[0].mxu0
    %7099 = vmatprep.mubr.f32.mxu0 %v5782
    %7100 = vmatmul.mubr.f32.gmra.mrb[0].mxu0 %v5781
    %v7101 = vpop.f32.mrb[0].mxu0
    %v7102 = vadd.f32 %v6717, %v7101
    %v7103 = vpop.f32.mrb[0].mxu0
    %7104 = vmatprep.mubr.f32.mxu0 %v5791
    %7105 = vmatmul.mubr.f32.gmra.mrb[0].mxu0 %v5790
    %v7106 = vpop.f32.mrb[0].mxu0
    %v7107 = vadd.f32 %v6722, %v7106
    %v7108 = vpop.f32.mrb[0].mxu0
    %7109 = vmatprep.mubr.f32.mxu0 %v5800
    %7110 = vmatmul.mubr.f32.gmra.mrb[0].mxu0 %v5799
    %v7111 = vpop.f32.mrb[0].mxu0
    %v7112 = vadd.f32 %v6727, %v7111
    %v7113 = vpop.f32.mrb[0].mxu0
    %7114 = vmatprep.mubr.f32.mxu0 %v5809
    %7115 = vmatmul.mubr.f32.gmra.mrb[0].mxu0 %v5808
    %v7116 = vpop.f32.mrb[0].mxu0
    %v7117 = vadd.f32 %v6732, %v7116
    %v7118 = vpop.f32.mrb[0].mxu0
    %7119 = vmatprep.mubr.f32.mxu0 %v5818
    %7120 = vmatmul.mubr.f32.gmra.mrb[0].mxu0 %v5817
    %v7121 = vpop.f32.mrb[0].mxu0
    %v7122 = vadd.f32 %v6737, %v7121
    %v7123 = vpop.f32.mrb[0].mxu0
    %7124 = vmatprep.mubr.f32.mxu0 %v5827
    %7125 = vmatmul.mubr.f32.gmra.mrb[0].mxu0 %v5826
    %v7126 = vpop.f32.mrb[0].mxu0
    %v7127 = vadd.f32 %v6742, %v7126
    %v7128 = vpop.f32.mrb[0].mxu0
    %7129 = vdwg.mxu0
    %7130 = vmatprep.subr.mxu0 0.0
    %7131 = vmatpush1.msra.mxu0 %v5927
    %7132 = vmatprep.subr.mxu0 0.0
    %7133 = vmatpush1.msra.mxu0 %v5928
    %7134 = vmatprep.subr.mxu0 0.0
    %7135 = vmatpush1.msra.mxu0 %v5929
    %7136 = vmatprep.subr.mxu0 0.0
    %7137 = vmatpush1.msra.mxu0 %v5930
    %7138 = vmatprep.subr.mxu0 0.0
    %7139 = vmatpush1.msra.mxu0 %v5931
    %7140 = vmatprep.subr.mxu0 0.0
    %7141 = vmatpush1.msra.mxu0 %v5932
    %7142 = vmatprep.subr.mxu0 0.0
    %7143 = vmatpush1.msra.mxu0 %v5933
    %7144 = vmatprep.subr.mxu0 0.0
    %7145 = vmatpush1.msra.mxu0 %v5934
    %7146 = vmatprep.subr.mxu0 0.0
    %7147 = vmatpush1.msra.mxu0 %v5935
    %7148 = vmatprep.subr.mxu0 0.0
    %7149 = vmatpush1.msra.mxu0 %v5936
    %7150 = vmatprep.subr.mxu0 0.0
    %7151 = vmatpush1.msra.mxu0 %v5937
    %7152 = vmatprep.subr.mxu0 0.0
    %7153 = vmatpush1.msra.mxu0 %v5938
    %7154 = vmatprep.subr.mxu0 0.0
    %7155 = vmatpush1.msra.mxu0 %v5939
    %7156 = vmatprep.subr.mxu0 0.0
    %7157 = vmatpush1.msra.mxu0 %v5940
    %7158 = vmatprep.subr.mxu0 0.0
    %7159 = vmatpush1.msra.mxu0 %v5941
    %7160 = vmatprep.subr.mxu0 0.0
    %7161 = vmatpush1.msra.mxu0 %v5942
    %7162 = vmatprep.subr.mxu0 0.0
    %7163 = vmatpush1.msra.mxu0 %v5943
    %7164 = vmatprep.subr.mxu0 0.0
    %7165 = vmatpush1.msra.mxu0 %v5944
    %7166 = vmatprep.subr.mxu0 0.0
    %7167 = vmatpush1.msra.mxu0 %v5945
    %7168 = vmatprep.subr.mxu0 0.0
    %7169 = vmatpush1.msra.mxu0 %v5946
    %7170 = vmatprep.subr.mxu0 0.0
    %7171 = vmatpush1.msra.mxu0 %v5947
    %7172 = vmatprep.subr.mxu0 0.0
    %7173 = vmatpush1.msra.mxu0 %v5948
    %7174 = vmatprep.subr.mxu0 0.0
    %7175 = vmatpush1.msra.mxu0 %v5949
    %7176 = vmatprep.subr.mxu0 0.0
    %7177 = vmatpush1.msra.mxu0 %v5950
    %7178 = vmatprep.subr.mxu0 0.0
    %7179 = vmatpush1.msra.mxu0 %v5951
    %7180 = vmatprep.subr.mxu0 0.0
    %7181 = vmatpush1.msra.mxu0 %v5952
    %7182 = vmatprep.subr.mxu0 0.0
    %7183 = vmatpush1.msra.mxu0 %v5953
    %7184 = vmatprep.subr.mxu0 0.0
    %7185 = vmatpush1.msra.mxu0 %v5954
    %7186 = vmatprep.subr.mxu0 0.0
    %7187 = vmatpush1.msra.mxu0 %v5955
    %7188 = vmatprep.subr.mxu0 0.0
    %7189 = vmatpush1.msra.mxu0 %v5956
    %7190 = vmatprep.subr.mxu0 0.0
    %7191 = vmatpush1.msra.mxu0 %v5957
    %7192 = vmatprep.subr.mxu0 0.0
    %7193 = vmatpush1.msra.mxu0 %v5958
    %7194 = vmatprep.mubr.f32.mxu0 %v5262
    %7195 = vmatmul.mubr.f32.gmra.mrb[0].mxu0 %v5261
    %v7196 = vpop.f32.mrb[0].mxu0
    %v7197 = vadd.f32 %v6812, %v7196
    %v7198 = vpop.f32.mrb[0].mxu0
    %7199 = vmatprep.mubr.f32.mxu0 %v5271
    %7200 = vmatmul.mubr.f32.gmra.mrb[0].mxu0 %v5270
    %v7201 = vpop.f32.mrb[0].mxu0
    %v7202 = vadd.f32 %v6817, %v7201
    %v7203 = vpop.f32.mrb[0].mxu0
    %7204 = vmatprep.mubr.f32.mxu0 %v5280
    %7205 = vmatmul.mubr.f32.gmra.mrb[0].mxu0 %v5279
    %v7206 = vpop.f32.mrb[0].mxu0
    %v7207 = vadd.f32 %v6822, %v7206
    %v7208 = vpop.f32.mrb[0].mxu0
    %7209 = vmatprep.mubr.f32.mxu0 %v5289
    %7210 = vmatmul.mubr.f32.gmra.mrb[0].mxu0 %v5288
    %v7211 = vpop.f32.mrb[0].mxu0
    %v7212 = vadd.f32 %v6827, %v7211
    %v7213 = vpop.f32.mrb[0].mxu0
    %7214 = vmatprep.mubr.f32.mxu0 %v5298
    %7215 = vmatmul.mubr.f32.gmra.mrb[0].mxu0 %v5297
    %v7216 = vpop.f32.mrb[0].mxu0
    %v7217 = vadd.f32 %v6832, %v7216
    %v7218 = vpop.f32.mrb[0].mxu0
    %7219 = vmatprep.mubr.f32.mxu0 %v5307
    %7220 = vmatmul.mubr.f32.gmra.mrb[0].mxu0 %v5306
    %v7221 = vpop.f32.mrb[0].mxu0
    %v7222 = vadd.f32 %v6837, %v7221
    %v7223 = vpop.f32.mrb[0].mxu0
    %7224 = vmatprep.mubr.f32.mxu0 %v5316
    %7225 = vmatmul.mubr.f32.gmra.mrb[0].mxu0 %v5315
    %v7226 = vpop.f32.mrb[0].mxu0
    %v7227 = vadd.f32 %v6842, %v7226
    %v7228 = vpop.f32.mrb[0].mxu0
    %7229 = vmatprep.mubr.f32.mxu0 %v5325
    %7230 = vmatmul.mubr.f32.gmra.mrb[0].mxu0 %v5324
    %v7231 = vpop.f32.mrb[0].mxu0
    %v7232 = vadd.f32 %v6847, %v7231
    %v7233 = vpop.f32.mrb[0].mxu0
    %7234 = vmatprep.mubr.f32.mxu0 %v5334
    %7235 = vmatmul.mubr.f32.gmra.mrb[0].mxu0 %v5333
    %v7236 = vpop.f32.mrb[0].mxu0
    %v7237 = vadd.f32 %v6852, %v7236
    %v7238 = vpop.f32.mrb[0].mxu0
    %7239 = vmatprep.mubr.f32.mxu0 %v5343
    %7240 = vmatmul.mubr.f32.gmra.mrb[0].mxu0 %v5342
    %v7241 = vpop.f32.mrb[0].mxu0
    %v7242 = vadd.f32 %v6857, %v7241
    %v7243 = vpop.f32.mrb[0].mxu0
    %7244 = vmatprep.mubr.f32.mxu0 %v5352
    %7245 = vmatmul.mubr.f32.gmra.mrb[0].mxu0 %v5351
    %v7246 = vpop.f32.mrb[0].mxu0
    %v7247 = vadd.f32 %v6862, %v7246
    %v7248 = vpop.f32.mrb[0].mxu0
    %7249 = vmatprep.mubr.f32.mxu0 %v5361
    %7250 = vmatmul.mubr.f32.gmra.mrb[0].mxu0 %v5360
    %v7251 = vpop.f32.mrb[0].mxu0
    %v7252 = vadd.f32 %v6867, %v7251
    %v7253 = vpop.f32.mrb[0].mxu0
    %7254 = vmatprep.mubr.f32.mxu0 %v5370
    %7255 = vmatmul.mubr.f32.gmra.mrb[0].mxu0 %v5369
    %v7256 = vpop.f32.mrb[0].mxu0
    %v7257 = vadd.f32 %v6872, %v7256
    %v7258 = vpop.f32.mrb[0].mxu0
    %7259 = vmatprep.mubr.f32.mxu0 %v5379
    %7260 = vmatmul.mubr.f32.gmra.mrb[0].mxu0 %v5378
    %v7261 = vpop.f32.mrb[0].mxu0
    %v7262 = vadd.f32 %v6877, %v7261
    %v7263 = vpop.f32.mrb[0].mxu0
    %7264 = vmatprep.mubr.f32.mxu0 %v5388
    %7265 = vmatmul.mubr.f32.gmra.mrb[0].mxu0 %v5387
    %v7266 = vpop.f32.mrb[0].mxu0
    %v7267 = vadd.f32 %v6882, %v7266
    %v7268 = vpop.f32.mrb[0].mxu0
    %7269 = vmatprep.mubr.f32.mxu0 %v5397
    %7270 = vmatmul.mubr.f32.gmra.mrb[0].mxu0 %v5396
    %v7271 = vpop.f32.mrb[0].mxu0
    %v7272 = vadd.f32 %v6887, %v7271
    %v7273 = vpop.f32.mrb[0].mxu0
    %7274 = vmatprep.mubr.f32.mxu0 %v5406
    %7275 = vmatmul.mubr.f32.gmra.mrb[0].mxu0 %v5405
    %v7276 = vpop.f32.mrb[0].mxu0
    %v7277 = vadd.f32 %v6892, %v7276
    %v7278 = vpop.f32.mrb[0].mxu0
    %7279 = vmatprep.mubr.f32.mxu0 %v5415
    %7280 = vmatmul.mubr.f32.gmra.mrb[0].mxu0 %v5414
    %v7281 = vpop.f32.mrb[0].mxu0
    %v7282 = vadd.f32 %v6897, %v7281
    %v7283 = vpop.f32.mrb[0].mxu0
    %7284 = vmatprep.mubr.f32.mxu0 %v5424
    %7285 = vmatmul.mubr.f32.gmra.mrb[0].mxu0 %v5423
    %v7286 = vpop.f32.mrb[0].mxu0
    %v7287 = vadd.f32 %v6902, %v7286
    %v7288 = vpop.f32.mrb[0].mxu0
    %7289 = vmatprep.mubr.f32.mxu0 %v5433
    %7290 = vmatmul.mubr.f32.gmra.mrb[0].mxu0 %v5432
    %v7291 = vpop.f32.mrb[0].mxu0
    %v7292 = vadd.f32 %v6907, %v7291
    %v7293 = vpop.f32.mrb[0].mxu0
    %7294 = vmatprep.mubr.f32.mxu0 %v5442
    %7295 = vmatmul.mubr.f32.gmra.mrb[0].mxu0 %v5441
    %v7296 = vpop.f32.mrb[0].mxu0
    %v7297 = vadd.f32 %v6912, %v7296
    %v7298 = vpop.f32.mrb[0].mxu0
    %7299 = vmatprep.mubr.f32.mxu0 %v5451
    %7300 = vmatmul.mubr.f32.gmra.mrb[0].mxu0 %v5450
    %v7301 = vpop.f32.mrb[0].mxu0
    %v7302 = vadd.f32 %v6917, %v7301
    %v7303 = vpop.f32.mrb[0].mxu0
    %7304 = vmatprep.mubr.f32.mxu0 %v5460
    %7305 = vmatmul.mubr.f32.gmra.mrb[0].mxu0 %v5459
    %v7306 = vpop.f32.mrb[0].mxu0
    %v7307 = vadd.f32 %v6922, %v7306
    %v7308 = vpop.f32.mrb[0].mxu0
    %7309 = vmatprep.mubr.f32.mxu0 %v5469
    %7310 = vmatmul.mubr.f32.gmra.mrb[0].mxu0 %v5468
    %v7311 = vpop.f32.mrb[0].mxu0
    %v7312 = vadd.f32 %v6927, %v7311
    %v7313 = vpop.f32.mrb[0].mxu0
    %7314 = vmatprep.mubr.f32.mxu0 %v5478
    %7315 = vmatmul.mubr.f32.gmra.mrb[0].mxu0 %v5477
    %v7316 = vpop.f32.mrb[0].mxu0
    %v7317 = vadd.f32 %v6932, %v7316
    %v7318 = vpop.f32.mrb[0].mxu0
    %7319 = vmatprep.mubr.f32.mxu0 %v5487
    %7320 = vmatmul.mubr.f32.gmra.mrb[0].mxu0 %v5486
    %v7321 = vpop.f32.mrb[0].mxu0
    %v7322 = vadd.f32 %v6937, %v7321
    %v7323 = vpop.f32.mrb[0].mxu0
    %7324 = vmatprep.mubr.f32.mxu0 %v5496
    %7325 = vmatmul.mubr.f32.gmra.mrb[0].mxu0 %v5495
    %v7326 = vpop.f32.mrb[0].mxu0
    %v7327 = vadd.f32 %v6942, %v7326
    %v7328 = vpop.f32.mrb[0].mxu0
    %7329 = vmatprep.mubr.f32.mxu0 %v5505
    %7330 = vmatmul.mubr.f32.gmra.mrb[0].mxu0 %v5504
    %v7331 = vpop.f32.mrb[0].mxu0
    %v7332 = vadd.f32 %v6947, %v7331
    %v7333 = vpop.f32.mrb[0].mxu0
    %7334 = vmatprep.mubr.f32.mxu0 %v5514
    %7335 = vmatmul.mubr.f32.gmra.mrb[0].mxu0 %v5513
    %v7336 = vpop.f32.mrb[0].mxu0
    %v7337 = vadd.f32 %v6952, %v7336
    %v7338 = vpop.f32.mrb[0].mxu0
    %7339 = vmatprep.mubr.f32.mxu0 %v5523
    %7340 = vmatmul.mubr.f32.gmra.mrb[0].mxu0 %v5522
    %v7341 = vpop.f32.mrb[0].mxu0
    %v7342 = vadd.f32 %v6957, %v7341
    %v7343 = vpop.f32.mrb[0].mxu0
    %7344 = vmatprep.mubr.f32.mxu0 %v5532
    %7345 = vmatmul.mubr.f32.gmra.mrb[0].mxu0 %v5531
    %v7346 = vpop.f32.mrb[0].mxu0
    %v7347 = vadd.f32 %v6962, %v7346
    %v7348 = vpop.f32.mrb[0].mxu0
    %7349 = vmatprep.mubr.f32.mxu0 %v5541
    %7350 = vmatmul.mubr.f32.gmra.mrb[0].mxu0 %v5540
    %v7351 = vpop.f32.mrb[0].mxu0
    %v7352 = vadd.f32 %v6967, %v7351
    %v7353 = vpop.f32.mrb[0].mxu0
    %7354 = vmatprep.mubr.f32.mxu0 %v5550
    %7355 = vmatmul.mubr.f32.gmra.mrb[0].mxu0 %v5549
    %v7356 = vpop.f32.mrb[0].mxu0
    %v7357 = vadd.f32 %v6972, %v7356
    %v7358 = vpop.f32.mrb[0].mxu0
    %7359 = vmatprep.mubr.f32.mxu0 %v5559
    %7360 = vmatmul.mubr.f32.gmra.mrb[0].mxu0 %v5558
    %v7361 = vpop.f32.mrb[0].mxu0
    %v7362 = vadd.f32 %v6977, %v7361
    %v7363 = vpop.f32.mrb[0].mxu0
    %7364 = vmatprep.mubr.f32.mxu0 %v5568
    %7365 = vmatmul.mubr.f32.gmra.mrb[0].mxu0 %v5567
    %v7366 = vpop.f32.mrb[0].mxu0
    %v7367 = vadd.f32 %v6982, %v7366
    %v7368 = vpop.f32.mrb[0].mxu0
    %7369 = vmatprep.mubr.f32.mxu0 %v5577
    %7370 = vmatmul.mubr.f32.gmra.mrb[0].mxu0 %v5576
    %v7371 = vpop.f32.mrb[0].mxu0
    %v7372 = vadd.f32 %v6987, %v7371
    %v7373 = vpop.f32.mrb[0].mxu0
    %7374 = vmatprep.mubr.f32.mxu0 %v5586
    %7375 = vmatmul.mubr.f32.gmra.mrb[0].mxu0 %v5585
    %v7376 = vpop.f32.mrb[0].mxu0
    %v7377 = vadd.f32 %v6992, %v7376
    %v7378 = vpop.f32.mrb[0].mxu0
    %7379 = vmatprep.mubr.f32.mxu0 %v5595
    %7380 = vmatmul.mubr.f32.gmra.mrb[0].mxu0 %v5594
    %v7381 = vpop.f32.mrb[0].mxu0
    %v7382 = vadd.f32 %v6997, %v7381
    %v7383 = vpop.f32.mrb[0].mxu0
    %7384 = vmatprep.mubr.f32.mxu0 %v5604
    %7385 = vmatmul.mubr.f32.gmra.mrb[0].mxu0 %v5603
    %v7386 = vpop.f32.mrb[0].mxu0
    %v7387 = vadd.f32 %v7002, %v7386
    %v7388 = vpop.f32.mrb[0].mxu0
    %7389 = vmatprep.mubr.f32.mxu0 %v5613
    %7390 = vmatmul.mubr.f32.gmra.mrb[0].mxu0 %v5612
    %v7391 = vpop.f32.mrb[0].mxu0
    %v7392 = vadd.f32 %v7007, %v7391
    %v7393 = vpop.f32.mrb[0].mxu0
    %7394 = vmatprep.mubr.f32.mxu0 %v5622
    %7395 = vmatmul.mubr.f32.gmra.mrb[0].mxu0 %v5621
    %v7396 = vpop.f32.mrb[0].mxu0
    %v7397 = vadd.f32 %v7012, %v7396
    %v7398 = vpop.f32.mrb[0].mxu0
    %7399 = vmatprep.mubr.f32.mxu0 %v5631
    %7400 = vmatmul.mubr.f32.gmra.mrb[0].mxu0 %v5630
    %v7401 = vpop.f32.mrb[0].mxu0
    %v7402 = vadd.f32 %v7017, %v7401
    %v7403 = vpop.f32.mrb[0].mxu0
    %7404 = vmatprep.mubr.f32.mxu0 %v5640
    %7405 = vmatmul.mubr.f32.gmra.mrb[0].mxu0 %v5639
    %v7406 = vpop.f32.mrb[0].mxu0
    %v7407 = vadd.f32 %v7022, %v7406
    %v7408 = vpop.f32.mrb[0].mxu0
    %7409 = vmatprep.mubr.f32.mxu0 %v5649
    %7410 = vmatmul.mubr.f32.gmra.mrb[0].mxu0 %v5648
    %v7411 = vpop.f32.mrb[0].mxu0
    %v7412 = vadd.f32 %v7027, %v7411
    %v7413 = vpop.f32.mrb[0].mxu0
    %7414 = vmatprep.mubr.f32.mxu0 %v5658
    %7415 = vmatmul.mubr.f32.gmra.mrb[0].mxu0 %v5657
    %v7416 = vpop.f32.mrb[0].mxu0
    %v7417 = vadd.f32 %v7032, %v7416
    %v7418 = vpop.f32.mrb[0].mxu0
    %7419 = vmatprep.mubr.f32.mxu0 %v5667
    %7420 = vmatmul.mubr.f32.gmra.mrb[0].mxu0 %v5666
    %v7421 = vpop.f32.mrb[0].mxu0
    %v7422 = vadd.f32 %v7037, %v7421
    %v7423 = vpop.f32.mrb[0].mxu0
    %7424 = vmatprep.mubr.f32.mxu0 %v5676
    %7425 = vmatmul.mubr.f32.gmra.mrb[0].mxu0 %v5675
    %v7426 = vpop.f32.mrb[0].mxu0
    %v7427 = vadd.f32 %v7042, %v7426
    %v7428 = vpop.f32.mrb[0].mxu0
    %7429 = vmatprep.mubr.f32.mxu0 %v5685
    %7430 = vmatmul.mubr.f32.gmra.mrb[0].mxu0 %v5684
    %v7431 = vpop.f32.mrb[0].mxu0
    %v7432 = vadd.f32 %v7047, %v7431
    %v7433 = vpop.f32.mrb[0].mxu0
    %7434 = vmatprep.mubr.f32.mxu0 %v5694
    %7435 = vmatmul.mubr.f32.gmra.mrb[0].mxu0 %v5693
    %v7436 = vpop.f32.mrb[0].mxu0
    %v7437 = vadd.f32 %v7052, %v7436
    %v7438 = vpop.f32.mrb[0].mxu0
    %7439 = vmatprep.mubr.f32.mxu0 %v5703
    %7440 = vmatmul.mubr.f32.gmra.mrb[0].mxu0 %v5702
    %v7441 = vpop.f32.mrb[0].mxu0
    %v7442 = vadd.f32 %v7057, %v7441
    %v7443 = vpop.f32.mrb[0].mxu0
    %7444 = vmatprep.mubr.f32.mxu0 %v5712
    %7445 = vmatmul.mubr.f32.gmra.mrb[0].mxu0 %v5711
    %v7446 = vpop.f32.mrb[0].mxu0
    %v7447 = vadd.f32 %v7062, %v7446
    %v7448 = vpop.f32.mrb[0].mxu0
    %7449 = vmatprep.mubr.f32.mxu0 %v5721
    %7450 = vmatmul.mubr.f32.gmra.mrb[0].mxu0 %v5720
    %v7451 = vpop.f32.mrb[0].mxu0
    %v7452 = vadd.f32 %v7067, %v7451
    %v7453 = vpop.f32.mrb[0].mxu0
    %7454 = vmatprep.mubr.f32.mxu0 %v5730
    %7455 = vmatmul.mubr.f32.gmra.mrb[0].mxu0 %v5729
    %v7456 = vpop.f32.mrb[0].mxu0
    %v7457 = vadd.f32 %v7072, %v7456
    %v7458 = vpop.f32.mrb[0].mxu0
    %7459 = vmatprep.mubr.f32.mxu0 %v5739
    %7460 = vmatmul.mubr.f32.gmra.mrb[0].mxu0 %v5738
    %v7461 = vpop.f32.mrb[0].mxu0
    %v7462 = vadd.f32 %v7077, %v7461
    %v7463 = vpop.f32.mrb[0].mxu0
    %7464 = vmatprep.mubr.f32.mxu0 %v5748
    %7465 = vmatmul.mubr.f32.gmra.mrb[0].mxu0 %v5747
    %v7466 = vpop.f32.mrb[0].mxu0
    %v7467 = vadd.f32 %v7082, %v7466
    %v7468 = vpop.f32.mrb[0].mxu0
    %7469 = vmatprep.mubr.f32.mxu0 %v5757
    %7470 = vmatmul.mubr.f32.gmra.mrb[0].mxu0 %v5756
    %v7471 = vpop.f32.mrb[0].mxu0
    %v7472 = vadd.f32 %v7087, %v7471
    %v7473 = vpop.f32.mrb[0].mxu0
    %7474 = vmatprep.mubr.f32.mxu0 %v5766
    %7475 = vmatmul.mubr.f32.gmra.mrb[0].mxu0 %v5765
    %v7476 = vpop.f32.mrb[0].mxu0
    %v7477 = vadd.f32 %v7092, %v7476
    %v7478 = vpop.f32.mrb[0].mxu0
    %7479 = vmatprep.mubr.f32.mxu0 %v5775
    %7480 = vmatmul.mubr.f32.gmra.mrb[0].mxu0 %v5774
    %v7481 = vpop.f32.mrb[0].mxu0
    %v7482 = vadd.f32 %v7097, %v7481
    %v7483 = vpop.f32.mrb[0].mxu0
    %7484 = vmatprep.mubr.f32.mxu0 %v5784
    %7485 = vmatmul.mubr.f32.gmra.mrb[0].mxu0 %v5783
    %v7486 = vpop.f32.mrb[0].mxu0
    %v7487 = vadd.f32 %v7102, %v7486
    %v7488 = vpop.f32.mrb[0].mxu0
    %7489 = vmatprep.mubr.f32.mxu0 %v5793
    %7490 = vmatmul.mubr.f32.gmra.mrb[0].mxu0 %v5792
    %v7491 = vpop.f32.mrb[0].mxu0
    %v7492 = vadd.f32 %v7107, %v7491
    %v7493 = vpop.f32.mrb[0].mxu0
    %7494 = vmatprep.mubr.f32.mxu0 %v5802
    %7495 = vmatmul.mubr.f32.gmra.mrb[0].mxu0 %v5801
    %v7496 = vpop.f32.mrb[0].mxu0
    %v7497 = vadd.f32 %v7112, %v7496
    %v7498 = vpop.f32.mrb[0].mxu0
    %7499 = vmatprep.mubr.f32.mxu0 %v5811
    %7500 = vmatmul.mubr.f32.gmra.mrb[0].mxu0 %v5810
    %v7501 = vpop.f32.mrb[0].mxu0
    %v7502 = vadd.f32 %v7117, %v7501
    %v7503 = vpop.f32.mrb[0].mxu0
    %7504 = vmatprep.mubr.f32.mxu0 %v5820
    %7505 = vmatmul.mubr.f32.gmra.mrb[0].mxu0 %v5819
    %v7506 = vpop.f32.mrb[0].mxu0
    %v7507 = vadd.f32 %v7122, %v7506
    %v7508 = vpop.f32.mrb[0].mxu0
    %7509 = vmatprep.mubr.f32.mxu0 %v5829
    %7510 = vmatmul.mubr.f32.gmra.mrb[0].mxu0 %v5828
    %v7511 = vpop.f32.mrb[0].mxu0
    %v7512 = vadd.f32 %v7127, %v7511
    %v7513 = vpop.f32.mrb[0].mxu0
    %7514 = vdwg.mxu0
    %7515 = vmatprep.subr.mxu0 0.0
    %7516 = vmatpush1.msra.mxu0 %v5959
    %7517 = vmatprep.subr.mxu0 0.0
    %7518 = vmatpush1.msra.mxu0 %v5960
    %7519 = vmatprep.subr.mxu0 0.0
    %7520 = vmatpush1.msra.mxu0 %v5961
    %7521 = vmatprep.subr.mxu0 0.0
    %7522 = vmatpush1.msra.mxu0 %v5962
    %7523 = vmatprep.subr.mxu0 0.0
    %7524 = vmatpush1.msra.mxu0 %v5963
    %7525 = vmatprep.subr.mxu0 0.0
    %7526 = vmatpush1.msra.mxu0 %v5964
    %7527 = vmatprep.subr.mxu0 0.0
    %7528 = vmatpush1.msra.mxu0 %v5965
    %7529 = vmatprep.subr.mxu0 0.0
    %7530 = vmatpush1.msra.mxu0 %v5966
    %7531 = vmatprep.subr.mxu0 0.0
    %7532 = vmatpush1.msra.mxu0 %v5967
    %7533 = vmatprep.subr.mxu0 0.0
    %7534 = vmatpush1.msra.mxu0 %v5968
    %7535 = vmatprep.subr.mxu0 0.0
    %7536 = vmatpush1.msra.mxu0 %v5969
    %7537 = vmatprep.subr.mxu0 0.0
    %7538 = vmatpush1.msra.mxu0 %v5970
    %7539 = vmatprep.subr.mxu0 0.0
    %7540 = vmatpush1.msra.mxu0 %v5971
    %7541 = vmatprep.subr.mxu0 0.0
    %7542 = vmatpush1.msra.mxu0 %v5972
    %7543 = vmatprep.subr.mxu0 0.0
    %7544 = vmatpush1.msra.mxu0 %v5973
    %7545 = vmatprep.subr.mxu0 0.0
    %7546 = vmatpush1.msra.mxu0 %v5974
    %7547 = vmatprep.subr.mxu0 0.0
    %7548 = vmatpush1.msra.mxu0 0.0
    %7549 = vmatprep.subr.mxu0 0.0
    %7550 = vmatpush1.msra.mxu0 0.0
    %7551 = vmatprep.subr.mxu0 0.0
    %7552 = vmatpush1.msra.mxu0 0.0
    %7553 = vmatprep.subr.mxu0 0.0
    %7554 = vmatpush1.msra.mxu0 0.0
    %7555 = vmatprep.subr.mxu0 0.0
    %7556 = vmatpush1.msra.mxu0 0.0
    %7557 = vmatprep.subr.mxu0 0.0
    %7558 = vmatpush1.msra.mxu0 0.0
    %7559 = vmatprep.subr.mxu0 0.0
    %7560 = vmatpush1.msra.mxu0 0.0
    %7561 = vmatprep.subr.mxu0 0.0
    %7562 = vmatpush1.msra.mxu0 0.0
    %7563 = vmatprep.subr.mxu0 0.0
    %7564 = vmatpush1.msra.mxu0 0.0
    %7565 = vmatprep.subr.mxu0 0.0
    %7566 = vmatpush1.msra.mxu0 0.0
    %7567 = vmatprep.subr.mxu0 0.0
    %7568 = vmatpush1.msra.mxu0 0.0
    %7569 = vmatprep.subr.mxu0 0.0
    %7570 = vmatpush1.msra.mxu0 0.0
    %7571 = vmatprep.subr.mxu0 0.0
    %7572 = vmatpush1.msra.mxu0 0.0
    %7573 = vmatprep.subr.mxu0 0.0
    %7574 = vmatpush1.msra.mxu0 0.0
    %7575 = vmatprep.subr.mxu0 0.0
    %7576 = vmatpush1.msra.mxu0 0.0
    %7577 = vmatprep.subr.mxu0 0.0
    %7578 = vmatpush1.msra.mxu0 0.0
    %7579 = vmatprep.mubr.f32.mxu0 0.0
    %7580 = vmatmul.mubr.f32.gmra.mrb[0].mxu0 %v5263
    %v7581 = vpop.f32.mrb[0].mxu0
    %v7582 = vadd.f32 %v7197, %v7581
    %v7583 = vpop.f32.mrb[0].mxu0
    %7584 = vmatprep.mubr.f32.mxu0 0.0
    %7585 = vmatmul.mubr.f32.gmra.mrb[0].mxu0 %v5272
    %v7586 = vpop.f32.mrb[0].mxu0
    %v7587 = vadd.f32 %v7202, %v7586
    %v7588 = vpop.f32.mrb[0].mxu0
    %7589 = vmatprep.mubr.f32.mxu0 0.0
    %7590 = vmatmul.mubr.f32.gmra.mrb[0].mxu0 %v5281
    %v7591 = vpop.f32.mrb[0].mxu0
    %v7592 = vadd.f32 %v7207, %v7591
    %v7593 = vpop.f32.mrb[0].mxu0
    %7594 = vmatprep.mubr.f32.mxu0 0.0
    %7595 = vmatmul.mubr.f32.gmra.mrb[0].mxu0 %v5290
    %v7596 = vpop.f32.mrb[0].mxu0
    %v7597 = vadd.f32 %v7212, %v7596
    %v7598 = vpop.f32.mrb[0].mxu0
    %7599 = vmatprep.mubr.f32.mxu0 0.0
    %7600 = vmatmul.mubr.f32.gmra.mrb[0].mxu0 %v5299
    %v7601 = vpop.f32.mrb[0].mxu0
    %v7602 = vadd.f32 %v7217, %v7601
    %v7603 = vpop.f32.mrb[0].mxu0
    %7604 = vmatprep.mubr.f32.mxu0 0.0
    %7605 = vmatmul.mubr.f32.gmra.mrb[0].mxu0 %v5308
    %v7606 = vpop.f32.mrb[0].mxu0
    %v7607 = vadd.f32 %v7222, %v7606
    %v7608 = vpop.f32.mrb[0].mxu0
    %7609 = vmatprep.mubr.f32.mxu0 0.0
    %7610 = vmatmul.mubr.f32.gmra.mrb[0].mxu0 %v5317
    %v7611 = vpop.f32.mrb[0].mxu0
    %v7612 = vadd.f32 %v7227, %v7611
    %v7613 = vpop.f32.mrb[0].mxu0
    %7614 = vmatprep.mubr.f32.mxu0 0.0
    %7615 = vmatmul.mubr.f32.gmra.mrb[0].mxu0 %v5326
    %v7616 = vpop.f32.mrb[0].mxu0
    %v7617 = vadd.f32 %v7232, %v7616
    %v7618 = vpop.f32.mrb[0].mxu0
    %7619 = vmatprep.mubr.f32.mxu0 0.0
    %7620 = vmatmul.mubr.f32.gmra.mrb[0].mxu0 %v5335
    %v7621 = vpop.f32.mrb[0].mxu0
    %v7622 = vadd.f32 %v7237, %v7621
    %v7623 = vpop.f32.mrb[0].mxu0
    %7624 = vmatprep.mubr.f32.mxu0 0.0
    %7625 = vmatmul.mubr.f32.gmra.mrb[0].mxu0 %v5344
    %v7626 = vpop.f32.mrb[0].mxu0
    %v7627 = vadd.f32 %v7242, %v7626
    %v7628 = vpop.f32.mrb[0].mxu0
    %7629 = vmatprep.mubr.f32.mxu0 0.0
    %7630 = vmatmul.mubr.f32.gmra.mrb[0].mxu0 %v5353
    %v7631 = vpop.f32.mrb[0].mxu0
    %v7632 = vadd.f32 %v7247, %v7631
    %v7633 = vpop.f32.mrb[0].mxu0
    %7634 = vmatprep.mubr.f32.mxu0 0.0
    %7635 = vmatmul.mubr.f32.gmra.mrb[0].mxu0 %v5362
    %v7636 = vpop.f32.mrb[0].mxu0
    %v7637 = vadd.f32 %v7252, %v7636
    %v7638 = vpop.f32.mrb[0].mxu0
    %7639 = vmatprep.mubr.f32.mxu0 0.0
    %7640 = vmatmul.mubr.f32.gmra.mrb[0].mxu0 %v5371
    %v7641 = vpop.f32.mrb[0].mxu0
    %v7642 = vadd.f32 %v7257, %v7641
    %v7643 = vpop.f32.mrb[0].mxu0
    %7644 = vmatprep.mubr.f32.mxu0 0.0
    %7645 = vmatmul.mubr.f32.gmra.mrb[0].mxu0 %v5380
    %v7646 = vpop.f32.mrb[0].mxu0
    %v7647 = vadd.f32 %v7262, %v7646
    %v7648 = vpop.f32.mrb[0].mxu0
    %7649 = vmatprep.mubr.f32.mxu0 0.0
    %7650 = vmatmul.mubr.f32.gmra.mrb[0].mxu0 %v5389
    %v7651 = vpop.f32.mrb[0].mxu0
    %v7652 = vadd.f32 %v7267, %v7651
    %v7653 = vpop.f32.mrb[0].mxu0
    %7654 = vmatprep.mubr.f32.mxu0 0.0
    %7655 = vmatmul.mubr.f32.gmra.mrb[0].mxu0 %v5398
    %v7656 = vpop.f32.mrb[0].mxu0
    %v7657 = vadd.f32 %v7272, %v7656
    %v7658 = vpop.f32.mrb[0].mxu0
    %7659 = vmatprep.mubr.f32.mxu0 0.0
    %7660 = vmatmul.mubr.f32.gmra.mrb[0].mxu0 %v5407
    %v7661 = vpop.f32.mrb[0].mxu0
    %v7662 = vadd.f32 %v7277, %v7661
    %v7663 = vpop.f32.mrb[0].mxu0
    %7664 = vmatprep.mubr.f32.mxu0 0.0
    %7665 = vmatmul.mubr.f32.gmra.mrb[0].mxu0 %v5416
    %v7666 = vpop.f32.mrb[0].mxu0
    %v7667 = vadd.f32 %v7282, %v7666
    %v7668 = vpop.f32.mrb[0].mxu0
    %7669 = vmatprep.mubr.f32.mxu0 0.0
    %7670 = vmatmul.mubr.f32.gmra.mrb[0].mxu0 %v5425
    %v7671 = vpop.f32.mrb[0].mxu0
    %v7672 = vadd.f32 %v7287, %v7671
    %v7673 = vpop.f32.mrb[0].mxu0
    %7674 = vmatprep.mubr.f32.mxu0 0.0
    %7675 = vmatmul.mubr.f32.gmra.mrb[0].mxu0 %v5434
    %v7676 = vpop.f32.mrb[0].mxu0
    %v7677 = vadd.f32 %v7292, %v7676
    %v7678 = vpop.f32.mrb[0].mxu0
    %7679 = vmatprep.mubr.f32.mxu0 0.0
    %7680 = vmatmul.mubr.f32.gmra.mrb[0].mxu0 %v5443
    %v7681 = vpop.f32.mrb[0].mxu0
    %v7682 = vadd.f32 %v7297, %v7681
    %v7683 = vpop.f32.mrb[0].mxu0
    %7684 = vmatprep.mubr.f32.mxu0 0.0
    %7685 = vmatmul.mubr.f32.gmra.mrb[0].mxu0 %v5452
    %v7686 = vpop.f32.mrb[0].mxu0
    %v7687 = vadd.f32 %v7302, %v7686
    %v7688 = vpop.f32.mrb[0].mxu0
    %7689 = vmatprep.mubr.f32.mxu0 0.0
    %7690 = vmatmul.mubr.f32.gmra.mrb[0].mxu0 %v5461
    %v7691 = vpop.f32.mrb[0].mxu0
    %v7692 = vadd.f32 %v7307, %v7691
    %v7693 = vpop.f32.mrb[0].mxu0
    %7694 = vmatprep.mubr.f32.mxu0 0.0
    %7695 = vmatmul.mubr.f32.gmra.mrb[0].mxu0 %v5470
    %v7696 = vpop.f32.mrb[0].mxu0
    %v7697 = vadd.f32 %v7312, %v7696
    %v7698 = vpop.f32.mrb[0].mxu0
    %7699 = vmatprep.mubr.f32.mxu0 0.0
    %7700 = vmatmul.mubr.f32.gmra.mrb[0].mxu0 %v5479
    %v7701 = vpop.f32.mrb[0].mxu0
    %v7702 = vadd.f32 %v7317, %v7701
    %v7703 = vpop.f32.mrb[0].mxu0
    %7704 = vmatprep.mubr.f32.mxu0 0.0
    %7705 = vmatmul.mubr.f32.gmra.mrb[0].mxu0 %v5488
    %v7706 = vpop.f32.mrb[0].mxu0
    %v7707 = vadd.f32 %v7322, %v7706
    %v7708 = vpop.f32.mrb[0].mxu0
    %7709 = vmatprep.mubr.f32.mxu0 0.0
    %7710 = vmatmul.mubr.f32.gmra.mrb[0].mxu0 %v5497
    %v7711 = vpop.f32.mrb[0].mxu0
    %v7712 = vadd.f32 %v7327, %v7711
    %v7713 = vpop.f32.mrb[0].mxu0
    %7714 = vmatprep.mubr.f32.mxu0 0.0
    %7715 = vmatmul.mubr.f32.gmra.mrb[0].mxu0 %v5506
    %v7716 = vpop.f32.mrb[0].mxu0
    %v7717 = vadd.f32 %v7332, %v7716
    %v7718 = vpop.f32.mrb[0].mxu0
    %7719 = vmatprep.mubr.f32.mxu0 0.0
    %7720 = vmatmul.mubr.f32.gmra.mrb[0].mxu0 %v5515
    %v7721 = vpop.f32.mrb[0].mxu0
    %v7722 = vadd.f32 %v7337, %v7721
    %v7723 = vpop.f32.mrb[0].mxu0
    %7724 = vmatprep.mubr.f32.mxu0 0.0
    %7725 = vmatmul.mubr.f32.gmra.mrb[0].mxu0 %v5524
    %v7726 = vpop.f32.mrb[0].mxu0
    %v7727 = vadd.f32 %v7342, %v7726
    %v7728 = vpop.f32.mrb[0].mxu0
    %7729 = vmatprep.mubr.f32.mxu0 0.0
    %7730 = vmatmul.mubr.f32.gmra.mrb[0].mxu0 %v5533
    %v7731 = vpop.f32.mrb[0].mxu0
    %v7732 = vadd.f32 %v7347, %v7731
    %v7733 = vpop.f32.mrb[0].mxu0
    %7734 = vmatprep.mubr.f32.mxu0 0.0
    %7735 = vmatmul.mubr.f32.gmra.mrb[0].mxu0 %v5542
    %v7736 = vpop.f32.mrb[0].mxu0
    %v7737 = vadd.f32 %v7352, %v7736
    %v7738 = vpop.f32.mrb[0].mxu0
    %7739 = vmatprep.mubr.f32.mxu0 0.0
    %7740 = vmatmul.mubr.f32.gmra.mrb[0].mxu0 %v5551
    %v7741 = vpop.f32.mrb[0].mxu0
    %v7742 = vadd.f32 %v7357, %v7741
    %v7743 = vpop.f32.mrb[0].mxu0
    %7744 = vmatprep.mubr.f32.mxu0 0.0
    %7745 = vmatmul.mubr.f32.gmra.mrb[0].mxu0 %v5560
    %v7746 = vpop.f32.mrb[0].mxu0
    %v7747 = vadd.f32 %v7362, %v7746
    %v7748 = vpop.f32.mrb[0].mxu0
    %7749 = vmatprep.mubr.f32.mxu0 0.0
    %7750 = vmatmul.mubr.f32.gmra.mrb[0].mxu0 %v5569
    %v7751 = vpop.f32.mrb[0].mxu0
    %v7752 = vadd.f32 %v7367, %v7751
    %v7753 = vpop.f32.mrb[0].mxu0
    %7754 = vmatprep.mubr.f32.mxu0 0.0
    %7755 = vmatmul.mubr.f32.gmra.mrb[0].mxu0 %v5578
    %v7756 = vpop.f32.mrb[0].mxu0
    %v7757 = vadd.f32 %v7372, %v7756
    %v7758 = vpop.f32.mrb[0].mxu0
    %7759 = vmatprep.mubr.f32.mxu0 0.0
    %7760 = vmatmul.mubr.f32.gmra.mrb[0].mxu0 %v5587
    %v7761 = vpop.f32.mrb[0].mxu0
    %v7762 = vadd.f32 %v7377, %v7761
    %v7763 = vpop.f32.mrb[0].mxu0
    %7764 = vmatprep.mubr.f32.mxu0 0.0
    %7765 = vmatmul.mubr.f32.gmra.mrb[0].mxu0 %v5596
    %v7766 = vpop.f32.mrb[0].mxu0
    %v7767 = vadd.f32 %v7382, %v7766
    %v7768 = vpop.f32.mrb[0].mxu0
    %7769 = vmatprep.mubr.f32.mxu0 0.0
    %7770 = vmatmul.mubr.f32.gmra.mrb[0].mxu0 %v5605
    %v7771 = vpop.f32.mrb[0].mxu0
    %v7772 = vadd.f32 %v7387, %v7771
    %v7773 = vpop.f32.mrb[0].mxu0
    %7774 = vmatprep.mubr.f32.mxu0 0.0
    %7775 = vmatmul.mubr.f32.gmra.mrb[0].mxu0 %v5614
    %v7776 = vpop.f32.mrb[0].mxu0
    %v7777 = vadd.f32 %v7392, %v7776
    %v7778 = vpop.f32.mrb[0].mxu0
    %7779 = vmatprep.mubr.f32.mxu0 0.0
    %7780 = vmatmul.mubr.f32.gmra.mrb[0].mxu0 %v5623
    %v7781 = vpop.f32.mrb[0].mxu0
    %v7782 = vadd.f32 %v7397, %v7781
    %v7783 = vpop.f32.mrb[0].mxu0
    %7784 = vmatprep.mubr.f32.mxu0 0.0
    %7785 = vmatmul.mubr.f32.gmra.mrb[0].mxu0 %v5632
    %v7786 = vpop.f32.mrb[0].mxu0
    %v7787 = vadd.f32 %v7402, %v7786
    %v7788 = vpop.f32.mrb[0].mxu0
    %7789 = vmatprep.mubr.f32.mxu0 0.0
    %7790 = vmatmul.mubr.f32.gmra.mrb[0].mxu0 %v5641
    %v7791 = vpop.f32.mrb[0].mxu0
    %v7792 = vadd.f32 %v7407, %v7791
    %v7793 = vpop.f32.mrb[0].mxu0
    %7794 = vmatprep.mubr.f32.mxu0 0.0
    %7795 = vmatmul.mubr.f32.gmra.mrb[0].mxu0 %v5650
    %v7796 = vpop.f32.mrb[0].mxu0
    %v7797 = vadd.f32 %v7412, %v7796
    %v7798 = vpop.f32.mrb[0].mxu0
    %7799 = vmatprep.mubr.f32.mxu0 0.0
    %7800 = vmatmul.mubr.f32.gmra.mrb[0].mxu0 %v5659
    %v7801 = vpop.f32.mrb[0].mxu0
    %v7802 = vadd.f32 %v7417, %v7801
    %v7803 = vpop.f32.mrb[0].mxu0
    %7804 = vmatprep.mubr.f32.mxu0 0.0
    %7805 = vmatmul.mubr.f32.gmra.mrb[0].mxu0 %v5668
    %v7806 = vpop.f32.mrb[0].mxu0
    %v7807 = vadd.f32 %v7422, %v7806
    %v7808 = vpop.f32.mrb[0].mxu0
    %7809 = vmatprep.mubr.f32.mxu0 0.0
    %7810 = vmatmul.mubr.f32.gmra.mrb[0].mxu0 %v5677
    %v7811 = vpop.f32.mrb[0].mxu0
    %v7812 = vadd.f32 %v7427, %v7811
    %v7813 = vpop.f32.mrb[0].mxu0
    %7814 = vmatprep.mubr.f32.mxu0 0.0
    %7815 = vmatmul.mubr.f32.gmra.mrb[0].mxu0 %v5686
    %v7816 = vpop.f32.mrb[0].mxu0
    %v7817 = vadd.f32 %v7432, %v7816
    %v7818 = vpop.f32.mrb[0].mxu0
    %7819 = vmatprep.mubr.f32.mxu0 0.0
    %7820 = vmatmul.mubr.f32.gmra.mrb[0].mxu0 %v5695
    %v7821 = vpop.f32.mrb[0].mxu0
    %v7822 = vadd.f32 %v7437, %v7821
    %v7823 = vpop.f32.mrb[0].mxu0
    %7824 = vmatprep.mubr.f32.mxu0 0.0
    %7825 = vmatmul.mubr.f32.gmra.mrb[0].mxu0 %v5704
    %v7826 = vpop.f32.mrb[0].mxu0
    %v7827 = vadd.f32 %v7442, %v7826
    %v7828 = vpop.f32.mrb[0].mxu0
    %7829 = vmatprep.mubr.f32.mxu0 0.0
    %7830 = vmatmul.mubr.f32.gmra.mrb[0].mxu0 %v5713
    %v7831 = vpop.f32.mrb[0].mxu0
    %v7832 = vadd.f32 %v7447, %v7831
    %v7833 = vpop.f32.mrb[0].mxu0
    %7834 = vmatprep.mubr.f32.mxu0 0.0
    %7835 = vmatmul.mubr.f32.gmra.mrb[0].mxu0 %v5722
    %v7836 = vpop.f32.mrb[0].mxu0
    %v7837 = vadd.f32 %v7452, %v7836
    %v7838 = vpop.f32.mrb[0].mxu0
    %7839 = vmatprep.mubr.f32.mxu0 0.0
    %7840 = vmatmul.mubr.f32.gmra.mrb[0].mxu0 %v5731
    %v7841 = vpop.f32.mrb[0].mxu0
    %v7842 = vadd.f32 %v7457, %v7841
    %v7843 = vpop.f32.mrb[0].mxu0
    %7844 = vmatprep.mubr.f32.mxu0 0.0
    %7845 = vmatmul.mubr.f32.gmra.mrb[0].mxu0 %v5740
    %v7846 = vpop.f32.mrb[0].mxu0
    %v7847 = vadd.f32 %v7462, %v7846
    %v7848 = vpop.f32.mrb[0].mxu0
    %7849 = vmatprep.mubr.f32.mxu0 0.0
    %7850 = vmatmul.mubr.f32.gmra.mrb[0].mxu0 %v5749
    %v7851 = vpop.f32.mrb[0].mxu0
    %v7852 = vadd.f32 %v7467, %v7851
    %v7853 = vpop.f32.mrb[0].mxu0
    %7854 = vmatprep.mubr.f32.mxu0 0.0
    %7855 = vmatmul.mubr.f32.gmra.mrb[0].mxu0 %v5758
    %v7856 = vpop.f32.mrb[0].mxu0
    %v7857 = vadd.f32 %v7472, %v7856
    %v7858 = vpop.f32.mrb[0].mxu0
    %7859 = vmatprep.mubr.f32.mxu0 0.0
    %7860 = vmatmul.mubr.f32.gmra.mrb[0].mxu0 %v5767
    %v7861 = vpop.f32.mrb[0].mxu0
    %v7862 = vadd.f32 %v7477, %v7861
    %v7863 = vpop.f32.mrb[0].mxu0
    %7864 = vmatprep.mubr.f32.mxu0 0.0
    %7865 = vmatmul.mubr.f32.gmra.mrb[0].mxu0 %v5776
    %v7866 = vpop.f32.mrb[0].mxu0
    %v7867 = vadd.f32 %v7482, %v7866
    %v7868 = vpop.f32.mrb[0].mxu0
    %7869 = vmatprep.mubr.f32.mxu0 0.0
    %7870 = vmatmul.mubr.f32.gmra.mrb[0].mxu0 %v5785
    %v7871 = vpop.f32.mrb[0].mxu0
    %v7872 = vadd.f32 %v7487, %v7871
    %v7873 = vpop.f32.mrb[0].mxu0
    %7874 = vmatprep.mubr.f32.mxu0 0.0
    %7875 = vmatmul.mubr.f32.gmra.mrb[0].mxu0 %v5794
    %v7876 = vpop.f32.mrb[0].mxu0
    %v7877 = vadd.f32 %v7492, %v7876
    %v7878 = vpop.f32.mrb[0].mxu0
    %7879 = vmatprep.mubr.f32.mxu0 0.0
    %7880 = vmatmul.mubr.f32.gmra.mrb[0].mxu0 %v5803
    %v7881 = vpop.f32.mrb[0].mxu0
    %v7882 = vadd.f32 %v7497, %v7881
    %v7883 = vpop.f32.mrb[0].mxu0
    %7884 = vmatprep.mubr.f32.mxu0 0.0
    %7885 = vmatmul.mubr.f32.gmra.mrb[0].mxu0 %v5812
    %v7886 = vpop.f32.mrb[0].mxu0
    %v7887 = vadd.f32 %v7502, %v7886
    %v7888 = vpop.f32.mrb[0].mxu0
    %7889 = vmatprep.mubr.f32.mxu0 0.0
    %7890 = vmatmul.mubr.f32.gmra.mrb[0].mxu0 %v5821
    %v7891 = vpop.f32.mrb[0].mxu0
    %v7892 = vadd.f32 %v7507, %v7891
    %v7893 = vpop.f32.mrb[0].mxu0
    %7894 = vmatprep.mubr.f32.mxu0 0.0
    %7895 = vmatmul.mubr.f32.gmra.mrb[0].mxu0 %v5830
    %v7896 = vpop.f32.mrb[0].mxu0
    %v7897 = vadd.f32 %v7512, %v7896
    %v7898 = vpop.f32.mrb[0].mxu0
    %7899 = vdwg.mxu0
    %v7900 = vld [vmem:[%s5] sm:$0x1]
    %v7901 = vld [vmem:[%s6] sm:$0x1]
    %v7902 = vadd.f32 %v7582, %v7587
    %v7903 = vadd.f32 %v7902, %v7592
    %v7904 = vadd.f32 %v7903, %v7597
    %v7905 = vadd.f32 %v7904, %v7602
    %v7906 = vadd.f32 %v7905, %v7607
    %v7907 = vadd.f32 %v7906, %v7612
    %v7908 = vadd.f32 %v7907, %v7617
    %v7909 = vadd.f32 %v7908, %v7622
    %v7910 = vadd.f32 %v7909, %v7627
    %v7911 = vadd.f32 %v7910, %v7632
    %v7912 = vadd.f32 %v7911, %v7637
    %v7913 = vadd.f32 %v7912, %v7642
    %v7914 = vadd.f32 %v7913, %v7647
    %v7915 = vadd.f32 %v7914, %v7652
    %v7916 = vadd.f32 %v7915, %v7657
    %v7917 = vadd.f32 %v7916, %v7662
    %v7918 = vadd.f32 %v7917, %v7667
    %v7919 = vadd.f32 %v7918, %v7672
    %v7920 = vadd.f32 %v7919, %v7677
    %v7921 = vadd.f32 %v7920, %v7682
    %v7922 = vadd.f32 %v7921, %v7687
    %v7923 = vadd.f32 %v7922, %v7692
    %v7924 = vadd.f32 %v7923, %v7697
    %v7925 = vadd.f32 %v7924, %v7702
    %v7926 = vadd.f32 %v7925, %v7707
    %v7927 = vadd.f32 %v7926, %v7712
    %v7928 = vadd.f32 %v7927, %v7717
    %v7929 = vadd.f32 %v7928, %v7722
    %v7930 = vadd.f32 %v7929, %v7727
    %v7931 = vadd.f32 %v7930, %v7732
    %v7932 = vadd.f32 %v7931, %v7737
    %v7933 = vadd.f32 %v7932, %v7742
    %v7934 = vadd.f32 %v7933, %v7747
    %v7935 = vadd.f32 %v7934, %v7752
    %v7936 = vadd.f32 %v7935, %v7757
    %v7937 = vadd.f32 %v7936, %v7762
    %v7938 = vadd.f32 %v7937, %v7767
    %v7939 = vadd.f32 %v7938, %v7772
    %v7940 = vadd.f32 %v7939, %v7777
    %v7941 = vadd.f32 %v7940, %v7782
    %v7942 = vadd.f32 %v7941, %v7787
    %v7943 = vadd.f32 %v7942, %v7792
    %v7944 = vadd.f32 %v7943, %v7797
    %v7945 = vadd.f32 %v7944, %v7802
    %v7946 = vadd.f32 %v7945, %v7807
    %v7947 = vadd.f32 %v7946, %v7812
    %v7948 = vadd.f32 %v7947, %v7817
    %v7949 = vadd.f32 %v7948, %v7822
    %v7950 = vadd.f32 %v7949, %v7827
    %v7951 = vadd.f32 %v7950, %v7832
    %v7952 = vadd.f32 %v7951, %v7837
    %v7953 = vadd.f32 %v7952, %v7842
    %v7954 = vadd.f32 %v7953, %v7847
    %v7955 = vadd.f32 %v7954, %v7852
    %v7956 = vadd.f32 %v7955, %v7857
    %v7957 = vadd.f32 %v7956, %v7862
    %v7958 = vadd.f32 %v7957, %v7867
    %v7959 = vadd.f32 %v7958, %v7872
    %v7960 = vadd.f32 %v7959, %v7877
    %v7961 = vadd.f32 %v7960, %v7882
    %v7962 = vadd.f32 %v7961, %v7887
    %v7963 = vadd.f32 %v7962, %v7892
    %v7964 = vadd.f32 %v7963, %v7897
    %v7965 = vrot.slane %v7964, 4
    %v7966 = vadd.f32 %v7964, %v7965
    %v7967 = vrot.slane %v7966, 2
    %v7968 = vadd.f32 %v7966, %v7967
    %v7969 = vrot.slane %v7968, 1
    %v7970 = vadd.f32 %v7968, %v7969
    %v7971 = vmul.f32 %v7970, 0.001953125
    %v7972 = vsub.f32 %v7582, %v7971
    %v7973 = vsub.f32 %v7587, %v7971
    %v7974 = vsub.f32 %v7592, %v7971
    %v7975 = vsub.f32 %v7597, %v7971
    %v7976 = vsub.f32 %v7602, %v7971
    %v7977 = vsub.f32 %v7607, %v7971
    %v7978 = vsub.f32 %v7612, %v7971
    %v7979 = vsub.f32 %v7617, %v7971
    %v7980 = vsub.f32 %v7622, %v7971
    %v7981 = vsub.f32 %v7627, %v7971
    %v7982 = vsub.f32 %v7632, %v7971
    %v7983 = vsub.f32 %v7637, %v7971
    %v7984 = vsub.f32 %v7642, %v7971
    %v7985 = vsub.f32 %v7647, %v7971
    %v7986 = vsub.f32 %v7652, %v7971
    %v7987 = vsub.f32 %v7657, %v7971
    %v7988 = vsub.f32 %v7662, %v7971
    %v7989 = vsub.f32 %v7667, %v7971
    %v7990 = vsub.f32 %v7672, %v7971
    %v7991 = vsub.f32 %v7677, %v7971
    %v7992 = vsub.f32 %v7682, %v7971
    %v7993 = vsub.f32 %v7687, %v7971
    %v7994 = vsub.f32 %v7692, %v7971
    %v7995 = vsub.f32 %v7697, %v7971
    %v7996 = vsub.f32 %v7702, %v7971
    %v7997 = vsub.f32 %v7707, %v7971
    %v7998 = vsub.f32 %v7712, %v7971
    %v7999 = vsub.f32 %v7717, %v7971
    %v8000 = vsub.f32 %v7722, %v7971
    %v8001 = vsub.f32 %v7727, %v7971
    %v8002 = vsub.f32 %v7732, %v7971
    %v8003 = vsub.f32 %v7737, %v7971
    %v8004 = vsub.f32 %v7742, %v7971
    %v8005 = vsub.f32 %v7747, %v7971
    %v8006 = vsub.f32 %v7752, %v7971
    %v8007 = vsub.f32 %v7757, %v7971
    %v8008 = vsub.f32 %v7762, %v7971
    %v8009 = vsub.f32 %v7767, %v7971
    %v8010 = vsub.f32 %v7772, %v7971
    %v8011 = vsub.f32 %v7777, %v7971
    %v8012 = vsub.f32 %v7782, %v7971
    %v8013 = vsub.f32 %v7787, %v7971
    %v8014 = vsub.f32 %v7792, %v7971
    %v8015 = vsub.f32 %v7797, %v7971
    %v8016 = vsub.f32 %v7802, %v7971
    %v8017 = vsub.f32 %v7807, %v7971
    %v8018 = vsub.f32 %v7812, %v7971
    %v8019 = vsub.f32 %v7817, %v7971
    %v8020 = vsub.f32 %v7822, %v7971
    %v8021 = vsub.f32 %v7827, %v7971
    %v8022 = vsub.f32 %v7832, %v7971
    %v8023 = vsub.f32 %v7837, %v7971
    %v8024 = vsub.f32 %v7842, %v7971
    %v8025 = vsub.f32 %v7847, %v7971
    %v8026 = vsub.f32 %v7852, %v7971
    %v8027 = vsub.f32 %v7857, %v7971
    %v8028 = vsub.f32 %v7862, %v7971
    %v8029 = vsub.f32 %v7867, %v7971
    %v8030 = vsub.f32 %v7872, %v7971
    %v8031 = vsub.f32 %v7877, %v7971
    %v8032 = vsub.f32 %v7882, %v7971
    %v8033 = vsub.f32 %v7887, %v7971
    %v8034 = vsub.f32 %v7892, %v7971
    %v8035 = vsub.f32 %v7897, %v7971
    %v8036 = vmul.f32 %v7972, %v7972
    %v8037 = vmul.f32 %v7973, %v7973
    %v8038 = vmul.f32 %v7974, %v7974
    %v8039 = vmul.f32 %v7975, %v7975
    %v8040 = vmul.f32 %v7976, %v7976
    %v8041 = vmul.f32 %v7977, %v7977
    %v8042 = vmul.f32 %v7978, %v7978
    %v8043 = vmul.f32 %v7979, %v7979
    %v8044 = vmul.f32 %v7980, %v7980
    %v8045 = vmul.f32 %v7981, %v7981
    %v8046 = vmul.f32 %v7982, %v7982
    %v8047 = vmul.f32 %v7983, %v7983
    %v8048 = vmul.f32 %v7984, %v7984
    %v8049 = vmul.f32 %v7985, %v7985
    %v8050 = vmul.f32 %v7986, %v7986
    %v8051 = vmul.f32 %v7987, %v7987
    %v8052 = vmul.f32 %v7988, %v7988
    %v8053 = vmul.f32 %v7989, %v7989
    %v8054 = vmul.f32 %v7990, %v7990
    %v8055 = vmul.f32 %v7991, %v7991
    %v8056 = vmul.f32 %v7992, %v7992
    %v8057 = vmul.f32 %v7993, %v7993
    %v8058 = vmul.f32 %v7994, %v7994
    %v8059 = vmul.f32 %v7995, %v7995
    %v8060 = vmul.f32 %v7996, %v7996
    %v8061 = vmul.f32 %v7997, %v7997
    %v8062 = vmul.f32 %v7998, %v7998
    %v8063 = vmul.f32 %v7999, %v7999
    %v8064 = vmul.f32 %v8000, %v8000
    %v8065 = vmul.f32 %v8001, %v8001
    %v8066 = vmul.f32 %v8002, %v8002
    %v8067 = vmul.f32 %v8003, %v8003
    %v8068 = vmul.f32 %v8004, %v8004
    %v8069 = vmul.f32 %v8005, %v8005
    %v8070 = vmul.f32 %v8006, %v8006
    %v8071 = vmul.f32 %v8007, %v8007
    %v8072 = vmul.f32 %v8008, %v8008
    %v8073 = vmul.f32 %v8009, %v8009
    %v8074 = vmul.f32 %v8010, %v8010
    %v8075 = vmul.f32 %v8011, %v8011
    %v8076 = vmul.f32 %v8012, %v8012
    %v8077 = vmul.f32 %v8013, %v8013
    %v8078 = vmul.f32 %v8014, %v8014
    %v8079 = vmul.f32 %v8015, %v8015
    %v8080 = vmul.f32 %v8016, %v8016
    %v8081 = vmul.f32 %v8017, %v8017
    %v8082 = vmul.f32 %v8018, %v8018
    %v8083 = vmul.f32 %v8019, %v8019
    %v8084 = vmul.f32 %v8020, %v8020
    %v8085 = vmul.f32 %v8021, %v8021
    %v8086 = vmul.f32 %v8022, %v8022
    %v8087 = vmul.f32 %v8023, %v8023
    %v8088 = vmul.f32 %v8024, %v8024
    %v8089 = vmul.f32 %v8025, %v8025
    %v8090 = vmul.f32 %v8026, %v8026
    %v8091 = vmul.f32 %v8027, %v8027
    %v8092 = vmul.f32 %v8028, %v8028
    %v8093 = vmul.f32 %v8029, %v8029
    %v8094 = vmul.f32 %v8030, %v8030
    %v8095 = vmul.f32 %v8031, %v8031
    %v8096 = vmul.f32 %v8032, %v8032
    %v8097 = vmul.f32 %v8033, %v8033
    %v8098 = vmul.f32 %v8034, %v8034
    %v8099 = vmul.f32 %v8035, %v8035
    %v8100 = vadd.f32 %v8036, %v8037
    %v8101 = vadd.f32 %v8100, %v8038
    %v8102 = vadd.f32 %v8101, %v8039
    %v8103 = vadd.f32 %v8102, %v8040
    %v8104 = vadd.f32 %v8103, %v8041
    %v8105 = vadd.f32 %v8104, %v8042
    %v8106 = vadd.f32 %v8105, %v8043
    %v8107 = vadd.f32 %v8106, %v8044
    %v8108 = vadd.f32 %v8107, %v8045
    %v8109 = vadd.f32 %v8108, %v8046
    %v8110 = vadd.f32 %v8109, %v8047
    %v8111 = vadd.f32 %v8110, %v8048
    %v8112 = vadd.f32 %v8111, %v8049
    %v8113 = vadd.f32 %v8112, %v8050
    %v8114 = vadd.f32 %v8113, %v8051
    %v8115 = vadd.f32 %v8114, %v8052
    %v8116 = vadd.f32 %v8115, %v8053
    %v8117 = vadd.f32 %v8116, %v8054
    %v8118 = vadd.f32 %v8117, %v8055
    %v8119 = vadd.f32 %v8118, %v8056
    %v8120 = vadd.f32 %v8119, %v8057
    %v8121 = vadd.f32 %v8120, %v8058
    %v8122 = vadd.f32 %v8121, %v8059
    %v8123 = vadd.f32 %v8122, %v8060
    %v8124 = vadd.f32 %v8123, %v8061
    %v8125 = vadd.f32 %v8124, %v8062
    %v8126 = vadd.f32 %v8125, %v8063
    %v8127 = vadd.f32 %v8126, %v8064
    %v8128 = vadd.f32 %v8127, %v8065
    %v8129 = vadd.f32 %v8128, %v8066
    %v8130 = vadd.f32 %v8129, %v8067
    %v8131 = vadd.f32 %v8130, %v8068
    %v8132 = vadd.f32 %v8131, %v8069
    %v8133 = vadd.f32 %v8132, %v8070
    %v8134 = vadd.f32 %v8133, %v8071
    %v8135 = vadd.f32 %v8134, %v8072
    %v8136 = vadd.f32 %v8135, %v8073
    %v8137 = vadd.f32 %v8136, %v8074
    %v8138 = vadd.f32 %v8137, %v8075
    %v8139 = vadd.f32 %v8138, %v8076
    %v8140 = vadd.f32 %v8139, %v8077
    %v8141 = vadd.f32 %v8140, %v8078
    %v8142 = vadd.f32 %v8141, %v8079
    %v8143 = vadd.f32 %v8142, %v8080
    %v8144 = vadd.f32 %v8143, %v8081
    %v8145 = vadd.f32 %v8144, %v8082
    %v8146 = vadd.f32 %v8145, %v8083
    %v8147 = vadd.f32 %v8146, %v8084
    %v8148 = vadd.f32 %v8147, %v8085
    %v8149 = vadd.f32 %v8148, %v8086
    %v8150 = vadd.f32 %v8149, %v8087
    %v8151 = vadd.f32 %v8150, %v8088
    %v8152 = vadd.f32 %v8151, %v8089
    %v8153 = vadd.f32 %v8152, %v8090
    %v8154 = vadd.f32 %v8153, %v8091
    %v8155 = vadd.f32 %v8154, %v8092
    %v8156 = vadd.f32 %v8155, %v8093
    %v8157 = vadd.f32 %v8156, %v8094
    %v8158 = vadd.f32 %v8157, %v8095
    %v8159 = vadd.f32 %v8158, %v8096
    %v8160 = vadd.f32 %v8159, %v8097
    %v8161 = vadd.f32 %v8160, %v8098
    %v8162 = vadd.f32 %v8161, %v8099
    %v8163 = vrot.slane %v8162, 4
    %v8164 = vadd.f32 %v8162, %v8163
    %v8165 = vrot.slane %v8164, 2
    %v8166 = vadd.f32 %v8164, %v8165
    %v8167 = vrot.slane %v8166, 1
    %v8168 = vadd.f32 %v8166, %v8167
    %v8169 = vmul.f32 %v8168, 0.001953125
    %v8170 = vadd.f32 %v8169, 1e-05
    %v8171 = vrsqrt.pop %v8170
    %v8172 = vmul.f32 %v7900, %v8171
    %v8174 = vlaneseq
    %v8175 = vshrl.u32 %v8174, 7
    %v8176 = vsub.s32 0, %v8175
    %v8177 = vrot.slane %v8172, %v8176
    %v8179 = vmul.f32 %v7972, %v8177
    %v8180 = vmul.f32 %v7973, %v8177
    %v8181 = vmul.f32 %v7974, %v8177
    %v8182 = vmul.f32 %v7975, %v8177
    %v8183 = vmul.f32 %v7976, %v8177
    %v8184 = vmul.f32 %v7977, %v8177
    %v8185 = vmul.f32 %v7978, %v8177
    %v8186 = vmul.f32 %v7979, %v8177
    %v8187 = vmul.f32 %v7980, %v8177
    %v8188 = vmul.f32 %v7981, %v8177
    %v8189 = vmul.f32 %v7982, %v8177
    %v8190 = vmul.f32 %v7983, %v8177
    %v8191 = vmul.f32 %v7984, %v8177
    %v8192 = vmul.f32 %v7985, %v8177
    %v8193 = vmul.f32 %v7986, %v8177
    %v8194 = vmul.f32 %v7987, %v8177
    %v8195 = vmul.f32 %v7988, %v8177
    %v8196 = vmul.f32 %v7989, %v8177
    %v8197 = vmul.f32 %v7990, %v8177
    %v8198 = vmul.f32 %v7991, %v8177
    %v8199 = vmul.f32 %v7992, %v8177
    %v8200 = vmul.f32 %v7993, %v8177
    %v8201 = vmul.f32 %v7994, %v8177
    %v8202 = vmul.f32 %v7995, %v8177
    %v8203 = vmul.f32 %v7996, %v8177
    %v8204 = vmul.f32 %v7997, %v8177
    %v8205 = vmul.f32 %v7998, %v8177
    %v8206 = vmul.f32 %v7999, %v8177
    %v8207 = vmul.f32 %v8000, %v8177
    %v8208 = vmul.f32 %v8001, %v8177
    %v8209 = vmul.f32 %v8002, %v8177
    %v8210 = vmul.f32 %v8003, %v8177
    %v8211 = vmul.f32 %v8004, %v8177
    %v8212 = vmul.f32 %v8005, %v8177
    %v8213 = vmul.f32 %v8006, %v8177
    %v8214 = vmul.f32 %v8007, %v8177
    %v8215 = vmul.f32 %v8008, %v8177
    %v8216 = vmul.f32 %v8009, %v8177
    %v8217 = vmul.f32 %v8010, %v8177
    %v8218 = vmul.f32 %v8011, %v8177
    %v8219 = vmul.f32 %v8012, %v8177
    %v8220 = vmul.f32 %v8013, %v8177
    %v8221 = vmul.f32 %v8014, %v8177
    %v8222 = vmul.f32 %v8015, %v8177
    %v8223 = vmul.f32 %v8016, %v8177
    %v8224 = vmul.f32 %v8017, %v8177
    %v8225 = vmul.f32 %v8018, %v8177
    %v8226 = vmul.f32 %v8019, %v8177
    %v8227 = vmul.f32 %v8020, %v8177
    %v8228 = vmul.f32 %v8021, %v8177
    %v8229 = vmul.f32 %v8022, %v8177
    %v8230 = vmul.f32 %v8023, %v8177
    %v8231 = vmul.f32 %v8024, %v8177
    %v8232 = vmul.f32 %v8025, %v8177
    %v8233 = vmul.f32 %v8026, %v8177
    %v8234 = vmul.f32 %v8027, %v8177
    %v8235 = vmul.f32 %v8028, %v8177
    %v8236 = vmul.f32 %v8029, %v8177
    %v8237 = vmul.f32 %v8030, %v8177
    %v8238 = vmul.f32 %v8031, %v8177
    %v8239 = vmul.f32 %v8032, %v8177
    %v8240 = vmul.f32 %v8033, %v8177
    %v8241 = vmul.f32 %v8034, %v8177
    %v8242 = vmul.f32 %v8035, %v8177
    %v8244 = vlaneseq
    %v8245 = vshrl.u32 %v8244, 7
    %v8246 = vsub.s32 0, %v8245
    %v8247 = vrot.slane %v7901, %v8246
    %v8249 = vadd.f32 %v8179, %v8247
    %v8250 = vadd.f32 %v8180, %v8247
    %v8251 = vadd.f32 %v8181, %v8247
    %v8252 = vadd.f32 %v8182, %v8247
    %v8253 = vadd.f32 %v8183, %v8247
    %v8254 = vadd.f32 %v8184, %v8247
    %v8255 = vadd.f32 %v8185, %v8247
    %v8256 = vadd.f32 %v8186, %v8247
    %v8257 = vadd.f32 %v8187, %v8247
    %v8258 = vadd.f32 %v8188, %v8247
    %v8259 = vadd.f32 %v8189, %v8247
    %v8260 = vadd.f32 %v8190, %v8247
    %v8261 = vadd.f32 %v8191, %v8247
    %v8262 = vadd.f32 %v8192, %v8247
    %v8263 = vadd.f32 %v8193, %v8247
    %v8264 = vadd.f32 %v8194, %v8247
    %v8265 = vadd.f32 %v8195, %v8247
    %v8266 = vadd.f32 %v8196, %v8247
    %v8267 = vadd.f32 %v8197, %v8247
    %v8268 = vadd.f32 %v8198, %v8247
    %v8269 = vadd.f32 %v8199, %v8247
    %v8270 = vadd.f32 %v8200, %v8247
    %v8271 = vadd.f32 %v8201, %v8247
    %v8272 = vadd.f32 %v8202, %v8247
    %v8273 = vadd.f32 %v8203, %v8247
    %v8274 = vadd.f32 %v8204, %v8247
    %v8275 = vadd.f32 %v8205, %v8247
    %v8276 = vadd.f32 %v8206, %v8247
    %v8277 = vadd.f32 %v8207, %v8247
    %v8278 = vadd.f32 %v8208, %v8247
    %v8279 = vadd.f32 %v8209, %v8247
    %v8280 = vadd.f32 %v8210, %v8247
    %v8281 = vadd.f32 %v8211, %v8247
    %v8282 = vadd.f32 %v8212, %v8247
    %v8283 = vadd.f32 %v8213, %v8247
    %v8284 = vadd.f32 %v8214, %v8247
    %v8285 = vadd.f32 %v8215, %v8247
    %v8286 = vadd.f32 %v8216, %v8247
    %v8287 = vadd.f32 %v8217, %v8247
    %v8288 = vadd.f32 %v8218, %v8247
    %v8289 = vadd.f32 %v8219, %v8247
    %v8290 = vadd.f32 %v8220, %v8247
    %v8291 = vadd.f32 %v8221, %v8247
    %v8292 = vadd.f32 %v8222, %v8247
    %v8293 = vadd.f32 %v8223, %v8247
    %v8294 = vadd.f32 %v8224, %v8247
    %v8295 = vadd.f32 %v8225, %v8247
    %v8296 = vadd.f32 %v8226, %v8247
    %v8297 = vadd.f32 %v8227, %v8247
    %v8298 = vadd.f32 %v8228, %v8247
    %v8299 = vadd.f32 %v8229, %v8247
    %v8300 = vadd.f32 %v8230, %v8247
    %v8301 = vadd.f32 %v8231, %v8247
    %v8302 = vadd.f32 %v8232, %v8247
    %v8303 = vadd.f32 %v8233, %v8247
    %v8304 = vadd.f32 %v8234, %v8247
    %v8305 = vadd.f32 %v8235, %v8247
    %v8306 = vadd.f32 %v8236, %v8247
    %v8307 = vadd.f32 %v8237, %v8247
    %v8308 = vadd.f32 %v8238, %v8247
    %v8309 = vadd.f32 %v8239, %v8247
    %v8310 = vadd.f32 %v8240, %v8247
    %v8311 = vadd.f32 %v8241, %v8247
    %v8312 = vadd.f32 %v8242, %v8247
    %v8313 = vld [vmem:[#allocation4] sm:$0xff]
    %v8314 = vld [vmem:[#allocation4 + $0x8] sm:$0xff]
    %v8315 = vld [vmem:[#allocation4 + $0x10] sm:$0xff]
    %v8316 = vld [vmem:[#allocation4 + $0x18] sm:$0xff]
    %v8317 = vld [vmem:[#allocation4 + $0x20] sm:$0xff]
    %v8318 = vld [vmem:[#allocation4 + $0x28] sm:$0xff]
    %v8319 = vld [vmem:[#allocation4 + $0x30] sm:$0xff]
    %v8320 = vld [vmem:[#allocation4 + $0x38] sm:$0xff]
    %v8321 = vld [vmem:[#allocation4 + $0x40] sm:$0xff]
    %v8322 = vld [vmem:[#allocation4 + $0x48] sm:$0xff]
    %v8323 = vld [vmem:[#allocation4 + $0x50] sm:$0xff]
    %v8324 = vld [vmem:[#allocation4 + $0x58] sm:$0xff]
    %v8325 = vld [vmem:[#allocation4 + $0x60] sm:$0xff]
    %v8326 = vld [vmem:[#allocation4 + $0x68] sm:$0xff]
    %v8327 = vld [vmem:[#allocation4 + $0x70] sm:$0xff]
    %v8328 = vld [vmem:[#allocation4 + $0x78] sm:$0xff]
    %v8329 = vld [vmem:[#allocation4 + $0x80] sm:$0xff]
    %v8330 = vld [vmem:[#allocation4 + $0x88] sm:$0xff]
    %v8331 = vld [vmem:[#allocation4 + $0x90] sm:$0xff]
    %v8332 = vld [vmem:[#allocation4 + $0x98] sm:$0xff]
    %v8333 = vld [vmem:[#allocation4 + $0xa0] sm:$0xff]
    %v8334 = vld [vmem:[#allocation4 + $0xa8] sm:$0xff]
    %v8335 = vld [vmem:[#allocation4 + $0xb0] sm:$0xff]
    %v8336 = vld [vmem:[#allocation4 + $0xb8] sm:$0xff]
    %v8337 = vld [vmem:[#allocation4 + $0xc0] sm:$0xff]
    %v8338 = vld [vmem:[#allocation4 + $0xc8] sm:$0xff]
    %v8339 = vld [vmem:[#allocation4 + $0xd0] sm:$0xff]
    %v8340 = vld [vmem:[#allocation4 + $0xd8] sm:$0xff]
    %v8341 = vld [vmem:[#allocation4 + $0xe0] sm:$0xff]
    %v8342 = vld [vmem:[#allocation4 + $0xe8] sm:$0xff]
    %v8343 = vld [vmem:[#allocation4 + $0xf0] sm:$0xff]
    %v8344 = vld [vmem:[#allocation4 + $0xf8] sm:$0xff]
    %v8345 = vld [vmem:[#allocation4 + $0x100] sm:$0xff]
    %v8346 = vld [vmem:[#allocation4 + $0x108] sm:$0xff]
    %v8347 = vld [vmem:[#allocation4 + $0x110] sm:$0xff]
    %v8348 = vld [vmem:[#allocation4 + $0x118] sm:$0xff]
    %v8349 = vld [vmem:[#allocation4 + $0x120] sm:$0xff]
    %v8350 = vld [vmem:[#allocation4 + $0x128] sm:$0xff]
    %v8351 = vld [vmem:[#allocation4 + $0x130] sm:$0xff]
    %v8352 = vld [vmem:[#allocation4 + $0x138] sm:$0xff]
    %v8353 = vld [vmem:[#allocation4 + $0x140] sm:$0xff]
    %v8354 = vld [vmem:[#allocation4 + $0x148] sm:$0xff]
    %v8355 = vld [vmem:[#allocation4 + $0x150] sm:$0xff]
    %v8356 = vld [vmem:[#allocation4 + $0x158] sm:$0xff]
    %v8357 = vld [vmem:[#allocation4 + $0x160] sm:$0xff]
    %v8358 = vld [vmem:[#allocation4 + $0x168] sm:$0xff]
    %v8359 = vld [vmem:[#allocation4 + $0x170] sm:$0xff]
    %v8360 = vld [vmem:[#allocation4 + $0x178] sm:$0xff]
    %v8361 = vld [vmem:[#allocation4 + $0x180] sm:$0xff]
    %v8362 = vld [vmem:[#allocation4 + $0x188] sm:$0xff]
    %v8363 = vld [vmem:[#allocation4 + $0x190] sm:$0xff]
    %v8364 = vld [vmem:[#allocation4 + $0x198] sm:$0xff]
    %v8365 = vld [vmem:[#allocation4 + $0x1a0] sm:$0xff]
    %v8366 = vld [vmem:[#allocation4 + $0x1a8] sm:$0xff]
    %v8367 = vld [vmem:[#allocation4 + $0x1b0] sm:$0xff]
    %v8368 = vld [vmem:[#allocation4 + $0x1b8] sm:$0xff]
    %v8369 = vld [vmem:[#allocation4 + $0x1c0] sm:$0xff]
    %v8370 = vld [vmem:[#allocation4 + $0x1c8] sm:$0xff]
    %v8371 = vld [vmem:[#allocation4 + $0x1d0] sm:$0xff]
    %v8372 = vld [vmem:[#allocation4 + $0x1d8] sm:$0xff]
    %v8373 = vld [vmem:[#allocation4 + $0x1e0] sm:$0xff]
    %v8374 = vld [vmem:[#allocation4 + $0x1e8] sm:$0xff]
    %v8375 = vld [vmem:[#allocation4 + $0x1f0] sm:$0xff]
    %v8376 = vld [vmem:[#allocation4 + $0x1f8] sm:$0xff]
    %v8377 = vadd.f32 %v8249, %v8313
    %v8378 = vadd.f32 %v8250, %v8314
    %v8379 = vadd.f32 %v8251, %v8315
    %v8380 = vadd.f32 %v8252, %v8316
    %v8381 = vadd.f32 %v8253, %v8317
    %v8382 = vadd.f32 %v8254, %v8318
    %v8383 = vadd.f32 %v8255, %v8319
    %v8384 = vadd.f32 %v8256, %v8320
    %v8385 = vadd.f32 %v8257, %v8321
    %v8386 = vadd.f32 %v8258, %v8322
    %v8387 = vadd.f32 %v8259, %v8323
    %v8388 = vadd.f32 %v8260, %v8324
    %v8389 = vadd.f32 %v8261, %v8325
    %v8390 = vadd.f32 %v8262, %v8326
    %v8391 = vadd.f32 %v8263, %v8327
    %v8392 = vadd.f32 %v8264, %v8328
    %v8393 = vadd.f32 %v8265, %v8329
    %v8394 = vadd.f32 %v8266, %v8330
    %v8395 = vadd.f32 %v8267, %v8331
    %v8396 = vadd.f32 %v8268, %v8332
    %v8397 = vadd.f32 %v8269, %v8333
    %v8398 = vadd.f32 %v8270, %v8334
    %v8399 = vadd.f32 %v8271, %v8335
    %v8400 = vadd.f32 %v8272, %v8336
    %v8401 = vadd.f32 %v8273, %v8337
    %v8402 = vadd.f32 %v8274, %v8338
    %v8403 = vadd.f32 %v8275, %v8339
    %v8404 = vadd.f32 %v8276, %v8340
    %v8405 = vadd.f32 %v8277, %v8341
    %v8406 = vadd.f32 %v8278, %v8342
    %v8407 = vadd.f32 %v8279, %v8343
    %v8408 = vadd.f32 %v8280, %v8344
    %v8409 = vadd.f32 %v8281, %v8345
    %v8410 = vadd.f32 %v8282, %v8346
    %v8411 = vadd.f32 %v8283, %v8347
    %v8412 = vadd.f32 %v8284, %v8348
    %v8413 = vadd.f32 %v8285, %v8349
    %v8414 = vadd.f32 %v8286, %v8350
    %v8415 = vadd.f32 %v8287, %v8351
    %v8416 = vadd.f32 %v8288, %v8352
    %v8417 = vadd.f32 %v8289, %v8353
    %v8418 = vadd.f32 %v8290, %v8354
    %v8419 = vadd.f32 %v8291, %v8355
    %v8420 = vadd.f32 %v8292, %v8356
    %v8421 = vadd.f32 %v8293, %v8357
    %v8422 = vadd.f32 %v8294, %v8358
    %v8423 = vadd.f32 %v8295, %v8359
    %v8424 = vadd.f32 %v8296, %v8360
    %v8425 = vadd.f32 %v8297, %v8361
    %v8426 = vadd.f32 %v8298, %v8362
    %v8427 = vadd.f32 %v8299, %v8363
    %v8428 = vadd.f32 %v8300, %v8364
    %v8429 = vadd.f32 %v8301, %v8365
    %v8430 = vadd.f32 %v8302, %v8366
    %v8431 = vadd.f32 %v8303, %v8367
    %v8432 = vadd.f32 %v8304, %v8368
    %v8433 = vadd.f32 %v8305, %v8369
    %v8434 = vadd.f32 %v8306, %v8370
    %v8435 = vadd.f32 %v8307, %v8371
    %v8436 = vadd.f32 %v8308, %v8372
    %v8437 = vadd.f32 %v8309, %v8373
    %v8438 = vadd.f32 %v8310, %v8374
    %v8439 = vadd.f32 %v8311, %v8375
    %v8440 = vadd.f32 %v8312, %v8376
    %v8441 = vmax.f32 %v8377, 0.0
    %v8442 = vmax.f32 %v8378, 0.0
    %v8443 = vmax.f32 %v8379, 0.0
    %v8444 = vmax.f32 %v8380, 0.0
    %v8445 = vmax.f32 %v8381, 0.0
    %v8446 = vmax.f32 %v8382, 0.0
    %v8447 = vmax.f32 %v8383, 0.0
    %v8448 = vmax.f32 %v8384, 0.0
    %v8449 = vmax.f32 %v8385, 0.0
    %v8450 = vmax.f32 %v8386, 0.0
    %v8451 = vmax.f32 %v8387, 0.0
    %v8452 = vmax.f32 %v8388, 0.0
    %v8453 = vmax.f32 %v8389, 0.0
    %v8454 = vmax.f32 %v8390, 0.0
    %v8455 = vmax.f32 %v8391, 0.0
    %v8456 = vmax.f32 %v8392, 0.0
    %v8457 = vmax.f32 %v8393, 0.0
    %v8458 = vmax.f32 %v8394, 0.0
    %v8459 = vmax.f32 %v8395, 0.0
    %v8460 = vmax.f32 %v8396, 0.0
    %v8461 = vmax.f32 %v8397, 0.0
    %v8462 = vmax.f32 %v8398, 0.0
    %v8463 = vmax.f32 %v8399, 0.0
    %v8464 = vmax.f32 %v8400, 0.0
    %v8465 = vmax.f32 %v8401, 0.0
    %v8466 = vmax.f32 %v8402, 0.0
    %v8467 = vmax.f32 %v8403, 0.0
    %v8468 = vmax.f32 %v8404, 0.0
    %v8469 = vmax.f32 %v8405, 0.0
    %v8470 = vmax.f32 %v8406, 0.0
    %v8471 = vmax.f32 %v8407, 0.0
    %v8472 = vmax.f32 %v8408, 0.0
    %v8473 = vmax.f32 %v8409, 0.0
    %v8474 = vmax.f32 %v8410, 0.0
    %v8475 = vmax.f32 %v8411, 0.0
    %v8476 = vmax.f32 %v8412, 0.0
    %v8477 = vmax.f32 %v8413, 0.0
    %v8478 = vmax.f32 %v8414, 0.0
    %v8479 = vmax.f32 %v8415, 0.0
    %v8480 = vmax.f32 %v8416, 0.0
    %v8481 = vmax.f32 %v8417, 0.0
    %v8482 = vmax.f32 %v8418, 0.0
    %v8483 = vmax.f32 %v8419, 0.0
    %v8484 = vmax.f32 %v8420, 0.0
    %v8485 = vmax.f32 %v8421, 0.0
    %v8486 = vmax.f32 %v8422, 0.0
    %v8487 = vmax.f32 %v8423, 0.0
    %v8488 = vmax.f32 %v8424, 0.0
    %v8489 = vmax.f32 %v8425, 0.0
    %v8490 = vmax.f32 %v8426, 0.0
    %v8491 = vmax.f32 %v8427, 0.0
    %v8492 = vmax.f32 %v8428, 0.0
    %v8493 = vmax.f32 %v8429, 0.0
    %v8494 = vmax.f32 %v8430, 0.0
    %v8495 = vmax.f32 %v8431, 0.0
    %v8496 = vmax.f32 %v8432, 0.0
    %v8497 = vmax.f32 %v8433, 0.0
    %v8498 = vmax.f32 %v8434, 0.0
    %v8499 = vmax.f32 %v8435, 0.0
    %v8500 = vmax.f32 %v8436, 0.0
    %v8501 = vmax.f32 %v8437, 0.0
    %v8502 = vmax.f32 %v8438, 0.0
    %v8503 = vmax.f32 %v8439, 0.0
    %v8504 = vmax.f32 %v8440, 0.0
    %8505 = vst [vmem:[#allocation10] sm:$0xff] %v8441
    %8506 = vst [vmem:[#allocation10 + $0x8] sm:$0xff] %v8442
    %8507 = vst [vmem:[#allocation10 + $0x10] sm:$0xff] %v8443
    %8508 = vst [vmem:[#allocation10 + $0x18] sm:$0xff] %v8444
    %8509 = vst [vmem:[#allocation10 + $0x20] sm:$0xff] %v8445
    %8510 = vst [vmem:[#allocation10 + $0x28] sm:$0xff] %v8446
    %8511 = vst [vmem:[#allocation10 + $0x30] sm:$0xff] %v8447
    %8512 = vst [vmem:[#allocation10 + $0x38] sm:$0xff] %v8448
    %8513 = vst [vmem:[#allocation10 + $0x40] sm:$0xff] %v8449
    %8514 = vst [vmem:[#allocation10 + $0x48] sm:$0xff] %v8450
    %8515 = vst [vmem:[#allocation10 + $0x50] sm:$0xff] %v8451
    %8516 = vst [vmem:[#allocation10 + $0x58] sm:$0xff] %v8452
    %8517 = vst [vmem:[#allocation10 + $0x60] sm:$0xff] %v8453
    %8518 = vst [vmem:[#allocation10 + $0x68] sm:$0xff] %v8454
    %8519 = vst [vmem:[#allocation10 + $0x70] sm:$0xff] %v8455
    %8520 = vst [vmem:[#allocation10 + $0x78] sm:$0xff] %v8456
    %8521 = vst [vmem:[#allocation10 + $0x80] sm:$0xff] %v8457
    %8522 = vst [vmem:[#allocation10 + $0x88] sm:$0xff] %v8458
    %8523 = vst [vmem:[#allocation10 + $0x90] sm:$0xff] %v8459
    %8524 = vst [vmem:[#allocation10 + $0x98] sm:$0xff] %v8460
    %8525 = vst [vmem:[#allocation10 + $0xa0] sm:$0xff] %v8461
    %8526 = vst [vmem:[#allocation10 + $0xa8] sm:$0xff] %v8462
    %8527 = vst [vmem:[#allocation10 + $0xb0] sm:$0xff] %v8463
    %8528 = vst [vmem:[#allocation10 + $0xb8] sm:$0xff] %v8464
    %8529 = vst [vmem:[#allocation10 + $0xc0] sm:$0xff] %v8465
    %8530 = vst [vmem:[#allocation10 + $0xc8] sm:$0xff] %v8466
    %8531 = vst [vmem:[#allocation10 + $0xd0] sm:$0xff] %v8467
    %8532 = vst [vmem:[#allocation10 + $0xd8] sm:$0xff] %v8468
    %8533 = vst [vmem:[#allocation10 + $0xe0] sm:$0xff] %v8469
    %8534 = vst [vmem:[#allocation10 + $0xe8] sm:$0xff] %v8470
    %8535 = vst [vmem:[#allocation10 + $0xf0] sm:$0xff] %v8471
    %8536 = vst [vmem:[#allocation10 + $0xf8] sm:$0xff] %v8472
    %8537 = vst [vmem:[#allocation10 + $0x100] sm:$0xff] %v8473
    %8538 = vst [vmem:[#allocation10 + $0x108] sm:$0xff] %v8474
    %8539 = vst [vmem:[#allocation10 + $0x110] sm:$0xff] %v8475
    %8540 = vst [vmem:[#allocation10 + $0x118] sm:$0xff] %v8476
    %8541 = vst [vmem:[#allocation10 + $0x120] sm:$0xff] %v8477
    %8542 = vst [vmem:[#allocation10 + $0x128] sm:$0xff] %v8478
    %8543 = vst [vmem:[#allocation10 + $0x130] sm:$0xff] %v8479
    %8544 = vst [vmem:[#allocation10 + $0x138] sm:$0xff] %v8480
    %8545 = vst [vmem:[#allocation10 + $0x140] sm:$0xff] %v8481
    %8546 = vst [vmem:[#allocation10 + $0x148] sm:$0xff] %v8482
    %8547 = vst [vmem:[#allocation10 + $0x150] sm:$0xff] %v8483
    %8548 = vst [vmem:[#allocation10 + $0x158] sm:$0xff] %v8484
    %8549 = vst [vmem:[#allocation10 + $0x160] sm:$0xff] %v8485
    %8550 = vst [vmem:[#allocation10 + $0x168] sm:$0xff] %v8486
    %8551 = vst [vmem:[#allocation10 + $0x170] sm:$0xff] %v8487
    %8552 = vst [vmem:[#allocation10 + $0x178] sm:$0xff] %v8488
    %8553 = vst [vmem:[#allocation10 + $0x180] sm:$0xff] %v8489
    %8554 = vst [vmem:[#allocation10 + $0x188] sm:$0xff] %v8490
    %8555 = vst [vmem:[#allocation10 + $0x190] sm:$0xff] %v8491
    %8556 = vst [vmem:[#allocation10 + $0x198] sm:$0xff] %v8492
    %8557 = vst [vmem:[#allocation10 + $0x1a0] sm:$0xff] %v8493
    %8558 = vst [vmem:[#allocation10 + $0x1a8] sm:$0xff] %v8494
    %8559 = vst [vmem:[#allocation10 + $0x1b0] sm:$0xff] %v8495
    %8560 = vst [vmem:[#allocation10 + $0x1b8] sm:$0xff] %v8496
    %8561 = vst [vmem:[#allocation10 + $0x1c0] sm:$0xff] %v8497
    %8562 = vst [vmem:[#allocation10 + $0x1c8] sm:$0xff] %v8498
    %8563 = vst [vmem:[#allocation10 + $0x1d0] sm:$0xff] %v8499
    %8564 = vst [vmem:[#allocation10 + $0x1d8] sm:$0xff] %v8500
    %8565 = vst [vmem:[#allocation10 + $0x1e0] sm:$0xff] %v8501
    %8566 = vst [vmem:[#allocation10 + $0x1e8] sm:$0xff] %v8502
    %8567 = vst [vmem:[#allocation10 + $0x1f0] sm:$0xff] %v8503
    %8568 = vst [vmem:[#allocation10 + $0x1f8] sm:$0xff] %v8504
    // Predicated region
    $region38: #{tpu_custom_call.1} parent=1 // pred_check
      _
    $region39: #{tpu_custom_call.1} parent=1 // pred_check_branch
      %8570 = sbr.rel (0) target = $region41
    $region40: #{tpu_custom_call.1} parent=1 // pred_region
      %s8572 = ssub.s32 8192, 8192
      %8573 = vsyncadd [#allocation7], %s8572
      %s8574 = sshll.u32 [#allocation10], 4
      %s8575 = int_to_ptr.vmem [resolvable:$true] %s8574
      %8580 = dma.vmem_to_hbm [thread:$0]  %s8575, 8192, %s7, [#allocation7], 128, 128, 8
    $region41: #{tpu_custom_call.1} parent=1 // pred_fallthru
      _
    // Predicated region
    $region42: #{tpu_custom_call.1} parent=1 // pred_check
      _
    $region43: #{tpu_custom_call.1} parent=1 // pred_check_branch
      %8582 = sbr.rel (0) target = $region45
    $region44: #{tpu_custom_call.1} parent=1 // pred_region
      %8583 = dma.done [#allocation7], 8192
    $region45: #{tpu_custom_call.1} parent=1 // pred_fallthru
      _
    %8584 = vsyncpa [#allocation6], 1
    %8585 = vsyncpa [#allocation9], 1
    %8586 = vsyncpa [#allocation7], 1

</llo_original>
